<compile_context>
chip_gen: v5e
topology: v5e:2x2
jax: 0.10.0
libtpu: 0.0.40
codegen_flags: <defaults>
</compile_context>

<pallas_src>
import jax
import jax.numpy as jnp
from jax.experimental import pallas as pl
from jax.experimental.pallas import tpu as pltpu


def _round_up(a, b):
    return (a + b - 1) // b * b


def intra_voxel_volterra(x_ncdhw, w1, w2, w3, *, row_tile=1024,
                         mxu_dtype=jnp.bfloat16):
    """x_ncdhw: (N, Cin, D, H, W); w*: (Cout, k, k, k, Cin) -> (N, Cout, D, H, W)."""
    n, cin, d, h, w = x_ncdhw.shape
    cout, k = int(w1.shape[0]), int(w1.shape[1])
    assert k % 2 == 1, "kernel_size must be odd for 'same' padding"
    assert int(w1.shape[4]) == cin
    pad = k // 2
    dp, hp, wp = d + 2 * pad, h + 2 * pad, w + 2 * pad
    # sublane packing granularity of the MXU input dtype (8 rows/f32, 16/bf16)
    sub = 8 * (4 // jnp.dtype(mxu_dtype).itemsize)

    # ---- log hoisted out of the patch path; zero-pad in the log domain ----
    x_ndhwc = jnp.transpose(x_ncdhw, (0, 2, 3, 4, 1)).astype(jnp.float32)
    logxp = jnp.pad(jnp.log(x_ndhwc),
                    ((0, 0), (pad, pad), (pad, pad), (pad, pad), (0, 0)))

    # ---- rows = (n, dp, hp), lanes = (wp, ci); pad lanes/cols to 128 ----
    lanes = wp * cin
    kl = _round_up(max(lanes, 128), 128)          # padded per-offset contraction dim
    cop = _round_up(max(w * cout, 128), 128)      # padded per-mask output cols
    kk2 = k * k

    rout = n * dp * hp                            # outputs for all padded rows
    halo = (k - 1) * hp + (k - 1)                 # max row shift (kd,kh)
    halo_pad = _round_up(halo, sub)
    tr = _round_up(max(min(row_tile, rout), halo + 1), sub)   # row tile
    grid = pl.cdiv(rout, tr)
    rout_pad = grid * tr
    rin_pad = rout_pad + halo_pad

    l_mat = logxp.reshape(rout, lanes)
    l_mat = jnp.pad(l_mat, ((0, rin_pad - rout), (0, kl - lanes))).astype(mxu_dtype)
    body = l_mat[:rout_pad]                                       # (rout_pad, kl)
    # per-tile halo rows (tile i needs rows [(i+1)*tr, (i+1)*tr + halo_pad))
    halo_idx = (jnp.arange(grid)[:, None] + 1) * tr + jnp.arange(halo_pad)[None, :]
    halo_mat = l_mat[halo_idx]                                    # (grid, halo_pad, kl)

    # ---- fused block-Toeplitz weights, flattened to a single long-K matrix ----
    #   K index = (kd*k+kh)*kl + (iw*Cin+ci);  col = m*cop + (ow*Cout+co)
    #   value   = w_m[co, kd, kh, iw-ow, ci]   if 0 <= iw-ow < k else 0
    wf = jnp.stack([w1, w2, w3], axis=0).astype(jnp.float32)    # (3,co,kd,kh,kw,ci)
    wf = jnp.transpose(wf, (2, 3, 4, 5, 0, 1))                  # (kd,kh,kw,ci,3,co)
    kw_idx = jnp.arange(wp)[:, None] - jnp.arange(w)[None, :]   # (wp, w): iw - ow
    valid = (kw_idx >= 0) & (kw_idx < k)
    wt = wf[:, :, jnp.clip(kw_idx, 0, k - 1)]                   # (kd,kh,wp,w,ci,3,co)
    wt = jnp.where(valid[None, None, :, :, None, None, None], wt, 0.0)
    wt = jnp.transpose(wt, (0, 1, 2, 4, 5, 3, 6))               # (kd,kh,wp,ci,3,w,co)
    wt = wt.reshape(kk2, wp * cin, 3, w * cout)
    wt = jnp.pad(wt, ((0, 0), (0, kl - lanes), (0, 0), (0, cop - w * cout)))
    wt = wt.reshape(kk2 * kl, 3 * cop).astype(mxu_dtype)

    offs = [kd * hp + kh for kd in range(k) for kh in range(k)]  # static row shifts

    def kernel(body_ref, halo_ref, w_ref, o_ref, slab_ref, lhs_ref):
        # contiguous slab = body tile + halo rows (both stores sublane-aligned)
        slab_ref[:tr, :] = body_ref[...]
        slab_ref[tr:, :] = halo_ref[0]
        # long-K LHS: k*k row-shifted windows laid side by side along lanes
        # (loads are row-shifted, all stores are (sub,128)-aligned)
        for idx, off in enumerate(offs):
            lhs_ref[:, idx * kl:(idx + 1) * kl] = slab_ref[off:off + tr, :]
        # single MXU contraction producing l1 | l2 | l3, accumulated in f32
        acc = jnp.dot(lhs_ref[...], w_ref[...],
                      preferred_element_type=jnp.float32)
        l1 = acc[:, 0:cop]
        l2 = acc[:, cop:2 * cop]
        l3 = acc[:, 2 * cop:3 * cop]
        o_ref[...] = jnp.exp(l1 + l2 * l3).astype(o_ref.dtype)   # f32 epilogue

    def call(single_buffer_weights):
        if single_buffer_weights:
            w_spec = pl.BlockSpec((kk2 * kl, 3 * cop), lambda i: (0, 0),
                                  pipeline_mode=pl.Buffered(1))
        else:
            w_spec = pl.BlockSpec((kk2 * kl, 3 * cop), lambda i: (0, 0))
        return pl.pallas_call(
            kernel,
            out_shape=jax.ShapeDtypeStruct((rout_pad, cop), jnp.float32),
            grid_spec=pltpu.PrefetchScalarGridSpec(
                num_scalar_prefetch=0,
                grid=(grid,),
                in_specs=[
                    pl.BlockSpec((tr, kl), lambda i: (i, 0)),          # body (pipelined)
                    pl.BlockSpec((1, halo_pad, kl), lambda i: (i, 0, 0)),  # halo (pipelined)
                    w_spec,                                            # resident weights
                ],
                out_specs=pl.BlockSpec((tr, cop), lambda i: (i, 0)),   # 128-lane dense
                scratch_shapes=[
                    pltpu.VMEM((tr + halo_pad, kl), mxu_dtype),        # slab
                    pltpu.VMEM((tr, kk2 * kl), mxu_dtype),             # long-K LHS
                ],
            ),
            compiler_params=pltpu.CompilerParams(
                dimension_semantics=("parallel",),
                vmem_limit_bytes=48 * 1024 * 1024,
            ),
        )(body, halo_mat, wt)

    try:
        out_flat = jax.block_until_ready(call(True))
    except Exception:
        # pl.Buffered(1) not accepted by this jax build -> plain resident spec
        out_flat = call(False)

    # drop padded columns / padded (dp>=D, hp>=H) rows, back to NCDHW
    out = out_flat[:rout, : w * cout].reshape(n, dp, hp, w, cout)
    out = out[:, :d, :h]
    return jnp.transpose(out, (0, 4, 1, 2, 3))


# ----------------------------- pure-JAX reference -----------------------------
def _im2col(x_ndhwc, k):
    # zero-padding in the log domain == padding x with ones
    n, d, h, w, c = x_ndhwc.shape
    p = k // 2
    xp = jnp.pad(x_ndhwc, ((0, 0), (p, p), (p, p), (p, p), (0, 0)),
                 constant_values=1.0)
    cols = []
    for kd in range(k):
        for kh in range(k):
            for kw in range(k):
                cols.append(xp[:, kd:kd + d, kh:kh + h, kw:kw + w, :])
    patches = jnp.concatenate(cols, axis=-1)            # (N, D, H, W, k^3*Cin)
    return patches.reshape(n * d * h * w, k * k * k * c)


def _weight_to_mat(wt, kk, cout):
    # (Cout, kd, kh, kw, Cin) -> (kd*kh*kw*Cin, Cout), matching im2col order
    return jnp.transpose(wt, (1, 2, 3, 4, 0)).reshape(kk, cout).astype(jnp.float32)


def intra_voxel_volterra_ref(x_ncdhw, w1, w2, w3):
    n, cin, d, h, w = x_ncdhw.shape
    cout, k = w1.shape[0], w1.shape[1]
    x_ndhwc = jnp.transpose(x_ncdhw, (0, 2, 3, 4, 1)).astype(jnp.float32)
    patches = _im2col(x_ndhwc, k)
    kk = patches.shape[1]
    logp = jnp.log(patches)
    l1 = logp @ _weight_to_mat(w1, kk, cout)
    l2 = logp @ _weight_to_mat(w2, kk, cout)
    l3 = logp @ _weight_to_mat(w3, kk, cout)
    out = jnp.exp(l1 + l2 * l3).reshape(n, d, h, w, cout)
    return jnp.transpose(out, (0, 4, 1, 2, 3))


if __name__ == "__main__":
    key = jax.random.PRNGKey(0)
    k_x, k1, k2, k3 = jax.random.split(key, 4)

    N, Cin, Cout, D, H, W, KS = 2, 4, 8, 8, 8, 8, 3

    # log-domain Volterra expects strictly positive inputs; keep x near 1.
    x = jax.random.uniform(k_x, (N, Cin, D, H, W), jnp.float32,
                           minval=0.7, maxval=1.3)
    # torch.rand-style uniform[0,1) deterministic init of the three masks
    w1 = jax.random.uniform(k1, (Cout, KS, KS, KS, Cin), jnp.float32)
    w2 = jax.random.uniform(k2, (Cout, KS, KS, KS, Cin), jnp.float32)
    w3 = jax.random.uniform(k3, (Cout, KS, KS, KS, Cin), jnp.float32)

    ref = jax.block_until_ready(intra_voxel_volterra_ref(x, w1, w2, w3))

    # --- f32-MXU path: tight correctness gate ---
    out_f32 = jax.block_until_ready(
        intra_voxel_volterra(x, w1, w2, w3, mxu_dtype=jnp.float32))
    assert out_f32.shape == (N, Cout, D, H, W), out_f32.shape
    assert bool(jnp.all(jnp.isfinite(out_f32)))
    rel_err = jnp.max(jnp.abs(out_f32 - ref) / (jnp.abs(ref) + 1e-6))
    assert float(rel_err) < 1e-2, float(rel_err)

    # --- default bf16-MXU path (v6e/v7x native): exp() amplifies bf16 rounding
    #     of the exponent (err ~ |l2|*err(l3) + ...), so compare in log space
    #     with a correspondingly looser gate.
    out_bf16 = jax.block_until_ready(intra_voxel_volterra(x, w1, w2, w3))
    assert out_bf16.shape == (N, Cout, D, H, W), out_bf16.shape
    assert bool(jnp.all(jnp.isfinite(out_bf16)))
    log_err = jnp.max(jnp.abs(jnp.log(out_bf16) - jnp.log(ref)))
    assert float(log_err) < 0.25, float(log_err)

    print("KERNEL_OK")
</pallas_src>

<mosaic_0001>
module attributes {stable_mosaic.version = 11 : i64} {
  func.func @kernel(%arg0: i32, %arg1: memref<200x128xf32, #tpu.memory_space<vmem>>, %arg2: memref<1x24x128xf32, #tpu.memory_space<vmem>>, %arg3: memref<1152x384xf32, #tpu.memory_space<vmem>>, %arg4: memref<200x128xf32, #tpu.memory_space<vmem>>, %arg5: memref<224x128xf32, #tpu.memory_space<vmem>>, %arg6: memref<200x1152xf32, #tpu.memory_space<vmem>>) attributes {dimension_semantics = [#tpu.dimension_semantics<parallel>], iteration_bounds = array<i64: 1>, scalar_prefetch = 0 : i64, scratch_operands = 2 : i64, tpu.core_type = #tpu.core_type<tc>, window_params = [{transform_indices = @transform_0, window_bounds = array<i64: 200, 128>}, {transform_indices = @transform_1, window_bounds = array<i64: 1, 24, 128>}, {pipeline_mode = #tpu.pipeline_mode<synchronous>, transform_indices = @transform_2, window_bounds = array<i64: 1152, 384>}, {transform_indices = @transform_3, window_bounds = array<i64: 200, 128>}]} {
    %c0 = arith.constant 0 : index
    %c0_0 = arith.constant 0 : index
    %0 = vector.load %arg1[%c0, %c0_0] : memref<200x128xf32, #tpu.memory_space<vmem>>, vector<200x128xf32>
    %c0_1 = arith.constant 0 : index
    %c0_2 = arith.constant 0 : index
    %1 = vector.load %arg5[%c0_1, %c0_2] : memref<224x128xf32, #tpu.memory_space<vmem>>, vector<200x128xf32>
    tpu.vector_store %arg5[%c0_1, %c0_2], %0 {strides = array<i32>} : memref<224x128xf32, #tpu.memory_space<vmem>>, vector<200x128xf32>,
    %c0_3 = arith.constant 0 : index
    %c0_4 = arith.constant 0 : index
    %c0_5 = arith.constant 0 : index
    %2 = vector.load %arg2[%c0_3, %c0_4, %c0_5] : memref<1x24x128xf32, #tpu.memory_space<vmem>>, vector<1x24x128xf32>
    %3 = vector.shape_cast %2 : vector<1x24x128xf32> to vector<24x128xf32>
    %c200 = arith.constant 200 : index
    %c0_6 = arith.constant 0 : index
    %4 = vector.load %arg5[%c200, %c0_6] : memref<224x128xf32, #tpu.memory_space<vmem>>, vector<24x128xf32>
    tpu.vector_store %arg5[%c200, %c0_6], %3 {strides = array<i32>} : memref<224x128xf32, #tpu.memory_space<vmem>>, vector<24x128xf32>,
    %c0_7 = arith.constant 0 : index
    %c0_8 = arith.constant 0 : index
    %5 = vector.load %arg5[%c0_7, %c0_8] : memref<224x128xf32, #tpu.memory_space<vmem>>, vector<200x128xf32>
    %c0_9 = arith.constant 0 : index
    %c0_10 = arith.constant 0 : index
    %6 = vector.load %arg6[%c0_9, %c0_10] : memref<200x1152xf32, #tpu.memory_space<vmem>>, vector<200x128xf32>
    tpu.vector_store %arg6[%c0_9, %c0_10], %5 {strides = array<i32>} : memref<200x1152xf32, #tpu.memory_space<vmem>>, vector<200x128xf32>,
    %c1 = arith.constant 1 : index
    %c0_11 = arith.constant 0 : index
    %7 = vector.load %arg5[%c1, %c0_11] : memref<224x128xf32, #tpu.memory_space<vmem>>, vector<200x128xf32>
    %c0_12 = arith.constant 0 : index
    %c128 = arith.constant 128 : index
    %8 = vector.load %arg6[%c0_12, %c128] : memref<200x1152xf32, #tpu.memory_space<vmem>>, vector<200x128xf32>
    tpu.vector_store %arg6[%c0_12, %c128], %7 {strides = array<i32>} : memref<200x1152xf32, #tpu.memory_space<vmem>>, vector<200x128xf32>,
    %c2 = arith.constant 2 : index
    %c0_13 = arith.constant 0 : index
    %9 = vector.load %arg5[%c2, %c0_13] : memref<224x128xf32, #tpu.memory_space<vmem>>, vector<200x128xf32>
    %c0_14 = arith.constant 0 : index
    %c256 = arith.constant 256 : index
    %10 = vector.load %arg6[%c0_14, %c256] : memref<200x1152xf32, #tpu.memory_space<vmem>>, vector<200x128xf32>
    tpu.vector_store %arg6[%c0_14, %c256], %9 {strides = array<i32>} : memref<200x1152xf32, #tpu.memory_space<vmem>>, vector<200x128xf32>,
    %c10 = arith.constant 10 : index
    %c0_15 = arith.constant 0 : index
    %11 = vector.load %arg5[%c10, %c0_15] : memref<224x128xf32, #tpu.memory_space<vmem>>, vector<200x128xf32>
    %c0_16 = arith.constant 0 : index
    %c384 = arith.constant 384 : index
    %12 = vector.load %arg6[%c0_16, %c384] : memref<200x1152xf32, #tpu.memory_space<vmem>>, vector<200x128xf32>
    tpu.vector_store %arg6[%c0_16, %c384], %11 {strides = array<i32>} : memref<200x1152xf32, #tpu.memory_space<vmem>>, vector<200x128xf32>,
    %c11 = arith.constant 11 : index
    %c0_17 = arith.constant 0 : index
    %13 = vector.load %arg5[%c11, %c0_17] : memref<224x128xf32, #tpu.memory_space<vmem>>, vector<200x128xf32>
    %c0_18 = arith.constant 0 : index
    %c512 = arith.constant 512 : index
    %14 = vector.load %arg6[%c0_18, %c512] : memref<200x1152xf32, #tpu.memory_space<vmem>>, vector<200x128xf32>
    tpu.vector_store %arg6[%c0_18, %c512], %13 {strides = array<i32>} : memref<200x1152xf32, #tpu.memory_space<vmem>>, vector<200x128xf32>,
    %c12 = arith.constant 12 : index
    %c0_19 = arith.constant 0 : index
    %15 = vector.load %arg5[%c12, %c0_19] : memref<224x128xf32, #tpu.memory_space<vmem>>, vector<200x128xf32>
    %c0_20 = arith.constant 0 : index
    %c640 = arith.constant 640 : index
    %16 = vector.load %arg6[%c0_20, %c640] : memref<200x1152xf32, #tpu.memory_space<vmem>>, vector<200x128xf32>
    tpu.vector_store %arg6[%c0_20, %c640], %15 {strides = array<i32>} : memref<200x1152xf32, #tpu.memory_space<vmem>>, vector<200x128xf32>,
    %c20 = arith.constant 20 : index
    %c0_21 = arith.constant 0 : index
    %17 = vector.load %arg5[%c20, %c0_21] : memref<224x128xf32, #tpu.memory_space<vmem>>, vector<200x128xf32>
    %c0_22 = arith.constant 0 : index
    %c768 = arith.constant 768 : index
    %18 = vector.load %arg6[%c0_22, %c768] : memref<200x1152xf32, #tpu.memory_space<vmem>>, vector<200x128xf32>
    tpu.vector_store %arg6[%c0_22, %c768], %17 {strides = array<i32>} : memref<200x1152xf32, #tpu.memory_space<vmem>>, vector<200x128xf32>,
    %c21 = arith.constant 21 : index
    %c0_23 = arith.constant 0 : index
    %19 = vector.load %arg5[%c21, %c0_23] : memref<224x128xf32, #tpu.memory_space<vmem>>, vector<200x128xf32>
    %c0_24 = arith.constant 0 : index
    %c896 = arith.constant 896 : index
    %20 = vector.load %arg6[%c0_24, %c896] : memref<200x1152xf32, #tpu.memory_space<vmem>>, vector<200x128xf32>
    tpu.vector_store %arg6[%c0_24, %c896], %19 {strides = array<i32>} : memref<200x1152xf32, #tpu.memory_space<vmem>>, vector<200x128xf32>,
    %c22 = arith.constant 22 : index
    %c0_25 = arith.constant 0 : index
    %21 = vector.load %arg5[%c22, %c0_25] : memref<224x128xf32, #tpu.memory_space<vmem>>, vector<200x128xf32>
    %c0_26 = arith.constant 0 : index
    %c1024 = arith.constant 1024 : index
    %22 = vector.load %arg6[%c0_26, %c1024] : memref<200x1152xf32, #tpu.memory_space<vmem>>, vector<200x128xf32>
    tpu.vector_store %arg6[%c0_26, %c1024], %21 {strides = array<i32>} : memref<200x1152xf32, #tpu.memory_space<vmem>>, vector<200x128xf32>,
    %c0_27 = arith.constant 0 : index
    %c0_28 = arith.constant 0 : index
    %23 = vector.load %arg6[%c0_27, %c0_28] : memref<200x1152xf32, #tpu.memory_space<vmem>>, vector<200x1152xf32>
    %c0_29 = arith.constant 0 : index
    %c0_30 = arith.constant 0 : index
    %24 = vector.load %arg3[%c0_29, %c0_30] : memref<1152x384xf32, #tpu.memory_space<vmem>>, vector<1152x384xf32>
    %cst = arith.constant dense<0.000000e+00> : vector<200x384xf32>
    %25 = tpu.matmul %23, %24, %cst {dimension_numbers = #tpu.dot_dimension_numbers<[1], [0], [0], [1], [0, 0, 1, 1], [], []>} : vector<200x1152xf32>, vector<1152x384xf32>, vector<200x384xf32> -> vector<200x384xf32>
    %26 = vector.extract_strided_slice %25 {offsets = [0, 0], sizes = [200, 128], strides = [1, 1]} : vector<200x384xf32> to vector<200x128xf32>
    %27 = vector.extract_strided_slice %25 {offsets = [0, 128], sizes = [200, 128], strides = [1, 1]} : vector<200x384xf32> to vector<200x128xf32>
    %28 = vector.extract_strided_slice %25 {offsets = [0, 256], sizes = [200, 128], strides = [1, 1]} : vector<200x384xf32> to vector<200x128xf32>
    %29 = arith.mulf %27, %28 : vector<200x128xf32>
    %30 = arith.addf %26, %29 : vector<200x128xf32>
    %31 = math.exp %30 : vector<200x128xf32>
    %c0_31 = arith.constant 0 : index
    %c0_32 = arith.constant 0 : index
    %32 = vector.load %arg4[%c0_31, %c0_32] : memref<200x128xf32, #tpu.memory_space<vmem>>, vector<200x128xf32>
    tpu.vector_store %arg4[%c0_31, %c0_32], %31 {strides = array<i32>} : memref<200x128xf32, #tpu.memory_space<vmem>>, vector<200x128xf32>,
    return
  }
  func.func @transform_0(%arg0: i32) -> (i32, i32) {
    %c0_i32 = arith.constant 0 : i32
    %c0_i32_0 = arith.constant 0 : i32
    return %arg0, %c0_i32 : i32, i32
  }
  func.func @transform_1(%arg0: i32) -> (i32, i32, i32) {
    %c0_i32 = arith.constant 0 : i32
    %c0_i32_0 = arith.constant 0 : i32
    %c0_i32_1 = arith.constant 0 : i32
    return %arg0, %c0_i32, %c0_i32_0 : i32, i32, i32
  }
  func.func @transform_2(%arg0: i32) -> (i32, i32) {
    %c0_i32 = arith.constant 0 : i32
    %c0_i32_0 = arith.constant 0 : i32
    %c0_i32_1 = arith.constant 0 : i32
    return %c0_i32, %c0_i32_0 : i32, i32
  }
  func.func @transform_3(%arg0: i32) -> (i32, i32) {
    %c0_i32 = arith.constant 0 : i32
    %c0_i32_0 = arith.constant 0 : i32
    return %arg0, %c0_i32 : i32, i32
  }
}

module attributes {stable_mosaic.version = 11 : i64} {
  func.func @kernel(%arg0: i32, %arg1: memref<200x128xf32, #tpu.memory_space<vmem>>, %arg2: memref<1x24x128xf32, #tpu.memory_space<vmem>>, %arg3: memref<1152x384xf32, #tpu.memory_space<vmem>>, %arg4: memref<200x128xf32, #tpu.memory_space<vmem>>, %arg5: memref<224x128xf32, #tpu.memory_space<vmem>>, %arg6: memref<200x1152xf32, #tpu.memory_space<vmem>>) attributes {dimension_semantics = [#tpu.dimension_semantics<parallel>], iteration_bounds = array<i64: 1>, scalar_prefetch = 0 : i64, scratch_operands = 2 : i64, tpu.core_type = #tpu.core_type<tc>, window_params = [{transform_indices = @transform_0, window_bounds = array<i64: 200, 128>}, {transform_indices = @transform_1, window_bounds = array<i64: 1, 24, 128>}, {pipeline_mode = #tpu.pipeline_mode<synchronous>, transform_indices = @transform_2, window_bounds = array<i64: 1152, 384>}, {transform_indices = @transform_3, window_bounds = array<i64: 200, 128>}]} {
    %c0 = arith.constant 0 : index
    %c0_0 = arith.constant 0 : index
    %0 = vector.load %arg1[%c0, %c0_0] : memref<200x128xf32, #tpu.memory_space<vmem>>, vector<200x128xf32>
    %c0_1 = arith.constant 0 : index
    %c0_2 = arith.constant 0 : index
    %1 = vector.load %arg5[%c0_1, %c0_2] : memref<224x128xf32, #tpu.memory_space<vmem>>, vector<200x128xf32>
    tpu.vector_store %arg5[%c0_1, %c0_2], %0 {strides = array<i32>} : memref<224x128xf32, #tpu.memory_space<vmem>>, vector<200x128xf32>,
    %c0_3 = arith.constant 0 : index
    %c0_4 = arith.constant 0 : index
    %c0_5 = arith.constant 0 : index
    %2 = vector.load %arg2[%c0_3, %c0_4, %c0_5] : memref<1x24x128xf32, #tpu.memory_space<vmem>>, vector<1x24x128xf32>
    %3 = vector.shape_cast %2 : vector<1x24x128xf32> to vector<24x128xf32>
    %c200 = arith.constant 200 : index
    %c0_6 = arith.constant 0 : index
    %4 = vector.load %arg5[%c200, %c0_6] : memref<224x128xf32, #tpu.memory_space<vmem>>, vector<24x128xf32>
    tpu.vector_store %arg5[%c200, %c0_6], %3 {strides = array<i32>} : memref<224x128xf32, #tpu.memory_space<vmem>>, vector<24x128xf32>,
    %c0_7 = arith.constant 0 : index
    %c0_8 = arith.constant 0 : index
    %5 = vector.load %arg5[%c0_7, %c0_8] : memref<224x128xf32, #tpu.memory_space<vmem>>, vector<200x128xf32>
    %c0_9 = arith.constant 0 : index
    %c0_10 = arith.constant 0 : index
    %6 = vector.load %arg6[%c0_9, %c0_10] : memref<200x1152xf32, #tpu.memory_space<vmem>>, vector<200x128xf32>
    tpu.vector_store %arg6[%c0_9, %c0_10], %5 {strides = array<i32>} : memref<200x1152xf32, #tpu.memory_space<vmem>>, vector<200x128xf32>,
    %c1 = arith.constant 1 : index
    %c0_11 = arith.constant 0 : index
    %7 = vector.load %arg5[%c1, %c0_11] : memref<224x128xf32, #tpu.memory_space<vmem>>, vector<200x128xf32>
    %c0_12 = arith.constant 0 : index
    %c128 = arith.constant 128 : index
    %8 = vector.load %arg6[%c0_12, %c128] : memref<200x1152xf32, #tpu.memory_space<vmem>>, vector<200x128xf32>
    tpu.vector_store %arg6[%c0_12, %c128], %7 {strides = array<i32>} : memref<200x1152xf32, #tpu.memory_space<vmem>>, vector<200x128xf32>,
    %c2 = arith.constant 2 : index
    %c0_13 = arith.constant 0 : index
    %9 = vector.load %arg5[%c2, %c0_13] : memref<224x128xf32, #tpu.memory_space<vmem>>, vector<200x128xf32>
    %c0_14 = arith.constant 0 : index
    %c256 = arith.constant 256 : index
    %10 = vector.load %arg6[%c0_14, %c256] : memref<200x1152xf32, #tpu.memory_space<vmem>>, vector<200x128xf32>
    tpu.vector_store %arg6[%c0_14, %c256], %9 {strides = array<i32>} : memref<200x1152xf32, #tpu.memory_space<vmem>>, vector<200x128xf32>,
    %c10 = arith.constant 10 : index
    %c0_15 = arith.constant 0 : index
    %11 = vector.load %arg5[%c10, %c0_15] : memref<224x128xf32, #tpu.memory_space<vmem>>, vector<200x128xf32>
    %c0_16 = arith.constant 0 : index
    %c384 = arith.constant 384 : index
    %12 = vector.load %arg6[%c0_16, %c384] : memref<200x1152xf32, #tpu.memory_space<vmem>>, vector<200x128xf32>
    tpu.vector_store %arg6[%c0_16, %c384], %11 {strides = array<i32>} : memref<200x1152xf32, #tpu.memory_space<vmem>>, vector<200x128xf32>,
    %c11 = arith.constant 11 : index
    %c0_17 = arith.constant 0 : index
    %13 = vector.load %arg5[%c11, %c0_17] : memref<224x128xf32, #tpu.memory_space<vmem>>, vector<200x128xf32>
    %c0_18 = arith.constant 0 : index
    %c512 = arith.constant 512 : index
    %14 = vector.load %arg6[%c0_18, %c512] : memref<200x1152xf32, #tpu.memory_space<vmem>>, vector<200x128xf32>
    tpu.vector_store %arg6[%c0_18, %c512], %13 {strides = array<i32>} : memref<200x1152xf32, #tpu.memory_space<vmem>>, vector<200x128xf32>,
    %c12 = arith.constant 12 : index
    %c0_19 = arith.constant 0 : index
    %15 = vector.load %arg5[%c12, %c0_19] : memref<224x128xf32, #tpu.memory_space<vmem>>, vector<200x128xf32>
    %c0_20 = arith.constant 0 : index
    %c640 = arith.constant 640 : index
    %16 = vector.load %arg6[%c0_20, %c640] : memref<200x1152xf32, #tpu.memory_space<vmem>>, vector<200x128xf32>
    tpu.vector_store %arg6[%c0_20, %c640], %15 {strides = array<i32>} : memref<200x1152xf32, #tpu.memory_space<vmem>>, vector<200x128xf32>,
    %c20 = arith.constant 20 : index
    %c0_21 = arith.constant 0 : index
    %17 = vector.load %arg5[%c20, %c0_21] : memref<224x128xf32, #tpu.memory_space<vmem>>, vector<200x128xf32>
    %c0_22 = arith.constant 0 : index
    %c768 = arith.constant 768 : index
    %18 = vector.load %arg6[%c0_22, %c768] : memref<200x1152xf32, #tpu.memory_space<vmem>>, vector<200x128xf32>
    tpu.vector_store %arg6[%c0_22, %c768], %17 {strides = array<i32>} : memref<200x1152xf32, #tpu.memory_space<vmem>>, vector<200x128xf32>,
    %c21 = arith.constant 21 : index
    %c0_23 = arith.constant 0 : index
    %19 = vector.load %arg5[%c21, %c0_23] : memref<224x128xf32, #tpu.memory_space<vmem>>, vector<200x128xf32>
    %c0_24 = arith.constant 0 : index
    %c896 = arith.constant 896 : index
    %20 = vector.load %arg6[%c0_24, %c896] : memref<200x1152xf32, #tpu.memory_space<vmem>>, vector<200x128xf32>
    tpu.vector_store %arg6[%c0_24, %c896], %19 {strides = array<i32>} : memref<200x1152xf32, #tpu.memory_space<vmem>>, vector<200x128xf32>,
    %c22 = arith.constant 22 : index
    %c0_25 = arith.constant 0 : index
    %21 = vector.load %arg5[%c22, %c0_25] : memref<224x128xf32, #tpu.memory_space<vmem>>, vector<200x128xf32>
    %c0_26 = arith.constant 0 : index
    %c1024 = arith.constant 1024 : index
    %22 = vector.load %arg6[%c0_26, %c1024] : memref<200x1152xf32, #tpu.memory_space<vmem>>, vector<200x128xf32>
    tpu.vector_store %arg6[%c0_26, %c1024], %21 {strides = array<i32>} : memref<200x1152xf32, #tpu.memory_space<vmem>>, vector<200x128xf32>,
    %c0_27 = arith.constant 0 : index
    %c0_28 = arith.constant 0 : index
    %23 = vector.load %arg6[%c0_27, %c0_28] : memref<200x1152xf32, #tpu.memory_space<vmem>>, vector<200x1152xf32>
    %c0_29 = arith.constant 0 : index
    %c0_30 = arith.constant 0 : index
    %24 = vector.load %arg3[%c0_29, %c0_30] : memref<1152x384xf32, #tpu.memory_space<vmem>>, vector<1152x384xf32>
    %cst = arith.constant dense<0.000000e+00> : vector<200x384xf32>
    %25 = tpu.matmul %23, %24, %cst {dimension_numbers = #tpu.dot_dimension_numbers<[1], [0], [0], [1], [0, 0, 1, 1], [], []>} : vector<200x1152xf32>, vector<1152x384xf32>, vector<200x384xf32> -> vector<200x384xf32>
    %26 = vector.extract_strided_slice %25 {offsets = [0, 0], sizes = [200, 128], strides = [1, 1]} : vector<200x384xf32> to vector<200x128xf32>
    %27 = vector.extract_strided_slice %25 {offsets = [0, 128], sizes = [200, 128], strides = [1, 1]} : vector<200x384xf32> to vector<200x128xf32>
    %28 = vector.extract_strided_slice %25 {offsets = [0, 256], sizes = [200, 128], strides = [1, 1]} : vector<200x384xf32> to vector<200x128xf32>
    %29 = arith.mulf %27, %28 : vector<200x128xf32>
    %30 = arith.addf %26, %29 : vector<200x128xf32>
    %31 = math.exp %30 : vector<200x128xf32>
    %c0_31 = arith.constant 0 : index
    %c0_32 = arith.constant 0 : index
    %32 = vector.load %arg4[%c0_31, %c0_32] : memref<200x128xf32, #tpu.memory_space<vmem>>, vector<200x128xf32>
    tpu.vector_store %arg4[%c0_31, %c0_32], %31 {strides = array<i32>} : memref<200x128xf32, #tpu.memory_space<vmem>>, vector<200x128xf32>,
    return
  }
  func.func @transform_0(%arg0: i32) -> (i32, i32) {
    %c0_i32 = arith.constant 0 : i32
    %c0_i32_0 = arith.constant 0 : i32
    return %arg0, %c0_i32 : i32, i32
  }
  func.func @transform_1(%arg0: i32) -> (i32, i32, i32) {
    %c0_i32 = arith.constant 0 : i32
    %c0_i32_0 = arith.constant 0 : i32
    %c0_i32_1 = arith.constant 0 : i32
    return %arg0, %c0_i32, %c0_i32_0 : i32, i32, i32
  }
  func.func @transform_2(%arg0: i32) -> (i32, i32) {
    %c0_i32 = arith.constant 0 : i32
    %c0_i32_0 = arith.constant 0 : i32
    %c0_i32_1 = arith.constant 0 : i32
    return %c0_i32, %c0_i32_0 : i32, i32
  }
  func.func @transform_3(%arg0: i32) -> (i32, i32) {
    %c0_i32 = arith.constant 0 : i32
    %c0_i32_0 = arith.constant 0 : i32
    return %arg0, %c0_i32 : i32, i32
  }
}

</mosaic_0001>

<llo_original>
// kernel: tpu_custom_call.1
$region0: #{tpu_custom_call.1}
  #allocation0 [shape = 'u32[]', space=smem, size = 0x4, offset = 0x4, fixed_abs, tag = 'smem constant byte address 0x4 - core index']
  #allocation1 [shape = 'u32[72,128]{1,0:T(1,128)}', space=vmem, size = 0x9000, scoped, tag = 'internal scratch']
  #allocation2 [shape = 'f32[224,128]{1,0:T(8,128)}', space=vmem, size = 0x1c000, scoped, tag = 'scratch operand']
  #allocation3 [shape = 'f32[200,1152]{1,0:T(8,128)}', space=vmem, size = 0xe1000, scoped, tag = 'scratch operand']
  %s0 = inlined_call_operand.hbm [shape: f32[200,128], index: 0, kind: input, shape index: {}]
  %s1 = inlined_call_operand.hbm [shape: f32[1,24,128], index: 1, kind: input, shape index: {}]
  %s2 = inlined_call_operand.hbm [shape: f32[1152,384], index: 2, kind: input, shape index: {}]
  %s3 = inlined_call_operand.hbm [shape: f32[200,128], index: 3, kind: output, shape index: {}]
  %s4 = sld [smem:[#allocation0]]
  $region34: #{tpu_custom_call.1} parent=0
    _
  %s6 = ssub.s32 1, %s4
  %s7 = scalar_select 0, %s6, %s4
  $region1: #{tpu_custom_call.1} parent=0
    #allocation4 [shape = 'u8[102400]{0}', space=vmem, size = 0x19000, scoped, tag = 'input window, operand 0, single buffered']
    #allocation5 [shape = 's32[1]{0}', space=sflag, size = 0x4, scoped, tag = 'scoped memory for tpu_custom_call.1']
    #allocation6 [shape = 's32[1]{0}', space=sflag, size = 0x4, scoped, tag = 'scoped memory for tpu_custom_call.1']
    #allocation7 [shape = 'u8[12288]{0}', space=vmem, size = 0x3000, scoped, tag = 'input window, operand 1, single buffered']
    #allocation8 [shape = 's32[1]{0}', space=sflag, size = 0x4, scoped, tag = 'scoped memory for tpu_custom_call.1']
    #allocation9 [shape = 'u8[1769472]{0}', space=vmem, size = 0x1b0000, scoped, tag = 'input window, operand 2, single buffered']
    #allocation10 [shape = 'u8[102400]{0}', space=vmem, size = 0x19000, scoped, tag = 'output window, operand 0, single buffered']
    %8 = vsyncpa [#allocation5], 0
    %9 = vsyncpa [#allocation8], 0
    %10 = vsyncpa [#allocation6], 0
    // Predicated region
    $region2: #{tpu_custom_call.1} parent=1 // pred_check
      _
    $region3: #{tpu_custom_call.1} parent=1 // pred_check_branch
      %12 = sbr.rel (0) target = $region5
    $region4: #{tpu_custom_call.1} parent=1 // pred_region
      %14 = vsyncadd [#allocation5], 0
      %s15 = sshll.u32 %s0, 4
      %s16 = int_to_ptr.hbm [resolvable:$true] %s15
      %s17 = sshll.u32 [#allocation4], 4
      %s18 = int_to_ptr.vmem [resolvable:$true] %s17
      %23 = dma.hbm_to_vmem [thread:$0]  %s16, 3200, %s18, [#allocation5], 128, 128, 8
    $region5: #{tpu_custom_call.1} parent=1 // pred_fallthru
      _
    // Predicated region
    $region6: #{tpu_custom_call.1} parent=1 // pred_check
      _
    $region7: #{tpu_custom_call.1} parent=1 // pred_check_branch
      %25 = sbr.rel (0) target = $region9
    $region8: #{tpu_custom_call.1} parent=1 // pred_region
      %27 = vsyncadd [#allocation8], 0
      %s28 = sshll.u32 %s1, 4
      %s29 = int_to_ptr.hbm [resolvable:$true] %s28
      %s30 = sshll.u32 [#allocation7], 4
      %s31 = int_to_ptr.vmem [resolvable:$true] %s30
      %36 = dma.hbm_to_vmem [thread:$0]  %s29, 384, %s31, [#allocation8], 128, 128, 8
    $region9: #{tpu_custom_call.1} parent=1 // pred_fallthru
      _
    // Predicated region
    $region10: #{tpu_custom_call.1} parent=1 // pred_check
      _
    $region11: #{tpu_custom_call.1} parent=1 // pred_check_branch
      %38 = sbr.rel (0) target = $region13
    $region12: #{tpu_custom_call.1} parent=1 // pred_region
      %40 = vsyncadd [#allocation8], 0
      %s41 = sshll.u32 %s2, 4
      %s42 = int_to_ptr.hbm [resolvable:$true] %s41
      %s43 = sshll.u32 [#allocation9], 4
      %s44 = int_to_ptr.vmem [resolvable:$true] %s43
      %49 = dma.hbm_to_vmem [thread:$0]  %s42, 55296, %s44, [#allocation8], 384, 384, 24
    $region13: #{tpu_custom_call.1} parent=1 // pred_fallthru
      _
    // Predicated region
    $region14: #{tpu_custom_call.1} parent=1 // pred_check
      _
    $region15: #{tpu_custom_call.1} parent=1 // pred_check_branch
      %51 = sbr.rel (0) target = $region17
    $region16: #{tpu_custom_call.1} parent=1 // pred_region
      %53 = dma.done [#allocation5], 3200
    $region17: #{tpu_custom_call.1} parent=1 // pred_fallthru
      _
    // Predicated region
    $region18: #{tpu_custom_call.1} parent=1 // pred_check
      _
    $region19: #{tpu_custom_call.1} parent=1 // pred_check_branch
      %55 = sbr.rel (0) target = $region21
    $region20: #{tpu_custom_call.1} parent=1 // pred_region
      %57 = dma.done [#allocation8], 384
    $region21: #{tpu_custom_call.1} parent=1 // pred_fallthru
      _
    // Predicated region
    $region22: #{tpu_custom_call.1} parent=1 // pred_check
      _
    $region23: #{tpu_custom_call.1} parent=1 // pred_check_branch
      %59 = sbr.rel (0) target = $region25
    $region24: #{tpu_custom_call.1} parent=1 // pred_region
      %61 = dma.done [#allocation8], 55296
    $region25: #{tpu_custom_call.1} parent=1 // pred_fallthru
      _
    %v62 = vld [vmem:[#allocation4] sm:$0xff]
    %v63 = vld [vmem:[#allocation4 + $0x8] sm:$0xff]
    %v64 = vld [vmem:[#allocation4 + $0x10] sm:$0xff]
    %v65 = vld [vmem:[#allocation4 + $0x18] sm:$0xff]
    %v66 = vld [vmem:[#allocation4 + $0x20] sm:$0xff]
    %v67 = vld [vmem:[#allocation4 + $0x28] sm:$0xff]
    %v68 = vld [vmem:[#allocation4 + $0x30] sm:$0xff]
    %v69 = vld [vmem:[#allocation4 + $0x38] sm:$0xff]
    %v70 = vld [vmem:[#allocation4 + $0x40] sm:$0xff]
    %v71 = vld [vmem:[#allocation4 + $0x48] sm:$0xff]
    %v72 = vld [vmem:[#allocation4 + $0x50] sm:$0xff]
    %v73 = vld [vmem:[#allocation4 + $0x58] sm:$0xff]
    %v74 = vld [vmem:[#allocation4 + $0x60] sm:$0xff]
    %v75 = vld [vmem:[#allocation4 + $0x68] sm:$0xff]
    %v76 = vld [vmem:[#allocation4 + $0x70] sm:$0xff]
    %v77 = vld [vmem:[#allocation4 + $0x78] sm:$0xff]
    %v78 = vld [vmem:[#allocation4 + $0x80] sm:$0xff]
    %v79 = vld [vmem:[#allocation4 + $0x88] sm:$0xff]
    %v80 = vld [vmem:[#allocation4 + $0x90] sm:$0xff]
    %v81 = vld [vmem:[#allocation4 + $0x98] sm:$0xff]
    %v82 = vld [vmem:[#allocation4 + $0xa0] sm:$0xff]
    %v83 = vld [vmem:[#allocation4 + $0xa8] sm:$0xff]
    %v84 = vld [vmem:[#allocation4 + $0xb0] sm:$0xff]
    %v85 = vld [vmem:[#allocation4 + $0xb8] sm:$0xff]
    %v86 = vld [vmem:[#allocation4 + $0xc0] sm:$0xff]
    %87 = vst [vmem:[#allocation2] sm:$0xff] %v62
    %88 = vst [vmem:[#allocation2 + $0x8] sm:$0xff] %v63
    %89 = vst [vmem:[#allocation2 + $0x10] sm:$0xff] %v64
    %90 = vst [vmem:[#allocation2 + $0x18] sm:$0xff] %v65
    %91 = vst [vmem:[#allocation2 + $0x20] sm:$0xff] %v66
    %92 = vst [vmem:[#allocation2 + $0x28] sm:$0xff] %v67
    %93 = vst [vmem:[#allocation2 + $0x30] sm:$0xff] %v68
    %94 = vst [vmem:[#allocation2 + $0x38] sm:$0xff] %v69
    %95 = vst [vmem:[#allocation2 + $0x40] sm:$0xff] %v70
    %96 = vst [vmem:[#allocation2 + $0x48] sm:$0xff] %v71
    %97 = vst [vmem:[#allocation2 + $0x50] sm:$0xff] %v72
    %98 = vst [vmem:[#allocation2 + $0x58] sm:$0xff] %v73
    %99 = vst [vmem:[#allocation2 + $0x60] sm:$0xff] %v74
    %100 = vst [vmem:[#allocation2 + $0x68] sm:$0xff] %v75
    %101 = vst [vmem:[#allocation2 + $0x70] sm:$0xff] %v76
    %102 = vst [vmem:[#allocation2 + $0x78] sm:$0xff] %v77
    %103 = vst [vmem:[#allocation2 + $0x80] sm:$0xff] %v78
    %104 = vst [vmem:[#allocation2 + $0x88] sm:$0xff] %v79
    %105 = vst [vmem:[#allocation2 + $0x90] sm:$0xff] %v80
    %106 = vst [vmem:[#allocation2 + $0x98] sm:$0xff] %v81
    %107 = vst [vmem:[#allocation2 + $0xa0] sm:$0xff] %v82
    %108 = vst [vmem:[#allocation2 + $0xa8] sm:$0xff] %v83
    %109 = vst [vmem:[#allocation2 + $0xb0] sm:$0xff] %v84
    %110 = vst [vmem:[#allocation2 + $0xb8] sm:$0xff] %v85
    %111 = vst [vmem:[#allocation2 + $0xc0] sm:$0xff] %v86
    %v112 = vld [vmem:[#allocation7] sm:$0xff]
    %v113 = vld [vmem:[#allocation7 + $0x8] sm:$0xff]
    %v114 = vld [vmem:[#allocation7 + $0x10] sm:$0xff]
    %115 = vst [vmem:[#allocation2 + $0xc8] sm:$0xff] %v112
    %116 = vst [vmem:[#allocation2 + $0xd0] sm:$0xff] %v113
    %117 = vst [vmem:[#allocation2 + $0xd8] sm:$0xff] %v114
    %v118 = vld [vmem:[#allocation2] sm:$0xff]
    %v119 = vld [vmem:[#allocation2 + $0x8] sm:$0xff]
    %v120 = vld [vmem:[#allocation2 + $0x10] sm:$0xff]
    %v121 = vld [vmem:[#allocation2 + $0x18] sm:$0xff]
    %v122 = vld [vmem:[#allocation2 + $0x20] sm:$0xff]
    %v123 = vld [vmem:[#allocation2 + $0x28] sm:$0xff]
    %v124 = vld [vmem:[#allocation2 + $0x30] sm:$0xff]
    %v125 = vld [vmem:[#allocation2 + $0x38] sm:$0xff]
    %v126 = vld [vmem:[#allocation2 + $0x40] sm:$0xff]
    %v127 = vld [vmem:[#allocation2 + $0x48] sm:$0xff]
    %v128 = vld [vmem:[#allocation2 + $0x50] sm:$0xff]
    %v129 = vld [vmem:[#allocation2 + $0x58] sm:$0xff]
    %v130 = vld [vmem:[#allocation2 + $0x60] sm:$0xff]
    %v131 = vld [vmem:[#allocation2 + $0x68] sm:$0xff]
    %v132 = vld [vmem:[#allocation2 + $0x70] sm:$0xff]
    %v133 = vld [vmem:[#allocation2 + $0x78] sm:$0xff]
    %v134 = vld [vmem:[#allocation2 + $0x80] sm:$0xff]
    %v135 = vld [vmem:[#allocation2 + $0x88] sm:$0xff]
    %v136 = vld [vmem:[#allocation2 + $0x90] sm:$0xff]
    %v137 = vld [vmem:[#allocation2 + $0x98] sm:$0xff]
    %v138 = vld [vmem:[#allocation2 + $0xa0] sm:$0xff]
    %v139 = vld [vmem:[#allocation2 + $0xa8] sm:$0xff]
    %v140 = vld [vmem:[#allocation2 + $0xb0] sm:$0xff]
    %v141 = vld [vmem:[#allocation2 + $0xb8] sm:$0xff]
    %v142 = vld [vmem:[#allocation2 + $0xc0] sm:$0xff]
    %143 = vst [vmem:[#allocation3] sm:$0xff] %v118
    %144 = vst [vmem:[#allocation3 + $0x48] sm:$0xff] %v119
    %145 = vst [vmem:[#allocation3 + $0x90] sm:$0xff] %v120
    %146 = vst [vmem:[#allocation3 + $0xd8] sm:$0xff] %v121
    %147 = vst [vmem:[#allocation3 + $0x120] sm:$0xff] %v122
    %148 = vst [vmem:[#allocation3 + $0x168] sm:$0xff] %v123
    %149 = vst [vmem:[#allocation3 + $0x1b0] sm:$0xff] %v124
    %150 = vst [vmem:[#allocation3 + $0x1f8] sm:$0xff] %v125
    %151 = vst [vmem:[#allocation3 + $0x240] sm:$0xff] %v126
    %152 = vst [vmem:[#allocation3 + $0x288] sm:$0xff] %v127
    %153 = vst [vmem:[#allocation3 + $0x2d0] sm:$0xff] %v128
    %154 = vst [vmem:[#allocation3 + $0x318] sm:$0xff] %v129
    %155 = vst [vmem:[#allocation3 + $0x360] sm:$0xff] %v130
    %156 = vst [vmem:[#allocation3 + $0x3a8] sm:$0xff] %v131
    %157 = vst [vmem:[#allocation3 + $0x3f0] sm:$0xff] %v132
    %158 = vst [vmem:[#allocation3 + $0x438] sm:$0xff] %v133
    %159 = vst [vmem:[#allocation3 + $0x480] sm:$0xff] %v134
    %160 = vst [vmem:[#allocation3 + $0x4c8] sm:$0xff] %v135
    %161 = vst [vmem:[#allocation3 + $0x510] sm:$0xff] %v136
    %162 = vst [vmem:[#allocation3 + $0x558] sm:$0xff] %v137
    %163 = vst [vmem:[#allocation3 + $0x5a0] sm:$0xff] %v138
    %164 = vst [vmem:[#allocation3 + $0x5e8] sm:$0xff] %v139
    %165 = vst [vmem:[#allocation3 + $0x630] sm:$0xff] %v140
    %166 = vst [vmem:[#allocation3 + $0x678] sm:$0xff] %v141
    %167 = vst [vmem:[#allocation3 + $0x6c0] sm:$0xff] %v142
    %v168 = vld [vmem:[#allocation2 + $0x1] sm:$0xff]
    %v169 = vld [vmem:[#allocation2 + $0x9] sm:$0xff]
    %v170 = vld [vmem:[#allocation2 + $0x11] sm:$0xff]
    %v171 = vld [vmem:[#allocation2 + $0x19] sm:$0xff]
    %v172 = vld [vmem:[#allocation2 + $0x21] sm:$0xff]
    %v173 = vld [vmem:[#allocation2 + $0x29] sm:$0xff]
    %v174 = vld [vmem:[#allocation2 + $0x31] sm:$0xff]
    %v175 = vld [vmem:[#allocation2 + $0x39] sm:$0xff]
    %v176 = vld [vmem:[#allocation2 + $0x41] sm:$0xff]
    %v177 = vld [vmem:[#allocation2 + $0x49] sm:$0xff]
    %v178 = vld [vmem:[#allocation2 + $0x51] sm:$0xff]
    %v179 = vld [vmem:[#allocation2 + $0x59] sm:$0xff]
    %v180 = vld [vmem:[#allocation2 + $0x61] sm:$0xff]
    %v181 = vld [vmem:[#allocation2 + $0x69] sm:$0xff]
    %v182 = vld [vmem:[#allocation2 + $0x71] sm:$0xff]
    %v183 = vld [vmem:[#allocation2 + $0x79] sm:$0xff]
    %v184 = vld [vmem:[#allocation2 + $0x81] sm:$0xff]
    %v185 = vld [vmem:[#allocation2 + $0x89] sm:$0xff]
    %v186 = vld [vmem:[#allocation2 + $0x91] sm:$0xff]
    %v187 = vld [vmem:[#allocation2 + $0x99] sm:$0xff]
    %v188 = vld [vmem:[#allocation2 + $0xa1] sm:$0xff]
    %v189 = vld [vmem:[#allocation2 + $0xa9] sm:$0xff]
    %v190 = vld [vmem:[#allocation2 + $0xb1] sm:$0xff]
    %v191 = vld [vmem:[#allocation2 + $0xb9] sm:$0xff]
    %v192 = vld [vmem:[#allocation2 + $0xc1] sm:$0xff]
    %193 = vst [vmem:[#allocation3 + $0x8] sm:$0xff] %v168
    %194 = vst [vmem:[#allocation3 + $0x50] sm:$0xff] %v169
    %195 = vst [vmem:[#allocation3 + $0x98] sm:$0xff] %v170
    %196 = vst [vmem:[#allocation3 + $0xe0] sm:$0xff] %v171
    %197 = vst [vmem:[#allocation3 + $0x128] sm:$0xff] %v172
    %198 = vst [vmem:[#allocation3 + $0x170] sm:$0xff] %v173
    %199 = vst [vmem:[#allocation3 + $0x1b8] sm:$0xff] %v174
    %200 = vst [vmem:[#allocation3 + $0x200] sm:$0xff] %v175
    %201 = vst [vmem:[#allocation3 + $0x248] sm:$0xff] %v176
    %202 = vst [vmem:[#allocation3 + $0x290] sm:$0xff] %v177
    %203 = vst [vmem:[#allocation3 + $0x2d8] sm:$0xff] %v178
    %204 = vst [vmem:[#allocation3 + $0x320] sm:$0xff] %v179
    %205 = vst [vmem:[#allocation3 + $0x368] sm:$0xff] %v180
    %206 = vst [vmem:[#allocation3 + $0x3b0] sm:$0xff] %v181
    %207 = vst [vmem:[#allocation3 + $0x3f8] sm:$0xff] %v182
    %208 = vst [vmem:[#allocation3 + $0x440] sm:$0xff] %v183
    %209 = vst [vmem:[#allocation3 + $0x488] sm:$0xff] %v184
    %210 = vst [vmem:[#allocation3 + $0x4d0] sm:$0xff] %v185
    %211 = vst [vmem:[#allocation3 + $0x518] sm:$0xff] %v186
    %212 = vst [vmem:[#allocation3 + $0x560] sm:$0xff] %v187
    %213 = vst [vmem:[#allocation3 + $0x5a8] sm:$0xff] %v188
    %214 = vst [vmem:[#allocation3 + $0x5f0] sm:$0xff] %v189
    %215 = vst [vmem:[#allocation3 + $0x638] sm:$0xff] %v190
    %216 = vst [vmem:[#allocation3 + $0x680] sm:$0xff] %v191
    %217 = vst [vmem:[#allocation3 + $0x6c8] sm:$0xff] %v192
    %v218 = vld [vmem:[#allocation2 + $0x2] sm:$0xff]
    %v219 = vld [vmem:[#allocation2 + $0xa] sm:$0xff]
    %v220 = vld [vmem:[#allocation2 + $0x12] sm:$0xff]
    %v221 = vld [vmem:[#allocation2 + $0x1a] sm:$0xff]
    %v222 = vld [vmem:[#allocation2 + $0x22] sm:$0xff]
    %v223 = vld [vmem:[#allocation2 + $0x2a] sm:$0xff]
    %v224 = vld [vmem:[#allocation2 + $0x32] sm:$0xff]
    %v225 = vld [vmem:[#allocation2 + $0x3a] sm:$0xff]
    %v226 = vld [vmem:[#allocation2 + $0x42] sm:$0xff]
    %v227 = vld [vmem:[#allocation2 + $0x4a] sm:$0xff]
    %v228 = vld [vmem:[#allocation2 + $0x52] sm:$0xff]
    %v229 = vld [vmem:[#allocation2 + $0x5a] sm:$0xff]
    %v230 = vld [vmem:[#allocation2 + $0x62] sm:$0xff]
    %v231 = vld [vmem:[#allocation2 + $0x6a] sm:$0xff]
    %v232 = vld [vmem:[#allocation2 + $0x72] sm:$0xff]
    %v233 = vld [vmem:[#allocation2 + $0x7a] sm:$0xff]
    %v234 = vld [vmem:[#allocation2 + $0x82] sm:$0xff]
    %v235 = vld [vmem:[#allocation2 + $0x8a] sm:$0xff]
    %v236 = vld [vmem:[#allocation2 + $0x92] sm:$0xff]
    %v237 = vld [vmem:[#allocation2 + $0x9a] sm:$0xff]
    %v238 = vld [vmem:[#allocation2 + $0xa2] sm:$0xff]
    %v239 = vld [vmem:[#allocation2 + $0xaa] sm:$0xff]
    %v240 = vld [vmem:[#allocation2 + $0xb2] sm:$0xff]
    %v241 = vld [vmem:[#allocation2 + $0xba] sm:$0xff]
    %v242 = vld [vmem:[#allocation2 + $0xc2] sm:$0xff]
    %243 = vst [vmem:[#allocation3 + $0x10] sm:$0xff] %v218
    %244 = vst [vmem:[#allocation3 + $0x58] sm:$0xff] %v219
    %245 = vst [vmem:[#allocation3 + $0xa0] sm:$0xff] %v220
    %246 = vst [vmem:[#allocation3 + $0xe8] sm:$0xff] %v221
    %247 = vst [vmem:[#allocation3 + $0x130] sm:$0xff] %v222
    %248 = vst [vmem:[#allocation3 + $0x178] sm:$0xff] %v223
    %249 = vst [vmem:[#allocation3 + $0x1c0] sm:$0xff] %v224
    %250 = vst [vmem:[#allocation3 + $0x208] sm:$0xff] %v225
    %251 = vst [vmem:[#allocation3 + $0x250] sm:$0xff] %v226
    %252 = vst [vmem:[#allocation3 + $0x298] sm:$0xff] %v227
    %253 = vst [vmem:[#allocation3 + $0x2e0] sm:$0xff] %v228
    %254 = vst [vmem:[#allocation3 + $0x328] sm:$0xff] %v229
    %255 = vst [vmem:[#allocation3 + $0x370] sm:$0xff] %v230
    %256 = vst [vmem:[#allocation3 + $0x3b8] sm:$0xff] %v231
    %257 = vst [vmem:[#allocation3 + $0x400] sm:$0xff] %v232
    %258 = vst [vmem:[#allocation3 + $0x448] sm:$0xff] %v233
    %259 = vst [vmem:[#allocation3 + $0x490] sm:$0xff] %v234
    %260 = vst [vmem:[#allocation3 + $0x4d8] sm:$0xff] %v235
    %261 = vst [vmem:[#allocation3 + $0x520] sm:$0xff] %v236
    %262 = vst [vmem:[#allocation3 + $0x568] sm:$0xff] %v237
    %263 = vst [vmem:[#allocation3 + $0x5b0] sm:$0xff] %v238
    %264 = vst [vmem:[#allocation3 + $0x5f8] sm:$0xff] %v239
    %265 = vst [vmem:[#allocation3 + $0x640] sm:$0xff] %v240
    %266 = vst [vmem:[#allocation3 + $0x688] sm:$0xff] %v241
    %267 = vst [vmem:[#allocation3 + $0x6d0] sm:$0xff] %v242
    %v268 = vld [vmem:[#allocation2 + $0xa] sm:$0xff]
    %v269 = vld [vmem:[#allocation2 + $0x12] sm:$0xff]
    %v270 = vld [vmem:[#allocation2 + $0x1a] sm:$0xff]
    %v271 = vld [vmem:[#allocation2 + $0x22] sm:$0xff]
    %v272 = vld [vmem:[#allocation2 + $0x2a] sm:$0xff]
    %v273 = vld [vmem:[#allocation2 + $0x32] sm:$0xff]
    %v274 = vld [vmem:[#allocation2 + $0x3a] sm:$0xff]
    %v275 = vld [vmem:[#allocation2 + $0x42] sm:$0xff]
    %v276 = vld [vmem:[#allocation2 + $0x4a] sm:$0xff]
    %v277 = vld [vmem:[#allocation2 + $0x52] sm:$0xff]
    %v278 = vld [vmem:[#allocation2 + $0x5a] sm:$0xff]
    %v279 = vld [vmem:[#allocation2 + $0x62] sm:$0xff]
    %v280 = vld [vmem:[#allocation2 + $0x6a] sm:$0xff]
    %v281 = vld [vmem:[#allocation2 + $0x72] sm:$0xff]
    %v282 = vld [vmem:[#allocation2 + $0x7a] sm:$0xff]
    %v283 = vld [vmem:[#allocation2 + $0x82] sm:$0xff]
    %v284 = vld [vmem:[#allocation2 + $0x8a] sm:$0xff]
    %v285 = vld [vmem:[#allocation2 + $0x92] sm:$0xff]
    %v286 = vld [vmem:[#allocation2 + $0x9a] sm:$0xff]
    %v287 = vld [vmem:[#allocation2 + $0xa2] sm:$0xff]
    %v288 = vld [vmem:[#allocation2 + $0xaa] sm:$0xff]
    %v289 = vld [vmem:[#allocation2 + $0xb2] sm:$0xff]
    %v290 = vld [vmem:[#allocation2 + $0xba] sm:$0xff]
    %v291 = vld [vmem:[#allocation2 + $0xc2] sm:$0xff]
    %v292 = vld [vmem:[#allocation2 + $0xca] sm:$0xff]
    %293 = vst [vmem:[#allocation3 + $0x18] sm:$0xff] %v268
    %294 = vst [vmem:[#allocation3 + $0x60] sm:$0xff] %v269
    %295 = vst [vmem:[#allocation3 + $0xa8] sm:$0xff] %v270
    %296 = vst [vmem:[#allocation3 + $0xf0] sm:$0xff] %v271
    %297 = vst [vmem:[#allocation3 + $0x138] sm:$0xff] %v272
    %298 = vst [vmem:[#allocation3 + $0x180] sm:$0xff] %v273
    %299 = vst [vmem:[#allocation3 + $0x1c8] sm:$0xff] %v274
    %300 = vst [vmem:[#allocation3 + $0x210] sm:$0xff] %v275
    %301 = vst [vmem:[#allocation3 + $0x258] sm:$0xff] %v276
    %302 = vst [vmem:[#allocation3 + $0x2a0] sm:$0xff] %v277
    %303 = vst [vmem:[#allocation3 + $0x2e8] sm:$0xff] %v278
    %304 = vst [vmem:[#allocation3 + $0x330] sm:$0xff] %v279
    %305 = vst [vmem:[#allocation3 + $0x378] sm:$0xff] %v280
    %306 = vst [vmem:[#allocation3 + $0x3c0] sm:$0xff] %v281
    %307 = vst [vmem:[#allocation3 + $0x408] sm:$0xff] %v282
    %308 = vst [vmem:[#allocation3 + $0x450] sm:$0xff] %v283
    %309 = vst [vmem:[#allocation3 + $0x498] sm:$0xff] %v284
    %310 = vst [vmem:[#allocation3 + $0x4e0] sm:$0xff] %v285
    %311 = vst [vmem:[#allocation3 + $0x528] sm:$0xff] %v286
    %312 = vst [vmem:[#allocation3 + $0x570] sm:$0xff] %v287
    %313 = vst [vmem:[#allocation3 + $0x5b8] sm:$0xff] %v288
    %314 = vst [vmem:[#allocation3 + $0x600] sm:$0xff] %v289
    %315 = vst [vmem:[#allocation3 + $0x648] sm:$0xff] %v290
    %316 = vst [vmem:[#allocation3 + $0x690] sm:$0xff] %v291
    %317 = vst [vmem:[#allocation3 + $0x6d8] sm:$0xff] %v292
    %v318 = vld [vmem:[#allocation2 + $0xb] sm:$0xff]
    %v319 = vld [vmem:[#allocation2 + $0x13] sm:$0xff]
    %v320 = vld [vmem:[#allocation2 + $0x1b] sm:$0xff]
    %v321 = vld [vmem:[#allocation2 + $0x23] sm:$0xff]
    %v322 = vld [vmem:[#allocation2 + $0x2b] sm:$0xff]
    %v323 = vld [vmem:[#allocation2 + $0x33] sm:$0xff]
    %v324 = vld [vmem:[#allocation2 + $0x3b] sm:$0xff]
    %v325 = vld [vmem:[#allocation2 + $0x43] sm:$0xff]
    %v326 = vld [vmem:[#allocation2 + $0x4b] sm:$0xff]
    %v327 = vld [vmem:[#allocation2 + $0x53] sm:$0xff]
    %v328 = vld [vmem:[#allocation2 + $0x5b] sm:$0xff]
    %v329 = vld [vmem:[#allocation2 + $0x63] sm:$0xff]
    %v330 = vld [vmem:[#allocation2 + $0x6b] sm:$0xff]
    %v331 = vld [vmem:[#allocation2 + $0x73] sm:$0xff]
    %v332 = vld [vmem:[#allocation2 + $0x7b] sm:$0xff]
    %v333 = vld [vmem:[#allocation2 + $0x83] sm:$0xff]
    %v334 = vld [vmem:[#allocation2 + $0x8b] sm:$0xff]
    %v335 = vld [vmem:[#allocation2 + $0x93] sm:$0xff]
    %v336 = vld [vmem:[#allocation2 + $0x9b] sm:$0xff]
    %v337 = vld [vmem:[#allocation2 + $0xa3] sm:$0xff]
    %v338 = vld [vmem:[#allocation2 + $0xab] sm:$0xff]
    %v339 = vld [vmem:[#allocation2 + $0xb3] sm:$0xff]
    %v340 = vld [vmem:[#allocation2 + $0xbb] sm:$0xff]
    %v341 = vld [vmem:[#allocation2 + $0xc3] sm:$0xff]
    %v342 = vld [vmem:[#allocation2 + $0xcb] sm:$0xff]
    %343 = vst [vmem:[#allocation3 + $0x20] sm:$0xff] %v318
    %344 = vst [vmem:[#allocation3 + $0x68] sm:$0xff] %v319
    %345 = vst [vmem:[#allocation3 + $0xb0] sm:$0xff] %v320
    %346 = vst [vmem:[#allocation3 + $0xf8] sm:$0xff] %v321
    %347 = vst [vmem:[#allocation3 + $0x140] sm:$0xff] %v322
    %348 = vst [vmem:[#allocation3 + $0x188] sm:$0xff] %v323
    %349 = vst [vmem:[#allocation3 + $0x1d0] sm:$0xff] %v324
    %350 = vst [vmem:[#allocation3 + $0x218] sm:$0xff] %v325
    %351 = vst [vmem:[#allocation3 + $0x260] sm:$0xff] %v326
    %352 = vst [vmem:[#allocation3 + $0x2a8] sm:$0xff] %v327
    %353 = vst [vmem:[#allocation3 + $0x2f0] sm:$0xff] %v328
    %354 = vst [vmem:[#allocation3 + $0x338] sm:$0xff] %v329
    %355 = vst [vmem:[#allocation3 + $0x380] sm:$0xff] %v330
    %356 = vst [vmem:[#allocation3 + $0x3c8] sm:$0xff] %v331
    %357 = vst [vmem:[#allocation3 + $0x410] sm:$0xff] %v332
    %358 = vst [vmem:[#allocation3 + $0x458] sm:$0xff] %v333
    %359 = vst [vmem:[#allocation3 + $0x4a0] sm:$0xff] %v334
    %360 = vst [vmem:[#allocation3 + $0x4e8] sm:$0xff] %v335
    %361 = vst [vmem:[#allocation3 + $0x530] sm:$0xff] %v336
    %362 = vst [vmem:[#allocation3 + $0x578] sm:$0xff] %v337
    %363 = vst [vmem:[#allocation3 + $0x5c0] sm:$0xff] %v338
    %364 = vst [vmem:[#allocation3 + $0x608] sm:$0xff] %v339
    %365 = vst [vmem:[#allocation3 + $0x650] sm:$0xff] %v340
    %366 = vst [vmem:[#allocation3 + $0x698] sm:$0xff] %v341
    %367 = vst [vmem:[#allocation3 + $0x6e0] sm:$0xff] %v342
    %v368 = vld [vmem:[#allocation2 + $0xc] sm:$0xff]
    %v369 = vld [vmem:[#allocation2 + $0x14] sm:$0xff]
    %v370 = vld [vmem:[#allocation2 + $0x1c] sm:$0xff]
    %v371 = vld [vmem:[#allocation2 + $0x24] sm:$0xff]
    %v372 = vld [vmem:[#allocation2 + $0x2c] sm:$0xff]
    %v373 = vld [vmem:[#allocation2 + $0x34] sm:$0xff]
    %v374 = vld [vmem:[#allocation2 + $0x3c] sm:$0xff]
    %v375 = vld [vmem:[#allocation2 + $0x44] sm:$0xff]
    %v376 = vld [vmem:[#allocation2 + $0x4c] sm:$0xff]
    %v377 = vld [vmem:[#allocation2 + $0x54] sm:$0xff]
    %v378 = vld [vmem:[#allocation2 + $0x5c] sm:$0xff]
    %v379 = vld [vmem:[#allocation2 + $0x64] sm:$0xff]
    %v380 = vld [vmem:[#allocation2 + $0x6c] sm:$0xff]
    %v381 = vld [vmem:[#allocation2 + $0x74] sm:$0xff]
    %v382 = vld [vmem:[#allocation2 + $0x7c] sm:$0xff]
    %v383 = vld [vmem:[#allocation2 + $0x84] sm:$0xff]
    %v384 = vld [vmem:[#allocation2 + $0x8c] sm:$0xff]
    %v385 = vld [vmem:[#allocation2 + $0x94] sm:$0xff]
    %v386 = vld [vmem:[#allocation2 + $0x9c] sm:$0xff]
    %v387 = vld [vmem:[#allocation2 + $0xa4] sm:$0xff]
    %v388 = vld [vmem:[#allocation2 + $0xac] sm:$0xff]
    %v389 = vld [vmem:[#allocation2 + $0xb4] sm:$0xff]
    %v390 = vld [vmem:[#allocation2 + $0xbc] sm:$0xff]
    %v391 = vld [vmem:[#allocation2 + $0xc4] sm:$0xff]
    %v392 = vld [vmem:[#allocation2 + $0xcc] sm:$0xff]
    %393 = vst [vmem:[#allocation3 + $0x28] sm:$0xff] %v368
    %394 = vst [vmem:[#allocation3 + $0x70] sm:$0xff] %v369
    %395 = vst [vmem:[#allocation3 + $0xb8] sm:$0xff] %v370
    %396 = vst [vmem:[#allocation3 + $0x100] sm:$0xff] %v371
    %397 = vst [vmem:[#allocation3 + $0x148] sm:$0xff] %v372
    %398 = vst [vmem:[#allocation3 + $0x190] sm:$0xff] %v373
    %399 = vst [vmem:[#allocation3 + $0x1d8] sm:$0xff] %v374
    %400 = vst [vmem:[#allocation3 + $0x220] sm:$0xff] %v375
    %401 = vst [vmem:[#allocation3 + $0x268] sm:$0xff] %v376
    %402 = vst [vmem:[#allocation3 + $0x2b0] sm:$0xff] %v377
    %403 = vst [vmem:[#allocation3 + $0x2f8] sm:$0xff] %v378
    %404 = vst [vmem:[#allocation3 + $0x340] sm:$0xff] %v379
    %405 = vst [vmem:[#allocation3 + $0x388] sm:$0xff] %v380
    %406 = vst [vmem:[#allocation3 + $0x3d0] sm:$0xff] %v381
    %407 = vst [vmem:[#allocation3 + $0x418] sm:$0xff] %v382
    %408 = vst [vmem:[#allocation3 + $0x460] sm:$0xff] %v383
    %409 = vst [vmem:[#allocation3 + $0x4a8] sm:$0xff] %v384
    %410 = vst [vmem:[#allocation3 + $0x4f0] sm:$0xff] %v385
    %411 = vst [vmem:[#allocation3 + $0x538] sm:$0xff] %v386
    %412 = vst [vmem:[#allocation3 + $0x580] sm:$0xff] %v387
    %413 = vst [vmem:[#allocation3 + $0x5c8] sm:$0xff] %v388
    %414 = vst [vmem:[#allocation3 + $0x610] sm:$0xff] %v389
    %415 = vst [vmem:[#allocation3 + $0x658] sm:$0xff] %v390
    %416 = vst [vmem:[#allocation3 + $0x6a0] sm:$0xff] %v391
    %417 = vst [vmem:[#allocation3 + $0x6e8] sm:$0xff] %v392
    %v418 = vld [vmem:[#allocation2 + $0x14] sm:$0xff]
    %v419 = vld [vmem:[#allocation2 + $0x1c] sm:$0xff]
    %v420 = vld [vmem:[#allocation2 + $0x24] sm:$0xff]
    %v421 = vld [vmem:[#allocation2 + $0x2c] sm:$0xff]
    %v422 = vld [vmem:[#allocation2 + $0x34] sm:$0xff]
    %v423 = vld [vmem:[#allocation2 + $0x3c] sm:$0xff]
    %v424 = vld [vmem:[#allocation2 + $0x44] sm:$0xff]
    %v425 = vld [vmem:[#allocation2 + $0x4c] sm:$0xff]
    %v426 = vld [vmem:[#allocation2 + $0x54] sm:$0xff]
    %v427 = vld [vmem:[#allocation2 + $0x5c] sm:$0xff]
    %v428 = vld [vmem:[#allocation2 + $0x64] sm:$0xff]
    %v429 = vld [vmem:[#allocation2 + $0x6c] sm:$0xff]
    %v430 = vld [vmem:[#allocation2 + $0x74] sm:$0xff]
    %v431 = vld [vmem:[#allocation2 + $0x7c] sm:$0xff]
    %v432 = vld [vmem:[#allocation2 + $0x84] sm:$0xff]
    %v433 = vld [vmem:[#allocation2 + $0x8c] sm:$0xff]
    %v434 = vld [vmem:[#allocation2 + $0x94] sm:$0xff]
    %v435 = vld [vmem:[#allocation2 + $0x9c] sm:$0xff]
    %v436 = vld [vmem:[#allocation2 + $0xa4] sm:$0xff]
    %v437 = vld [vmem:[#allocation2 + $0xac] sm:$0xff]
    %v438 = vld [vmem:[#allocation2 + $0xb4] sm:$0xff]
    %v439 = vld [vmem:[#allocation2 + $0xbc] sm:$0xff]
    %v440 = vld [vmem:[#allocation2 + $0xc4] sm:$0xff]
    %v441 = vld [vmem:[#allocation2 + $0xcc] sm:$0xff]
    %v442 = vld [vmem:[#allocation2 + $0xd4] sm:$0xff]
    %443 = vst [vmem:[#allocation3 + $0x30] sm:$0xff] %v418
    %444 = vst [vmem:[#allocation3 + $0x78] sm:$0xff] %v419
    %445 = vst [vmem:[#allocation3 + $0xc0] sm:$0xff] %v420
    %446 = vst [vmem:[#allocation3 + $0x108] sm:$0xff] %v421
    %447 = vst [vmem:[#allocation3 + $0x150] sm:$0xff] %v422
    %448 = vst [vmem:[#allocation3 + $0x198] sm:$0xff] %v423
    %449 = vst [vmem:[#allocation3 + $0x1e0] sm:$0xff] %v424
    %450 = vst [vmem:[#allocation3 + $0x228] sm:$0xff] %v425
    %451 = vst [vmem:[#allocation3 + $0x270] sm:$0xff] %v426
    %452 = vst [vmem:[#allocation3 + $0x2b8] sm:$0xff] %v427
    %453 = vst [vmem:[#allocation3 + $0x300] sm:$0xff] %v428
    %454 = vst [vmem:[#allocation3 + $0x348] sm:$0xff] %v429
    %455 = vst [vmem:[#allocation3 + $0x390] sm:$0xff] %v430
    %456 = vst [vmem:[#allocation3 + $0x3d8] sm:$0xff] %v431
    %457 = vst [vmem:[#allocation3 + $0x420] sm:$0xff] %v432
    %458 = vst [vmem:[#allocation3 + $0x468] sm:$0xff] %v433
    %459 = vst [vmem:[#allocation3 + $0x4b0] sm:$0xff] %v434
    %460 = vst [vmem:[#allocation3 + $0x4f8] sm:$0xff] %v435
    %461 = vst [vmem:[#allocation3 + $0x540] sm:$0xff] %v436
    %462 = vst [vmem:[#allocation3 + $0x588] sm:$0xff] %v437
    %463 = vst [vmem:[#allocation3 + $0x5d0] sm:$0xff] %v438
    %464 = vst [vmem:[#allocation3 + $0x618] sm:$0xff] %v439
    %465 = vst [vmem:[#allocation3 + $0x660] sm:$0xff] %v440
    %466 = vst [vmem:[#allocation3 + $0x6a8] sm:$0xff] %v441
    %467 = vst [vmem:[#allocation3 + $0x6f0] sm:$0xff] %v442
    %v468 = vld [vmem:[#allocation2 + $0x15] sm:$0xff]
    %v469 = vld [vmem:[#allocation2 + $0x1d] sm:$0xff]
    %v470 = vld [vmem:[#allocation2 + $0x25] sm:$0xff]
    %v471 = vld [vmem:[#allocation2 + $0x2d] sm:$0xff]
    %v472 = vld [vmem:[#allocation2 + $0x35] sm:$0xff]
    %v473 = vld [vmem:[#allocation2 + $0x3d] sm:$0xff]
    %v474 = vld [vmem:[#allocation2 + $0x45] sm:$0xff]
    %v475 = vld [vmem:[#allocation2 + $0x4d] sm:$0xff]
    %v476 = vld [vmem:[#allocation2 + $0x55] sm:$0xff]
    %v477 = vld [vmem:[#allocation2 + $0x5d] sm:$0xff]
    %v478 = vld [vmem:[#allocation2 + $0x65] sm:$0xff]
    %v479 = vld [vmem:[#allocation2 + $0x6d] sm:$0xff]
    %v480 = vld [vmem:[#allocation2 + $0x75] sm:$0xff]
    %v481 = vld [vmem:[#allocation2 + $0x7d] sm:$0xff]
    %v482 = vld [vmem:[#allocation2 + $0x85] sm:$0xff]
    %v483 = vld [vmem:[#allocation2 + $0x8d] sm:$0xff]
    %v484 = vld [vmem:[#allocation2 + $0x95] sm:$0xff]
    %v485 = vld [vmem:[#allocation2 + $0x9d] sm:$0xff]
    %v486 = vld [vmem:[#allocation2 + $0xa5] sm:$0xff]
    %v487 = vld [vmem:[#allocation2 + $0xad] sm:$0xff]
    %v488 = vld [vmem:[#allocation2 + $0xb5] sm:$0xff]
    %v489 = vld [vmem:[#allocation2 + $0xbd] sm:$0xff]
    %v490 = vld [vmem:[#allocation2 + $0xc5] sm:$0xff]
    %v491 = vld [vmem:[#allocation2 + $0xcd] sm:$0xff]
    %v492 = vld [vmem:[#allocation2 + $0xd5] sm:$0xff]
    %493 = vst [vmem:[#allocation3 + $0x38] sm:$0xff] %v468
    %494 = vst [vmem:[#allocation3 + $0x80] sm:$0xff] %v469
    %495 = vst [vmem:[#allocation3 + $0xc8] sm:$0xff] %v470
    %496 = vst [vmem:[#allocation3 + $0x110] sm:$0xff] %v471
    %497 = vst [vmem:[#allocation3 + $0x158] sm:$0xff] %v472
    %498 = vst [vmem:[#allocation3 + $0x1a0] sm:$0xff] %v473
    %499 = vst [vmem:[#allocation3 + $0x1e8] sm:$0xff] %v474
    %500 = vst [vmem:[#allocation3 + $0x230] sm:$0xff] %v475
    %501 = vst [vmem:[#allocation3 + $0x278] sm:$0xff] %v476
    %502 = vst [vmem:[#allocation3 + $0x2c0] sm:$0xff] %v477
    %503 = vst [vmem:[#allocation3 + $0x308] sm:$0xff] %v478
    %504 = vst [vmem:[#allocation3 + $0x350] sm:$0xff] %v479
    %505 = vst [vmem:[#allocation3 + $0x398] sm:$0xff] %v480
    %506 = vst [vmem:[#allocation3 + $0x3e0] sm:$0xff] %v481
    %507 = vst [vmem:[#allocation3 + $0x428] sm:$0xff] %v482
    %508 = vst [vmem:[#allocation3 + $0x470] sm:$0xff] %v483
    %509 = vst [vmem:[#allocation3 + $0x4b8] sm:$0xff] %v484
    %510 = vst [vmem:[#allocation3 + $0x500] sm:$0xff] %v485
    %511 = vst [vmem:[#allocation3 + $0x548] sm:$0xff] %v486
    %512 = vst [vmem:[#allocation3 + $0x590] sm:$0xff] %v487
    %513 = vst [vmem:[#allocation3 + $0x5d8] sm:$0xff] %v488
    %514 = vst [vmem:[#allocation3 + $0x620] sm:$0xff] %v489
    %515 = vst [vmem:[#allocation3 + $0x668] sm:$0xff] %v490
    %516 = vst [vmem:[#allocation3 + $0x6b0] sm:$0xff] %v491
    %517 = vst [vmem:[#allocation3 + $0x6f8] sm:$0xff] %v492
    %v518 = vld [vmem:[#allocation2 + $0x16] sm:$0xff]
    %v519 = vld [vmem:[#allocation2 + $0x1e] sm:$0xff]
    %v520 = vld [vmem:[#allocation2 + $0x26] sm:$0xff]
    %v521 = vld [vmem:[#allocation2 + $0x2e] sm:$0xff]
    %v522 = vld [vmem:[#allocation2 + $0x36] sm:$0xff]
    %v523 = vld [vmem:[#allocation2 + $0x3e] sm:$0xff]
    %v524 = vld [vmem:[#allocation2 + $0x46] sm:$0xff]
    %v525 = vld [vmem:[#allocation2 + $0x4e] sm:$0xff]
    %v526 = vld [vmem:[#allocation2 + $0x56] sm:$0xff]
    %v527 = vld [vmem:[#allocation2 + $0x5e] sm:$0xff]
    %v528 = vld [vmem:[#allocation2 + $0x66] sm:$0xff]
    %v529 = vld [vmem:[#allocation2 + $0x6e] sm:$0xff]
    %v530 = vld [vmem:[#allocation2 + $0x76] sm:$0xff]
    %v531 = vld [vmem:[#allocation2 + $0x7e] sm:$0xff]
    %v532 = vld [vmem:[#allocation2 + $0x86] sm:$0xff]
    %v533 = vld [vmem:[#allocation2 + $0x8e] sm:$0xff]
    %v534 = vld [vmem:[#allocation2 + $0x96] sm:$0xff]
    %v535 = vld [vmem:[#allocation2 + $0x9e] sm:$0xff]
    %v536 = vld [vmem:[#allocation2 + $0xa6] sm:$0xff]
    %v537 = vld [vmem:[#allocation2 + $0xae] sm:$0xff]
    %v538 = vld [vmem:[#allocation2 + $0xb6] sm:$0xff]
    %v539 = vld [vmem:[#allocation2 + $0xbe] sm:$0xff]
    %v540 = vld [vmem:[#allocation2 + $0xc6] sm:$0xff]
    %v541 = vld [vmem:[#allocation2 + $0xce] sm:$0xff]
    %v542 = vld [vmem:[#allocation2 + $0xd6] sm:$0xff]
    %543 = vst [vmem:[#allocation3 + $0x40] sm:$0xff] %v518
    %544 = vst [vmem:[#allocation3 + $0x88] sm:$0xff] %v519
    %545 = vst [vmem:[#allocation3 + $0xd0] sm:$0xff] %v520
    %546 = vst [vmem:[#allocation3 + $0x118] sm:$0xff] %v521
    %547 = vst [vmem:[#allocation3 + $0x160] sm:$0xff] %v522
    %548 = vst [vmem:[#allocation3 + $0x1a8] sm:$0xff] %v523
    %549 = vst [vmem:[#allocation3 + $0x1f0] sm:$0xff] %v524
    %550 = vst [vmem:[#allocation3 + $0x238] sm:$0xff] %v525
    %551 = vst [vmem:[#allocation3 + $0x280] sm:$0xff] %v526
    %552 = vst [vmem:[#allocation3 + $0x2c8] sm:$0xff] %v527
    %553 = vst [vmem:[#allocation3 + $0x310] sm:$0xff] %v528
    %554 = vst [vmem:[#allocation3 + $0x358] sm:$0xff] %v529
    %555 = vst [vmem:[#allocation3 + $0x3a0] sm:$0xff] %v530
    %556 = vst [vmem:[#allocation3 + $0x3e8] sm:$0xff] %v531
    %557 = vst [vmem:[#allocation3 + $0x430] sm:$0xff] %v532
    %558 = vst [vmem:[#allocation3 + $0x478] sm:$0xff] %v533
    %559 = vst [vmem:[#allocation3 + $0x4c0] sm:$0xff] %v534
    %560 = vst [vmem:[#allocation3 + $0x508] sm:$0xff] %v535
    %561 = vst [vmem:[#allocation3 + $0x550] sm:$0xff] %v536
    %562 = vst [vmem:[#allocation3 + $0x598] sm:$0xff] %v537
    %563 = vst [vmem:[#allocation3 + $0x5e0] sm:$0xff] %v538
    %564 = vst [vmem:[#allocation3 + $0x628] sm:$0xff] %v539
    %565 = vst [vmem:[#allocation3 + $0x670] sm:$0xff] %v540
    %566 = vst [vmem:[#allocation3 + $0x6b8] sm:$0xff] %v541
    %567 = vst [vmem:[#allocation3 + $0x700] sm:$0xff] %v542
    %v568 = vld [vmem:[#allocation3] sm:$0xff]
    %v569 = vld [vmem:[#allocation3 + $0x8] sm:$0xff]
    %v570 = vld [vmem:[#allocation3 + $0x10] sm:$0xff]
    %v571 = vld [vmem:[#allocation3 + $0x18] sm:$0xff]
    %v572 = vld [vmem:[#allocation3 + $0x20] sm:$0xff]
    %v573 = vld [vmem:[#allocation3 + $0x28] sm:$0xff]
    %v574 = vld [vmem:[#allocation3 + $0x30] sm:$0xff]
    %v575 = vld [vmem:[#allocation3 + $0x38] sm:$0xff]
    %v576 = vld [vmem:[#allocation3 + $0x40] sm:$0xff]
    %v577 = vld [vmem:[#allocation3 + $0x48] sm:$0xff]
    %v578 = vld [vmem:[#allocation3 + $0x50] sm:$0xff]
    %v579 = vld [vmem:[#allocation3 + $0x58] sm:$0xff]
    %v580 = vld [vmem:[#allocation3 + $0x60] sm:$0xff]
    %v581 = vld [vmem:[#allocation3 + $0x68] sm:$0xff]
    %v582 = vld [vmem:[#allocation3 + $0x70] sm:$0xff]
    %v583 = vld [vmem:[#allocation3 + $0x78] sm:$0xff]
    %v584 = vld [vmem:[#allocation3 + $0x80] sm:$0xff]
    %v585 = vld [vmem:[#allocation3 + $0x88] sm:$0xff]
    %v586 = vld [vmem:[#allocation3 + $0x90] sm:$0xff]
    %v587 = vld [vmem:[#allocation3 + $0x98] sm:$0xff]
    %v588 = vld [vmem:[#allocation3 + $0xa0] sm:$0xff]
    %v589 = vld [vmem:[#allocation3 + $0xa8] sm:$0xff]
    %v590 = vld [vmem:[#allocation3 + $0xb0] sm:$0xff]
    %v591 = vld [vmem:[#allocation3 + $0xb8] sm:$0xff]
    %v592 = vld [vmem:[#allocation3 + $0xc0] sm:$0xff]
    %v593 = vld [vmem:[#allocation3 + $0xc8] sm:$0xff]
    %v594 = vld [vmem:[#allocation3 + $0xd0] sm:$0xff]
    %v595 = vld [vmem:[#allocation3 + $0xd8] sm:$0xff]
    %v596 = vld [vmem:[#allocation3 + $0xe0] sm:$0xff]
    %v597 = vld [vmem:[#allocation3 + $0xe8] sm:$0xff]
    %v598 = vld [vmem:[#allocation3 + $0xf0] sm:$0xff]
    %v599 = vld [vmem:[#allocation3 + $0xf8] sm:$0xff]
    %v600 = vld [vmem:[#allocation3 + $0x100] sm:$0xff]
    %v601 = vld [vmem:[#allocation3 + $0x108] sm:$0xff]
    %v602 = vld [vmem:[#allocation3 + $0x110] sm:$0xff]
    %v603 = vld [vmem:[#allocation3 + $0x118] sm:$0xff]
    %v604 = vld [vmem:[#allocation3 + $0x120] sm:$0xff]
    %v605 = vld [vmem:[#allocation3 + $0x128] sm:$0xff]
    %v606 = vld [vmem:[#allocation3 + $0x130] sm:$0xff]
    %v607 = vld [vmem:[#allocation3 + $0x138] sm:$0xff]
    %v608 = vld [vmem:[#allocation3 + $0x140] sm:$0xff]
    %v609 = vld [vmem:[#allocation3 + $0x148] sm:$0xff]
    %v610 = vld [vmem:[#allocation3 + $0x150] sm:$0xff]
    %v611 = vld [vmem:[#allocation3 + $0x158] sm:$0xff]
    %v612 = vld [vmem:[#allocation3 + $0x160] sm:$0xff]
    %v613 = vld [vmem:[#allocation3 + $0x168] sm:$0xff]
    %v614 = vld [vmem:[#allocation3 + $0x170] sm:$0xff]
    %v615 = vld [vmem:[#allocation3 + $0x178] sm:$0xff]
    %v616 = vld [vmem:[#allocation3 + $0x180] sm:$0xff]
    %v617 = vld [vmem:[#allocation3 + $0x188] sm:$0xff]
    %v618 = vld [vmem:[#allocation3 + $0x190] sm:$0xff]
    %v619 = vld [vmem:[#allocation3 + $0x198] sm:$0xff]
    %v620 = vld [vmem:[#allocation3 + $0x1a0] sm:$0xff]
    %v621 = vld [vmem:[#allocation3 + $0x1a8] sm:$0xff]
    %v622 = vld [vmem:[#allocation3 + $0x1b0] sm:$0xff]
    %v623 = vld [vmem:[#allocation3 + $0x1b8] sm:$0xff]
    %v624 = vld [vmem:[#allocation3 + $0x1c0] sm:$0xff]
    %v625 = vld [vmem:[#allocation3 + $0x1c8] sm:$0xff]
    %v626 = vld [vmem:[#allocation3 + $0x1d0] sm:$0xff]
    %v627 = vld [vmem:[#allocation3 + $0x1d8] sm:$0xff]
    %v628 = vld [vmem:[#allocation3 + $0x1e0] sm:$0xff]
    %v629 = vld [vmem:[#allocation3 + $0x1e8] sm:$0xff]
    %v630 = vld [vmem:[#allocation3 + $0x1f0] sm:$0xff]
    %v631 = vld [vmem:[#allocation3 + $0x1f8] sm:$0xff]
    %v632 = vld [vmem:[#allocation3 + $0x200] sm:$0xff]
    %v633 = vld [vmem:[#allocation3 + $0x208] sm:$0xff]
    %v634 = vld [vmem:[#allocation3 + $0x210] sm:$0xff]
    %v635 = vld [vmem:[#allocation3 + $0x218] sm:$0xff]
    %v636 = vld [vmem:[#allocation3 + $0x220] sm:$0xff]
    %v637 = vld [vmem:[#allocation3 + $0x228] sm:$0xff]
    %v638 = vld [vmem:[#allocation3 + $0x230] sm:$0xff]
    %v639 = vld [vmem:[#allocation3 + $0x238] sm:$0xff]
    %v640 = vld [vmem:[#allocation3 + $0x240] sm:$0xff]
    %v641 = vld [vmem:[#allocation3 + $0x248] sm:$0xff]
    %v642 = vld [vmem:[#allocation3 + $0x250] sm:$0xff]
    %v643 = vld [vmem:[#allocation3 + $0x258] sm:$0xff]
    %v644 = vld [vmem:[#allocation3 + $0x260] sm:$0xff]
    %v645 = vld [vmem:[#allocation3 + $0x268] sm:$0xff]
    %v646 = vld [vmem:[#allocation3 + $0x270] sm:$0xff]
    %v647 = vld [vmem:[#allocation3 + $0x278] sm:$0xff]
    %v648 = vld [vmem:[#allocation3 + $0x280] sm:$0xff]
    %v649 = vld [vmem:[#allocation3 + $0x288] sm:$0xff]
    %v650 = vld [vmem:[#allocation3 + $0x290] sm:$0xff]
    %v651 = vld [vmem:[#allocation3 + $0x298] sm:$0xff]
    %v652 = vld [vmem:[#allocation3 + $0x2a0] sm:$0xff]
    %v653 = vld [vmem:[#allocation3 + $0x2a8] sm:$0xff]
    %v654 = vld [vmem:[#allocation3 + $0x2b0] sm:$0xff]
    %v655 = vld [vmem:[#allocation3 + $0x2b8] sm:$0xff]
    %v656 = vld [vmem:[#allocation3 + $0x2c0] sm:$0xff]
    %v657 = vld [vmem:[#allocation3 + $0x2c8] sm:$0xff]
    %v658 = vld [vmem:[#allocation3 + $0x2d0] sm:$0xff]
    %v659 = vld [vmem:[#allocation3 + $0x2d8] sm:$0xff]
    %v660 = vld [vmem:[#allocation3 + $0x2e0] sm:$0xff]
    %v661 = vld [vmem:[#allocation3 + $0x2e8] sm:$0xff]
    %v662 = vld [vmem:[#allocation3 + $0x2f0] sm:$0xff]
    %v663 = vld [vmem:[#allocation3 + $0x2f8] sm:$0xff]
    %v664 = vld [vmem:[#allocation3 + $0x300] sm:$0xff]
    %v665 = vld [vmem:[#allocation3 + $0x308] sm:$0xff]
    %v666 = vld [vmem:[#allocation3 + $0x310] sm:$0xff]
    %v667 = vld [vmem:[#allocation3 + $0x318] sm:$0xff]
    %v668 = vld [vmem:[#allocation3 + $0x320] sm:$0xff]
    %v669 = vld [vmem:[#allocation3 + $0x328] sm:$0xff]
    %v670 = vld [vmem:[#allocation3 + $0x330] sm:$0xff]
    %v671 = vld [vmem:[#allocation3 + $0x338] sm:$0xff]
    %v672 = vld [vmem:[#allocation3 + $0x340] sm:$0xff]
    %v673 = vld [vmem:[#allocation3 + $0x348] sm:$0xff]
    %v674 = vld [vmem:[#allocation3 + $0x350] sm:$0xff]
    %v675 = vld [vmem:[#allocation3 + $0x358] sm:$0xff]
    %v676 = vld [vmem:[#allocation3 + $0x360] sm:$0xff]
    %v677 = vld [vmem:[#allocation3 + $0x368] sm:$0xff]
    %v678 = vld [vmem:[#allocation3 + $0x370] sm:$0xff]
    %v679 = vld [vmem:[#allocation3 + $0x378] sm:$0xff]
    %v680 = vld [vmem:[#allocation3 + $0x380] sm:$0xff]
    %v681 = vld [vmem:[#allocation3 + $0x388] sm:$0xff]
    %v682 = vld [vmem:[#allocation3 + $0x390] sm:$0xff]
    %v683 = vld [vmem:[#allocation3 + $0x398] sm:$0xff]
    %v684 = vld [vmem:[#allocation3 + $0x3a0] sm:$0xff]
    %v685 = vld [vmem:[#allocation3 + $0x3a8] sm:$0xff]
    %v686 = vld [vmem:[#allocation3 + $0x3b0] sm:$0xff]
    %v687 = vld [vmem:[#allocation3 + $0x3b8] sm:$0xff]
    %v688 = vld [vmem:[#allocation3 + $0x3c0] sm:$0xff]
    %v689 = vld [vmem:[#allocation3 + $0x3c8] sm:$0xff]
    %v690 = vld [vmem:[#allocation3 + $0x3d0] sm:$0xff]
    %v691 = vld [vmem:[#allocation3 + $0x3d8] sm:$0xff]
    %v692 = vld [vmem:[#allocation3 + $0x3e0] sm:$0xff]
    %v693 = vld [vmem:[#allocation3 + $0x3e8] sm:$0xff]
    %v694 = vld [vmem:[#allocation3 + $0x3f0] sm:$0xff]
    %v695 = vld [vmem:[#allocation3 + $0x3f8] sm:$0xff]
    %v696 = vld [vmem:[#allocation3 + $0x400] sm:$0xff]
    %v697 = vld [vmem:[#allocation3 + $0x408] sm:$0xff]
    %v698 = vld [vmem:[#allocation3 + $0x410] sm:$0xff]
    %v699 = vld [vmem:[#allocation3 + $0x418] sm:$0xff]
    %v700 = vld [vmem:[#allocation3 + $0x420] sm:$0xff]
    %v701 = vld [vmem:[#allocation3 + $0x428] sm:$0xff]
    %v702 = vld [vmem:[#allocation3 + $0x430] sm:$0xff]
    %v703 = vld [vmem:[#allocation3 + $0x438] sm:$0xff]
    %v704 = vld [vmem:[#allocation3 + $0x440] sm:$0xff]
    %v705 = vld [vmem:[#allocation3 + $0x448] sm:$0xff]
    %v706 = vld [vmem:[#allocation3 + $0x450] sm:$0xff]
    %v707 = vld [vmem:[#allocation3 + $0x458] sm:$0xff]
    %v708 = vld [vmem:[#allocation3 + $0x460] sm:$0xff]
    %v709 = vld [vmem:[#allocation3 + $0x468] sm:$0xff]
    %v710 = vld [vmem:[#allocation3 + $0x470] sm:$0xff]
    %v711 = vld [vmem:[#allocation3 + $0x478] sm:$0xff]
    %v712 = vld [vmem:[#allocation3 + $0x480] sm:$0xff]
    %v713 = vld [vmem:[#allocation3 + $0x488] sm:$0xff]
    %v714 = vld [vmem:[#allocation3 + $0x490] sm:$0xff]
    %v715 = vld [vmem:[#allocation3 + $0x498] sm:$0xff]
    %v716 = vld [vmem:[#allocation3 + $0x4a0] sm:$0xff]
    %v717 = vld [vmem:[#allocation3 + $0x4a8] sm:$0xff]
    %v718 = vld [vmem:[#allocation3 + $0x4b0] sm:$0xff]
    %v719 = vld [vmem:[#allocation3 + $0x4b8] sm:$0xff]
    %v720 = vld [vmem:[#allocation3 + $0x4c0] sm:$0xff]
    %v721 = vld [vmem:[#allocation3 + $0x4c8] sm:$0xff]
    %v722 = vld [vmem:[#allocation3 + $0x4d0] sm:$0xff]
    %v723 = vld [vmem:[#allocation3 + $0x4d8] sm:$0xff]
    %v724 = vld [vmem:[#allocation3 + $0x4e0] sm:$0xff]
    %v725 = vld [vmem:[#allocation3 + $0x4e8] sm:$0xff]
    %v726 = vld [vmem:[#allocation3 + $0x4f0] sm:$0xff]
    %v727 = vld [vmem:[#allocation3 + $0x4f8] sm:$0xff]
    %v728 = vld [vmem:[#allocation3 + $0x500] sm:$0xff]
    %v729 = vld [vmem:[#allocation3 + $0x508] sm:$0xff]
    %v730 = vld [vmem:[#allocation3 + $0x510] sm:$0xff]
    %v731 = vld [vmem:[#allocation3 + $0x518] sm:$0xff]
    %v732 = vld [vmem:[#allocation3 + $0x520] sm:$0xff]
    %v733 = vld [vmem:[#allocation3 + $0x528] sm:$0xff]
    %v734 = vld [vmem:[#allocation3 + $0x530] sm:$0xff]
    %v735 = vld [vmem:[#allocation3 + $0x538] sm:$0xff]
    %v736 = vld [vmem:[#allocation3 + $0x540] sm:$0xff]
    %v737 = vld [vmem:[#allocation3 + $0x548] sm:$0xff]
    %v738 = vld [vmem:[#allocation3 + $0x550] sm:$0xff]
    %v739 = vld [vmem:[#allocation3 + $0x558] sm:$0xff]
    %v740 = vld [vmem:[#allocation3 + $0x560] sm:$0xff]
    %v741 = vld [vmem:[#allocation3 + $0x568] sm:$0xff]
    %v742 = vld [vmem:[#allocation3 + $0x570] sm:$0xff]
    %v743 = vld [vmem:[#allocation3 + $0x578] sm:$0xff]
    %v744 = vld [vmem:[#allocation3 + $0x580] sm:$0xff]
    %v745 = vld [vmem:[#allocation3 + $0x588] sm:$0xff]
    %v746 = vld [vmem:[#allocation3 + $0x590] sm:$0xff]
    %v747 = vld [vmem:[#allocation3 + $0x598] sm:$0xff]
    %v748 = vld [vmem:[#allocation3 + $0x5a0] sm:$0xff]
    %v749 = vld [vmem:[#allocation3 + $0x5a8] sm:$0xff]
    %v750 = vld [vmem:[#allocation3 + $0x5b0] sm:$0xff]
    %v751 = vld [vmem:[#allocation3 + $0x5b8] sm:$0xff]
    %v752 = vld [vmem:[#allocation3 + $0x5c0] sm:$0xff]
    %v753 = vld [vmem:[#allocation3 + $0x5c8] sm:$0xff]
    %v754 = vld [vmem:[#allocation3 + $0x5d0] sm:$0xff]
    %v755 = vld [vmem:[#allocation3 + $0x5d8] sm:$0xff]
    %v756 = vld [vmem:[#allocation3 + $0x5e0] sm:$0xff]
    %v757 = vld [vmem:[#allocation3 + $0x5e8] sm:$0xff]
    %v758 = vld [vmem:[#allocation3 + $0x5f0] sm:$0xff]
    %v759 = vld [vmem:[#allocation3 + $0x5f8] sm:$0xff]
    %v760 = vld [vmem:[#allocation3 + $0x600] sm:$0xff]
    %v761 = vld [vmem:[#allocation3 + $0x608] sm:$0xff]
    %v762 = vld [vmem:[#allocation3 + $0x610] sm:$0xff]
    %v763 = vld [vmem:[#allocation3 + $0x618] sm:$0xff]
    %v764 = vld [vmem:[#allocation3 + $0x620] sm:$0xff]
    %v765 = vld [vmem:[#allocation3 + $0x628] sm:$0xff]
    %v766 = vld [vmem:[#allocation3 + $0x630] sm:$0xff]
    %v767 = vld [vmem:[#allocation3 + $0x638] sm:$0xff]
    %v768 = vld [vmem:[#allocation3 + $0x640] sm:$0xff]
    %v769 = vld [vmem:[#allocation3 + $0x648] sm:$0xff]
    %v770 = vld [vmem:[#allocation3 + $0x650] sm:$0xff]
    %v771 = vld [vmem:[#allocation3 + $0x658] sm:$0xff]
    %v772 = vld [vmem:[#allocation3 + $0x660] sm:$0xff]
    %v773 = vld [vmem:[#allocation3 + $0x668] sm:$0xff]
    %v774 = vld [vmem:[#allocation3 + $0x670] sm:$0xff]
    %v775 = vld [vmem:[#allocation3 + $0x678] sm:$0xff]
    %v776 = vld [vmem:[#allocation3 + $0x680] sm:$0xff]
    %v777 = vld [vmem:[#allocation3 + $0x688] sm:$0xff]
    %v778 = vld [vmem:[#allocation3 + $0x690] sm:$0xff]
    %v779 = vld [vmem:[#allocation3 + $0x698] sm:$0xff]
    %v780 = vld [vmem:[#allocation3 + $0x6a0] sm:$0xff]
    %v781 = vld [vmem:[#allocation3 + $0x6a8] sm:$0xff]
    %v782 = vld [vmem:[#allocation3 + $0x6b0] sm:$0xff]
    %v783 = vld [vmem:[#allocation3 + $0x6b8] sm:$0xff]
    %v784 = vld [vmem:[#allocation3 + $0x6c0] sm:$0xff]
    %v785 = vld [vmem:[#allocation3 + $0x6c8] sm:$0xff]
    %v786 = vld [vmem:[#allocation3 + $0x6d0] sm:$0xff]
    %v787 = vld [vmem:[#allocation3 + $0x6d8] sm:$0xff]
    %v788 = vld [vmem:[#allocation3 + $0x6e0] sm:$0xff]
    %v789 = vld [vmem:[#allocation3 + $0x6e8] sm:$0xff]
    %v790 = vld [vmem:[#allocation3 + $0x6f0] sm:$0xff]
    %v791 = vld [vmem:[#allocation3 + $0x6f8] sm:$0xff]
    %v792 = vld [vmem:[#allocation3 + $0x700] sm:$0xff]
    %v793 = vld [vmem:[#allocation9] sm:$0xff]
    %v794 = vld [vmem:[#allocation9 + $0x8] sm:$0xff]
    %v795 = vld [vmem:[#allocation9 + $0x10] sm:$0xff]
    %v796 = vld [vmem:[#allocation9 + $0x18] sm:$0xff]
    %v797 = vld [vmem:[#allocation9 + $0x20] sm:$0xff]
    %v798 = vld [vmem:[#allocation9 + $0x28] sm:$0xff]
    %v799 = vld [vmem:[#allocation9 + $0x30] sm:$0xff]
    %v800 = vld [vmem:[#allocation9 + $0x38] sm:$0xff]
    %v801 = vld [vmem:[#allocation9 + $0x40] sm:$0xff]
    %v802 = vld [vmem:[#allocation9 + $0x48] sm:$0xff]
    %v803 = vld [vmem:[#allocation9 + $0x50] sm:$0xff]
    %v804 = vld [vmem:[#allocation9 + $0x58] sm:$0xff]
    %v805 = vld [vmem:[#allocation9 + $0x60] sm:$0xff]
    %v806 = vld [vmem:[#allocation9 + $0x68] sm:$0xff]
    %v807 = vld [vmem:[#allocation9 + $0x70] sm:$0xff]
    %v808 = vld [vmem:[#allocation9 + $0x78] sm:$0xff]
    %v809 = vld [vmem:[#allocation9 + $0x80] sm:$0xff]
    %v810 = vld [vmem:[#allocation9 + $0x88] sm:$0xff]
    %v811 = vld [vmem:[#allocation9 + $0x90] sm:$0xff]
    %v812 = vld [vmem:[#allocation9 + $0x98] sm:$0xff]
    %v813 = vld [vmem:[#allocation9 + $0xa0] sm:$0xff]
    %v814 = vld [vmem:[#allocation9 + $0xa8] sm:$0xff]
    %v815 = vld [vmem:[#allocation9 + $0xb0] sm:$0xff]
    %v816 = vld [vmem:[#allocation9 + $0xb8] sm:$0xff]
    %v817 = vld [vmem:[#allocation9 + $0xc0] sm:$0xff]
    %v818 = vld [vmem:[#allocation9 + $0xc8] sm:$0xff]
    %v819 = vld [vmem:[#allocation9 + $0xd0] sm:$0xff]
    %v820 = vld [vmem:[#allocation9 + $0xd8] sm:$0xff]
    %v821 = vld [vmem:[#allocation9 + $0xe0] sm:$0xff]
    %v822 = vld [vmem:[#allocation9 + $0xe8] sm:$0xff]
    %v823 = vld [vmem:[#allocation9 + $0xf0] sm:$0xff]
    %v824 = vld [vmem:[#allocation9 + $0xf8] sm:$0xff]
    %v825 = vld [vmem:[#allocation9 + $0x100] sm:$0xff]
    %v826 = vld [vmem:[#allocation9 + $0x108] sm:$0xff]
    %v827 = vld [vmem:[#allocation9 + $0x110] sm:$0xff]
    %v828 = vld [vmem:[#allocation9 + $0x118] sm:$0xff]
    %v829 = vld [vmem:[#allocation9 + $0x120] sm:$0xff]
    %v830 = vld [vmem:[#allocation9 + $0x128] sm:$0xff]
    %v831 = vld [vmem:[#allocation9 + $0x130] sm:$0xff]
    %v832 = vld [vmem:[#allocation9 + $0x138] sm:$0xff]
    %v833 = vld [vmem:[#allocation9 + $0x140] sm:$0xff]
    %v834 = vld [vmem:[#allocation9 + $0x148] sm:$0xff]
    %v835 = vld [vmem:[#allocation9 + $0x150] sm:$0xff]
    %v836 = vld [vmem:[#allocation9 + $0x158] sm:$0xff]
    %v837 = vld [vmem:[#allocation9 + $0x160] sm:$0xff]
    %v838 = vld [vmem:[#allocation9 + $0x168] sm:$0xff]
    %v839 = vld [vmem:[#allocation9 + $0x170] sm:$0xff]
    %v840 = vld [vmem:[#allocation9 + $0x178] sm:$0xff]
    %v841 = vld [vmem:[#allocation9 + $0x180] sm:$0xff]
    %v842 = vld [vmem:[#allocation9 + $0x188] sm:$0xff]
    %v843 = vld [vmem:[#allocation9 + $0x190] sm:$0xff]
    %v844 = vld [vmem:[#allocation9 + $0x198] sm:$0xff]
    %v845 = vld [vmem:[#allocation9 + $0x1a0] sm:$0xff]
    %v846 = vld [vmem:[#allocation9 + $0x1a8] sm:$0xff]
    %v847 = vld [vmem:[#allocation9 + $0x1b0] sm:$0xff]
    %v848 = vld [vmem:[#allocation9 + $0x1b8] sm:$0xff]
    %v849 = vld [vmem:[#allocation9 + $0x1c0] sm:$0xff]
    %v850 = vld [vmem:[#allocation9 + $0x1c8] sm:$0xff]
    %v851 = vld [vmem:[#allocation9 + $0x1d0] sm:$0xff]
    %v852 = vld [vmem:[#allocation9 + $0x1d8] sm:$0xff]
    %v853 = vld [vmem:[#allocation9 + $0x1e0] sm:$0xff]
    %v854 = vld [vmem:[#allocation9 + $0x1e8] sm:$0xff]
    %v855 = vld [vmem:[#allocation9 + $0x1f0] sm:$0xff]
    %v856 = vld [vmem:[#allocation9 + $0x1f8] sm:$0xff]
    %v857 = vld [vmem:[#allocation9 + $0x200] sm:$0xff]
    %v858 = vld [vmem:[#allocation9 + $0x208] sm:$0xff]
    %v859 = vld [vmem:[#allocation9 + $0x210] sm:$0xff]
    %v860 = vld [vmem:[#allocation9 + $0x218] sm:$0xff]
    %v861 = vld [vmem:[#allocation9 + $0x220] sm:$0xff]
    %v862 = vld [vmem:[#allocation9 + $0x228] sm:$0xff]
    %v863 = vld [vmem:[#allocation9 + $0x230] sm:$0xff]
    %v864 = vld [vmem:[#allocation9 + $0x238] sm:$0xff]
    %v865 = vld [vmem:[#allocation9 + $0x240] sm:$0xff]
    %v866 = vld [vmem:[#allocation9 + $0x248] sm:$0xff]
    %v867 = vld [vmem:[#allocation9 + $0x250] sm:$0xff]
    %v868 = vld [vmem:[#allocation9 + $0x258] sm:$0xff]
    %v869 = vld [vmem:[#allocation9 + $0x260] sm:$0xff]
    %v870 = vld [vmem:[#allocation9 + $0x268] sm:$0xff]
    %v871 = vld [vmem:[#allocation9 + $0x270] sm:$0xff]
    %v872 = vld [vmem:[#allocation9 + $0x278] sm:$0xff]
    %v873 = vld [vmem:[#allocation9 + $0x280] sm:$0xff]
    %v874 = vld [vmem:[#allocation9 + $0x288] sm:$0xff]
    %v875 = vld [vmem:[#allocation9 + $0x290] sm:$0xff]
    %v876 = vld [vmem:[#allocation9 + $0x298] sm:$0xff]
    %v877 = vld [vmem:[#allocation9 + $0x2a0] sm:$0xff]
    %v878 = vld [vmem:[#allocation9 + $0x2a8] sm:$0xff]
    %v879 = vld [vmem:[#allocation9 + $0x2b0] sm:$0xff]
    %v880 = vld [vmem:[#allocation9 + $0x2b8] sm:$0xff]
    %v881 = vld [vmem:[#allocation9 + $0x2c0] sm:$0xff]
    %v882 = vld [vmem:[#allocation9 + $0x2c8] sm:$0xff]
    %v883 = vld [vmem:[#allocation9 + $0x2d0] sm:$0xff]
    %v884 = vld [vmem:[#allocation9 + $0x2d8] sm:$0xff]
    %v885 = vld [vmem:[#allocation9 + $0x2e0] sm:$0xff]
    %v886 = vld [vmem:[#allocation9 + $0x2e8] sm:$0xff]
    %v887 = vld [vmem:[#allocation9 + $0x2f0] sm:$0xff]
    %v888 = vld [vmem:[#allocation9 + $0x2f8] sm:$0xff]
    %v889 = vld [vmem:[#allocation9 + $0x300] sm:$0xff]
    %v890 = vld [vmem:[#allocation9 + $0x308] sm:$0xff]
    %v891 = vld [vmem:[#allocation9 + $0x310] sm:$0xff]
    %v892 = vld [vmem:[#allocation9 + $0x318] sm:$0xff]
    %v893 = vld [vmem:[#allocation9 + $0x320] sm:$0xff]
    %v894 = vld [vmem:[#allocation9 + $0x328] sm:$0xff]
    %v895 = vld [vmem:[#allocation9 + $0x330] sm:$0xff]
    %v896 = vld [vmem:[#allocation9 + $0x338] sm:$0xff]
    %v897 = vld [vmem:[#allocation9 + $0x340] sm:$0xff]
    %v898 = vld [vmem:[#allocation9 + $0x348] sm:$0xff]
    %v899 = vld [vmem:[#allocation9 + $0x350] sm:$0xff]
    %v900 = vld [vmem:[#allocation9 + $0x358] sm:$0xff]
    %v901 = vld [vmem:[#allocation9 + $0x360] sm:$0xff]
    %v902 = vld [vmem:[#allocation9 + $0x368] sm:$0xff]
    %v903 = vld [vmem:[#allocation9 + $0x370] sm:$0xff]
    %v904 = vld [vmem:[#allocation9 + $0x378] sm:$0xff]
    %v905 = vld [vmem:[#allocation9 + $0x380] sm:$0xff]
    %v906 = vld [vmem:[#allocation9 + $0x388] sm:$0xff]
    %v907 = vld [vmem:[#allocation9 + $0x390] sm:$0xff]
    %v908 = vld [vmem:[#allocation9 + $0x398] sm:$0xff]
    %v909 = vld [vmem:[#allocation9 + $0x3a0] sm:$0xff]
    %v910 = vld [vmem:[#allocation9 + $0x3a8] sm:$0xff]
    %v911 = vld [vmem:[#allocation9 + $0x3b0] sm:$0xff]
    %v912 = vld [vmem:[#allocation9 + $0x3b8] sm:$0xff]
    %v913 = vld [vmem:[#allocation9 + $0x3c0] sm:$0xff]
    %v914 = vld [vmem:[#allocation9 + $0x3c8] sm:$0xff]
    %v915 = vld [vmem:[#allocation9 + $0x3d0] sm:$0xff]
    %v916 = vld [vmem:[#allocation9 + $0x3d8] sm:$0xff]
    %v917 = vld [vmem:[#allocation9 + $0x3e0] sm:$0xff]
    %v918 = vld [vmem:[#allocation9 + $0x3e8] sm:$0xff]
    %v919 = vld [vmem:[#allocation9 + $0x3f0] sm:$0xff]
    %v920 = vld [vmem:[#allocation9 + $0x3f8] sm:$0xff]
    %v921 = vld [vmem:[#allocation9 + $0x400] sm:$0xff]
    %v922 = vld [vmem:[#allocation9 + $0x408] sm:$0xff]
    %v923 = vld [vmem:[#allocation9 + $0x410] sm:$0xff]
    %v924 = vld [vmem:[#allocation9 + $0x418] sm:$0xff]
    %v925 = vld [vmem:[#allocation9 + $0x420] sm:$0xff]
    %v926 = vld [vmem:[#allocation9 + $0x428] sm:$0xff]
    %v927 = vld [vmem:[#allocation9 + $0x430] sm:$0xff]
    %v928 = vld [vmem:[#allocation9 + $0x438] sm:$0xff]
    %v929 = vld [vmem:[#allocation9 + $0x440] sm:$0xff]
    %v930 = vld [vmem:[#allocation9 + $0x448] sm:$0xff]
    %v931 = vld [vmem:[#allocation9 + $0x450] sm:$0xff]
    %v932 = vld [vmem:[#allocation9 + $0x458] sm:$0xff]
    %v933 = vld [vmem:[#allocation9 + $0x460] sm:$0xff]
    %v934 = vld [vmem:[#allocation9 + $0x468] sm:$0xff]
    %v935 = vld [vmem:[#allocation9 + $0x470] sm:$0xff]
    %v936 = vld [vmem:[#allocation9 + $0x478] sm:$0xff]
    %v937 = vld [vmem:[#allocation9 + $0x480] sm:$0xff]
    %v938 = vld [vmem:[#allocation9 + $0x488] sm:$0xff]
    %v939 = vld [vmem:[#allocation9 + $0x490] sm:$0xff]
    %v940 = vld [vmem:[#allocation9 + $0x498] sm:$0xff]
    %v941 = vld [vmem:[#allocation9 + $0x4a0] sm:$0xff]
    %v942 = vld [vmem:[#allocation9 + $0x4a8] sm:$0xff]
    %v943 = vld [vmem:[#allocation9 + $0x4b0] sm:$0xff]
    %v944 = vld [vmem:[#allocation9 + $0x4b8] sm:$0xff]
    %v945 = vld [vmem:[#allocation9 + $0x4c0] sm:$0xff]
    %v946 = vld [vmem:[#allocation9 + $0x4c8] sm:$0xff]
    %v947 = vld [vmem:[#allocation9 + $0x4d0] sm:$0xff]
    %v948 = vld [vmem:[#allocation9 + $0x4d8] sm:$0xff]
    %v949 = vld [vmem:[#allocation9 + $0x4e0] sm:$0xff]
    %v950 = vld [vmem:[#allocation9 + $0x4e8] sm:$0xff]
    %v951 = vld [vmem:[#allocation9 + $0x4f0] sm:$0xff]
    %v952 = vld [vmem:[#allocation9 + $0x4f8] sm:$0xff]
    %v953 = vld [vmem:[#allocation9 + $0x500] sm:$0xff]
    %v954 = vld [vmem:[#allocation9 + $0x508] sm:$0xff]
    %v955 = vld [vmem:[#allocation9 + $0x510] sm:$0xff]
    %v956 = vld [vmem:[#allocation9 + $0x518] sm:$0xff]
    %v957 = vld [vmem:[#allocation9 + $0x520] sm:$0xff]
    %v958 = vld [vmem:[#allocation9 + $0x528] sm:$0xff]
    %v959 = vld [vmem:[#allocation9 + $0x530] sm:$0xff]
    %v960 = vld [vmem:[#allocation9 + $0x538] sm:$0xff]
    %v961 = vld [vmem:[#allocation9 + $0x540] sm:$0xff]
    %v962 = vld [vmem:[#allocation9 + $0x548] sm:$0xff]
    %v963 = vld [vmem:[#allocation9 + $0x550] sm:$0xff]
    %v964 = vld [vmem:[#allocation9 + $0x558] sm:$0xff]
    %v965 = vld [vmem:[#allocation9 + $0x560] sm:$0xff]
    %v966 = vld [vmem:[#allocation9 + $0x568] sm:$0xff]
    %v967 = vld [vmem:[#allocation9 + $0x570] sm:$0xff]
    %v968 = vld [vmem:[#allocation9 + $0x578] sm:$0xff]
    %v969 = vld [vmem:[#allocation9 + $0x580] sm:$0xff]
    %v970 = vld [vmem:[#allocation9 + $0x588] sm:$0xff]
    %v971 = vld [vmem:[#allocation9 + $0x590] sm:$0xff]
    %v972 = vld [vmem:[#allocation9 + $0x598] sm:$0xff]
    %v973 = vld [vmem:[#allocation9 + $0x5a0] sm:$0xff]
    %v974 = vld [vmem:[#allocation9 + $0x5a8] sm:$0xff]
    %v975 = vld [vmem:[#allocation9 + $0x5b0] sm:$0xff]
    %v976 = vld [vmem:[#allocation9 + $0x5b8] sm:$0xff]
    %v977 = vld [vmem:[#allocation9 + $0x5c0] sm:$0xff]
    %v978 = vld [vmem:[#allocation9 + $0x5c8] sm:$0xff]
    %v979 = vld [vmem:[#allocation9 + $0x5d0] sm:$0xff]
    %v980 = vld [vmem:[#allocation9 + $0x5d8] sm:$0xff]
    %v981 = vld [vmem:[#allocation9 + $0x5e0] sm:$0xff]
    %v982 = vld [vmem:[#allocation9 + $0x5e8] sm:$0xff]
    %v983 = vld [vmem:[#allocation9 + $0x5f0] sm:$0xff]
    %v984 = vld [vmem:[#allocation9 + $0x5f8] sm:$0xff]
    %v985 = vld [vmem:[#allocation9 + $0x600] sm:$0xff]
    %v986 = vld [vmem:[#allocation9 + $0x608] sm:$0xff]
    %v987 = vld [vmem:[#allocation9 + $0x610] sm:$0xff]
    %v988 = vld [vmem:[#allocation9 + $0x618] sm:$0xff]
    %v989 = vld [vmem:[#allocation9 + $0x620] sm:$0xff]
    %v990 = vld [vmem:[#allocation9 + $0x628] sm:$0xff]
    %v991 = vld [vmem:[#allocation9 + $0x630] sm:$0xff]
    %v992 = vld [vmem:[#allocation9 + $0x638] sm:$0xff]
    %v993 = vld [vmem:[#allocation9 + $0x640] sm:$0xff]
    %v994 = vld [vmem:[#allocation9 + $0x648] sm:$0xff]
    %v995 = vld [vmem:[#allocation9 + $0x650] sm:$0xff]
    %v996 = vld [vmem:[#allocation9 + $0x658] sm:$0xff]
    %v997 = vld [vmem:[#allocation9 + $0x660] sm:$0xff]
    %v998 = vld [vmem:[#allocation9 + $0x668] sm:$0xff]
    %v999 = vld [vmem:[#allocation9 + $0x670] sm:$0xff]
    %v1000 = vld [vmem:[#allocation9 + $0x678] sm:$0xff]
    %v1001 = vld [vmem:[#allocation9 + $0x680] sm:$0xff]
    %v1002 = vld [vmem:[#allocation9 + $0x688] sm:$0xff]
    %v1003 = vld [vmem:[#allocation9 + $0x690] sm:$0xff]
    %v1004 = vld [vmem:[#allocation9 + $0x698] sm:$0xff]
    %v1005 = vld [vmem:[#allocation9 + $0x6a0] sm:$0xff]
    %v1006 = vld [vmem:[#allocation9 + $0x6a8] sm:$0xff]
    %v1007 = vld [vmem:[#allocation9 + $0x6b0] sm:$0xff]
    %v1008 = vld [vmem:[#allocation9 + $0x6b8] sm:$0xff]
    %v1009 = vld [vmem:[#allocation9 + $0x6c0] sm:$0xff]
    %v1010 = vld [vmem:[#allocation9 + $0x6c8] sm:$0xff]
    %v1011 = vld [vmem:[#allocation9 + $0x6d0] sm:$0xff]
    %v1012 = vld [vmem:[#allocation9 + $0x6d8] sm:$0xff]
    %v1013 = vld [vmem:[#allocation9 + $0x6e0] sm:$0xff]
    %v1014 = vld [vmem:[#allocation9 + $0x6e8] sm:$0xff]
    %v1015 = vld [vmem:[#allocation9 + $0x6f0] sm:$0xff]
    %v1016 = vld [vmem:[#allocation9 + $0x6f8] sm:$0xff]
    %v1017 = vld [vmem:[#allocation9 + $0x700] sm:$0xff]
    %v1018 = vld [vmem:[#allocation9 + $0x708] sm:$0xff]
    %v1019 = vld [vmem:[#allocation9 + $0x710] sm:$0xff]
    %v1020 = vld [vmem:[#allocation9 + $0x718] sm:$0xff]
    %v1021 = vld [vmem:[#allocation9 + $0x720] sm:$0xff]
    %v1022 = vld [vmem:[#allocation9 + $0x728] sm:$0xff]
    %v1023 = vld [vmem:[#allocation9 + $0x730] sm:$0xff]
    %v1024 = vld [vmem:[#allocation9 + $0x738] sm:$0xff]
    %v1025 = vld [vmem:[#allocation9 + $0x740] sm:$0xff]
    %v1026 = vld [vmem:[#allocation9 + $0x748] sm:$0xff]
    %v1027 = vld [vmem:[#allocation9 + $0x750] sm:$0xff]
    %v1028 = vld [vmem:[#allocation9 + $0x758] sm:$0xff]
    %v1029 = vld [vmem:[#allocation9 + $0x760] sm:$0xff]
    %v1030 = vld [vmem:[#allocation9 + $0x768] sm:$0xff]
    %v1031 = vld [vmem:[#allocation9 + $0x770] sm:$0xff]
    %v1032 = vld [vmem:[#allocation9 + $0x778] sm:$0xff]
    %v1033 = vld [vmem:[#allocation9 + $0x780] sm:$0xff]
    %v1034 = vld [vmem:[#allocation9 + $0x788] sm:$0xff]
    %v1035 = vld [vmem:[#allocation9 + $0x790] sm:$0xff]
    %v1036 = vld [vmem:[#allocation9 + $0x798] sm:$0xff]
    %v1037 = vld [vmem:[#allocation9 + $0x7a0] sm:$0xff]
    %v1038 = vld [vmem:[#allocation9 + $0x7a8] sm:$0xff]
    %v1039 = vld [vmem:[#allocation9 + $0x7b0] sm:$0xff]
    %v1040 = vld [vmem:[#allocation9 + $0x7b8] sm:$0xff]
    %v1041 = vld [vmem:[#allocation9 + $0x7c0] sm:$0xff]
    %v1042 = vld [vmem:[#allocation9 + $0x7c8] sm:$0xff]
    %v1043 = vld [vmem:[#allocation9 + $0x7d0] sm:$0xff]
    %v1044 = vld [vmem:[#allocation9 + $0x7d8] sm:$0xff]
    %v1045 = vld [vmem:[#allocation9 + $0x7e0] sm:$0xff]
    %v1046 = vld [vmem:[#allocation9 + $0x7e8] sm:$0xff]
    %v1047 = vld [vmem:[#allocation9 + $0x7f0] sm:$0xff]
    %v1048 = vld [vmem:[#allocation9 + $0x7f8] sm:$0xff]
    %v1049 = vld [vmem:[#allocation9 + $0x800] sm:$0xff]
    %v1050 = vld [vmem:[#allocation9 + $0x808] sm:$0xff]
    %v1051 = vld [vmem:[#allocation9 + $0x810] sm:$0xff]
    %v1052 = vld [vmem:[#allocation9 + $0x818] sm:$0xff]
    %v1053 = vld [vmem:[#allocation9 + $0x820] sm:$0xff]
    %v1054 = vld [vmem:[#allocation9 + $0x828] sm:$0xff]
    %v1055 = vld [vmem:[#allocation9 + $0x830] sm:$0xff]
    %v1056 = vld [vmem:[#allocation9 + $0x838] sm:$0xff]
    %v1057 = vld [vmem:[#allocation9 + $0x840] sm:$0xff]
    %v1058 = vld [vmem:[#allocation9 + $0x848] sm:$0xff]
    %v1059 = vld [vmem:[#allocation9 + $0x850] sm:$0xff]
    %v1060 = vld [vmem:[#allocation9 + $0x858] sm:$0xff]
    %v1061 = vld [vmem:[#allocation9 + $0x860] sm:$0xff]
    %v1062 = vld [vmem:[#allocation9 + $0x868] sm:$0xff]
    %v1063 = vld [vmem:[#allocation9 + $0x870] sm:$0xff]
    %v1064 = vld [vmem:[#allocation9 + $0x878] sm:$0xff]
    %v1065 = vld [vmem:[#allocation9 + $0x880] sm:$0xff]
    %v1066 = vld [vmem:[#allocation9 + $0x888] sm:$0xff]
    %v1067 = vld [vmem:[#allocation9 + $0x890] sm:$0xff]
    %v1068 = vld [vmem:[#allocation9 + $0x898] sm:$0xff]
    %v1069 = vld [vmem:[#allocation9 + $0x8a0] sm:$0xff]
    %v1070 = vld [vmem:[#allocation9 + $0x8a8] sm:$0xff]
    %v1071 = vld [vmem:[#allocation9 + $0x8b0] sm:$0xff]
    %v1072 = vld [vmem:[#allocation9 + $0x8b8] sm:$0xff]
    %v1073 = vld [vmem:[#allocation9 + $0x8c0] sm:$0xff]
    %v1074 = vld [vmem:[#allocation9 + $0x8c8] sm:$0xff]
    %v1075 = vld [vmem:[#allocation9 + $0x8d0] sm:$0xff]
    %v1076 = vld [vmem:[#allocation9 + $0x8d8] sm:$0xff]
    %v1077 = vld [vmem:[#allocation9 + $0x8e0] sm:$0xff]
    %v1078 = vld [vmem:[#allocation9 + $0x8e8] sm:$0xff]
    %v1079 = vld [vmem:[#allocation9 + $0x8f0] sm:$0xff]
    %v1080 = vld [vmem:[#allocation9 + $0x8f8] sm:$0xff]
    %v1081 = vld [vmem:[#allocation9 + $0x900] sm:$0xff]
    %v1082 = vld [vmem:[#allocation9 + $0x908] sm:$0xff]
    %v1083 = vld [vmem:[#allocation9 + $0x910] sm:$0xff]
    %v1084 = vld [vmem:[#allocation9 + $0x918] sm:$0xff]
    %v1085 = vld [vmem:[#allocation9 + $0x920] sm:$0xff]
    %v1086 = vld [vmem:[#allocation9 + $0x928] sm:$0xff]
    %v1087 = vld [vmem:[#allocation9 + $0x930] sm:$0xff]
    %v1088 = vld [vmem:[#allocation9 + $0x938] sm:$0xff]
    %v1089 = vld [vmem:[#allocation9 + $0x940] sm:$0xff]
    %v1090 = vld [vmem:[#allocation9 + $0x948] sm:$0xff]
    %v1091 = vld [vmem:[#allocation9 + $0x950] sm:$0xff]
    %v1092 = vld [vmem:[#allocation9 + $0x958] sm:$0xff]
    %v1093 = vld [vmem:[#allocation9 + $0x960] sm:$0xff]
    %v1094 = vld [vmem:[#allocation9 + $0x968] sm:$0xff]
    %v1095 = vld [vmem:[#allocation9 + $0x970] sm:$0xff]
    %v1096 = vld [vmem:[#allocation9 + $0x978] sm:$0xff]
    %v1097 = vld [vmem:[#allocation9 + $0x980] sm:$0xff]
    %v1098 = vld [vmem:[#allocation9 + $0x988] sm:$0xff]
    %v1099 = vld [vmem:[#allocation9 + $0x990] sm:$0xff]
    %v1100 = vld [vmem:[#allocation9 + $0x998] sm:$0xff]
    %v1101 = vld [vmem:[#allocation9 + $0x9a0] sm:$0xff]
    %v1102 = vld [vmem:[#allocation9 + $0x9a8] sm:$0xff]
    %v1103 = vld [vmem:[#allocation9 + $0x9b0] sm:$0xff]
    %v1104 = vld [vmem:[#allocation9 + $0x9b8] sm:$0xff]
    %v1105 = vld [vmem:[#allocation9 + $0x9c0] sm:$0xff]
    %v1106 = vld [vmem:[#allocation9 + $0x9c8] sm:$0xff]
    %v1107 = vld [vmem:[#allocation9 + $0x9d0] sm:$0xff]
    %v1108 = vld [vmem:[#allocation9 + $0x9d8] sm:$0xff]
    %v1109 = vld [vmem:[#allocation9 + $0x9e0] sm:$0xff]
    %v1110 = vld [vmem:[#allocation9 + $0x9e8] sm:$0xff]
    %v1111 = vld [vmem:[#allocation9 + $0x9f0] sm:$0xff]
    %v1112 = vld [vmem:[#allocation9 + $0x9f8] sm:$0xff]
    %v1113 = vld [vmem:[#allocation9 + $0xa00] sm:$0xff]
    %v1114 = vld [vmem:[#allocation9 + $0xa08] sm:$0xff]
    %v1115 = vld [vmem:[#allocation9 + $0xa10] sm:$0xff]
    %v1116 = vld [vmem:[#allocation9 + $0xa18] sm:$0xff]
    %v1117 = vld [vmem:[#allocation9 + $0xa20] sm:$0xff]
    %v1118 = vld [vmem:[#allocation9 + $0xa28] sm:$0xff]
    %v1119 = vld [vmem:[#allocation9 + $0xa30] sm:$0xff]
    %v1120 = vld [vmem:[#allocation9 + $0xa38] sm:$0xff]
    %v1121 = vld [vmem:[#allocation9 + $0xa40] sm:$0xff]
    %v1122 = vld [vmem:[#allocation9 + $0xa48] sm:$0xff]
    %v1123 = vld [vmem:[#allocation9 + $0xa50] sm:$0xff]
    %v1124 = vld [vmem:[#allocation9 + $0xa58] sm:$0xff]
    %v1125 = vld [vmem:[#allocation9 + $0xa60] sm:$0xff]
    %v1126 = vld [vmem:[#allocation9 + $0xa68] sm:$0xff]
    %v1127 = vld [vmem:[#allocation9 + $0xa70] sm:$0xff]
    %v1128 = vld [vmem:[#allocation9 + $0xa78] sm:$0xff]
    %v1129 = vld [vmem:[#allocation9 + $0xa80] sm:$0xff]
    %v1130 = vld [vmem:[#allocation9 + $0xa88] sm:$0xff]
    %v1131 = vld [vmem:[#allocation9 + $0xa90] sm:$0xff]
    %v1132 = vld [vmem:[#allocation9 + $0xa98] sm:$0xff]
    %v1133 = vld [vmem:[#allocation9 + $0xaa0] sm:$0xff]
    %v1134 = vld [vmem:[#allocation9 + $0xaa8] sm:$0xff]
    %v1135 = vld [vmem:[#allocation9 + $0xab0] sm:$0xff]
    %v1136 = vld [vmem:[#allocation9 + $0xab8] sm:$0xff]
    %v1137 = vld [vmem:[#allocation9 + $0xac0] sm:$0xff]
    %v1138 = vld [vmem:[#allocation9 + $0xac8] sm:$0xff]
    %v1139 = vld [vmem:[#allocation9 + $0xad0] sm:$0xff]
    %v1140 = vld [vmem:[#allocation9 + $0xad8] sm:$0xff]
    %v1141 = vld [vmem:[#allocation9 + $0xae0] sm:$0xff]
    %v1142 = vld [vmem:[#allocation9 + $0xae8] sm:$0xff]
    %v1143 = vld [vmem:[#allocation9 + $0xaf0] sm:$0xff]
    %v1144 = vld [vmem:[#allocation9 + $0xaf8] sm:$0xff]
    %v1145 = vld [vmem:[#allocation9 + $0xb00] sm:$0xff]
    %v1146 = vld [vmem:[#allocation9 + $0xb08] sm:$0xff]
    %v1147 = vld [vmem:[#allocation9 + $0xb10] sm:$0xff]
    %v1148 = vld [vmem:[#allocation9 + $0xb18] sm:$0xff]
    %v1149 = vld [vmem:[#allocation9 + $0xb20] sm:$0xff]
    %v1150 = vld [vmem:[#allocation9 + $0xb28] sm:$0xff]
    %v1151 = vld [vmem:[#allocation9 + $0xb30] sm:$0xff]
    %v1152 = vld [vmem:[#allocation9 + $0xb38] sm:$0xff]
    %v1153 = vld [vmem:[#allocation9 + $0xb40] sm:$0xff]
    %v1154 = vld [vmem:[#allocation9 + $0xb48] sm:$0xff]
    %v1155 = vld [vmem:[#allocation9 + $0xb50] sm:$0xff]
    %v1156 = vld [vmem:[#allocation9 + $0xb58] sm:$0xff]
    %v1157 = vld [vmem:[#allocation9 + $0xb60] sm:$0xff]
    %v1158 = vld [vmem:[#allocation9 + $0xb68] sm:$0xff]
    %v1159 = vld [vmem:[#allocation9 + $0xb70] sm:$0xff]
    %v1160 = vld [vmem:[#allocation9 + $0xb78] sm:$0xff]
    %v1161 = vld [vmem:[#allocation9 + $0xb80] sm:$0xff]
    %v1162 = vld [vmem:[#allocation9 + $0xb88] sm:$0xff]
    %v1163 = vld [vmem:[#allocation9 + $0xb90] sm:$0xff]
    %v1164 = vld [vmem:[#allocation9 + $0xb98] sm:$0xff]
    %v1165 = vld [vmem:[#allocation9 + $0xba0] sm:$0xff]
    %v1166 = vld [vmem:[#allocation9 + $0xba8] sm:$0xff]
    %v1167 = vld [vmem:[#allocation9 + $0xbb0] sm:$0xff]
    %v1168 = vld [vmem:[#allocation9 + $0xbb8] sm:$0xff]
    %v1169 = vld [vmem:[#allocation9 + $0xbc0] sm:$0xff]
    %v1170 = vld [vmem:[#allocation9 + $0xbc8] sm:$0xff]
    %v1171 = vld [vmem:[#allocation9 + $0xbd0] sm:$0xff]
    %v1172 = vld [vmem:[#allocation9 + $0xbd8] sm:$0xff]
    %v1173 = vld [vmem:[#allocation9 + $0xbe0] sm:$0xff]
    %v1174 = vld [vmem:[#allocation9 + $0xbe8] sm:$0xff]
    %v1175 = vld [vmem:[#allocation9 + $0xbf0] sm:$0xff]
    %v1176 = vld [vmem:[#allocation9 + $0xbf8] sm:$0xff]
    %v1177 = vld [vmem:[#allocation9 + $0xc00] sm:$0xff]
    %v1178 = vld [vmem:[#allocation9 + $0xc08] sm:$0xff]
    %v1179 = vld [vmem:[#allocation9 + $0xc10] sm:$0xff]
    %v1180 = vld [vmem:[#allocation9 + $0xc18] sm:$0xff]
    %v1181 = vld [vmem:[#allocation9 + $0xc20] sm:$0xff]
    %v1182 = vld [vmem:[#allocation9 + $0xc28] sm:$0xff]
    %v1183 = vld [vmem:[#allocation9 + $0xc30] sm:$0xff]
    %v1184 = vld [vmem:[#allocation9 + $0xc38] sm:$0xff]
    %v1185 = vld [vmem:[#allocation9 + $0xc40] sm:$0xff]
    %v1186 = vld [vmem:[#allocation9 + $0xc48] sm:$0xff]
    %v1187 = vld [vmem:[#allocation9 + $0xc50] sm:$0xff]
    %v1188 = vld [vmem:[#allocation9 + $0xc58] sm:$0xff]
    %v1189 = vld [vmem:[#allocation9 + $0xc60] sm:$0xff]
    %v1190 = vld [vmem:[#allocation9 + $0xc68] sm:$0xff]
    %v1191 = vld [vmem:[#allocation9 + $0xc70] sm:$0xff]
    %v1192 = vld [vmem:[#allocation9 + $0xc78] sm:$0xff]
    %v1193 = vld [vmem:[#allocation9 + $0xc80] sm:$0xff]
    %v1194 = vld [vmem:[#allocation9 + $0xc88] sm:$0xff]
    %v1195 = vld [vmem:[#allocation9 + $0xc90] sm:$0xff]
    %v1196 = vld [vmem:[#allocation9 + $0xc98] sm:$0xff]
    %v1197 = vld [vmem:[#allocation9 + $0xca0] sm:$0xff]
    %v1198 = vld [vmem:[#allocation9 + $0xca8] sm:$0xff]
    %v1199 = vld [vmem:[#allocation9 + $0xcb0] sm:$0xff]
    %v1200 = vld [vmem:[#allocation9 + $0xcb8] sm:$0xff]
    %v1201 = vld [vmem:[#allocation9 + $0xcc0] sm:$0xff]
    %v1202 = vld [vmem:[#allocation9 + $0xcc8] sm:$0xff]
    %v1203 = vld [vmem:[#allocation9 + $0xcd0] sm:$0xff]
    %v1204 = vld [vmem:[#allocation9 + $0xcd8] sm:$0xff]
    %v1205 = vld [vmem:[#allocation9 + $0xce0] sm:$0xff]
    %v1206 = vld [vmem:[#allocation9 + $0xce8] sm:$0xff]
    %v1207 = vld [vmem:[#allocation9 + $0xcf0] sm:$0xff]
    %v1208 = vld [vmem:[#allocation9 + $0xcf8] sm:$0xff]
    %v1209 = vld [vmem:[#allocation9 + $0xd00] sm:$0xff]
    %v1210 = vld [vmem:[#allocation9 + $0xd08] sm:$0xff]
    %v1211 = vld [vmem:[#allocation9 + $0xd10] sm:$0xff]
    %v1212 = vld [vmem:[#allocation9 + $0xd18] sm:$0xff]
    %v1213 = vld [vmem:[#allocation9 + $0xd20] sm:$0xff]
    %v1214 = vld [vmem:[#allocation9 + $0xd28] sm:$0xff]
    %v1215 = vld [vmem:[#allocation9 + $0xd30] sm:$0xff]
    %v1216 = vld [vmem:[#allocation9 + $0xd38] sm:$0xff]
    %v1217 = vld [vmem:[#allocation9 + $0xd40] sm:$0xff]
    %v1218 = vld [vmem:[#allocation9 + $0xd48] sm:$0xff]
    %v1219 = vld [vmem:[#allocation9 + $0xd50] sm:$0xff]
    %v1220 = vld [vmem:[#allocation9 + $0xd58] sm:$0xff]
    %v1221 = vld [vmem:[#allocation9 + $0xd60] sm:$0xff]
    %v1222 = vld [vmem:[#allocation9 + $0xd68] sm:$0xff]
    %v1223 = vld [vmem:[#allocation9 + $0xd70] sm:$0xff]
    %v1224 = vld [vmem:[#allocation9 + $0xd78] sm:$0xff]
    %1225 = vmatpush.msra.mxu0 %v838
    %1226 = vmatpush.msra.mxu0 %v835
    %1227 = vmatpush.msra.mxu0 %v832
    %1228 = vmatpush.msra.mxu0 %v829
    %1229 = vmatpush.msra.mxu0 %v826
    %1230 = vmatpush.msra.mxu0 %v823
    %1231 = vmatpush.msra.mxu0 %v820
    %1232 = vmatpush.msra.mxu0 %v817
    %1233 = vmatpush.msra.mxu0 %v814
    %1234 = vmatpush.msra.mxu0 %v811
    %1235 = vmatpush.msra.mxu0 %v808
    %1236 = vmatpush.msra.mxu0 %v805
    %1237 = vmatpush.msra.mxu0 %v802
    %1238 = vmatpush.msra.mxu0 %v799
    %1239 = vmatpush.msra.mxu0 %v796
    %1240 = vmatpush.msra.mxu0 %v793
    %1241 = vmatmul.f32.gmra.mxu0 %v568
    %v1242 = vpop.f32.mrf.mxu0
    %v1243 = vadd.f32 0.0, %v1242
    %1244 = vmatmul.f32.gmra.mxu0 %v577
    %v1245 = vpop.f32.mrf.mxu0
    %v1246 = vadd.f32 0.0, %v1245
    %1247 = vmatmul.f32.gmra.mxu0 %v586
    %v1248 = vpop.f32.mrf.mxu0
    %v1249 = vadd.f32 0.0, %v1248
    %1250 = vmatmul.f32.gmra.mxu0 %v595
    %v1251 = vpop.f32.mrf.mxu0
    %v1252 = vadd.f32 0.0, %v1251
    %1253 = vmatmul.f32.gmra.mxu0 %v604
    %v1254 = vpop.f32.mrf.mxu0
    %v1255 = vadd.f32 0.0, %v1254
    %1256 = vmatmul.f32.gmra.mxu0 %v613
    %v1257 = vpop.f32.mrf.mxu0
    %v1258 = vadd.f32 0.0, %v1257
    %1259 = vmatmul.f32.gmra.mxu0 %v622
    %v1260 = vpop.f32.mrf.mxu0
    %v1261 = vadd.f32 0.0, %v1260
    %1262 = vmatmul.f32.gmra.mxu0 %v631
    %v1263 = vpop.f32.mrf.mxu0
    %v1264 = vadd.f32 0.0, %v1263
    %1265 = vmatmul.f32.gmra.mxu0 %v640
    %v1266 = vpop.f32.mrf.mxu0
    %v1267 = vadd.f32 0.0, %v1266
    %1268 = vmatmul.f32.gmra.mxu0 %v649
    %v1269 = vpop.f32.mrf.mxu0
    %v1270 = vadd.f32 0.0, %v1269
    %1271 = vmatmul.f32.gmra.mxu0 %v658
    %v1272 = vpop.f32.mrf.mxu0
    %v1273 = vadd.f32 0.0, %v1272
    %1274 = vmatmul.f32.gmra.mxu0 %v667
    %v1275 = vpop.f32.mrf.mxu0
    %v1276 = vadd.f32 0.0, %v1275
    %1277 = vmatmul.f32.gmra.mxu0 %v676
    %v1278 = vpop.f32.mrf.mxu0
    %v1279 = vadd.f32 0.0, %v1278
    %1280 = vmatmul.f32.gmra.mxu0 %v685
    %v1281 = vpop.f32.mrf.mxu0
    %v1282 = vadd.f32 0.0, %v1281
    %1283 = vmatmul.f32.gmra.mxu0 %v694
    %v1284 = vpop.f32.mrf.mxu0
    %v1285 = vadd.f32 0.0, %v1284
    %1286 = vmatmul.f32.gmra.mxu0 %v703
    %v1287 = vpop.f32.mrf.mxu0
    %v1288 = vadd.f32 0.0, %v1287
    %1289 = vmatmul.f32.gmra.mxu0 %v712
    %v1290 = vpop.f32.mrf.mxu0
    %v1291 = vadd.f32 0.0, %v1290
    %1292 = vmatmul.f32.gmra.mxu0 %v721
    %v1293 = vpop.f32.mrf.mxu0
    %v1294 = vadd.f32 0.0, %v1293
    %1295 = vmatmul.f32.gmra.mxu0 %v730
    %v1296 = vpop.f32.mrf.mxu0
    %v1297 = vadd.f32 0.0, %v1296
    %1298 = vmatmul.f32.gmra.mxu0 %v739
    %v1299 = vpop.f32.mrf.mxu0
    %v1300 = vadd.f32 0.0, %v1299
    %1301 = vmatmul.f32.gmra.mxu0 %v748
    %v1302 = vpop.f32.mrf.mxu0
    %v1303 = vadd.f32 0.0, %v1302
    %1304 = vmatmul.f32.gmra.mxu0 %v757
    %v1305 = vpop.f32.mrf.mxu0
    %v1306 = vadd.f32 0.0, %v1305
    %1307 = vmatmul.f32.gmra.mxu0 %v766
    %v1308 = vpop.f32.mrf.mxu0
    %v1309 = vadd.f32 0.0, %v1308
    %1310 = vmatmul.f32.gmra.mxu0 %v775
    %v1311 = vpop.f32.mrf.mxu0
    %v1312 = vadd.f32 0.0, %v1311
    %1313 = vmatmul.f32.gmra.mxu0 %v784
    %v1314 = vpop.f32.mrf.mxu0
    %v1315 = vadd.f32 0.0, %v1314
    %1316 = vdwg.mxu0
    %1317 = vmatpush.msra.mxu0 %v886
    %1318 = vmatpush.msra.mxu0 %v883
    %1319 = vmatpush.msra.mxu0 %v880
    %1320 = vmatpush.msra.mxu0 %v877
    %1321 = vmatpush.msra.mxu0 %v874
    %1322 = vmatpush.msra.mxu0 %v871
    %1323 = vmatpush.msra.mxu0 %v868
    %1324 = vmatpush.msra.mxu0 %v865
    %1325 = vmatpush.msra.mxu0 %v862
    %1326 = vmatpush.msra.mxu0 %v859
    %1327 = vmatpush.msra.mxu0 %v856
    %1328 = vmatpush.msra.mxu0 %v853
    %1329 = vmatpush.msra.mxu0 %v850
    %1330 = vmatpush.msra.mxu0 %v847
    %1331 = vmatpush.msra.mxu0 %v844
    %1332 = vmatpush.msra.mxu0 %v841
    %1333 = vmatmul.f32.gmra.mxu0 %v569
    %v1334 = vpop.f32.mrf.mxu0
    %v1335 = vadd.f32 %v1243, %v1334
    %1336 = vmatmul.f32.gmra.mxu0 %v578
    %v1337 = vpop.f32.mrf.mxu0
    %v1338 = vadd.f32 %v1246, %v1337
    %1339 = vmatmul.f32.gmra.mxu0 %v587
    %v1340 = vpop.f32.mrf.mxu0
    %v1341 = vadd.f32 %v1249, %v1340
    %1342 = vmatmul.f32.gmra.mxu0 %v596
    %v1343 = vpop.f32.mrf.mxu0
    %v1344 = vadd.f32 %v1252, %v1343
    %1345 = vmatmul.f32.gmra.mxu0 %v605
    %v1346 = vpop.f32.mrf.mxu0
    %v1347 = vadd.f32 %v1255, %v1346
    %1348 = vmatmul.f32.gmra.mxu0 %v614
    %v1349 = vpop.f32.mrf.mxu0
    %v1350 = vadd.f32 %v1258, %v1349
    %1351 = vmatmul.f32.gmra.mxu0 %v623
    %v1352 = vpop.f32.mrf.mxu0
    %v1353 = vadd.f32 %v1261, %v1352
    %1354 = vmatmul.f32.gmra.mxu0 %v632
    %v1355 = vpop.f32.mrf.mxu0
    %v1356 = vadd.f32 %v1264, %v1355
    %1357 = vmatmul.f32.gmra.mxu0 %v641
    %v1358 = vpop.f32.mrf.mxu0
    %v1359 = vadd.f32 %v1267, %v1358
    %1360 = vmatmul.f32.gmra.mxu0 %v650
    %v1361 = vpop.f32.mrf.mxu0
    %v1362 = vadd.f32 %v1270, %v1361
    %1363 = vmatmul.f32.gmra.mxu0 %v659
    %v1364 = vpop.f32.mrf.mxu0
    %v1365 = vadd.f32 %v1273, %v1364
    %1366 = vmatmul.f32.gmra.mxu0 %v668
    %v1367 = vpop.f32.mrf.mxu0
    %v1368 = vadd.f32 %v1276, %v1367
    %1369 = vmatmul.f32.gmra.mxu0 %v677
    %v1370 = vpop.f32.mrf.mxu0
    %v1371 = vadd.f32 %v1279, %v1370
    %1372 = vmatmul.f32.gmra.mxu0 %v686
    %v1373 = vpop.f32.mrf.mxu0
    %v1374 = vadd.f32 %v1282, %v1373
    %1375 = vmatmul.f32.gmra.mxu0 %v695
    %v1376 = vpop.f32.mrf.mxu0
    %v1377 = vadd.f32 %v1285, %v1376
    %1378 = vmatmul.f32.gmra.mxu0 %v704
    %v1379 = vpop.f32.mrf.mxu0
    %v1380 = vadd.f32 %v1288, %v1379
    %1381 = vmatmul.f32.gmra.mxu0 %v713
    %v1382 = vpop.f32.mrf.mxu0
    %v1383 = vadd.f32 %v1291, %v1382
    %1384 = vmatmul.f32.gmra.mxu0 %v722
    %v1385 = vpop.f32.mrf.mxu0
    %v1386 = vadd.f32 %v1294, %v1385
    %1387 = vmatmul.f32.gmra.mxu0 %v731
    %v1388 = vpop.f32.mrf.mxu0
    %v1389 = vadd.f32 %v1297, %v1388
    %1390 = vmatmul.f32.gmra.mxu0 %v740
    %v1391 = vpop.f32.mrf.mxu0
    %v1392 = vadd.f32 %v1300, %v1391
    %1393 = vmatmul.f32.gmra.mxu0 %v749
    %v1394 = vpop.f32.mrf.mxu0
    %v1395 = vadd.f32 %v1303, %v1394
    %1396 = vmatmul.f32.gmra.mxu0 %v758
    %v1397 = vpop.f32.mrf.mxu0
    %v1398 = vadd.f32 %v1306, %v1397
    %1399 = vmatmul.f32.gmra.mxu0 %v767
    %v1400 = vpop.f32.mrf.mxu0
    %v1401 = vadd.f32 %v1309, %v1400
    %1402 = vmatmul.f32.gmra.mxu0 %v776
    %v1403 = vpop.f32.mrf.mxu0
    %v1404 = vadd.f32 %v1312, %v1403
    %1405 = vmatmul.f32.gmra.mxu0 %v785
    %v1406 = vpop.f32.mrf.mxu0
    %v1407 = vadd.f32 %v1315, %v1406
    %1408 = vdwg.mxu0
    %1409 = vmatpush.msra.mxu0 %v934
    %1410 = vmatpush.msra.mxu0 %v931
    %1411 = vmatpush.msra.mxu0 %v928
    %1412 = vmatpush.msra.mxu0 %v925
    %1413 = vmatpush.msra.mxu0 %v922
    %1414 = vmatpush.msra.mxu0 %v919
    %1415 = vmatpush.msra.mxu0 %v916
    %1416 = vmatpush.msra.mxu0 %v913
    %1417 = vmatpush.msra.mxu0 %v910
    %1418 = vmatpush.msra.mxu0 %v907
    %1419 = vmatpush.msra.mxu0 %v904
    %1420 = vmatpush.msra.mxu0 %v901
    %1421 = vmatpush.msra.mxu0 %v898
    %1422 = vmatpush.msra.mxu0 %v895
    %1423 = vmatpush.msra.mxu0 %v892
    %1424 = vmatpush.msra.mxu0 %v889
    %1425 = vmatmul.f32.gmra.mxu0 %v570
    %v1426 = vpop.f32.mrf.mxu0
    %v1427 = vadd.f32 %v1335, %v1426
    %1428 = vmatmul.f32.gmra.mxu0 %v579
    %v1429 = vpop.f32.mrf.mxu0
    %v1430 = vadd.f32 %v1338, %v1429
    %1431 = vmatmul.f32.gmra.mxu0 %v588
    %v1432 = vpop.f32.mrf.mxu0
    %v1433 = vadd.f32 %v1341, %v1432
    %1434 = vmatmul.f32.gmra.mxu0 %v597
    %v1435 = vpop.f32.mrf.mxu0
    %v1436 = vadd.f32 %v1344, %v1435
    %1437 = vmatmul.f32.gmra.mxu0 %v606
    %v1438 = vpop.f32.mrf.mxu0
    %v1439 = vadd.f32 %v1347, %v1438
    %1440 = vmatmul.f32.gmra.mxu0 %v615
    %v1441 = vpop.f32.mrf.mxu0
    %v1442 = vadd.f32 %v1350, %v1441
    %1443 = vmatmul.f32.gmra.mxu0 %v624
    %v1444 = vpop.f32.mrf.mxu0
    %v1445 = vadd.f32 %v1353, %v1444
    %1446 = vmatmul.f32.gmra.mxu0 %v633
    %v1447 = vpop.f32.mrf.mxu0
    %v1448 = vadd.f32 %v1356, %v1447
    %1449 = vmatmul.f32.gmra.mxu0 %v642
    %v1450 = vpop.f32.mrf.mxu0
    %v1451 = vadd.f32 %v1359, %v1450
    %1452 = vmatmul.f32.gmra.mxu0 %v651
    %v1453 = vpop.f32.mrf.mxu0
    %v1454 = vadd.f32 %v1362, %v1453
    %1455 = vmatmul.f32.gmra.mxu0 %v660
    %v1456 = vpop.f32.mrf.mxu0
    %v1457 = vadd.f32 %v1365, %v1456
    %1458 = vmatmul.f32.gmra.mxu0 %v669
    %v1459 = vpop.f32.mrf.mxu0
    %v1460 = vadd.f32 %v1368, %v1459
    %1461 = vmatmul.f32.gmra.mxu0 %v678
    %v1462 = vpop.f32.mrf.mxu0
    %v1463 = vadd.f32 %v1371, %v1462
    %1464 = vmatmul.f32.gmra.mxu0 %v687
    %v1465 = vpop.f32.mrf.mxu0
    %v1466 = vadd.f32 %v1374, %v1465
    %1467 = vmatmul.f32.gmra.mxu0 %v696
    %v1468 = vpop.f32.mrf.mxu0
    %v1469 = vadd.f32 %v1377, %v1468
    %1470 = vmatmul.f32.gmra.mxu0 %v705
    %v1471 = vpop.f32.mrf.mxu0
    %v1472 = vadd.f32 %v1380, %v1471
    %1473 = vmatmul.f32.gmra.mxu0 %v714
    %v1474 = vpop.f32.mrf.mxu0
    %v1475 = vadd.f32 %v1383, %v1474
    %1476 = vmatmul.f32.gmra.mxu0 %v723
    %v1477 = vpop.f32.mrf.mxu0
    %v1478 = vadd.f32 %v1386, %v1477
    %1479 = vmatmul.f32.gmra.mxu0 %v732
    %v1480 = vpop.f32.mrf.mxu0
    %v1481 = vadd.f32 %v1389, %v1480
    %1482 = vmatmul.f32.gmra.mxu0 %v741
    %v1483 = vpop.f32.mrf.mxu0
    %v1484 = vadd.f32 %v1392, %v1483
    %1485 = vmatmul.f32.gmra.mxu0 %v750
    %v1486 = vpop.f32.mrf.mxu0
    %v1487 = vadd.f32 %v1395, %v1486
    %1488 = vmatmul.f32.gmra.mxu0 %v759
    %v1489 = vpop.f32.mrf.mxu0
    %v1490 = vadd.f32 %v1398, %v1489
    %1491 = vmatmul.f32.gmra.mxu0 %v768
    %v1492 = vpop.f32.mrf.mxu0
    %v1493 = vadd.f32 %v1401, %v1492
    %1494 = vmatmul.f32.gmra.mxu0 %v777
    %v1495 = vpop.f32.mrf.mxu0
    %v1496 = vadd.f32 %v1404, %v1495
    %1497 = vmatmul.f32.gmra.mxu0 %v786
    %v1498 = vpop.f32.mrf.mxu0
    %v1499 = vadd.f32 %v1407, %v1498
    %1500 = vdwg.mxu0
    %1501 = vmatpush.msra.mxu0 %v982
    %1502 = vmatpush.msra.mxu0 %v979
    %1503 = vmatpush.msra.mxu0 %v976
    %1504 = vmatpush.msra.mxu0 %v973
    %1505 = vmatpush.msra.mxu0 %v970
    %1506 = vmatpush.msra.mxu0 %v967
    %1507 = vmatpush.msra.mxu0 %v964
    %1508 = vmatpush.msra.mxu0 %v961
    %1509 = vmatpush.msra.mxu0 %v958
    %1510 = vmatpush.msra.mxu0 %v955
    %1511 = vmatpush.msra.mxu0 %v952
    %1512 = vmatpush.msra.mxu0 %v949
    %1513 = vmatpush.msra.mxu0 %v946
    %1514 = vmatpush.msra.mxu0 %v943
    %1515 = vmatpush.msra.mxu0 %v940
    %1516 = vmatpush.msra.mxu0 %v937
    %1517 = vmatmul.f32.gmra.mxu0 %v571
    %v1518 = vpop.f32.mrf.mxu0
    %v1519 = vadd.f32 %v1427, %v1518
    %1520 = vmatmul.f32.gmra.mxu0 %v580
    %v1521 = vpop.f32.mrf.mxu0
    %v1522 = vadd.f32 %v1430, %v1521
    %1523 = vmatmul.f32.gmra.mxu0 %v589
    %v1524 = vpop.f32.mrf.mxu0
    %v1525 = vadd.f32 %v1433, %v1524
    %1526 = vmatmul.f32.gmra.mxu0 %v598
    %v1527 = vpop.f32.mrf.mxu0
    %v1528 = vadd.f32 %v1436, %v1527
    %1529 = vmatmul.f32.gmra.mxu0 %v607
    %v1530 = vpop.f32.mrf.mxu0
    %v1531 = vadd.f32 %v1439, %v1530
    %1532 = vmatmul.f32.gmra.mxu0 %v616
    %v1533 = vpop.f32.mrf.mxu0
    %v1534 = vadd.f32 %v1442, %v1533
    %1535 = vmatmul.f32.gmra.mxu0 %v625
    %v1536 = vpop.f32.mrf.mxu0
    %v1537 = vadd.f32 %v1445, %v1536
    %1538 = vmatmul.f32.gmra.mxu0 %v634
    %v1539 = vpop.f32.mrf.mxu0
    %v1540 = vadd.f32 %v1448, %v1539
    %1541 = vmatmul.f32.gmra.mxu0 %v643
    %v1542 = vpop.f32.mrf.mxu0
    %v1543 = vadd.f32 %v1451, %v1542
    %1544 = vmatmul.f32.gmra.mxu0 %v652
    %v1545 = vpop.f32.mrf.mxu0
    %v1546 = vadd.f32 %v1454, %v1545
    %1547 = vmatmul.f32.gmra.mxu0 %v661
    %v1548 = vpop.f32.mrf.mxu0
    %v1549 = vadd.f32 %v1457, %v1548
    %1550 = vmatmul.f32.gmra.mxu0 %v670
    %v1551 = vpop.f32.mrf.mxu0
    %v1552 = vadd.f32 %v1460, %v1551
    %1553 = vmatmul.f32.gmra.mxu0 %v679
    %v1554 = vpop.f32.mrf.mxu0
    %v1555 = vadd.f32 %v1463, %v1554
    %1556 = vmatmul.f32.gmra.mxu0 %v688
    %v1557 = vpop.f32.mrf.mxu0
    %v1558 = vadd.f32 %v1466, %v1557
    %1559 = vmatmul.f32.gmra.mxu0 %v697
    %v1560 = vpop.f32.mrf.mxu0
    %v1561 = vadd.f32 %v1469, %v1560
    %1562 = vmatmul.f32.gmra.mxu0 %v706
    %v1563 = vpop.f32.mrf.mxu0
    %v1564 = vadd.f32 %v1472, %v1563
    %1565 = vmatmul.f32.gmra.mxu0 %v715
    %v1566 = vpop.f32.mrf.mxu0
    %v1567 = vadd.f32 %v1475, %v1566
    %1568 = vmatmul.f32.gmra.mxu0 %v724
    %v1569 = vpop.f32.mrf.mxu0
    %v1570 = vadd.f32 %v1478, %v1569
    %1571 = vmatmul.f32.gmra.mxu0 %v733
    %v1572 = vpop.f32.mrf.mxu0
    %v1573 = vadd.f32 %v1481, %v1572
    %1574 = vmatmul.f32.gmra.mxu0 %v742
    %v1575 = vpop.f32.mrf.mxu0
    %v1576 = vadd.f32 %v1484, %v1575
    %1577 = vmatmul.f32.gmra.mxu0 %v751
    %v1578 = vpop.f32.mrf.mxu0
    %v1579 = vadd.f32 %v1487, %v1578
    %1580 = vmatmul.f32.gmra.mxu0 %v760
    %v1581 = vpop.f32.mrf.mxu0
    %v1582 = vadd.f32 %v1490, %v1581
    %1583 = vmatmul.f32.gmra.mxu0 %v769
    %v1584 = vpop.f32.mrf.mxu0
    %v1585 = vadd.f32 %v1493, %v1584
    %1586 = vmatmul.f32.gmra.mxu0 %v778
    %v1587 = vpop.f32.mrf.mxu0
    %v1588 = vadd.f32 %v1496, %v1587
    %1589 = vmatmul.f32.gmra.mxu0 %v787
    %v1590 = vpop.f32.mrf.mxu0
    %v1591 = vadd.f32 %v1499, %v1590
    %1592 = vdwg.mxu0
    %1593 = vmatpush.msra.mxu0 %v1030
    %1594 = vmatpush.msra.mxu0 %v1027
    %1595 = vmatpush.msra.mxu0 %v1024
    %1596 = vmatpush.msra.mxu0 %v1021
    %1597 = vmatpush.msra.mxu0 %v1018
    %1598 = vmatpush.msra.mxu0 %v1015
    %1599 = vmatpush.msra.mxu0 %v1012
    %1600 = vmatpush.msra.mxu0 %v1009
    %1601 = vmatpush.msra.mxu0 %v1006
    %1602 = vmatpush.msra.mxu0 %v1003
    %1603 = vmatpush.msra.mxu0 %v1000
    %1604 = vmatpush.msra.mxu0 %v997
    %1605 = vmatpush.msra.mxu0 %v994
    %1606 = vmatpush.msra.mxu0 %v991
    %1607 = vmatpush.msra.mxu0 %v988
    %1608 = vmatpush.msra.mxu0 %v985
    %1609 = vmatmul.f32.gmra.mxu0 %v572
    %v1610 = vpop.f32.mrf.mxu0
    %v1611 = vadd.f32 %v1519, %v1610
    %1612 = vmatmul.f32.gmra.mxu0 %v581
    %v1613 = vpop.f32.mrf.mxu0
    %v1614 = vadd.f32 %v1522, %v1613
    %1615 = vmatmul.f32.gmra.mxu0 %v590
    %v1616 = vpop.f32.mrf.mxu0
    %v1617 = vadd.f32 %v1525, %v1616
    %1618 = vmatmul.f32.gmra.mxu0 %v599
    %v1619 = vpop.f32.mrf.mxu0
    %v1620 = vadd.f32 %v1528, %v1619
    %1621 = vmatmul.f32.gmra.mxu0 %v608
    %v1622 = vpop.f32.mrf.mxu0
    %v1623 = vadd.f32 %v1531, %v1622
    %1624 = vmatmul.f32.gmra.mxu0 %v617
    %v1625 = vpop.f32.mrf.mxu0
    %v1626 = vadd.f32 %v1534, %v1625
    %1627 = vmatmul.f32.gmra.mxu0 %v626
    %v1628 = vpop.f32.mrf.mxu0
    %v1629 = vadd.f32 %v1537, %v1628
    %1630 = vmatmul.f32.gmra.mxu0 %v635
    %v1631 = vpop.f32.mrf.mxu0
    %v1632 = vadd.f32 %v1540, %v1631
    %1633 = vmatmul.f32.gmra.mxu0 %v644
    %v1634 = vpop.f32.mrf.mxu0
    %v1635 = vadd.f32 %v1543, %v1634
    %1636 = vmatmul.f32.gmra.mxu0 %v653
    %v1637 = vpop.f32.mrf.mxu0
    %v1638 = vadd.f32 %v1546, %v1637
    %1639 = vmatmul.f32.gmra.mxu0 %v662
    %v1640 = vpop.f32.mrf.mxu0
    %v1641 = vadd.f32 %v1549, %v1640
    %1642 = vmatmul.f32.gmra.mxu0 %v671
    %v1643 = vpop.f32.mrf.mxu0
    %v1644 = vadd.f32 %v1552, %v1643
    %1645 = vmatmul.f32.gmra.mxu0 %v680
    %v1646 = vpop.f32.mrf.mxu0
    %v1647 = vadd.f32 %v1555, %v1646
    %1648 = vmatmul.f32.gmra.mxu0 %v689
    %v1649 = vpop.f32.mrf.mxu0
    %v1650 = vadd.f32 %v1558, %v1649
    %1651 = vmatmul.f32.gmra.mxu0 %v698
    %v1652 = vpop.f32.mrf.mxu0
    %v1653 = vadd.f32 %v1561, %v1652
    %1654 = vmatmul.f32.gmra.mxu0 %v707
    %v1655 = vpop.f32.mrf.mxu0
    %v1656 = vadd.f32 %v1564, %v1655
    %1657 = vmatmul.f32.gmra.mxu0 %v716
    %v1658 = vpop.f32.mrf.mxu0
    %v1659 = vadd.f32 %v1567, %v1658
    %1660 = vmatmul.f32.gmra.mxu0 %v725
    %v1661 = vpop.f32.mrf.mxu0
    %v1662 = vadd.f32 %v1570, %v1661
    %1663 = vmatmul.f32.gmra.mxu0 %v734
    %v1664 = vpop.f32.mrf.mxu0
    %v1665 = vadd.f32 %v1573, %v1664
    %1666 = vmatmul.f32.gmra.mxu0 %v743
    %v1667 = vpop.f32.mrf.mxu0
    %v1668 = vadd.f32 %v1576, %v1667
    %1669 = vmatmul.f32.gmra.mxu0 %v752
    %v1670 = vpop.f32.mrf.mxu0
    %v1671 = vadd.f32 %v1579, %v1670
    %1672 = vmatmul.f32.gmra.mxu0 %v761
    %v1673 = vpop.f32.mrf.mxu0
    %v1674 = vadd.f32 %v1582, %v1673
    %1675 = vmatmul.f32.gmra.mxu0 %v770
    %v1676 = vpop.f32.mrf.mxu0
    %v1677 = vadd.f32 %v1585, %v1676
    %1678 = vmatmul.f32.gmra.mxu0 %v779
    %v1679 = vpop.f32.mrf.mxu0
    %v1680 = vadd.f32 %v1588, %v1679
    %1681 = vmatmul.f32.gmra.mxu0 %v788
    %v1682 = vpop.f32.mrf.mxu0
    %v1683 = vadd.f32 %v1591, %v1682
    %1684 = vdwg.mxu0
    %1685 = vmatpush.msra.mxu0 %v1078
    %1686 = vmatpush.msra.mxu0 %v1075
    %1687 = vmatpush.msra.mxu0 %v1072
    %1688 = vmatpush.msra.mxu0 %v1069
    %1689 = vmatpush.msra.mxu0 %v1066
    %1690 = vmatpush.msra.mxu0 %v1063
    %1691 = vmatpush.msra.mxu0 %v1060
    %1692 = vmatpush.msra.mxu0 %v1057
    %1693 = vmatpush.msra.mxu0 %v1054
    %1694 = vmatpush.msra.mxu0 %v1051
    %1695 = vmatpush.msra.mxu0 %v1048
    %1696 = vmatpush.msra.mxu0 %v1045
    %1697 = vmatpush.msra.mxu0 %v1042
    %1698 = vmatpush.msra.mxu0 %v1039
    %1699 = vmatpush.msra.mxu0 %v1036
    %1700 = vmatpush.msra.mxu0 %v1033
    %1701 = vmatmul.f32.gmra.mxu0 %v573
    %v1702 = vpop.f32.mrf.mxu0
    %v1703 = vadd.f32 %v1611, %v1702
    %1704 = vmatmul.f32.gmra.mxu0 %v582
    %v1705 = vpop.f32.mrf.mxu0
    %v1706 = vadd.f32 %v1614, %v1705
    %1707 = vmatmul.f32.gmra.mxu0 %v591
    %v1708 = vpop.f32.mrf.mxu0
    %v1709 = vadd.f32 %v1617, %v1708
    %1710 = vmatmul.f32.gmra.mxu0 %v600
    %v1711 = vpop.f32.mrf.mxu0
    %v1712 = vadd.f32 %v1620, %v1711
    %1713 = vmatmul.f32.gmra.mxu0 %v609
    %v1714 = vpop.f32.mrf.mxu0
    %v1715 = vadd.f32 %v1623, %v1714
    %1716 = vmatmul.f32.gmra.mxu0 %v618
    %v1717 = vpop.f32.mrf.mxu0
    %v1718 = vadd.f32 %v1626, %v1717
    %1719 = vmatmul.f32.gmra.mxu0 %v627
    %v1720 = vpop.f32.mrf.mxu0
    %v1721 = vadd.f32 %v1629, %v1720
    %1722 = vmatmul.f32.gmra.mxu0 %v636
    %v1723 = vpop.f32.mrf.mxu0
    %v1724 = vadd.f32 %v1632, %v1723
    %1725 = vmatmul.f32.gmra.mxu0 %v645
    %v1726 = vpop.f32.mrf.mxu0
    %v1727 = vadd.f32 %v1635, %v1726
    %1728 = vmatmul.f32.gmra.mxu0 %v654
    %v1729 = vpop.f32.mrf.mxu0
    %v1730 = vadd.f32 %v1638, %v1729
    %1731 = vmatmul.f32.gmra.mxu0 %v663
    %v1732 = vpop.f32.mrf.mxu0
    %v1733 = vadd.f32 %v1641, %v1732
    %1734 = vmatmul.f32.gmra.mxu0 %v672
    %v1735 = vpop.f32.mrf.mxu0
    %v1736 = vadd.f32 %v1644, %v1735
    %1737 = vmatmul.f32.gmra.mxu0 %v681
    %v1738 = vpop.f32.mrf.mxu0
    %v1739 = vadd.f32 %v1647, %v1738
    %1740 = vmatmul.f32.gmra.mxu0 %v690
    %v1741 = vpop.f32.mrf.mxu0
    %v1742 = vadd.f32 %v1650, %v1741
    %1743 = vmatmul.f32.gmra.mxu0 %v699
    %v1744 = vpop.f32.mrf.mxu0
    %v1745 = vadd.f32 %v1653, %v1744
    %1746 = vmatmul.f32.gmra.mxu0 %v708
    %v1747 = vpop.f32.mrf.mxu0
    %v1748 = vadd.f32 %v1656, %v1747
    %1749 = vmatmul.f32.gmra.mxu0 %v717
    %v1750 = vpop.f32.mrf.mxu0
    %v1751 = vadd.f32 %v1659, %v1750
    %1752 = vmatmul.f32.gmra.mxu0 %v726
    %v1753 = vpop.f32.mrf.mxu0
    %v1754 = vadd.f32 %v1662, %v1753
    %1755 = vmatmul.f32.gmra.mxu0 %v735
    %v1756 = vpop.f32.mrf.mxu0
    %v1757 = vadd.f32 %v1665, %v1756
    %1758 = vmatmul.f32.gmra.mxu0 %v744
    %v1759 = vpop.f32.mrf.mxu0
    %v1760 = vadd.f32 %v1668, %v1759
    %1761 = vmatmul.f32.gmra.mxu0 %v753
    %v1762 = vpop.f32.mrf.mxu0
    %v1763 = vadd.f32 %v1671, %v1762
    %1764 = vmatmul.f32.gmra.mxu0 %v762
    %v1765 = vpop.f32.mrf.mxu0
    %v1766 = vadd.f32 %v1674, %v1765
    %1767 = vmatmul.f32.gmra.mxu0 %v771
    %v1768 = vpop.f32.mrf.mxu0
    %v1769 = vadd.f32 %v1677, %v1768
    %1770 = vmatmul.f32.gmra.mxu0 %v780
    %v1771 = vpop.f32.mrf.mxu0
    %v1772 = vadd.f32 %v1680, %v1771
    %1773 = vmatmul.f32.gmra.mxu0 %v789
    %v1774 = vpop.f32.mrf.mxu0
    %v1775 = vadd.f32 %v1683, %v1774
    %1776 = vdwg.mxu0
    %1777 = vmatpush.msra.mxu0 %v1126
    %1778 = vmatpush.msra.mxu0 %v1123
    %1779 = vmatpush.msra.mxu0 %v1120
    %1780 = vmatpush.msra.mxu0 %v1117
    %1781 = vmatpush.msra.mxu0 %v1114
    %1782 = vmatpush.msra.mxu0 %v1111
    %1783 = vmatpush.msra.mxu0 %v1108
    %1784 = vmatpush.msra.mxu0 %v1105
    %1785 = vmatpush.msra.mxu0 %v1102
    %1786 = vmatpush.msra.mxu0 %v1099
    %1787 = vmatpush.msra.mxu0 %v1096
    %1788 = vmatpush.msra.mxu0 %v1093
    %1789 = vmatpush.msra.mxu0 %v1090
    %1790 = vmatpush.msra.mxu0 %v1087
    %1791 = vmatpush.msra.mxu0 %v1084
    %1792 = vmatpush.msra.mxu0 %v1081
    %1793 = vmatmul.f32.gmra.mxu0 %v574
    %v1794 = vpop.f32.mrf.mxu0
    %v1795 = vadd.f32 %v1703, %v1794
    %1796 = vmatmul.f32.gmra.mxu0 %v583
    %v1797 = vpop.f32.mrf.mxu0
    %v1798 = vadd.f32 %v1706, %v1797
    %1799 = vmatmul.f32.gmra.mxu0 %v592
    %v1800 = vpop.f32.mrf.mxu0
    %v1801 = vadd.f32 %v1709, %v1800
    %1802 = vmatmul.f32.gmra.mxu0 %v601
    %v1803 = vpop.f32.mrf.mxu0
    %v1804 = vadd.f32 %v1712, %v1803
    %1805 = vmatmul.f32.gmra.mxu0 %v610
    %v1806 = vpop.f32.mrf.mxu0
    %v1807 = vadd.f32 %v1715, %v1806
    %1808 = vmatmul.f32.gmra.mxu0 %v619
    %v1809 = vpop.f32.mrf.mxu0
    %v1810 = vadd.f32 %v1718, %v1809
    %1811 = vmatmul.f32.gmra.mxu0 %v628
    %v1812 = vpop.f32.mrf.mxu0
    %v1813 = vadd.f32 %v1721, %v1812
    %1814 = vmatmul.f32.gmra.mxu0 %v637
    %v1815 = vpop.f32.mrf.mxu0
    %v1816 = vadd.f32 %v1724, %v1815
    %1817 = vmatmul.f32.gmra.mxu0 %v646
    %v1818 = vpop.f32.mrf.mxu0
    %v1819 = vadd.f32 %v1727, %v1818
    %1820 = vmatmul.f32.gmra.mxu0 %v655
    %v1821 = vpop.f32.mrf.mxu0
    %v1822 = vadd.f32 %v1730, %v1821
    %1823 = vmatmul.f32.gmra.mxu0 %v664
    %v1824 = vpop.f32.mrf.mxu0
    %v1825 = vadd.f32 %v1733, %v1824
    %1826 = vmatmul.f32.gmra.mxu0 %v673
    %v1827 = vpop.f32.mrf.mxu0
    %v1828 = vadd.f32 %v1736, %v1827
    %1829 = vmatmul.f32.gmra.mxu0 %v682
    %v1830 = vpop.f32.mrf.mxu0
    %v1831 = vadd.f32 %v1739, %v1830
    %1832 = vmatmul.f32.gmra.mxu0 %v691
    %v1833 = vpop.f32.mrf.mxu0
    %v1834 = vadd.f32 %v1742, %v1833
    %1835 = vmatmul.f32.gmra.mxu0 %v700
    %v1836 = vpop.f32.mrf.mxu0
    %v1837 = vadd.f32 %v1745, %v1836
    %1838 = vmatmul.f32.gmra.mxu0 %v709
    %v1839 = vpop.f32.mrf.mxu0
    %v1840 = vadd.f32 %v1748, %v1839
    %1841 = vmatmul.f32.gmra.mxu0 %v718
    %v1842 = vpop.f32.mrf.mxu0
    %v1843 = vadd.f32 %v1751, %v1842
    %1844 = vmatmul.f32.gmra.mxu0 %v727
    %v1845 = vpop.f32.mrf.mxu0
    %v1846 = vadd.f32 %v1754, %v1845
    %1847 = vmatmul.f32.gmra.mxu0 %v736
    %v1848 = vpop.f32.mrf.mxu0
    %v1849 = vadd.f32 %v1757, %v1848
    %1850 = vmatmul.f32.gmra.mxu0 %v745
    %v1851 = vpop.f32.mrf.mxu0
    %v1852 = vadd.f32 %v1760, %v1851
    %1853 = vmatmul.f32.gmra.mxu0 %v754
    %v1854 = vpop.f32.mrf.mxu0
    %v1855 = vadd.f32 %v1763, %v1854
    %1856 = vmatmul.f32.gmra.mxu0 %v763
    %v1857 = vpop.f32.mrf.mxu0
    %v1858 = vadd.f32 %v1766, %v1857
    %1859 = vmatmul.f32.gmra.mxu0 %v772
    %v1860 = vpop.f32.mrf.mxu0
    %v1861 = vadd.f32 %v1769, %v1860
    %1862 = vmatmul.f32.gmra.mxu0 %v781
    %v1863 = vpop.f32.mrf.mxu0
    %v1864 = vadd.f32 %v1772, %v1863
    %1865 = vmatmul.f32.gmra.mxu0 %v790
    %v1866 = vpop.f32.mrf.mxu0
    %v1867 = vadd.f32 %v1775, %v1866
    %1868 = vdwg.mxu0
    %1869 = vmatpush.msra.mxu0 %v1174
    %1870 = vmatpush.msra.mxu0 %v1171
    %1871 = vmatpush.msra.mxu0 %v1168
    %1872 = vmatpush.msra.mxu0 %v1165
    %1873 = vmatpush.msra.mxu0 %v1162
    %1874 = vmatpush.msra.mxu0 %v1159
    %1875 = vmatpush.msra.mxu0 %v1156
    %1876 = vmatpush.msra.mxu0 %v1153
    %1877 = vmatpush.msra.mxu0 %v1150
    %1878 = vmatpush.msra.mxu0 %v1147
    %1879 = vmatpush.msra.mxu0 %v1144
    %1880 = vmatpush.msra.mxu0 %v1141
    %1881 = vmatpush.msra.mxu0 %v1138
    %1882 = vmatpush.msra.mxu0 %v1135
    %1883 = vmatpush.msra.mxu0 %v1132
    %1884 = vmatpush.msra.mxu0 %v1129
    %1885 = vmatmul.f32.gmra.mxu0 %v575
    %v1886 = vpop.f32.mrf.mxu0
    %v1887 = vadd.f32 %v1795, %v1886
    %1888 = vmatmul.f32.gmra.mxu0 %v584
    %v1889 = vpop.f32.mrf.mxu0
    %v1890 = vadd.f32 %v1798, %v1889
    %1891 = vmatmul.f32.gmra.mxu0 %v593
    %v1892 = vpop.f32.mrf.mxu0
    %v1893 = vadd.f32 %v1801, %v1892
    %1894 = vmatmul.f32.gmra.mxu0 %v602
    %v1895 = vpop.f32.mrf.mxu0
    %v1896 = vadd.f32 %v1804, %v1895
    %1897 = vmatmul.f32.gmra.mxu0 %v611
    %v1898 = vpop.f32.mrf.mxu0
    %v1899 = vadd.f32 %v1807, %v1898
    %1900 = vmatmul.f32.gmra.mxu0 %v620
    %v1901 = vpop.f32.mrf.mxu0
    %v1902 = vadd.f32 %v1810, %v1901
    %1903 = vmatmul.f32.gmra.mxu0 %v629
    %v1904 = vpop.f32.mrf.mxu0
    %v1905 = vadd.f32 %v1813, %v1904
    %1906 = vmatmul.f32.gmra.mxu0 %v638
    %v1907 = vpop.f32.mrf.mxu0
    %v1908 = vadd.f32 %v1816, %v1907
    %1909 = vmatmul.f32.gmra.mxu0 %v647
    %v1910 = vpop.f32.mrf.mxu0
    %v1911 = vadd.f32 %v1819, %v1910
    %1912 = vmatmul.f32.gmra.mxu0 %v656
    %v1913 = vpop.f32.mrf.mxu0
    %v1914 = vadd.f32 %v1822, %v1913
    %1915 = vmatmul.f32.gmra.mxu0 %v665
    %v1916 = vpop.f32.mrf.mxu0
    %v1917 = vadd.f32 %v1825, %v1916
    %1918 = vmatmul.f32.gmra.mxu0 %v674
    %v1919 = vpop.f32.mrf.mxu0
    %v1920 = vadd.f32 %v1828, %v1919
    %1921 = vmatmul.f32.gmra.mxu0 %v683
    %v1922 = vpop.f32.mrf.mxu0
    %v1923 = vadd.f32 %v1831, %v1922
    %1924 = vmatmul.f32.gmra.mxu0 %v692
    %v1925 = vpop.f32.mrf.mxu0
    %v1926 = vadd.f32 %v1834, %v1925
    %1927 = vmatmul.f32.gmra.mxu0 %v701
    %v1928 = vpop.f32.mrf.mxu0
    %v1929 = vadd.f32 %v1837, %v1928
    %1930 = vmatmul.f32.gmra.mxu0 %v710
    %v1931 = vpop.f32.mrf.mxu0
    %v1932 = vadd.f32 %v1840, %v1931
    %1933 = vmatmul.f32.gmra.mxu0 %v719
    %v1934 = vpop.f32.mrf.mxu0
    %v1935 = vadd.f32 %v1843, %v1934
    %1936 = vmatmul.f32.gmra.mxu0 %v728
    %v1937 = vpop.f32.mrf.mxu0
    %v1938 = vadd.f32 %v1846, %v1937
    %1939 = vmatmul.f32.gmra.mxu0 %v737
    %v1940 = vpop.f32.mrf.mxu0
    %v1941 = vadd.f32 %v1849, %v1940
    %1942 = vmatmul.f32.gmra.mxu0 %v746
    %v1943 = vpop.f32.mrf.mxu0
    %v1944 = vadd.f32 %v1852, %v1943
    %1945 = vmatmul.f32.gmra.mxu0 %v755
    %v1946 = vpop.f32.mrf.mxu0
    %v1947 = vadd.f32 %v1855, %v1946
    %1948 = vmatmul.f32.gmra.mxu0 %v764
    %v1949 = vpop.f32.mrf.mxu0
    %v1950 = vadd.f32 %v1858, %v1949
    %1951 = vmatmul.f32.gmra.mxu0 %v773
    %v1952 = vpop.f32.mrf.mxu0
    %v1953 = vadd.f32 %v1861, %v1952
    %1954 = vmatmul.f32.gmra.mxu0 %v782
    %v1955 = vpop.f32.mrf.mxu0
    %v1956 = vadd.f32 %v1864, %v1955
    %1957 = vmatmul.f32.gmra.mxu0 %v791
    %v1958 = vpop.f32.mrf.mxu0
    %v1959 = vadd.f32 %v1867, %v1958
    %1960 = vdwg.mxu0
    %1961 = vmatpush.msra.mxu0 %v1222
    %1962 = vmatpush.msra.mxu0 %v1219
    %1963 = vmatpush.msra.mxu0 %v1216
    %1964 = vmatpush.msra.mxu0 %v1213
    %1965 = vmatpush.msra.mxu0 %v1210
    %1966 = vmatpush.msra.mxu0 %v1207
    %1967 = vmatpush.msra.mxu0 %v1204
    %1968 = vmatpush.msra.mxu0 %v1201
    %1969 = vmatpush.msra.mxu0 %v1198
    %1970 = vmatpush.msra.mxu0 %v1195
    %1971 = vmatpush.msra.mxu0 %v1192
    %1972 = vmatpush.msra.mxu0 %v1189
    %1973 = vmatpush.msra.mxu0 %v1186
    %1974 = vmatpush.msra.mxu0 %v1183
    %1975 = vmatpush.msra.mxu0 %v1180
    %1976 = vmatpush.msra.mxu0 %v1177
    %1977 = vmatmul.f32.gmra.mxu0 %v576
    %v1978 = vpop.f32.mrf.mxu0
    %v1979 = vadd.f32 %v1887, %v1978
    %1980 = vmatmul.f32.gmra.mxu0 %v585
    %v1981 = vpop.f32.mrf.mxu0
    %v1982 = vadd.f32 %v1890, %v1981
    %1983 = vmatmul.f32.gmra.mxu0 %v594
    %v1984 = vpop.f32.mrf.mxu0
    %v1985 = vadd.f32 %v1893, %v1984
    %1986 = vmatmul.f32.gmra.mxu0 %v603
    %v1987 = vpop.f32.mrf.mxu0
    %v1988 = vadd.f32 %v1896, %v1987
    %1989 = vmatmul.f32.gmra.mxu0 %v612
    %v1990 = vpop.f32.mrf.mxu0
    %v1991 = vadd.f32 %v1899, %v1990
    %1992 = vmatmul.f32.gmra.mxu0 %v621
    %v1993 = vpop.f32.mrf.mxu0
    %v1994 = vadd.f32 %v1902, %v1993
    %1995 = vmatmul.f32.gmra.mxu0 %v630
    %v1996 = vpop.f32.mrf.mxu0
    %v1997 = vadd.f32 %v1905, %v1996
    %1998 = vmatmul.f32.gmra.mxu0 %v639
    %v1999 = vpop.f32.mrf.mxu0
    %v2000 = vadd.f32 %v1908, %v1999
    %2001 = vmatmul.f32.gmra.mxu0 %v648
    %v2002 = vpop.f32.mrf.mxu0
    %v2003 = vadd.f32 %v1911, %v2002
    %2004 = vmatmul.f32.gmra.mxu0 %v657
    %v2005 = vpop.f32.mrf.mxu0
    %v2006 = vadd.f32 %v1914, %v2005
    %2007 = vmatmul.f32.gmra.mxu0 %v666
    %v2008 = vpop.f32.mrf.mxu0
    %v2009 = vadd.f32 %v1917, %v2008
    %2010 = vmatmul.f32.gmra.mxu0 %v675
    %v2011 = vpop.f32.mrf.mxu0
    %v2012 = vadd.f32 %v1920, %v2011
    %2013 = vmatmul.f32.gmra.mxu0 %v684
    %v2014 = vpop.f32.mrf.mxu0
    %v2015 = vadd.f32 %v1923, %v2014
    %2016 = vmatmul.f32.gmra.mxu0 %v693
    %v2017 = vpop.f32.mrf.mxu0
    %v2018 = vadd.f32 %v1926, %v2017
    %2019 = vmatmul.f32.gmra.mxu0 %v702
    %v2020 = vpop.f32.mrf.mxu0
    %v2021 = vadd.f32 %v1929, %v2020
    %2022 = vmatmul.f32.gmra.mxu0 %v711
    %v2023 = vpop.f32.mrf.mxu0
    %v2024 = vadd.f32 %v1932, %v2023
    %2025 = vmatmul.f32.gmra.mxu0 %v720
    %v2026 = vpop.f32.mrf.mxu0
    %v2027 = vadd.f32 %v1935, %v2026
    %2028 = vmatmul.f32.gmra.mxu0 %v729
    %v2029 = vpop.f32.mrf.mxu0
    %v2030 = vadd.f32 %v1938, %v2029
    %2031 = vmatmul.f32.gmra.mxu0 %v738
    %v2032 = vpop.f32.mrf.mxu0
    %v2033 = vadd.f32 %v1941, %v2032
    %2034 = vmatmul.f32.gmra.mxu0 %v747
    %v2035 = vpop.f32.mrf.mxu0
    %v2036 = vadd.f32 %v1944, %v2035
    %2037 = vmatmul.f32.gmra.mxu0 %v756
    %v2038 = vpop.f32.mrf.mxu0
    %v2039 = vadd.f32 %v1947, %v2038
    %2040 = vmatmul.f32.gmra.mxu0 %v765
    %v2041 = vpop.f32.mrf.mxu0
    %v2042 = vadd.f32 %v1950, %v2041
    %2043 = vmatmul.f32.gmra.mxu0 %v774
    %v2044 = vpop.f32.mrf.mxu0
    %v2045 = vadd.f32 %v1953, %v2044
    %2046 = vmatmul.f32.gmra.mxu0 %v783
    %v2047 = vpop.f32.mrf.mxu0
    %v2048 = vadd.f32 %v1956, %v2047
    %2049 = vmatmul.f32.gmra.mxu0 %v792
    %v2050 = vpop.f32.mrf.mxu0
    %v2051 = vadd.f32 %v1959, %v2050
    %2052 = vdwg.mxu0
    %2053 = vmatpush.msra.mxu0 %v839
    %2054 = vmatpush.msra.mxu0 %v836
    %2055 = vmatpush.msra.mxu0 %v833
    %2056 = vmatpush.msra.mxu0 %v830
    %2057 = vmatpush.msra.mxu0 %v827
    %2058 = vmatpush.msra.mxu0 %v824
    %2059 = vmatpush.msra.mxu0 %v821
    %2060 = vmatpush.msra.mxu0 %v818
    %2061 = vmatpush.msra.mxu0 %v815
    %2062 = vmatpush.msra.mxu0 %v812
    %2063 = vmatpush.msra.mxu0 %v809
    %2064 = vmatpush.msra.mxu0 %v806
    %2065 = vmatpush.msra.mxu0 %v803
    %2066 = vmatpush.msra.mxu0 %v800
    %2067 = vmatpush.msra.mxu0 %v797
    %2068 = vmatpush.msra.mxu0 %v794
    %2069 = vmatmul.f32.gmra.mxu0 %v568
    %v2070 = vpop.f32.mrf.mxu0
    %v2071 = vadd.f32 0.0, %v2070
    %2072 = vmatmul.f32.gmra.mxu0 %v577
    %v2073 = vpop.f32.mrf.mxu0
    %v2074 = vadd.f32 0.0, %v2073
    %2075 = vmatmul.f32.gmra.mxu0 %v586
    %v2076 = vpop.f32.mrf.mxu0
    %v2077 = vadd.f32 0.0, %v2076
    %2078 = vmatmul.f32.gmra.mxu0 %v595
    %v2079 = vpop.f32.mrf.mxu0
    %v2080 = vadd.f32 0.0, %v2079
    %2081 = vmatmul.f32.gmra.mxu0 %v604
    %v2082 = vpop.f32.mrf.mxu0
    %v2083 = vadd.f32 0.0, %v2082
    %2084 = vmatmul.f32.gmra.mxu0 %v613
    %v2085 = vpop.f32.mrf.mxu0
    %v2086 = vadd.f32 0.0, %v2085
    %2087 = vmatmul.f32.gmra.mxu0 %v622
    %v2088 = vpop.f32.mrf.mxu0
    %v2089 = vadd.f32 0.0, %v2088
    %2090 = vmatmul.f32.gmra.mxu0 %v631
    %v2091 = vpop.f32.mrf.mxu0
    %v2092 = vadd.f32 0.0, %v2091
    %2093 = vmatmul.f32.gmra.mxu0 %v640
    %v2094 = vpop.f32.mrf.mxu0
    %v2095 = vadd.f32 0.0, %v2094
    %2096 = vmatmul.f32.gmra.mxu0 %v649
    %v2097 = vpop.f32.mrf.mxu0
    %v2098 = vadd.f32 0.0, %v2097
    %2099 = vmatmul.f32.gmra.mxu0 %v658
    %v2100 = vpop.f32.mrf.mxu0
    %v2101 = vadd.f32 0.0, %v2100
    %2102 = vmatmul.f32.gmra.mxu0 %v667
    %v2103 = vpop.f32.mrf.mxu0
    %v2104 = vadd.f32 0.0, %v2103
    %2105 = vmatmul.f32.gmra.mxu0 %v676
    %v2106 = vpop.f32.mrf.mxu0
    %v2107 = vadd.f32 0.0, %v2106
    %2108 = vmatmul.f32.gmra.mxu0 %v685
    %v2109 = vpop.f32.mrf.mxu0
    %v2110 = vadd.f32 0.0, %v2109
    %2111 = vmatmul.f32.gmra.mxu0 %v694
    %v2112 = vpop.f32.mrf.mxu0
    %v2113 = vadd.f32 0.0, %v2112
    %2114 = vmatmul.f32.gmra.mxu0 %v703
    %v2115 = vpop.f32.mrf.mxu0
    %v2116 = vadd.f32 0.0, %v2115
    %2117 = vmatmul.f32.gmra.mxu0 %v712
    %v2118 = vpop.f32.mrf.mxu0
    %v2119 = vadd.f32 0.0, %v2118
    %2120 = vmatmul.f32.gmra.mxu0 %v721
    %v2121 = vpop.f32.mrf.mxu0
    %v2122 = vadd.f32 0.0, %v2121
    %2123 = vmatmul.f32.gmra.mxu0 %v730
    %v2124 = vpop.f32.mrf.mxu0
    %v2125 = vadd.f32 0.0, %v2124
    %2126 = vmatmul.f32.gmra.mxu0 %v739
    %v2127 = vpop.f32.mrf.mxu0
    %v2128 = vadd.f32 0.0, %v2127
    %2129 = vmatmul.f32.gmra.mxu0 %v748
    %v2130 = vpop.f32.mrf.mxu0
    %v2131 = vadd.f32 0.0, %v2130
    %2132 = vmatmul.f32.gmra.mxu0 %v757
    %v2133 = vpop.f32.mrf.mxu0
    %v2134 = vadd.f32 0.0, %v2133
    %2135 = vmatmul.f32.gmra.mxu0 %v766
    %v2136 = vpop.f32.mrf.mxu0
    %v2137 = vadd.f32 0.0, %v2136
    %2138 = vmatmul.f32.gmra.mxu0 %v775
    %v2139 = vpop.f32.mrf.mxu0
    %v2140 = vadd.f32 0.0, %v2139
    %2141 = vmatmul.f32.gmra.mxu0 %v784
    %v2142 = vpop.f32.mrf.mxu0
    %v2143 = vadd.f32 0.0, %v2142
    %2144 = vdwg.mxu0
    %2145 = vmatpush.msra.mxu0 %v887
    %2146 = vmatpush.msra.mxu0 %v884
    %2147 = vmatpush.msra.mxu0 %v881
    %2148 = vmatpush.msra.mxu0 %v878
    %2149 = vmatpush.msra.mxu0 %v875
    %2150 = vmatpush.msra.mxu0 %v872
    %2151 = vmatpush.msra.mxu0 %v869
    %2152 = vmatpush.msra.mxu0 %v866
    %2153 = vmatpush.msra.mxu0 %v863
    %2154 = vmatpush.msra.mxu0 %v860
    %2155 = vmatpush.msra.mxu0 %v857
    %2156 = vmatpush.msra.mxu0 %v854
    %2157 = vmatpush.msra.mxu0 %v851
    %2158 = vmatpush.msra.mxu0 %v848
    %2159 = vmatpush.msra.mxu0 %v845
    %2160 = vmatpush.msra.mxu0 %v842
    %2161 = vmatmul.f32.gmra.mxu0 %v569
    %v2162 = vpop.f32.mrf.mxu0
    %v2163 = vadd.f32 %v2071, %v2162
    %2164 = vmatmul.f32.gmra.mxu0 %v578
    %v2165 = vpop.f32.mrf.mxu0
    %v2166 = vadd.f32 %v2074, %v2165
    %2167 = vmatmul.f32.gmra.mxu0 %v587
    %v2168 = vpop.f32.mrf.mxu0
    %v2169 = vadd.f32 %v2077, %v2168
    %2170 = vmatmul.f32.gmra.mxu0 %v596
    %v2171 = vpop.f32.mrf.mxu0
    %v2172 = vadd.f32 %v2080, %v2171
    %2173 = vmatmul.f32.gmra.mxu0 %v605
    %v2174 = vpop.f32.mrf.mxu0
    %v2175 = vadd.f32 %v2083, %v2174
    %2176 = vmatmul.f32.gmra.mxu0 %v614
    %v2177 = vpop.f32.mrf.mxu0
    %v2178 = vadd.f32 %v2086, %v2177
    %2179 = vmatmul.f32.gmra.mxu0 %v623
    %v2180 = vpop.f32.mrf.mxu0
    %v2181 = vadd.f32 %v2089, %v2180
    %2182 = vmatmul.f32.gmra.mxu0 %v632
    %v2183 = vpop.f32.mrf.mxu0
    %v2184 = vadd.f32 %v2092, %v2183
    %2185 = vmatmul.f32.gmra.mxu0 %v641
    %v2186 = vpop.f32.mrf.mxu0
    %v2187 = vadd.f32 %v2095, %v2186
    %2188 = vmatmul.f32.gmra.mxu0 %v650
    %v2189 = vpop.f32.mrf.mxu0
    %v2190 = vadd.f32 %v2098, %v2189
    %2191 = vmatmul.f32.gmra.mxu0 %v659
    %v2192 = vpop.f32.mrf.mxu0
    %v2193 = vadd.f32 %v2101, %v2192
    %2194 = vmatmul.f32.gmra.mxu0 %v668
    %v2195 = vpop.f32.mrf.mxu0
    %v2196 = vadd.f32 %v2104, %v2195
    %2197 = vmatmul.f32.gmra.mxu0 %v677
    %v2198 = vpop.f32.mrf.mxu0
    %v2199 = vadd.f32 %v2107, %v2198
    %2200 = vmatmul.f32.gmra.mxu0 %v686
    %v2201 = vpop.f32.mrf.mxu0
    %v2202 = vadd.f32 %v2110, %v2201
    %2203 = vmatmul.f32.gmra.mxu0 %v695
    %v2204 = vpop.f32.mrf.mxu0
    %v2205 = vadd.f32 %v2113, %v2204
    %2206 = vmatmul.f32.gmra.mxu0 %v704
    %v2207 = vpop.f32.mrf.mxu0
    %v2208 = vadd.f32 %v2116, %v2207
    %2209 = vmatmul.f32.gmra.mxu0 %v713
    %v2210 = vpop.f32.mrf.mxu0
    %v2211 = vadd.f32 %v2119, %v2210
    %2212 = vmatmul.f32.gmra.mxu0 %v722
    %v2213 = vpop.f32.mrf.mxu0
    %v2214 = vadd.f32 %v2122, %v2213
    %2215 = vmatmul.f32.gmra.mxu0 %v731
    %v2216 = vpop.f32.mrf.mxu0
    %v2217 = vadd.f32 %v2125, %v2216
    %2218 = vmatmul.f32.gmra.mxu0 %v740
    %v2219 = vpop.f32.mrf.mxu0
    %v2220 = vadd.f32 %v2128, %v2219
    %2221 = vmatmul.f32.gmra.mxu0 %v749
    %v2222 = vpop.f32.mrf.mxu0
    %v2223 = vadd.f32 %v2131, %v2222
    %2224 = vmatmul.f32.gmra.mxu0 %v758
    %v2225 = vpop.f32.mrf.mxu0
    %v2226 = vadd.f32 %v2134, %v2225
    %2227 = vmatmul.f32.gmra.mxu0 %v767
    %v2228 = vpop.f32.mrf.mxu0
    %v2229 = vadd.f32 %v2137, %v2228
    %2230 = vmatmul.f32.gmra.mxu0 %v776
    %v2231 = vpop.f32.mrf.mxu0
    %v2232 = vadd.f32 %v2140, %v2231
    %2233 = vmatmul.f32.gmra.mxu0 %v785
    %v2234 = vpop.f32.mrf.mxu0
    %v2235 = vadd.f32 %v2143, %v2234
    %2236 = vdwg.mxu0
    %2237 = vmatpush.msra.mxu0 %v935
    %2238 = vmatpush.msra.mxu0 %v932
    %2239 = vmatpush.msra.mxu0 %v929
    %2240 = vmatpush.msra.mxu0 %v926
    %2241 = vmatpush.msra.mxu0 %v923
    %2242 = vmatpush.msra.mxu0 %v920
    %2243 = vmatpush.msra.mxu0 %v917
    %2244 = vmatpush.msra.mxu0 %v914
    %2245 = vmatpush.msra.mxu0 %v911
    %2246 = vmatpush.msra.mxu0 %v908
    %2247 = vmatpush.msra.mxu0 %v905
    %2248 = vmatpush.msra.mxu0 %v902
    %2249 = vmatpush.msra.mxu0 %v899
    %2250 = vmatpush.msra.mxu0 %v896
    %2251 = vmatpush.msra.mxu0 %v893
    %2252 = vmatpush.msra.mxu0 %v890
    %2253 = vmatmul.f32.gmra.mxu0 %v570
    %v2254 = vpop.f32.mrf.mxu0
    %v2255 = vadd.f32 %v2163, %v2254
    %2256 = vmatmul.f32.gmra.mxu0 %v579
    %v2257 = vpop.f32.mrf.mxu0
    %v2258 = vadd.f32 %v2166, %v2257
    %2259 = vmatmul.f32.gmra.mxu0 %v588
    %v2260 = vpop.f32.mrf.mxu0
    %v2261 = vadd.f32 %v2169, %v2260
    %2262 = vmatmul.f32.gmra.mxu0 %v597
    %v2263 = vpop.f32.mrf.mxu0
    %v2264 = vadd.f32 %v2172, %v2263
    %2265 = vmatmul.f32.gmra.mxu0 %v606
    %v2266 = vpop.f32.mrf.mxu0
    %v2267 = vadd.f32 %v2175, %v2266
    %2268 = vmatmul.f32.gmra.mxu0 %v615
    %v2269 = vpop.f32.mrf.mxu0
    %v2270 = vadd.f32 %v2178, %v2269
    %2271 = vmatmul.f32.gmra.mxu0 %v624
    %v2272 = vpop.f32.mrf.mxu0
    %v2273 = vadd.f32 %v2181, %v2272
    %2274 = vmatmul.f32.gmra.mxu0 %v633
    %v2275 = vpop.f32.mrf.mxu0
    %v2276 = vadd.f32 %v2184, %v2275
    %2277 = vmatmul.f32.gmra.mxu0 %v642
    %v2278 = vpop.f32.mrf.mxu0
    %v2279 = vadd.f32 %v2187, %v2278
    %2280 = vmatmul.f32.gmra.mxu0 %v651
    %v2281 = vpop.f32.mrf.mxu0
    %v2282 = vadd.f32 %v2190, %v2281
    %2283 = vmatmul.f32.gmra.mxu0 %v660
    %v2284 = vpop.f32.mrf.mxu0
    %v2285 = vadd.f32 %v2193, %v2284
    %2286 = vmatmul.f32.gmra.mxu0 %v669
    %v2287 = vpop.f32.mrf.mxu0
    %v2288 = vadd.f32 %v2196, %v2287
    %2289 = vmatmul.f32.gmra.mxu0 %v678
    %v2290 = vpop.f32.mrf.mxu0
    %v2291 = vadd.f32 %v2199, %v2290
    %2292 = vmatmul.f32.gmra.mxu0 %v687
    %v2293 = vpop.f32.mrf.mxu0
    %v2294 = vadd.f32 %v2202, %v2293
    %2295 = vmatmul.f32.gmra.mxu0 %v696
    %v2296 = vpop.f32.mrf.mxu0
    %v2297 = vadd.f32 %v2205, %v2296
    %2298 = vmatmul.f32.gmra.mxu0 %v705
    %v2299 = vpop.f32.mrf.mxu0
    %v2300 = vadd.f32 %v2208, %v2299
    %2301 = vmatmul.f32.gmra.mxu0 %v714
    %v2302 = vpop.f32.mrf.mxu0
    %v2303 = vadd.f32 %v2211, %v2302
    %2304 = vmatmul.f32.gmra.mxu0 %v723
    %v2305 = vpop.f32.mrf.mxu0
    %v2306 = vadd.f32 %v2214, %v2305
    %2307 = vmatmul.f32.gmra.mxu0 %v732
    %v2308 = vpop.f32.mrf.mxu0
    %v2309 = vadd.f32 %v2217, %v2308
    %2310 = vmatmul.f32.gmra.mxu0 %v741
    %v2311 = vpop.f32.mrf.mxu0
    %v2312 = vadd.f32 %v2220, %v2311
    %2313 = vmatmul.f32.gmra.mxu0 %v750
    %v2314 = vpop.f32.mrf.mxu0
    %v2315 = vadd.f32 %v2223, %v2314
    %2316 = vmatmul.f32.gmra.mxu0 %v759
    %v2317 = vpop.f32.mrf.mxu0
    %v2318 = vadd.f32 %v2226, %v2317
    %2319 = vmatmul.f32.gmra.mxu0 %v768
    %v2320 = vpop.f32.mrf.mxu0
    %v2321 = vadd.f32 %v2229, %v2320
    %2322 = vmatmul.f32.gmra.mxu0 %v777
    %v2323 = vpop.f32.mrf.mxu0
    %v2324 = vadd.f32 %v2232, %v2323
    %2325 = vmatmul.f32.gmra.mxu0 %v786
    %v2326 = vpop.f32.mrf.mxu0
    %v2327 = vadd.f32 %v2235, %v2326
    %2328 = vdwg.mxu0
    %2329 = vmatpush.msra.mxu0 %v983
    %2330 = vmatpush.msra.mxu0 %v980
    %2331 = vmatpush.msra.mxu0 %v977
    %2332 = vmatpush.msra.mxu0 %v974
    %2333 = vmatpush.msra.mxu0 %v971
    %2334 = vmatpush.msra.mxu0 %v968
    %2335 = vmatpush.msra.mxu0 %v965
    %2336 = vmatpush.msra.mxu0 %v962
    %2337 = vmatpush.msra.mxu0 %v959
    %2338 = vmatpush.msra.mxu0 %v956
    %2339 = vmatpush.msra.mxu0 %v953
    %2340 = vmatpush.msra.mxu0 %v950
    %2341 = vmatpush.msra.mxu0 %v947
    %2342 = vmatpush.msra.mxu0 %v944
    %2343 = vmatpush.msra.mxu0 %v941
    %2344 = vmatpush.msra.mxu0 %v938
    %2345 = vmatmul.f32.gmra.mxu0 %v571
    %v2346 = vpop.f32.mrf.mxu0
    %v2347 = vadd.f32 %v2255, %v2346
    %2348 = vmatmul.f32.gmra.mxu0 %v580
    %v2349 = vpop.f32.mrf.mxu0
    %v2350 = vadd.f32 %v2258, %v2349
    %2351 = vmatmul.f32.gmra.mxu0 %v589
    %v2352 = vpop.f32.mrf.mxu0
    %v2353 = vadd.f32 %v2261, %v2352
    %2354 = vmatmul.f32.gmra.mxu0 %v598
    %v2355 = vpop.f32.mrf.mxu0
    %v2356 = vadd.f32 %v2264, %v2355
    %2357 = vmatmul.f32.gmra.mxu0 %v607
    %v2358 = vpop.f32.mrf.mxu0
    %v2359 = vadd.f32 %v2267, %v2358
    %2360 = vmatmul.f32.gmra.mxu0 %v616
    %v2361 = vpop.f32.mrf.mxu0
    %v2362 = vadd.f32 %v2270, %v2361
    %2363 = vmatmul.f32.gmra.mxu0 %v625
    %v2364 = vpop.f32.mrf.mxu0
    %v2365 = vadd.f32 %v2273, %v2364
    %2366 = vmatmul.f32.gmra.mxu0 %v634
    %v2367 = vpop.f32.mrf.mxu0
    %v2368 = vadd.f32 %v2276, %v2367
    %2369 = vmatmul.f32.gmra.mxu0 %v643
    %v2370 = vpop.f32.mrf.mxu0
    %v2371 = vadd.f32 %v2279, %v2370
    %2372 = vmatmul.f32.gmra.mxu0 %v652
    %v2373 = vpop.f32.mrf.mxu0
    %v2374 = vadd.f32 %v2282, %v2373
    %2375 = vmatmul.f32.gmra.mxu0 %v661
    %v2376 = vpop.f32.mrf.mxu0
    %v2377 = vadd.f32 %v2285, %v2376
    %2378 = vmatmul.f32.gmra.mxu0 %v670
    %v2379 = vpop.f32.mrf.mxu0
    %v2380 = vadd.f32 %v2288, %v2379
    %2381 = vmatmul.f32.gmra.mxu0 %v679
    %v2382 = vpop.f32.mrf.mxu0
    %v2383 = vadd.f32 %v2291, %v2382
    %2384 = vmatmul.f32.gmra.mxu0 %v688
    %v2385 = vpop.f32.mrf.mxu0
    %v2386 = vadd.f32 %v2294, %v2385
    %2387 = vmatmul.f32.gmra.mxu0 %v697
    %v2388 = vpop.f32.mrf.mxu0
    %v2389 = vadd.f32 %v2297, %v2388
    %2390 = vmatmul.f32.gmra.mxu0 %v706
    %v2391 = vpop.f32.mrf.mxu0
    %v2392 = vadd.f32 %v2300, %v2391
    %2393 = vmatmul.f32.gmra.mxu0 %v715
    %v2394 = vpop.f32.mrf.mxu0
    %v2395 = vadd.f32 %v2303, %v2394
    %2396 = vmatmul.f32.gmra.mxu0 %v724
    %v2397 = vpop.f32.mrf.mxu0
    %v2398 = vadd.f32 %v2306, %v2397
    %2399 = vmatmul.f32.gmra.mxu0 %v733
    %v2400 = vpop.f32.mrf.mxu0
    %v2401 = vadd.f32 %v2309, %v2400
    %2402 = vmatmul.f32.gmra.mxu0 %v742
    %v2403 = vpop.f32.mrf.mxu0
    %v2404 = vadd.f32 %v2312, %v2403
    %2405 = vmatmul.f32.gmra.mxu0 %v751
    %v2406 = vpop.f32.mrf.mxu0
    %v2407 = vadd.f32 %v2315, %v2406
    %2408 = vmatmul.f32.gmra.mxu0 %v760
    %v2409 = vpop.f32.mrf.mxu0
    %v2410 = vadd.f32 %v2318, %v2409
    %2411 = vmatmul.f32.gmra.mxu0 %v769
    %v2412 = vpop.f32.mrf.mxu0
    %v2413 = vadd.f32 %v2321, %v2412
    %2414 = vmatmul.f32.gmra.mxu0 %v778
    %v2415 = vpop.f32.mrf.mxu0
    %v2416 = vadd.f32 %v2324, %v2415
    %2417 = vmatmul.f32.gmra.mxu0 %v787
    %v2418 = vpop.f32.mrf.mxu0
    %v2419 = vadd.f32 %v2327, %v2418
    %2420 = vdwg.mxu0
    %2421 = vmatpush.msra.mxu0 %v1031
    %2422 = vmatpush.msra.mxu0 %v1028
    %2423 = vmatpush.msra.mxu0 %v1025
    %2424 = vmatpush.msra.mxu0 %v1022
    %2425 = vmatpush.msra.mxu0 %v1019
    %2426 = vmatpush.msra.mxu0 %v1016
    %2427 = vmatpush.msra.mxu0 %v1013
    %2428 = vmatpush.msra.mxu0 %v1010
    %2429 = vmatpush.msra.mxu0 %v1007
    %2430 = vmatpush.msra.mxu0 %v1004
    %2431 = vmatpush.msra.mxu0 %v1001
    %2432 = vmatpush.msra.mxu0 %v998
    %2433 = vmatpush.msra.mxu0 %v995
    %2434 = vmatpush.msra.mxu0 %v992
    %2435 = vmatpush.msra.mxu0 %v989
    %2436 = vmatpush.msra.mxu0 %v986
    %2437 = vmatmul.f32.gmra.mxu0 %v572
    %v2438 = vpop.f32.mrf.mxu0
    %v2439 = vadd.f32 %v2347, %v2438
    %2440 = vmatmul.f32.gmra.mxu0 %v581
    %v2441 = vpop.f32.mrf.mxu0
    %v2442 = vadd.f32 %v2350, %v2441
    %2443 = vmatmul.f32.gmra.mxu0 %v590
    %v2444 = vpop.f32.mrf.mxu0
    %v2445 = vadd.f32 %v2353, %v2444
    %2446 = vmatmul.f32.gmra.mxu0 %v599
    %v2447 = vpop.f32.mrf.mxu0
    %v2448 = vadd.f32 %v2356, %v2447
    %2449 = vmatmul.f32.gmra.mxu0 %v608
    %v2450 = vpop.f32.mrf.mxu0
    %v2451 = vadd.f32 %v2359, %v2450
    %2452 = vmatmul.f32.gmra.mxu0 %v617
    %v2453 = vpop.f32.mrf.mxu0
    %v2454 = vadd.f32 %v2362, %v2453
    %2455 = vmatmul.f32.gmra.mxu0 %v626
    %v2456 = vpop.f32.mrf.mxu0
    %v2457 = vadd.f32 %v2365, %v2456
    %2458 = vmatmul.f32.gmra.mxu0 %v635
    %v2459 = vpop.f32.mrf.mxu0
    %v2460 = vadd.f32 %v2368, %v2459
    %2461 = vmatmul.f32.gmra.mxu0 %v644
    %v2462 = vpop.f32.mrf.mxu0
    %v2463 = vadd.f32 %v2371, %v2462
    %2464 = vmatmul.f32.gmra.mxu0 %v653
    %v2465 = vpop.f32.mrf.mxu0
    %v2466 = vadd.f32 %v2374, %v2465
    %2467 = vmatmul.f32.gmra.mxu0 %v662
    %v2468 = vpop.f32.mrf.mxu0
    %v2469 = vadd.f32 %v2377, %v2468
    %2470 = vmatmul.f32.gmra.mxu0 %v671
    %v2471 = vpop.f32.mrf.mxu0
    %v2472 = vadd.f32 %v2380, %v2471
    %2473 = vmatmul.f32.gmra.mxu0 %v680
    %v2474 = vpop.f32.mrf.mxu0
    %v2475 = vadd.f32 %v2383, %v2474
    %2476 = vmatmul.f32.gmra.mxu0 %v689
    %v2477 = vpop.f32.mrf.mxu0
    %v2478 = vadd.f32 %v2386, %v2477
    %2479 = vmatmul.f32.gmra.mxu0 %v698
    %v2480 = vpop.f32.mrf.mxu0
    %v2481 = vadd.f32 %v2389, %v2480
    %2482 = vmatmul.f32.gmra.mxu0 %v707
    %v2483 = vpop.f32.mrf.mxu0
    %v2484 = vadd.f32 %v2392, %v2483
    %2485 = vmatmul.f32.gmra.mxu0 %v716
    %v2486 = vpop.f32.mrf.mxu0
    %v2487 = vadd.f32 %v2395, %v2486
    %2488 = vmatmul.f32.gmra.mxu0 %v725
    %v2489 = vpop.f32.mrf.mxu0
    %v2490 = vadd.f32 %v2398, %v2489
    %2491 = vmatmul.f32.gmra.mxu0 %v734
    %v2492 = vpop.f32.mrf.mxu0
    %v2493 = vadd.f32 %v2401, %v2492
    %2494 = vmatmul.f32.gmra.mxu0 %v743
    %v2495 = vpop.f32.mrf.mxu0
    %v2496 = vadd.f32 %v2404, %v2495
    %2497 = vmatmul.f32.gmra.mxu0 %v752
    %v2498 = vpop.f32.mrf.mxu0
    %v2499 = vadd.f32 %v2407, %v2498
    %2500 = vmatmul.f32.gmra.mxu0 %v761
    %v2501 = vpop.f32.mrf.mxu0
    %v2502 = vadd.f32 %v2410, %v2501
    %2503 = vmatmul.f32.gmra.mxu0 %v770
    %v2504 = vpop.f32.mrf.mxu0
    %v2505 = vadd.f32 %v2413, %v2504
    %2506 = vmatmul.f32.gmra.mxu0 %v779
    %v2507 = vpop.f32.mrf.mxu0
    %v2508 = vadd.f32 %v2416, %v2507
    %2509 = vmatmul.f32.gmra.mxu0 %v788
    %v2510 = vpop.f32.mrf.mxu0
    %v2511 = vadd.f32 %v2419, %v2510
    %2512 = vdwg.mxu0
    %2513 = vmatpush.msra.mxu0 %v1079
    %2514 = vmatpush.msra.mxu0 %v1076
    %2515 = vmatpush.msra.mxu0 %v1073
    %2516 = vmatpush.msra.mxu0 %v1070
    %2517 = vmatpush.msra.mxu0 %v1067
    %2518 = vmatpush.msra.mxu0 %v1064
    %2519 = vmatpush.msra.mxu0 %v1061
    %2520 = vmatpush.msra.mxu0 %v1058
    %2521 = vmatpush.msra.mxu0 %v1055
    %2522 = vmatpush.msra.mxu0 %v1052
    %2523 = vmatpush.msra.mxu0 %v1049
    %2524 = vmatpush.msra.mxu0 %v1046
    %2525 = vmatpush.msra.mxu0 %v1043
    %2526 = vmatpush.msra.mxu0 %v1040
    %2527 = vmatpush.msra.mxu0 %v1037
    %2528 = vmatpush.msra.mxu0 %v1034
    %2529 = vmatmul.f32.gmra.mxu0 %v573
    %v2530 = vpop.f32.mrf.mxu0
    %v2531 = vadd.f32 %v2439, %v2530
    %2532 = vmatmul.f32.gmra.mxu0 %v582
    %v2533 = vpop.f32.mrf.mxu0
    %v2534 = vadd.f32 %v2442, %v2533
    %2535 = vmatmul.f32.gmra.mxu0 %v591
    %v2536 = vpop.f32.mrf.mxu0
    %v2537 = vadd.f32 %v2445, %v2536
    %2538 = vmatmul.f32.gmra.mxu0 %v600
    %v2539 = vpop.f32.mrf.mxu0
    %v2540 = vadd.f32 %v2448, %v2539
    %2541 = vmatmul.f32.gmra.mxu0 %v609
    %v2542 = vpop.f32.mrf.mxu0
    %v2543 = vadd.f32 %v2451, %v2542
    %2544 = vmatmul.f32.gmra.mxu0 %v618
    %v2545 = vpop.f32.mrf.mxu0
    %v2546 = vadd.f32 %v2454, %v2545
    %2547 = vmatmul.f32.gmra.mxu0 %v627
    %v2548 = vpop.f32.mrf.mxu0
    %v2549 = vadd.f32 %v2457, %v2548
    %2550 = vmatmul.f32.gmra.mxu0 %v636
    %v2551 = vpop.f32.mrf.mxu0
    %v2552 = vadd.f32 %v2460, %v2551
    %2553 = vmatmul.f32.gmra.mxu0 %v645
    %v2554 = vpop.f32.mrf.mxu0
    %v2555 = vadd.f32 %v2463, %v2554
    %2556 = vmatmul.f32.gmra.mxu0 %v654
    %v2557 = vpop.f32.mrf.mxu0
    %v2558 = vadd.f32 %v2466, %v2557
    %2559 = vmatmul.f32.gmra.mxu0 %v663
    %v2560 = vpop.f32.mrf.mxu0
    %v2561 = vadd.f32 %v2469, %v2560
    %2562 = vmatmul.f32.gmra.mxu0 %v672
    %v2563 = vpop.f32.mrf.mxu0
    %v2564 = vadd.f32 %v2472, %v2563
    %2565 = vmatmul.f32.gmra.mxu0 %v681
    %v2566 = vpop.f32.mrf.mxu0
    %v2567 = vadd.f32 %v2475, %v2566
    %2568 = vmatmul.f32.gmra.mxu0 %v690
    %v2569 = vpop.f32.mrf.mxu0
    %v2570 = vadd.f32 %v2478, %v2569
    %2571 = vmatmul.f32.gmra.mxu0 %v699
    %v2572 = vpop.f32.mrf.mxu0
    %v2573 = vadd.f32 %v2481, %v2572
    %2574 = vmatmul.f32.gmra.mxu0 %v708
    %v2575 = vpop.f32.mrf.mxu0
    %v2576 = vadd.f32 %v2484, %v2575
    %2577 = vmatmul.f32.gmra.mxu0 %v717
    %v2578 = vpop.f32.mrf.mxu0
    %v2579 = vadd.f32 %v2487, %v2578
    %2580 = vmatmul.f32.gmra.mxu0 %v726
    %v2581 = vpop.f32.mrf.mxu0
    %v2582 = vadd.f32 %v2490, %v2581
    %2583 = vmatmul.f32.gmra.mxu0 %v735
    %v2584 = vpop.f32.mrf.mxu0
    %v2585 = vadd.f32 %v2493, %v2584
    %2586 = vmatmul.f32.gmra.mxu0 %v744
    %v2587 = vpop.f32.mrf.mxu0
    %v2588 = vadd.f32 %v2496, %v2587
    %2589 = vmatmul.f32.gmra.mxu0 %v753
    %v2590 = vpop.f32.mrf.mxu0
    %v2591 = vadd.f32 %v2499, %v2590
    %2592 = vmatmul.f32.gmra.mxu0 %v762
    %v2593 = vpop.f32.mrf.mxu0
    %v2594 = vadd.f32 %v2502, %v2593
    %2595 = vmatmul.f32.gmra.mxu0 %v771
    %v2596 = vpop.f32.mrf.mxu0
    %v2597 = vadd.f32 %v2505, %v2596
    %2598 = vmatmul.f32.gmra.mxu0 %v780
    %v2599 = vpop.f32.mrf.mxu0
    %v2600 = vadd.f32 %v2508, %v2599
    %2601 = vmatmul.f32.gmra.mxu0 %v789
    %v2602 = vpop.f32.mrf.mxu0
    %v2603 = vadd.f32 %v2511, %v2602
    %2604 = vdwg.mxu0
    %2605 = vmatpush.msra.mxu0 %v1127
    %2606 = vmatpush.msra.mxu0 %v1124
    %2607 = vmatpush.msra.mxu0 %v1121
    %2608 = vmatpush.msra.mxu0 %v1118
    %2609 = vmatpush.msra.mxu0 %v1115
    %2610 = vmatpush.msra.mxu0 %v1112
    %2611 = vmatpush.msra.mxu0 %v1109
    %2612 = vmatpush.msra.mxu0 %v1106
    %2613 = vmatpush.msra.mxu0 %v1103
    %2614 = vmatpush.msra.mxu0 %v1100
    %2615 = vmatpush.msra.mxu0 %v1097
    %2616 = vmatpush.msra.mxu0 %v1094
    %2617 = vmatpush.msra.mxu0 %v1091
    %2618 = vmatpush.msra.mxu0 %v1088
    %2619 = vmatpush.msra.mxu0 %v1085
    %2620 = vmatpush.msra.mxu0 %v1082
    %2621 = vmatmul.f32.gmra.mxu0 %v574
    %v2622 = vpop.f32.mrf.mxu0
    %v2623 = vadd.f32 %v2531, %v2622
    %2624 = vmatmul.f32.gmra.mxu0 %v583
    %v2625 = vpop.f32.mrf.mxu0
    %v2626 = vadd.f32 %v2534, %v2625
    %2627 = vmatmul.f32.gmra.mxu0 %v592
    %v2628 = vpop.f32.mrf.mxu0
    %v2629 = vadd.f32 %v2537, %v2628
    %2630 = vmatmul.f32.gmra.mxu0 %v601
    %v2631 = vpop.f32.mrf.mxu0
    %v2632 = vadd.f32 %v2540, %v2631
    %2633 = vmatmul.f32.gmra.mxu0 %v610
    %v2634 = vpop.f32.mrf.mxu0
    %v2635 = vadd.f32 %v2543, %v2634
    %2636 = vmatmul.f32.gmra.mxu0 %v619
    %v2637 = vpop.f32.mrf.mxu0
    %v2638 = vadd.f32 %v2546, %v2637
    %2639 = vmatmul.f32.gmra.mxu0 %v628
    %v2640 = vpop.f32.mrf.mxu0
    %v2641 = vadd.f32 %v2549, %v2640
    %2642 = vmatmul.f32.gmra.mxu0 %v637
    %v2643 = vpop.f32.mrf.mxu0
    %v2644 = vadd.f32 %v2552, %v2643
    %2645 = vmatmul.f32.gmra.mxu0 %v646
    %v2646 = vpop.f32.mrf.mxu0
    %v2647 = vadd.f32 %v2555, %v2646
    %2648 = vmatmul.f32.gmra.mxu0 %v655
    %v2649 = vpop.f32.mrf.mxu0
    %v2650 = vadd.f32 %v2558, %v2649
    %2651 = vmatmul.f32.gmra.mxu0 %v664
    %v2652 = vpop.f32.mrf.mxu0
    %v2653 = vadd.f32 %v2561, %v2652
    %2654 = vmatmul.f32.gmra.mxu0 %v673
    %v2655 = vpop.f32.mrf.mxu0
    %v2656 = vadd.f32 %v2564, %v2655
    %2657 = vmatmul.f32.gmra.mxu0 %v682
    %v2658 = vpop.f32.mrf.mxu0
    %v2659 = vadd.f32 %v2567, %v2658
    %2660 = vmatmul.f32.gmra.mxu0 %v691
    %v2661 = vpop.f32.mrf.mxu0
    %v2662 = vadd.f32 %v2570, %v2661
    %2663 = vmatmul.f32.gmra.mxu0 %v700
    %v2664 = vpop.f32.mrf.mxu0
    %v2665 = vadd.f32 %v2573, %v2664
    %2666 = vmatmul.f32.gmra.mxu0 %v709
    %v2667 = vpop.f32.mrf.mxu0
    %v2668 = vadd.f32 %v2576, %v2667
    %2669 = vmatmul.f32.gmra.mxu0 %v718
    %v2670 = vpop.f32.mrf.mxu0
    %v2671 = vadd.f32 %v2579, %v2670
    %2672 = vmatmul.f32.gmra.mxu0 %v727
    %v2673 = vpop.f32.mrf.mxu0
    %v2674 = vadd.f32 %v2582, %v2673
    %2675 = vmatmul.f32.gmra.mxu0 %v736
    %v2676 = vpop.f32.mrf.mxu0
    %v2677 = vadd.f32 %v2585, %v2676
    %2678 = vmatmul.f32.gmra.mxu0 %v745
    %v2679 = vpop.f32.mrf.mxu0
    %v2680 = vadd.f32 %v2588, %v2679
    %2681 = vmatmul.f32.gmra.mxu0 %v754
    %v2682 = vpop.f32.mrf.mxu0
    %v2683 = vadd.f32 %v2591, %v2682
    %2684 = vmatmul.f32.gmra.mxu0 %v763
    %v2685 = vpop.f32.mrf.mxu0
    %v2686 = vadd.f32 %v2594, %v2685
    %2687 = vmatmul.f32.gmra.mxu0 %v772
    %v2688 = vpop.f32.mrf.mxu0
    %v2689 = vadd.f32 %v2597, %v2688
    %2690 = vmatmul.f32.gmra.mxu0 %v781
    %v2691 = vpop.f32.mrf.mxu0
    %v2692 = vadd.f32 %v2600, %v2691
    %2693 = vmatmul.f32.gmra.mxu0 %v790
    %v2694 = vpop.f32.mrf.mxu0
    %v2695 = vadd.f32 %v2603, %v2694
    %2696 = vdwg.mxu0
    %2697 = vmatpush.msra.mxu0 %v1175
    %2698 = vmatpush.msra.mxu0 %v1172
    %2699 = vmatpush.msra.mxu0 %v1169
    %2700 = vmatpush.msra.mxu0 %v1166
    %2701 = vmatpush.msra.mxu0 %v1163
    %2702 = vmatpush.msra.mxu0 %v1160
    %2703 = vmatpush.msra.mxu0 %v1157
    %2704 = vmatpush.msra.mxu0 %v1154
    %2705 = vmatpush.msra.mxu0 %v1151
    %2706 = vmatpush.msra.mxu0 %v1148
    %2707 = vmatpush.msra.mxu0 %v1145
    %2708 = vmatpush.msra.mxu0 %v1142
    %2709 = vmatpush.msra.mxu0 %v1139
    %2710 = vmatpush.msra.mxu0 %v1136
    %2711 = vmatpush.msra.mxu0 %v1133
    %2712 = vmatpush.msra.mxu0 %v1130
    %2713 = vmatmul.f32.gmra.mxu0 %v575
    %v2714 = vpop.f32.mrf.mxu0
    %v2715 = vadd.f32 %v2623, %v2714
    %2716 = vmatmul.f32.gmra.mxu0 %v584
    %v2717 = vpop.f32.mrf.mxu0
    %v2718 = vadd.f32 %v2626, %v2717
    %2719 = vmatmul.f32.gmra.mxu0 %v593
    %v2720 = vpop.f32.mrf.mxu0
    %v2721 = vadd.f32 %v2629, %v2720
    %2722 = vmatmul.f32.gmra.mxu0 %v602
    %v2723 = vpop.f32.mrf.mxu0
    %v2724 = vadd.f32 %v2632, %v2723
    %2725 = vmatmul.f32.gmra.mxu0 %v611
    %v2726 = vpop.f32.mrf.mxu0
    %v2727 = vadd.f32 %v2635, %v2726
    %2728 = vmatmul.f32.gmra.mxu0 %v620
    %v2729 = vpop.f32.mrf.mxu0
    %v2730 = vadd.f32 %v2638, %v2729
    %2731 = vmatmul.f32.gmra.mxu0 %v629
    %v2732 = vpop.f32.mrf.mxu0
    %v2733 = vadd.f32 %v2641, %v2732
    %2734 = vmatmul.f32.gmra.mxu0 %v638
    %v2735 = vpop.f32.mrf.mxu0
    %v2736 = vadd.f32 %v2644, %v2735
    %2737 = vmatmul.f32.gmra.mxu0 %v647
    %v2738 = vpop.f32.mrf.mxu0
    %v2739 = vadd.f32 %v2647, %v2738
    %2740 = vmatmul.f32.gmra.mxu0 %v656
    %v2741 = vpop.f32.mrf.mxu0
    %v2742 = vadd.f32 %v2650, %v2741
    %2743 = vmatmul.f32.gmra.mxu0 %v665
    %v2744 = vpop.f32.mrf.mxu0
    %v2745 = vadd.f32 %v2653, %v2744
    %2746 = vmatmul.f32.gmra.mxu0 %v674
    %v2747 = vpop.f32.mrf.mxu0
    %v2748 = vadd.f32 %v2656, %v2747
    %2749 = vmatmul.f32.gmra.mxu0 %v683
    %v2750 = vpop.f32.mrf.mxu0
    %v2751 = vadd.f32 %v2659, %v2750
    %2752 = vmatmul.f32.gmra.mxu0 %v692
    %v2753 = vpop.f32.mrf.mxu0
    %v2754 = vadd.f32 %v2662, %v2753
    %2755 = vmatmul.f32.gmra.mxu0 %v701
    %v2756 = vpop.f32.mrf.mxu0
    %v2757 = vadd.f32 %v2665, %v2756
    %2758 = vmatmul.f32.gmra.mxu0 %v710
    %v2759 = vpop.f32.mrf.mxu0
    %v2760 = vadd.f32 %v2668, %v2759
    %2761 = vmatmul.f32.gmra.mxu0 %v719
    %v2762 = vpop.f32.mrf.mxu0
    %v2763 = vadd.f32 %v2671, %v2762
    %2764 = vmatmul.f32.gmra.mxu0 %v728
    %v2765 = vpop.f32.mrf.mxu0
    %v2766 = vadd.f32 %v2674, %v2765
    %2767 = vmatmul.f32.gmra.mxu0 %v737
    %v2768 = vpop.f32.mrf.mxu0
    %v2769 = vadd.f32 %v2677, %v2768
    %2770 = vmatmul.f32.gmra.mxu0 %v746
    %v2771 = vpop.f32.mrf.mxu0
    %v2772 = vadd.f32 %v2680, %v2771
    %2773 = vmatmul.f32.gmra.mxu0 %v755
    %v2774 = vpop.f32.mrf.mxu0
    %v2775 = vadd.f32 %v2683, %v2774
    %2776 = vmatmul.f32.gmra.mxu0 %v764
    %v2777 = vpop.f32.mrf.mxu0
    %v2778 = vadd.f32 %v2686, %v2777
    %2779 = vmatmul.f32.gmra.mxu0 %v773
    %v2780 = vpop.f32.mrf.mxu0
    %v2781 = vadd.f32 %v2689, %v2780
    %2782 = vmatmul.f32.gmra.mxu0 %v782
    %v2783 = vpop.f32.mrf.mxu0
    %v2784 = vadd.f32 %v2692, %v2783
    %2785 = vmatmul.f32.gmra.mxu0 %v791
    %v2786 = vpop.f32.mrf.mxu0
    %v2787 = vadd.f32 %v2695, %v2786
    %2788 = vdwg.mxu0
    %2789 = vmatpush.msra.mxu0 %v1223
    %2790 = vmatpush.msra.mxu0 %v1220
    %2791 = vmatpush.msra.mxu0 %v1217
    %2792 = vmatpush.msra.mxu0 %v1214
    %2793 = vmatpush.msra.mxu0 %v1211
    %2794 = vmatpush.msra.mxu0 %v1208
    %2795 = vmatpush.msra.mxu0 %v1205
    %2796 = vmatpush.msra.mxu0 %v1202
    %2797 = vmatpush.msra.mxu0 %v1199
    %2798 = vmatpush.msra.mxu0 %v1196
    %2799 = vmatpush.msra.mxu0 %v1193
    %2800 = vmatpush.msra.mxu0 %v1190
    %2801 = vmatpush.msra.mxu0 %v1187
    %2802 = vmatpush.msra.mxu0 %v1184
    %2803 = vmatpush.msra.mxu0 %v1181
    %2804 = vmatpush.msra.mxu0 %v1178
    %2805 = vmatmul.f32.gmra.mxu0 %v576
    %v2806 = vpop.f32.mrf.mxu0
    %v2807 = vadd.f32 %v2715, %v2806
    %2808 = vmatmul.f32.gmra.mxu0 %v585
    %v2809 = vpop.f32.mrf.mxu0
    %v2810 = vadd.f32 %v2718, %v2809
    %2811 = vmatmul.f32.gmra.mxu0 %v594
    %v2812 = vpop.f32.mrf.mxu0
    %v2813 = vadd.f32 %v2721, %v2812
    %2814 = vmatmul.f32.gmra.mxu0 %v603
    %v2815 = vpop.f32.mrf.mxu0
    %v2816 = vadd.f32 %v2724, %v2815
    %2817 = vmatmul.f32.gmra.mxu0 %v612
    %v2818 = vpop.f32.mrf.mxu0
    %v2819 = vadd.f32 %v2727, %v2818
    %2820 = vmatmul.f32.gmra.mxu0 %v621
    %v2821 = vpop.f32.mrf.mxu0
    %v2822 = vadd.f32 %v2730, %v2821
    %2823 = vmatmul.f32.gmra.mxu0 %v630
    %v2824 = vpop.f32.mrf.mxu0
    %v2825 = vadd.f32 %v2733, %v2824
    %2826 = vmatmul.f32.gmra.mxu0 %v639
    %v2827 = vpop.f32.mrf.mxu0
    %v2828 = vadd.f32 %v2736, %v2827
    %2829 = vmatmul.f32.gmra.mxu0 %v648
    %v2830 = vpop.f32.mrf.mxu0
    %v2831 = vadd.f32 %v2739, %v2830
    %2832 = vmatmul.f32.gmra.mxu0 %v657
    %v2833 = vpop.f32.mrf.mxu0
    %v2834 = vadd.f32 %v2742, %v2833
    %2835 = vmatmul.f32.gmra.mxu0 %v666
    %v2836 = vpop.f32.mrf.mxu0
    %v2837 = vadd.f32 %v2745, %v2836
    %2838 = vmatmul.f32.gmra.mxu0 %v675
    %v2839 = vpop.f32.mrf.mxu0
    %v2840 = vadd.f32 %v2748, %v2839
    %2841 = vmatmul.f32.gmra.mxu0 %v684
    %v2842 = vpop.f32.mrf.mxu0
    %v2843 = vadd.f32 %v2751, %v2842
    %2844 = vmatmul.f32.gmra.mxu0 %v693
    %v2845 = vpop.f32.mrf.mxu0
    %v2846 = vadd.f32 %v2754, %v2845
    %2847 = vmatmul.f32.gmra.mxu0 %v702
    %v2848 = vpop.f32.mrf.mxu0
    %v2849 = vadd.f32 %v2757, %v2848
    %2850 = vmatmul.f32.gmra.mxu0 %v711
    %v2851 = vpop.f32.mrf.mxu0
    %v2852 = vadd.f32 %v2760, %v2851
    %2853 = vmatmul.f32.gmra.mxu0 %v720
    %v2854 = vpop.f32.mrf.mxu0
    %v2855 = vadd.f32 %v2763, %v2854
    %2856 = vmatmul.f32.gmra.mxu0 %v729
    %v2857 = vpop.f32.mrf.mxu0
    %v2858 = vadd.f32 %v2766, %v2857
    %2859 = vmatmul.f32.gmra.mxu0 %v738
    %v2860 = vpop.f32.mrf.mxu0
    %v2861 = vadd.f32 %v2769, %v2860
    %2862 = vmatmul.f32.gmra.mxu0 %v747
    %v2863 = vpop.f32.mrf.mxu0
    %v2864 = vadd.f32 %v2772, %v2863
    %2865 = vmatmul.f32.gmra.mxu0 %v756
    %v2866 = vpop.f32.mrf.mxu0
    %v2867 = vadd.f32 %v2775, %v2866
    %2868 = vmatmul.f32.gmra.mxu0 %v765
    %v2869 = vpop.f32.mrf.mxu0
    %v2870 = vadd.f32 %v2778, %v2869
    %2871 = vmatmul.f32.gmra.mxu0 %v774
    %v2872 = vpop.f32.mrf.mxu0
    %v2873 = vadd.f32 %v2781, %v2872
    %2874 = vmatmul.f32.gmra.mxu0 %v783
    %v2875 = vpop.f32.mrf.mxu0
    %v2876 = vadd.f32 %v2784, %v2875
    %2877 = vmatmul.f32.gmra.mxu0 %v792
    %v2878 = vpop.f32.mrf.mxu0
    %v2879 = vadd.f32 %v2787, %v2878
    %2880 = vdwg.mxu0
    %2881 = vmatpush.msra.mxu0 %v840
    %2882 = vmatpush.msra.mxu0 %v837
    %2883 = vmatpush.msra.mxu0 %v834
    %2884 = vmatpush.msra.mxu0 %v831
    %2885 = vmatpush.msra.mxu0 %v828
    %2886 = vmatpush.msra.mxu0 %v825
    %2887 = vmatpush.msra.mxu0 %v822
    %2888 = vmatpush.msra.mxu0 %v819
    %2889 = vmatpush.msra.mxu0 %v816
    %2890 = vmatpush.msra.mxu0 %v813
    %2891 = vmatpush.msra.mxu0 %v810
    %2892 = vmatpush.msra.mxu0 %v807
    %2893 = vmatpush.msra.mxu0 %v804
    %2894 = vmatpush.msra.mxu0 %v801
    %2895 = vmatpush.msra.mxu0 %v798
    %2896 = vmatpush.msra.mxu0 %v795
    %2897 = vmatmul.f32.gmra.mxu0 %v568
    %v2898 = vpop.f32.mrf.mxu0
    %v2899 = vadd.f32 0.0, %v2898
    %2900 = vmatmul.f32.gmra.mxu0 %v577
    %v2901 = vpop.f32.mrf.mxu0
    %v2902 = vadd.f32 0.0, %v2901
    %2903 = vmatmul.f32.gmra.mxu0 %v586
    %v2904 = vpop.f32.mrf.mxu0
    %v2905 = vadd.f32 0.0, %v2904
    %2906 = vmatmul.f32.gmra.mxu0 %v595
    %v2907 = vpop.f32.mrf.mxu0
    %v2908 = vadd.f32 0.0, %v2907
    %2909 = vmatmul.f32.gmra.mxu0 %v604
    %v2910 = vpop.f32.mrf.mxu0
    %v2911 = vadd.f32 0.0, %v2910
    %2912 = vmatmul.f32.gmra.mxu0 %v613
    %v2913 = vpop.f32.mrf.mxu0
    %v2914 = vadd.f32 0.0, %v2913
    %2915 = vmatmul.f32.gmra.mxu0 %v622
    %v2916 = vpop.f32.mrf.mxu0
    %v2917 = vadd.f32 0.0, %v2916
    %2918 = vmatmul.f32.gmra.mxu0 %v631
    %v2919 = vpop.f32.mrf.mxu0
    %v2920 = vadd.f32 0.0, %v2919
    %2921 = vmatmul.f32.gmra.mxu0 %v640
    %v2922 = vpop.f32.mrf.mxu0
    %v2923 = vadd.f32 0.0, %v2922
    %2924 = vmatmul.f32.gmra.mxu0 %v649
    %v2925 = vpop.f32.mrf.mxu0
    %v2926 = vadd.f32 0.0, %v2925
    %2927 = vmatmul.f32.gmra.mxu0 %v658
    %v2928 = vpop.f32.mrf.mxu0
    %v2929 = vadd.f32 0.0, %v2928
    %2930 = vmatmul.f32.gmra.mxu0 %v667
    %v2931 = vpop.f32.mrf.mxu0
    %v2932 = vadd.f32 0.0, %v2931
    %2933 = vmatmul.f32.gmra.mxu0 %v676
    %v2934 = vpop.f32.mrf.mxu0
    %v2935 = vadd.f32 0.0, %v2934
    %2936 = vmatmul.f32.gmra.mxu0 %v685
    %v2937 = vpop.f32.mrf.mxu0
    %v2938 = vadd.f32 0.0, %v2937
    %2939 = vmatmul.f32.gmra.mxu0 %v694
    %v2940 = vpop.f32.mrf.mxu0
    %v2941 = vadd.f32 0.0, %v2940
    %2942 = vmatmul.f32.gmra.mxu0 %v703
    %v2943 = vpop.f32.mrf.mxu0
    %v2944 = vadd.f32 0.0, %v2943
    %2945 = vmatmul.f32.gmra.mxu0 %v712
    %v2946 = vpop.f32.mrf.mxu0
    %v2947 = vadd.f32 0.0, %v2946
    %2948 = vmatmul.f32.gmra.mxu0 %v721
    %v2949 = vpop.f32.mrf.mxu0
    %v2950 = vadd.f32 0.0, %v2949
    %2951 = vmatmul.f32.gmra.mxu0 %v730
    %v2952 = vpop.f32.mrf.mxu0
    %v2953 = vadd.f32 0.0, %v2952
    %2954 = vmatmul.f32.gmra.mxu0 %v739
    %v2955 = vpop.f32.mrf.mxu0
    %v2956 = vadd.f32 0.0, %v2955
    %2957 = vmatmul.f32.gmra.mxu0 %v748
    %v2958 = vpop.f32.mrf.mxu0
    %v2959 = vadd.f32 0.0, %v2958
    %2960 = vmatmul.f32.gmra.mxu0 %v757
    %v2961 = vpop.f32.mrf.mxu0
    %v2962 = vadd.f32 0.0, %v2961
    %2963 = vmatmul.f32.gmra.mxu0 %v766
    %v2964 = vpop.f32.mrf.mxu0
    %v2965 = vadd.f32 0.0, %v2964
    %2966 = vmatmul.f32.gmra.mxu0 %v775
    %v2967 = vpop.f32.mrf.mxu0
    %v2968 = vadd.f32 0.0, %v2967
    %2969 = vmatmul.f32.gmra.mxu0 %v784
    %v2970 = vpop.f32.mrf.mxu0
    %v2971 = vadd.f32 0.0, %v2970
    %2972 = vdwg.mxu0
    %2973 = vmatpush.msra.mxu0 %v888
    %2974 = vmatpush.msra.mxu0 %v885
    %2975 = vmatpush.msra.mxu0 %v882
    %2976 = vmatpush.msra.mxu0 %v879
    %2977 = vmatpush.msra.mxu0 %v876
    %2978 = vmatpush.msra.mxu0 %v873
    %2979 = vmatpush.msra.mxu0 %v870
    %2980 = vmatpush.msra.mxu0 %v867
    %2981 = vmatpush.msra.mxu0 %v864
    %2982 = vmatpush.msra.mxu0 %v861
    %2983 = vmatpush.msra.mxu0 %v858
    %2984 = vmatpush.msra.mxu0 %v855
    %2985 = vmatpush.msra.mxu0 %v852
    %2986 = vmatpush.msra.mxu0 %v849
    %2987 = vmatpush.msra.mxu0 %v846
    %2988 = vmatpush.msra.mxu0 %v843
    %2989 = vmatmul.f32.gmra.mxu0 %v569
    %v2990 = vpop.f32.mrf.mxu0
    %v2991 = vadd.f32 %v2899, %v2990
    %2992 = vmatmul.f32.gmra.mxu0 %v578
    %v2993 = vpop.f32.mrf.mxu0
    %v2994 = vadd.f32 %v2902, %v2993
    %2995 = vmatmul.f32.gmra.mxu0 %v587
    %v2996 = vpop.f32.mrf.mxu0
    %v2997 = vadd.f32 %v2905, %v2996
    %2998 = vmatmul.f32.gmra.mxu0 %v596
    %v2999 = vpop.f32.mrf.mxu0
    %v3000 = vadd.f32 %v2908, %v2999
    %3001 = vmatmul.f32.gmra.mxu0 %v605
    %v3002 = vpop.f32.mrf.mxu0
    %v3003 = vadd.f32 %v2911, %v3002
    %3004 = vmatmul.f32.gmra.mxu0 %v614
    %v3005 = vpop.f32.mrf.mxu0
    %v3006 = vadd.f32 %v2914, %v3005
    %3007 = vmatmul.f32.gmra.mxu0 %v623
    %v3008 = vpop.f32.mrf.mxu0
    %v3009 = vadd.f32 %v2917, %v3008
    %3010 = vmatmul.f32.gmra.mxu0 %v632
    %v3011 = vpop.f32.mrf.mxu0
    %v3012 = vadd.f32 %v2920, %v3011
    %3013 = vmatmul.f32.gmra.mxu0 %v641
    %v3014 = vpop.f32.mrf.mxu0
    %v3015 = vadd.f32 %v2923, %v3014
    %3016 = vmatmul.f32.gmra.mxu0 %v650
    %v3017 = vpop.f32.mrf.mxu0
    %v3018 = vadd.f32 %v2926, %v3017
    %3019 = vmatmul.f32.gmra.mxu0 %v659
    %v3020 = vpop.f32.mrf.mxu0
    %v3021 = vadd.f32 %v2929, %v3020
    %3022 = vmatmul.f32.gmra.mxu0 %v668
    %v3023 = vpop.f32.mrf.mxu0
    %v3024 = vadd.f32 %v2932, %v3023
    %3025 = vmatmul.f32.gmra.mxu0 %v677
    %v3026 = vpop.f32.mrf.mxu0
    %v3027 = vadd.f32 %v2935, %v3026
    %3028 = vmatmul.f32.gmra.mxu0 %v686
    %v3029 = vpop.f32.mrf.mxu0
    %v3030 = vadd.f32 %v2938, %v3029
    %3031 = vmatmul.f32.gmra.mxu0 %v695
    %v3032 = vpop.f32.mrf.mxu0
    %v3033 = vadd.f32 %v2941, %v3032
    %3034 = vmatmul.f32.gmra.mxu0 %v704
    %v3035 = vpop.f32.mrf.mxu0
    %v3036 = vadd.f32 %v2944, %v3035
    %3037 = vmatmul.f32.gmra.mxu0 %v713
    %v3038 = vpop.f32.mrf.mxu0
    %v3039 = vadd.f32 %v2947, %v3038
    %3040 = vmatmul.f32.gmra.mxu0 %v722
    %v3041 = vpop.f32.mrf.mxu0
    %v3042 = vadd.f32 %v2950, %v3041
    %3043 = vmatmul.f32.gmra.mxu0 %v731
    %v3044 = vpop.f32.mrf.mxu0
    %v3045 = vadd.f32 %v2953, %v3044
    %3046 = vmatmul.f32.gmra.mxu0 %v740
    %v3047 = vpop.f32.mrf.mxu0
    %v3048 = vadd.f32 %v2956, %v3047
    %3049 = vmatmul.f32.gmra.mxu0 %v749
    %v3050 = vpop.f32.mrf.mxu0
    %v3051 = vadd.f32 %v2959, %v3050
    %3052 = vmatmul.f32.gmra.mxu0 %v758
    %v3053 = vpop.f32.mrf.mxu0
    %v3054 = vadd.f32 %v2962, %v3053
    %3055 = vmatmul.f32.gmra.mxu0 %v767
    %v3056 = vpop.f32.mrf.mxu0
    %v3057 = vadd.f32 %v2965, %v3056
    %3058 = vmatmul.f32.gmra.mxu0 %v776
    %v3059 = vpop.f32.mrf.mxu0
    %v3060 = vadd.f32 %v2968, %v3059
    %3061 = vmatmul.f32.gmra.mxu0 %v785
    %v3062 = vpop.f32.mrf.mxu0
    %v3063 = vadd.f32 %v2971, %v3062
    %3064 = vdwg.mxu0
    %3065 = vmatpush.msra.mxu0 %v936
    %3066 = vmatpush.msra.mxu0 %v933
    %3067 = vmatpush.msra.mxu0 %v930
    %3068 = vmatpush.msra.mxu0 %v927
    %3069 = vmatpush.msra.mxu0 %v924
    %3070 = vmatpush.msra.mxu0 %v921
    %3071 = vmatpush.msra.mxu0 %v918
    %3072 = vmatpush.msra.mxu0 %v915
    %3073 = vmatpush.msra.mxu0 %v912
    %3074 = vmatpush.msra.mxu0 %v909
    %3075 = vmatpush.msra.mxu0 %v906
    %3076 = vmatpush.msra.mxu0 %v903
    %3077 = vmatpush.msra.mxu0 %v900
    %3078 = vmatpush.msra.mxu0 %v897
    %3079 = vmatpush.msra.mxu0 %v894
    %3080 = vmatpush.msra.mxu0 %v891
    %3081 = vmatmul.f32.gmra.mxu0 %v570
    %v3082 = vpop.f32.mrf.mxu0
    %v3083 = vadd.f32 %v2991, %v3082
    %3084 = vmatmul.f32.gmra.mxu0 %v579
    %v3085 = vpop.f32.mrf.mxu0
    %v3086 = vadd.f32 %v2994, %v3085
    %3087 = vmatmul.f32.gmra.mxu0 %v588
    %v3088 = vpop.f32.mrf.mxu0
    %v3089 = vadd.f32 %v2997, %v3088
    %3090 = vmatmul.f32.gmra.mxu0 %v597
    %v3091 = vpop.f32.mrf.mxu0
    %v3092 = vadd.f32 %v3000, %v3091
    %3093 = vmatmul.f32.gmra.mxu0 %v606
    %v3094 = vpop.f32.mrf.mxu0
    %v3095 = vadd.f32 %v3003, %v3094
    %3096 = vmatmul.f32.gmra.mxu0 %v615
    %v3097 = vpop.f32.mrf.mxu0
    %v3098 = vadd.f32 %v3006, %v3097
    %3099 = vmatmul.f32.gmra.mxu0 %v624
    %v3100 = vpop.f32.mrf.mxu0
    %v3101 = vadd.f32 %v3009, %v3100
    %3102 = vmatmul.f32.gmra.mxu0 %v633
    %v3103 = vpop.f32.mrf.mxu0
    %v3104 = vadd.f32 %v3012, %v3103
    %3105 = vmatmul.f32.gmra.mxu0 %v642
    %v3106 = vpop.f32.mrf.mxu0
    %v3107 = vadd.f32 %v3015, %v3106
    %3108 = vmatmul.f32.gmra.mxu0 %v651
    %v3109 = vpop.f32.mrf.mxu0
    %v3110 = vadd.f32 %v3018, %v3109
    %3111 = vmatmul.f32.gmra.mxu0 %v660
    %v3112 = vpop.f32.mrf.mxu0
    %v3113 = vadd.f32 %v3021, %v3112
    %3114 = vmatmul.f32.gmra.mxu0 %v669
    %v3115 = vpop.f32.mrf.mxu0
    %v3116 = vadd.f32 %v3024, %v3115
    %3117 = vmatmul.f32.gmra.mxu0 %v678
    %v3118 = vpop.f32.mrf.mxu0
    %v3119 = vadd.f32 %v3027, %v3118
    %3120 = vmatmul.f32.gmra.mxu0 %v687
    %v3121 = vpop.f32.mrf.mxu0
    %v3122 = vadd.f32 %v3030, %v3121
    %3123 = vmatmul.f32.gmra.mxu0 %v696
    %v3124 = vpop.f32.mrf.mxu0
    %v3125 = vadd.f32 %v3033, %v3124
    %3126 = vmatmul.f32.gmra.mxu0 %v705
    %v3127 = vpop.f32.mrf.mxu0
    %v3128 = vadd.f32 %v3036, %v3127
    %3129 = vmatmul.f32.gmra.mxu0 %v714
    %v3130 = vpop.f32.mrf.mxu0
    %v3131 = vadd.f32 %v3039, %v3130
    %3132 = vmatmul.f32.gmra.mxu0 %v723
    %v3133 = vpop.f32.mrf.mxu0
    %v3134 = vadd.f32 %v3042, %v3133
    %3135 = vmatmul.f32.gmra.mxu0 %v732
    %v3136 = vpop.f32.mrf.mxu0
    %v3137 = vadd.f32 %v3045, %v3136
    %3138 = vmatmul.f32.gmra.mxu0 %v741
    %v3139 = vpop.f32.mrf.mxu0
    %v3140 = vadd.f32 %v3048, %v3139
    %3141 = vmatmul.f32.gmra.mxu0 %v750
    %v3142 = vpop.f32.mrf.mxu0
    %v3143 = vadd.f32 %v3051, %v3142
    %3144 = vmatmul.f32.gmra.mxu0 %v759
    %v3145 = vpop.f32.mrf.mxu0
    %v3146 = vadd.f32 %v3054, %v3145
    %3147 = vmatmul.f32.gmra.mxu0 %v768
    %v3148 = vpop.f32.mrf.mxu0
    %v3149 = vadd.f32 %v3057, %v3148
    %3150 = vmatmul.f32.gmra.mxu0 %v777
    %v3151 = vpop.f32.mrf.mxu0
    %v3152 = vadd.f32 %v3060, %v3151
    %3153 = vmatmul.f32.gmra.mxu0 %v786
    %v3154 = vpop.f32.mrf.mxu0
    %v3155 = vadd.f32 %v3063, %v3154
    %3156 = vdwg.mxu0
    %3157 = vmatpush.msra.mxu0 %v984
    %3158 = vmatpush.msra.mxu0 %v981
    %3159 = vmatpush.msra.mxu0 %v978
    %3160 = vmatpush.msra.mxu0 %v975
    %3161 = vmatpush.msra.mxu0 %v972
    %3162 = vmatpush.msra.mxu0 %v969
    %3163 = vmatpush.msra.mxu0 %v966
    %3164 = vmatpush.msra.mxu0 %v963
    %3165 = vmatpush.msra.mxu0 %v960
    %3166 = vmatpush.msra.mxu0 %v957
    %3167 = vmatpush.msra.mxu0 %v954
    %3168 = vmatpush.msra.mxu0 %v951
    %3169 = vmatpush.msra.mxu0 %v948
    %3170 = vmatpush.msra.mxu0 %v945
    %3171 = vmatpush.msra.mxu0 %v942
    %3172 = vmatpush.msra.mxu0 %v939
    %3173 = vmatmul.f32.gmra.mxu0 %v571
    %v3174 = vpop.f32.mrf.mxu0
    %v3175 = vadd.f32 %v3083, %v3174
    %3176 = vmatmul.f32.gmra.mxu0 %v580
    %v3177 = vpop.f32.mrf.mxu0
    %v3178 = vadd.f32 %v3086, %v3177
    %3179 = vmatmul.f32.gmra.mxu0 %v589
    %v3180 = vpop.f32.mrf.mxu0
    %v3181 = vadd.f32 %v3089, %v3180
    %3182 = vmatmul.f32.gmra.mxu0 %v598
    %v3183 = vpop.f32.mrf.mxu0
    %v3184 = vadd.f32 %v3092, %v3183
    %3185 = vmatmul.f32.gmra.mxu0 %v607
    %v3186 = vpop.f32.mrf.mxu0
    %v3187 = vadd.f32 %v3095, %v3186
    %3188 = vmatmul.f32.gmra.mxu0 %v616
    %v3189 = vpop.f32.mrf.mxu0
    %v3190 = vadd.f32 %v3098, %v3189
    %3191 = vmatmul.f32.gmra.mxu0 %v625
    %v3192 = vpop.f32.mrf.mxu0
    %v3193 = vadd.f32 %v3101, %v3192
    %3194 = vmatmul.f32.gmra.mxu0 %v634
    %v3195 = vpop.f32.mrf.mxu0
    %v3196 = vadd.f32 %v3104, %v3195
    %3197 = vmatmul.f32.gmra.mxu0 %v643
    %v3198 = vpop.f32.mrf.mxu0
    %v3199 = vadd.f32 %v3107, %v3198
    %3200 = vmatmul.f32.gmra.mxu0 %v652
    %v3201 = vpop.f32.mrf.mxu0
    %v3202 = vadd.f32 %v3110, %v3201
    %3203 = vmatmul.f32.gmra.mxu0 %v661
    %v3204 = vpop.f32.mrf.mxu0
    %v3205 = vadd.f32 %v3113, %v3204
    %3206 = vmatmul.f32.gmra.mxu0 %v670
    %v3207 = vpop.f32.mrf.mxu0
    %v3208 = vadd.f32 %v3116, %v3207
    %3209 = vmatmul.f32.gmra.mxu0 %v679
    %v3210 = vpop.f32.mrf.mxu0
    %v3211 = vadd.f32 %v3119, %v3210
    %3212 = vmatmul.f32.gmra.mxu0 %v688
    %v3213 = vpop.f32.mrf.mxu0
    %v3214 = vadd.f32 %v3122, %v3213
    %3215 = vmatmul.f32.gmra.mxu0 %v697
    %v3216 = vpop.f32.mrf.mxu0
    %v3217 = vadd.f32 %v3125, %v3216
    %3218 = vmatmul.f32.gmra.mxu0 %v706
    %v3219 = vpop.f32.mrf.mxu0
    %v3220 = vadd.f32 %v3128, %v3219
    %3221 = vmatmul.f32.gmra.mxu0 %v715
    %v3222 = vpop.f32.mrf.mxu0
    %v3223 = vadd.f32 %v3131, %v3222
    %3224 = vmatmul.f32.gmra.mxu0 %v724
    %v3225 = vpop.f32.mrf.mxu0
    %v3226 = vadd.f32 %v3134, %v3225
    %3227 = vmatmul.f32.gmra.mxu0 %v733
    %v3228 = vpop.f32.mrf.mxu0
    %v3229 = vadd.f32 %v3137, %v3228
    %3230 = vmatmul.f32.gmra.mxu0 %v742
    %v3231 = vpop.f32.mrf.mxu0
    %v3232 = vadd.f32 %v3140, %v3231
    %3233 = vmatmul.f32.gmra.mxu0 %v751
    %v3234 = vpop.f32.mrf.mxu0
    %v3235 = vadd.f32 %v3143, %v3234
    %3236 = vmatmul.f32.gmra.mxu0 %v760
    %v3237 = vpop.f32.mrf.mxu0
    %v3238 = vadd.f32 %v3146, %v3237
    %3239 = vmatmul.f32.gmra.mxu0 %v769
    %v3240 = vpop.f32.mrf.mxu0
    %v3241 = vadd.f32 %v3149, %v3240
    %3242 = vmatmul.f32.gmra.mxu0 %v778
    %v3243 = vpop.f32.mrf.mxu0
    %v3244 = vadd.f32 %v3152, %v3243
    %3245 = vmatmul.f32.gmra.mxu0 %v787
    %v3246 = vpop.f32.mrf.mxu0
    %v3247 = vadd.f32 %v3155, %v3246
    %3248 = vdwg.mxu0
    %3249 = vmatpush.msra.mxu0 %v1032
    %3250 = vmatpush.msra.mxu0 %v1029
    %3251 = vmatpush.msra.mxu0 %v1026
    %3252 = vmatpush.msra.mxu0 %v1023
    %3253 = vmatpush.msra.mxu0 %v1020
    %3254 = vmatpush.msra.mxu0 %v1017
    %3255 = vmatpush.msra.mxu0 %v1014
    %3256 = vmatpush.msra.mxu0 %v1011
    %3257 = vmatpush.msra.mxu0 %v1008
    %3258 = vmatpush.msra.mxu0 %v1005
    %3259 = vmatpush.msra.mxu0 %v1002
    %3260 = vmatpush.msra.mxu0 %v999
    %3261 = vmatpush.msra.mxu0 %v996
    %3262 = vmatpush.msra.mxu0 %v993
    %3263 = vmatpush.msra.mxu0 %v990
    %3264 = vmatpush.msra.mxu0 %v987
    %3265 = vmatmul.f32.gmra.mxu0 %v572
    %v3266 = vpop.f32.mrf.mxu0
    %v3267 = vadd.f32 %v3175, %v3266
    %3268 = vmatmul.f32.gmra.mxu0 %v581
    %v3269 = vpop.f32.mrf.mxu0
    %v3270 = vadd.f32 %v3178, %v3269
    %3271 = vmatmul.f32.gmra.mxu0 %v590
    %v3272 = vpop.f32.mrf.mxu0
    %v3273 = vadd.f32 %v3181, %v3272
    %3274 = vmatmul.f32.gmra.mxu0 %v599
    %v3275 = vpop.f32.mrf.mxu0
    %v3276 = vadd.f32 %v3184, %v3275
    %3277 = vmatmul.f32.gmra.mxu0 %v608
    %v3278 = vpop.f32.mrf.mxu0
    %v3279 = vadd.f32 %v3187, %v3278
    %3280 = vmatmul.f32.gmra.mxu0 %v617
    %v3281 = vpop.f32.mrf.mxu0
    %v3282 = vadd.f32 %v3190, %v3281
    %3283 = vmatmul.f32.gmra.mxu0 %v626
    %v3284 = vpop.f32.mrf.mxu0
    %v3285 = vadd.f32 %v3193, %v3284
    %3286 = vmatmul.f32.gmra.mxu0 %v635
    %v3287 = vpop.f32.mrf.mxu0
    %v3288 = vadd.f32 %v3196, %v3287
    %3289 = vmatmul.f32.gmra.mxu0 %v644
    %v3290 = vpop.f32.mrf.mxu0
    %v3291 = vadd.f32 %v3199, %v3290
    %3292 = vmatmul.f32.gmra.mxu0 %v653
    %v3293 = vpop.f32.mrf.mxu0
    %v3294 = vadd.f32 %v3202, %v3293
    %3295 = vmatmul.f32.gmra.mxu0 %v662
    %v3296 = vpop.f32.mrf.mxu0
    %v3297 = vadd.f32 %v3205, %v3296
    %3298 = vmatmul.f32.gmra.mxu0 %v671
    %v3299 = vpop.f32.mrf.mxu0
    %v3300 = vadd.f32 %v3208, %v3299
    %3301 = vmatmul.f32.gmra.mxu0 %v680
    %v3302 = vpop.f32.mrf.mxu0
    %v3303 = vadd.f32 %v3211, %v3302
    %3304 = vmatmul.f32.gmra.mxu0 %v689
    %v3305 = vpop.f32.mrf.mxu0
    %v3306 = vadd.f32 %v3214, %v3305
    %3307 = vmatmul.f32.gmra.mxu0 %v698
    %v3308 = vpop.f32.mrf.mxu0
    %v3309 = vadd.f32 %v3217, %v3308
    %3310 = vmatmul.f32.gmra.mxu0 %v707
    %v3311 = vpop.f32.mrf.mxu0
    %v3312 = vadd.f32 %v3220, %v3311
    %3313 = vmatmul.f32.gmra.mxu0 %v716
    %v3314 = vpop.f32.mrf.mxu0
    %v3315 = vadd.f32 %v3223, %v3314
    %3316 = vmatmul.f32.gmra.mxu0 %v725
    %v3317 = vpop.f32.mrf.mxu0
    %v3318 = vadd.f32 %v3226, %v3317
    %3319 = vmatmul.f32.gmra.mxu0 %v734
    %v3320 = vpop.f32.mrf.mxu0
    %v3321 = vadd.f32 %v3229, %v3320
    %3322 = vmatmul.f32.gmra.mxu0 %v743
    %v3323 = vpop.f32.mrf.mxu0
    %v3324 = vadd.f32 %v3232, %v3323
    %3325 = vmatmul.f32.gmra.mxu0 %v752
    %v3326 = vpop.f32.mrf.mxu0
    %v3327 = vadd.f32 %v3235, %v3326
    %3328 = vmatmul.f32.gmra.mxu0 %v761
    %v3329 = vpop.f32.mrf.mxu0
    %v3330 = vadd.f32 %v3238, %v3329
    %3331 = vmatmul.f32.gmra.mxu0 %v770
    %v3332 = vpop.f32.mrf.mxu0
    %v3333 = vadd.f32 %v3241, %v3332
    %3334 = vmatmul.f32.gmra.mxu0 %v779
    %v3335 = vpop.f32.mrf.mxu0
    %v3336 = vadd.f32 %v3244, %v3335
    %3337 = vmatmul.f32.gmra.mxu0 %v788
    %v3338 = vpop.f32.mrf.mxu0
    %v3339 = vadd.f32 %v3247, %v3338
    %3340 = vdwg.mxu0
    %3341 = vmatpush.msra.mxu0 %v1080
    %3342 = vmatpush.msra.mxu0 %v1077
    %3343 = vmatpush.msra.mxu0 %v1074
    %3344 = vmatpush.msra.mxu0 %v1071
    %3345 = vmatpush.msra.mxu0 %v1068
    %3346 = vmatpush.msra.mxu0 %v1065
    %3347 = vmatpush.msra.mxu0 %v1062
    %3348 = vmatpush.msra.mxu0 %v1059
    %3349 = vmatpush.msra.mxu0 %v1056
    %3350 = vmatpush.msra.mxu0 %v1053
    %3351 = vmatpush.msra.mxu0 %v1050
    %3352 = vmatpush.msra.mxu0 %v1047
    %3353 = vmatpush.msra.mxu0 %v1044
    %3354 = vmatpush.msra.mxu0 %v1041
    %3355 = vmatpush.msra.mxu0 %v1038
    %3356 = vmatpush.msra.mxu0 %v1035
    %3357 = vmatmul.f32.gmra.mxu0 %v573
    %v3358 = vpop.f32.mrf.mxu0
    %v3359 = vadd.f32 %v3267, %v3358
    %3360 = vmatmul.f32.gmra.mxu0 %v582
    %v3361 = vpop.f32.mrf.mxu0
    %v3362 = vadd.f32 %v3270, %v3361
    %3363 = vmatmul.f32.gmra.mxu0 %v591
    %v3364 = vpop.f32.mrf.mxu0
    %v3365 = vadd.f32 %v3273, %v3364
    %3366 = vmatmul.f32.gmra.mxu0 %v600
    %v3367 = vpop.f32.mrf.mxu0
    %v3368 = vadd.f32 %v3276, %v3367
    %3369 = vmatmul.f32.gmra.mxu0 %v609
    %v3370 = vpop.f32.mrf.mxu0
    %v3371 = vadd.f32 %v3279, %v3370
    %3372 = vmatmul.f32.gmra.mxu0 %v618
    %v3373 = vpop.f32.mrf.mxu0
    %v3374 = vadd.f32 %v3282, %v3373
    %3375 = vmatmul.f32.gmra.mxu0 %v627
    %v3376 = vpop.f32.mrf.mxu0
    %v3377 = vadd.f32 %v3285, %v3376
    %3378 = vmatmul.f32.gmra.mxu0 %v636
    %v3379 = vpop.f32.mrf.mxu0
    %v3380 = vadd.f32 %v3288, %v3379
    %3381 = vmatmul.f32.gmra.mxu0 %v645
    %v3382 = vpop.f32.mrf.mxu0
    %v3383 = vadd.f32 %v3291, %v3382
    %3384 = vmatmul.f32.gmra.mxu0 %v654
    %v3385 = vpop.f32.mrf.mxu0
    %v3386 = vadd.f32 %v3294, %v3385
    %3387 = vmatmul.f32.gmra.mxu0 %v663
    %v3388 = vpop.f32.mrf.mxu0
    %v3389 = vadd.f32 %v3297, %v3388
    %3390 = vmatmul.f32.gmra.mxu0 %v672
    %v3391 = vpop.f32.mrf.mxu0
    %v3392 = vadd.f32 %v3300, %v3391
    %3393 = vmatmul.f32.gmra.mxu0 %v681
    %v3394 = vpop.f32.mrf.mxu0
    %v3395 = vadd.f32 %v3303, %v3394
    %3396 = vmatmul.f32.gmra.mxu0 %v690
    %v3397 = vpop.f32.mrf.mxu0
    %v3398 = vadd.f32 %v3306, %v3397
    %3399 = vmatmul.f32.gmra.mxu0 %v699
    %v3400 = vpop.f32.mrf.mxu0
    %v3401 = vadd.f32 %v3309, %v3400
    %3402 = vmatmul.f32.gmra.mxu0 %v708
    %v3403 = vpop.f32.mrf.mxu0
    %v3404 = vadd.f32 %v3312, %v3403
    %3405 = vmatmul.f32.gmra.mxu0 %v717
    %v3406 = vpop.f32.mrf.mxu0
    %v3407 = vadd.f32 %v3315, %v3406
    %3408 = vmatmul.f32.gmra.mxu0 %v726
    %v3409 = vpop.f32.mrf.mxu0
    %v3410 = vadd.f32 %v3318, %v3409
    %3411 = vmatmul.f32.gmra.mxu0 %v735
    %v3412 = vpop.f32.mrf.mxu0
    %v3413 = vadd.f32 %v3321, %v3412
    %3414 = vmatmul.f32.gmra.mxu0 %v744
    %v3415 = vpop.f32.mrf.mxu0
    %v3416 = vadd.f32 %v3324, %v3415
    %3417 = vmatmul.f32.gmra.mxu0 %v753
    %v3418 = vpop.f32.mrf.mxu0
    %v3419 = vadd.f32 %v3327, %v3418
    %3420 = vmatmul.f32.gmra.mxu0 %v762
    %v3421 = vpop.f32.mrf.mxu0
    %v3422 = vadd.f32 %v3330, %v3421
    %3423 = vmatmul.f32.gmra.mxu0 %v771
    %v3424 = vpop.f32.mrf.mxu0
    %v3425 = vadd.f32 %v3333, %v3424
    %3426 = vmatmul.f32.gmra.mxu0 %v780
    %v3427 = vpop.f32.mrf.mxu0
    %v3428 = vadd.f32 %v3336, %v3427
    %3429 = vmatmul.f32.gmra.mxu0 %v789
    %v3430 = vpop.f32.mrf.mxu0
    %v3431 = vadd.f32 %v3339, %v3430
    %3432 = vdwg.mxu0
    %3433 = vmatpush.msra.mxu0 %v1128
    %3434 = vmatpush.msra.mxu0 %v1125
    %3435 = vmatpush.msra.mxu0 %v1122
    %3436 = vmatpush.msra.mxu0 %v1119
    %3437 = vmatpush.msra.mxu0 %v1116
    %3438 = vmatpush.msra.mxu0 %v1113
    %3439 = vmatpush.msra.mxu0 %v1110
    %3440 = vmatpush.msra.mxu0 %v1107
    %3441 = vmatpush.msra.mxu0 %v1104
    %3442 = vmatpush.msra.mxu0 %v1101
    %3443 = vmatpush.msra.mxu0 %v1098
    %3444 = vmatpush.msra.mxu0 %v1095
    %3445 = vmatpush.msra.mxu0 %v1092
    %3446 = vmatpush.msra.mxu0 %v1089
    %3447 = vmatpush.msra.mxu0 %v1086
    %3448 = vmatpush.msra.mxu0 %v1083
    %3449 = vmatmul.f32.gmra.mxu0 %v574
    %v3450 = vpop.f32.mrf.mxu0
    %v3451 = vadd.f32 %v3359, %v3450
    %3452 = vmatmul.f32.gmra.mxu0 %v583
    %v3453 = vpop.f32.mrf.mxu0
    %v3454 = vadd.f32 %v3362, %v3453
    %3455 = vmatmul.f32.gmra.mxu0 %v592
    %v3456 = vpop.f32.mrf.mxu0
    %v3457 = vadd.f32 %v3365, %v3456
    %3458 = vmatmul.f32.gmra.mxu0 %v601
    %v3459 = vpop.f32.mrf.mxu0
    %v3460 = vadd.f32 %v3368, %v3459
    %3461 = vmatmul.f32.gmra.mxu0 %v610
    %v3462 = vpop.f32.mrf.mxu0
    %v3463 = vadd.f32 %v3371, %v3462
    %3464 = vmatmul.f32.gmra.mxu0 %v619
    %v3465 = vpop.f32.mrf.mxu0
    %v3466 = vadd.f32 %v3374, %v3465
    %3467 = vmatmul.f32.gmra.mxu0 %v628
    %v3468 = vpop.f32.mrf.mxu0
    %v3469 = vadd.f32 %v3377, %v3468
    %3470 = vmatmul.f32.gmra.mxu0 %v637
    %v3471 = vpop.f32.mrf.mxu0
    %v3472 = vadd.f32 %v3380, %v3471
    %3473 = vmatmul.f32.gmra.mxu0 %v646
    %v3474 = vpop.f32.mrf.mxu0
    %v3475 = vadd.f32 %v3383, %v3474
    %3476 = vmatmul.f32.gmra.mxu0 %v655
    %v3477 = vpop.f32.mrf.mxu0
    %v3478 = vadd.f32 %v3386, %v3477
    %3479 = vmatmul.f32.gmra.mxu0 %v664
    %v3480 = vpop.f32.mrf.mxu0
    %v3481 = vadd.f32 %v3389, %v3480
    %3482 = vmatmul.f32.gmra.mxu0 %v673
    %v3483 = vpop.f32.mrf.mxu0
    %v3484 = vadd.f32 %v3392, %v3483
    %3485 = vmatmul.f32.gmra.mxu0 %v682
    %v3486 = vpop.f32.mrf.mxu0
    %v3487 = vadd.f32 %v3395, %v3486
    %3488 = vmatmul.f32.gmra.mxu0 %v691
    %v3489 = vpop.f32.mrf.mxu0
    %v3490 = vadd.f32 %v3398, %v3489
    %3491 = vmatmul.f32.gmra.mxu0 %v700
    %v3492 = vpop.f32.mrf.mxu0
    %v3493 = vadd.f32 %v3401, %v3492
    %3494 = vmatmul.f32.gmra.mxu0 %v709
    %v3495 = vpop.f32.mrf.mxu0
    %v3496 = vadd.f32 %v3404, %v3495
    %3497 = vmatmul.f32.gmra.mxu0 %v718
    %v3498 = vpop.f32.mrf.mxu0
    %v3499 = vadd.f32 %v3407, %v3498
    %3500 = vmatmul.f32.gmra.mxu0 %v727
    %v3501 = vpop.f32.mrf.mxu0
    %v3502 = vadd.f32 %v3410, %v3501
    %3503 = vmatmul.f32.gmra.mxu0 %v736
    %v3504 = vpop.f32.mrf.mxu0
    %v3505 = vadd.f32 %v3413, %v3504
    %3506 = vmatmul.f32.gmra.mxu0 %v745
    %v3507 = vpop.f32.mrf.mxu0
    %v3508 = vadd.f32 %v3416, %v3507
    %3509 = vmatmul.f32.gmra.mxu0 %v754
    %v3510 = vpop.f32.mrf.mxu0
    %v3511 = vadd.f32 %v3419, %v3510
    %3512 = vmatmul.f32.gmra.mxu0 %v763
    %v3513 = vpop.f32.mrf.mxu0
    %v3514 = vadd.f32 %v3422, %v3513
    %3515 = vmatmul.f32.gmra.mxu0 %v772
    %v3516 = vpop.f32.mrf.mxu0
    %v3517 = vadd.f32 %v3425, %v3516
    %3518 = vmatmul.f32.gmra.mxu0 %v781
    %v3519 = vpop.f32.mrf.mxu0
    %v3520 = vadd.f32 %v3428, %v3519
    %3521 = vmatmul.f32.gmra.mxu0 %v790
    %v3522 = vpop.f32.mrf.mxu0
    %v3523 = vadd.f32 %v3431, %v3522
    %3524 = vdwg.mxu0
    %3525 = vmatpush.msra.mxu0 %v1176
    %3526 = vmatpush.msra.mxu0 %v1173
    %3527 = vmatpush.msra.mxu0 %v1170
    %3528 = vmatpush.msra.mxu0 %v1167
    %3529 = vmatpush.msra.mxu0 %v1164
    %3530 = vmatpush.msra.mxu0 %v1161
    %3531 = vmatpush.msra.mxu0 %v1158
    %3532 = vmatpush.msra.mxu0 %v1155
    %3533 = vmatpush.msra.mxu0 %v1152
    %3534 = vmatpush.msra.mxu0 %v1149
    %3535 = vmatpush.msra.mxu0 %v1146
    %3536 = vmatpush.msra.mxu0 %v1143
    %3537 = vmatpush.msra.mxu0 %v1140
    %3538 = vmatpush.msra.mxu0 %v1137
    %3539 = vmatpush.msra.mxu0 %v1134
    %3540 = vmatpush.msra.mxu0 %v1131
    %3541 = vmatmul.f32.gmra.mxu0 %v575
    %v3542 = vpop.f32.mrf.mxu0
    %v3543 = vadd.f32 %v3451, %v3542
    %3544 = vmatmul.f32.gmra.mxu0 %v584
    %v3545 = vpop.f32.mrf.mxu0
    %v3546 = vadd.f32 %v3454, %v3545
    %3547 = vmatmul.f32.gmra.mxu0 %v593
    %v3548 = vpop.f32.mrf.mxu0
    %v3549 = vadd.f32 %v3457, %v3548
    %3550 = vmatmul.f32.gmra.mxu0 %v602
    %v3551 = vpop.f32.mrf.mxu0
    %v3552 = vadd.f32 %v3460, %v3551
    %3553 = vmatmul.f32.gmra.mxu0 %v611
    %v3554 = vpop.f32.mrf.mxu0
    %v3555 = vadd.f32 %v3463, %v3554
    %3556 = vmatmul.f32.gmra.mxu0 %v620
    %v3557 = vpop.f32.mrf.mxu0
    %v3558 = vadd.f32 %v3466, %v3557
    %3559 = vmatmul.f32.gmra.mxu0 %v629
    %v3560 = vpop.f32.mrf.mxu0
    %v3561 = vadd.f32 %v3469, %v3560
    %3562 = vmatmul.f32.gmra.mxu0 %v638
    %v3563 = vpop.f32.mrf.mxu0
    %v3564 = vadd.f32 %v3472, %v3563
    %3565 = vmatmul.f32.gmra.mxu0 %v647
    %v3566 = vpop.f32.mrf.mxu0
    %v3567 = vadd.f32 %v3475, %v3566
    %3568 = vmatmul.f32.gmra.mxu0 %v656
    %v3569 = vpop.f32.mrf.mxu0
    %v3570 = vadd.f32 %v3478, %v3569
    %3571 = vmatmul.f32.gmra.mxu0 %v665
    %v3572 = vpop.f32.mrf.mxu0
    %v3573 = vadd.f32 %v3481, %v3572
    %3574 = vmatmul.f32.gmra.mxu0 %v674
    %v3575 = vpop.f32.mrf.mxu0
    %v3576 = vadd.f32 %v3484, %v3575
    %3577 = vmatmul.f32.gmra.mxu0 %v683
    %v3578 = vpop.f32.mrf.mxu0
    %v3579 = vadd.f32 %v3487, %v3578
    %3580 = vmatmul.f32.gmra.mxu0 %v692
    %v3581 = vpop.f32.mrf.mxu0
    %v3582 = vadd.f32 %v3490, %v3581
    %3583 = vmatmul.f32.gmra.mxu0 %v701
    %v3584 = vpop.f32.mrf.mxu0
    %v3585 = vadd.f32 %v3493, %v3584
    %3586 = vmatmul.f32.gmra.mxu0 %v710
    %v3587 = vpop.f32.mrf.mxu0
    %v3588 = vadd.f32 %v3496, %v3587
    %3589 = vmatmul.f32.gmra.mxu0 %v719
    %v3590 = vpop.f32.mrf.mxu0
    %v3591 = vadd.f32 %v3499, %v3590
    %3592 = vmatmul.f32.gmra.mxu0 %v728
    %v3593 = vpop.f32.mrf.mxu0
    %v3594 = vadd.f32 %v3502, %v3593
    %3595 = vmatmul.f32.gmra.mxu0 %v737
    %v3596 = vpop.f32.mrf.mxu0
    %v3597 = vadd.f32 %v3505, %v3596
    %3598 = vmatmul.f32.gmra.mxu0 %v746
    %v3599 = vpop.f32.mrf.mxu0
    %v3600 = vadd.f32 %v3508, %v3599
    %3601 = vmatmul.f32.gmra.mxu0 %v755
    %v3602 = vpop.f32.mrf.mxu0
    %v3603 = vadd.f32 %v3511, %v3602
    %3604 = vmatmul.f32.gmra.mxu0 %v764
    %v3605 = vpop.f32.mrf.mxu0
    %v3606 = vadd.f32 %v3514, %v3605
    %3607 = vmatmul.f32.gmra.mxu0 %v773
    %v3608 = vpop.f32.mrf.mxu0
    %v3609 = vadd.f32 %v3517, %v3608
    %3610 = vmatmul.f32.gmra.mxu0 %v782
    %v3611 = vpop.f32.mrf.mxu0
    %v3612 = vadd.f32 %v3520, %v3611
    %3613 = vmatmul.f32.gmra.mxu0 %v791
    %v3614 = vpop.f32.mrf.mxu0
    %v3615 = vadd.f32 %v3523, %v3614
    %3616 = vdwg.mxu0
    %3617 = vmatpush.msra.mxu0 %v1224
    %3618 = vmatpush.msra.mxu0 %v1221
    %3619 = vmatpush.msra.mxu0 %v1218
    %3620 = vmatpush.msra.mxu0 %v1215
    %3621 = vmatpush.msra.mxu0 %v1212
    %3622 = vmatpush.msra.mxu0 %v1209
    %3623 = vmatpush.msra.mxu0 %v1206
    %3624 = vmatpush.msra.mxu0 %v1203
    %3625 = vmatpush.msra.mxu0 %v1200
    %3626 = vmatpush.msra.mxu0 %v1197
    %3627 = vmatpush.msra.mxu0 %v1194
    %3628 = vmatpush.msra.mxu0 %v1191
    %3629 = vmatpush.msra.mxu0 %v1188
    %3630 = vmatpush.msra.mxu0 %v1185
    %3631 = vmatpush.msra.mxu0 %v1182
    %3632 = vmatpush.msra.mxu0 %v1179
    %3633 = vmatmul.f32.gmra.mxu0 %v576
    %v3634 = vpop.f32.mrf.mxu0
    %v3635 = vadd.f32 %v3543, %v3634
    %3636 = vmatmul.f32.gmra.mxu0 %v585
    %v3637 = vpop.f32.mrf.mxu0
    %v3638 = vadd.f32 %v3546, %v3637
    %3639 = vmatmul.f32.gmra.mxu0 %v594
    %v3640 = vpop.f32.mrf.mxu0
    %v3641 = vadd.f32 %v3549, %v3640
    %3642 = vmatmul.f32.gmra.mxu0 %v603
    %v3643 = vpop.f32.mrf.mxu0
    %v3644 = vadd.f32 %v3552, %v3643
    %3645 = vmatmul.f32.gmra.mxu0 %v612
    %v3646 = vpop.f32.mrf.mxu0
    %v3647 = vadd.f32 %v3555, %v3646
    %3648 = vmatmul.f32.gmra.mxu0 %v621
    %v3649 = vpop.f32.mrf.mxu0
    %v3650 = vadd.f32 %v3558, %v3649
    %3651 = vmatmul.f32.gmra.mxu0 %v630
    %v3652 = vpop.f32.mrf.mxu0
    %v3653 = vadd.f32 %v3561, %v3652
    %3654 = vmatmul.f32.gmra.mxu0 %v639
    %v3655 = vpop.f32.mrf.mxu0
    %v3656 = vadd.f32 %v3564, %v3655
    %3657 = vmatmul.f32.gmra.mxu0 %v648
    %v3658 = vpop.f32.mrf.mxu0
    %v3659 = vadd.f32 %v3567, %v3658
    %3660 = vmatmul.f32.gmra.mxu0 %v657
    %v3661 = vpop.f32.mrf.mxu0
    %v3662 = vadd.f32 %v3570, %v3661
    %3663 = vmatmul.f32.gmra.mxu0 %v666
    %v3664 = vpop.f32.mrf.mxu0
    %v3665 = vadd.f32 %v3573, %v3664
    %3666 = vmatmul.f32.gmra.mxu0 %v675
    %v3667 = vpop.f32.mrf.mxu0
    %v3668 = vadd.f32 %v3576, %v3667
    %3669 = vmatmul.f32.gmra.mxu0 %v684
    %v3670 = vpop.f32.mrf.mxu0
    %v3671 = vadd.f32 %v3579, %v3670
    %3672 = vmatmul.f32.gmra.mxu0 %v693
    %v3673 = vpop.f32.mrf.mxu0
    %v3674 = vadd.f32 %v3582, %v3673
    %3675 = vmatmul.f32.gmra.mxu0 %v702
    %v3676 = vpop.f32.mrf.mxu0
    %v3677 = vadd.f32 %v3585, %v3676
    %3678 = vmatmul.f32.gmra.mxu0 %v711
    %v3679 = vpop.f32.mrf.mxu0
    %v3680 = vadd.f32 %v3588, %v3679
    %3681 = vmatmul.f32.gmra.mxu0 %v720
    %v3682 = vpop.f32.mrf.mxu0
    %v3683 = vadd.f32 %v3591, %v3682
    %3684 = vmatmul.f32.gmra.mxu0 %v729
    %v3685 = vpop.f32.mrf.mxu0
    %v3686 = vadd.f32 %v3594, %v3685
    %3687 = vmatmul.f32.gmra.mxu0 %v738
    %v3688 = vpop.f32.mrf.mxu0
    %v3689 = vadd.f32 %v3597, %v3688
    %3690 = vmatmul.f32.gmra.mxu0 %v747
    %v3691 = vpop.f32.mrf.mxu0
    %v3692 = vadd.f32 %v3600, %v3691
    %3693 = vmatmul.f32.gmra.mxu0 %v756
    %v3694 = vpop.f32.mrf.mxu0
    %v3695 = vadd.f32 %v3603, %v3694
    %3696 = vmatmul.f32.gmra.mxu0 %v765
    %v3697 = vpop.f32.mrf.mxu0
    %v3698 = vadd.f32 %v3606, %v3697
    %3699 = vmatmul.f32.gmra.mxu0 %v774
    %v3700 = vpop.f32.mrf.mxu0
    %v3701 = vadd.f32 %v3609, %v3700
    %3702 = vmatmul.f32.gmra.mxu0 %v783
    %v3703 = vpop.f32.mrf.mxu0
    %v3704 = vadd.f32 %v3612, %v3703
    %3705 = vmatmul.f32.gmra.mxu0 %v792
    %v3706 = vpop.f32.mrf.mxu0
    %v3707 = vadd.f32 %v3615, %v3706
    %3708 = vdwg.mxu0
    %v3709 = vmul.f32 %v2807, %v3635
    %v3710 = vmul.f32 %v2810, %v3638
    %v3711 = vmul.f32 %v2813, %v3641
    %v3712 = vmul.f32 %v2816, %v3644
    %v3713 = vmul.f32 %v2819, %v3647
    %v3714 = vmul.f32 %v2822, %v3650
    %v3715 = vmul.f32 %v2825, %v3653
    %v3716 = vmul.f32 %v2828, %v3656
    %v3717 = vmul.f32 %v2831, %v3659
    %v3718 = vmul.f32 %v2834, %v3662
    %v3719 = vmul.f32 %v2837, %v3665
    %v3720 = vmul.f32 %v2840, %v3668
    %v3721 = vmul.f32 %v2843, %v3671
    %v3722 = vmul.f32 %v2846, %v3674
    %v3723 = vmul.f32 %v2849, %v3677
    %v3724 = vmul.f32 %v2852, %v3680
    %v3725 = vmul.f32 %v2855, %v3683
    %v3726 = vmul.f32 %v2858, %v3686
    %v3727 = vmul.f32 %v2861, %v3689
    %v3728 = vmul.f32 %v2864, %v3692
    %v3729 = vmul.f32 %v2867, %v3695
    %v3730 = vmul.f32 %v2870, %v3698
    %v3731 = vmul.f32 %v2873, %v3701
    %v3732 = vmul.f32 %v2876, %v3704
    %v3733 = vmul.f32 %v2879, %v3707
    %v3734 = vadd.f32 %v1979, %v3709
    %v3735 = vadd.f32 %v1982, %v3710
    %v3736 = vadd.f32 %v1985, %v3711
    %v3737 = vadd.f32 %v1988, %v3712
    %v3738 = vadd.f32 %v1991, %v3713
    %v3739 = vadd.f32 %v1994, %v3714
    %v3740 = vadd.f32 %v1997, %v3715
    %v3741 = vadd.f32 %v2000, %v3716
    %v3742 = vadd.f32 %v2003, %v3717
    %v3743 = vadd.f32 %v2006, %v3718
    %v3744 = vadd.f32 %v2009, %v3719
    %v3745 = vadd.f32 %v2012, %v3720
    %v3746 = vadd.f32 %v2015, %v3721
    %v3747 = vadd.f32 %v2018, %v3722
    %v3748 = vadd.f32 %v2021, %v3723
    %v3749 = vadd.f32 %v2024, %v3724
    %v3750 = vadd.f32 %v2027, %v3725
    %v3751 = vadd.f32 %v2030, %v3726
    %v3752 = vadd.f32 %v2033, %v3727
    %v3753 = vadd.f32 %v2036, %v3728
    %v3754 = vadd.f32 %v2039, %v3729
    %v3755 = vadd.f32 %v2042, %v3730
    %v3756 = vadd.f32 %v2045, %v3731
    %v3757 = vadd.f32 %v2048, %v3732
    %v3758 = vadd.f32 %v2051, %v3733
    %v3759 = vmul.f32 %v3734, 1.442695
    %v3760 = vpow.pop %v3759
    %v3761 = vmul.f32 %v3735, 1.442695
    %v3762 = vpow.pop %v3761
    %v3763 = vmul.f32 %v3736, 1.442695
    %v3764 = vpow.pop %v3763
    %v3765 = vmul.f32 %v3737, 1.442695
    %v3766 = vpow.pop %v3765
    %v3767 = vmul.f32 %v3738, 1.442695
    %v3768 = vpow.pop %v3767
    %v3769 = vmul.f32 %v3739, 1.442695
    %v3770 = vpow.pop %v3769
    %v3771 = vmul.f32 %v3740, 1.442695
    %v3772 = vpow.pop %v3771
    %v3773 = vmul.f32 %v3741, 1.442695
    %v3774 = vpow.pop %v3773
    %v3775 = vmul.f32 %v3742, 1.442695
    %v3776 = vpow.pop %v3775
    %v3777 = vmul.f32 %v3743, 1.442695
    %v3778 = vpow.pop %v3777
    %v3779 = vmul.f32 %v3744, 1.442695
    %v3780 = vpow.pop %v3779
    %v3781 = vmul.f32 %v3745, 1.442695
    %v3782 = vpow.pop %v3781
    %v3783 = vmul.f32 %v3746, 1.442695
    %v3784 = vpow.pop %v3783
    %v3785 = vmul.f32 %v3747, 1.442695
    %v3786 = vpow.pop %v3785
    %v3787 = vmul.f32 %v3748, 1.442695
    %v3788 = vpow.pop %v3787
    %v3789 = vmul.f32 %v3749, 1.442695
    %v3790 = vpow.pop %v3789
    %v3791 = vmul.f32 %v3750, 1.442695
    %v3792 = vpow.pop %v3791
    %v3793 = vmul.f32 %v3751, 1.442695
    %v3794 = vpow.pop %v3793
    %v3795 = vmul.f32 %v3752, 1.442695
    %v3796 = vpow.pop %v3795
    %v3797 = vmul.f32 %v3753, 1.442695
    %v3798 = vpow.pop %v3797
    %v3799 = vmul.f32 %v3754, 1.442695
    %v3800 = vpow.pop %v3799
    %v3801 = vmul.f32 %v3755, 1.442695
    %v3802 = vpow.pop %v3801
    %v3803 = vmul.f32 %v3756, 1.442695
    %v3804 = vpow.pop %v3803
    %v3805 = vmul.f32 %v3757, 1.442695
    %v3806 = vpow.pop %v3805
    %v3807 = vmul.f32 %v3758, 1.442695
    %v3808 = vpow.pop %v3807
    %3809 = vst [vmem:[#allocation10] sm:$0xff] %v3760
    %3810 = vst [vmem:[#allocation10 + $0x8] sm:$0xff] %v3762
    %3811 = vst [vmem:[#allocation10 + $0x10] sm:$0xff] %v3764
    %3812 = vst [vmem:[#allocation10 + $0x18] sm:$0xff] %v3766
    %3813 = vst [vmem:[#allocation10 + $0x20] sm:$0xff] %v3768
    %3814 = vst [vmem:[#allocation10 + $0x28] sm:$0xff] %v3770
    %3815 = vst [vmem:[#allocation10 + $0x30] sm:$0xff] %v3772
    %3816 = vst [vmem:[#allocation10 + $0x38] sm:$0xff] %v3774
    %3817 = vst [vmem:[#allocation10 + $0x40] sm:$0xff] %v3776
    %3818 = vst [vmem:[#allocation10 + $0x48] sm:$0xff] %v3778
    %3819 = vst [vmem:[#allocation10 + $0x50] sm:$0xff] %v3780
    %3820 = vst [vmem:[#allocation10 + $0x58] sm:$0xff] %v3782
    %3821 = vst [vmem:[#allocation10 + $0x60] sm:$0xff] %v3784
    %3822 = vst [vmem:[#allocation10 + $0x68] sm:$0xff] %v3786
    %3823 = vst [vmem:[#allocation10 + $0x70] sm:$0xff] %v3788
    %3824 = vst [vmem:[#allocation10 + $0x78] sm:$0xff] %v3790
    %3825 = vst [vmem:[#allocation10 + $0x80] sm:$0xff] %v3792
    %3826 = vst [vmem:[#allocation10 + $0x88] sm:$0xff] %v3794
    %3827 = vst [vmem:[#allocation10 + $0x90] sm:$0xff] %v3796
    %3828 = vst [vmem:[#allocation10 + $0x98] sm:$0xff] %v3798
    %3829 = vst [vmem:[#allocation10 + $0xa0] sm:$0xff] %v3800
    %3830 = vst [vmem:[#allocation10 + $0xa8] sm:$0xff] %v3802
    %3831 = vst [vmem:[#allocation10 + $0xb0] sm:$0xff] %v3804
    %3832 = vst [vmem:[#allocation10 + $0xb8] sm:$0xff] %v3806
    %3833 = vst [vmem:[#allocation10 + $0xc0] sm:$0xff] %v3808
    // Predicated region
    $region26: #{tpu_custom_call.1} parent=1 // pred_check
      _
    $region27: #{tpu_custom_call.1} parent=1 // pred_check_branch
      %3835 = sbr.rel (0) target = $region29
    $region28: #{tpu_custom_call.1} parent=1 // pred_region
      %3837 = vsyncadd [#allocation6], 0
      %s3838 = sshll.u32 [#allocation10], 4
      %s3839 = int_to_ptr.vmem [resolvable:$true] %s3838
      %s3840 = sshll.u32 %s3, 4
      %s3841 = int_to_ptr.hbm [resolvable:$true] %s3840
      %3846 = dma.vmem_to_hbm [thread:$0]  %s3839, 3200, %s3841, [#allocation6], 128, 128, 8
    $region29: #{tpu_custom_call.1} parent=1 // pred_fallthru
      _
    // Predicated region
    $region30: #{tpu_custom_call.1} parent=1 // pred_check
      _
    $region31: #{tpu_custom_call.1} parent=1 // pred_check_branch
      %3848 = sbr.rel (0) target = $region33
    $region32: #{tpu_custom_call.1} parent=1 // pred_region
      %3850 = dma.done [#allocation6], 3200
    $region33: #{tpu_custom_call.1} parent=1 // pred_fallthru
      _
    %3851 = vsyncpa [#allocation5], 1
    %3852 = vsyncpa [#allocation8], 1
    %3853 = vsyncpa [#allocation6], 1

// kernel: tpu_custom_call.1
$region0: #{tpu_custom_call.1}
  #allocation0 [shape = 'u32[]', space=smem, size = 0x4, offset = 0x4, fixed_abs, tag = 'smem constant byte address 0x4 - core index']
  #allocation1 [shape = 'u32[72,128]{1,0:T(1,128)}', space=vmem, size = 0x9000, scoped, tag = 'internal scratch']
  #allocation2 [shape = 'f32[224,128]{1,0:T(8,128)}', space=vmem, size = 0x1c000, scoped, tag = 'scratch operand']
  #allocation3 [shape = 'f32[200,1152]{1,0:T(8,128)}', space=vmem, size = 0xe1000, scoped, tag = 'scratch operand']
  %s0 = inlined_call_operand.hbm [shape: f32[200,128], index: 0, kind: input, shape index: {}]
  %s1 = inlined_call_operand.hbm [shape: f32[1,24,128], index: 1, kind: input, shape index: {}]
  %s2 = inlined_call_operand.hbm [shape: f32[1152,384], index: 2, kind: input, shape index: {}]
  %s3 = inlined_call_operand.hbm [shape: f32[200,128], index: 3, kind: output, shape index: {}]
  %s4 = sld [smem:[#allocation0]]
  $region34: #{tpu_custom_call.1} parent=0
    _
  %s6 = ssub.s32 1, %s4
  %s7 = scalar_select 0, %s6, %s4
  $region1: #{tpu_custom_call.1} parent=0
    #allocation4 [shape = 'u8[102400]{0}', space=vmem, size = 0x19000, scoped, tag = 'input window, operand 0, single buffered']
    #allocation5 [shape = 's32[1]{0}', space=sflag, size = 0x4, scoped, tag = 'scoped memory for tpu_custom_call.1']
    #allocation6 [shape = 's32[1]{0}', space=sflag, size = 0x4, scoped, tag = 'scoped memory for tpu_custom_call.1']
    #allocation7 [shape = 'u8[12288]{0}', space=vmem, size = 0x3000, scoped, tag = 'input window, operand 1, single buffered']
    #allocation8 [shape = 's32[1]{0}', space=sflag, size = 0x4, scoped, tag = 'scoped memory for tpu_custom_call.1']
    #allocation9 [shape = 'u8[1769472]{0}', space=vmem, size = 0x1b0000, scoped, tag = 'input window, operand 2, single buffered']
    #allocation10 [shape = 'u8[102400]{0}', space=vmem, size = 0x19000, scoped, tag = 'output window, operand 0, single buffered']
    %8 = vsyncpa [#allocation5], 0
    %9 = vsyncpa [#allocation8], 0
    %10 = vsyncpa [#allocation6], 0
    // Predicated region
    $region2: #{tpu_custom_call.1} parent=1 // pred_check
      _
    $region3: #{tpu_custom_call.1} parent=1 // pred_check_branch
      %12 = sbr.rel (0) target = $region5
    $region4: #{tpu_custom_call.1} parent=1 // pred_region
      %14 = vsyncadd [#allocation5], 0
      %s15 = sshll.u32 %s0, 4
      %s16 = int_to_ptr.hbm [resolvable:$true] %s15
      %s17 = sshll.u32 [#allocation4], 4
      %s18 = int_to_ptr.vmem [resolvable:$true] %s17
      %23 = dma.hbm_to_vmem [thread:$0]  %s16, 3200, %s18, [#allocation5], 128, 128, 8
    $region5: #{tpu_custom_call.1} parent=1 // pred_fallthru
      _
    // Predicated region
    $region6: #{tpu_custom_call.1} parent=1 // pred_check
      _
    $region7: #{tpu_custom_call.1} parent=1 // pred_check_branch
      %25 = sbr.rel (0) target = $region9
    $region8: #{tpu_custom_call.1} parent=1 // pred_region
      %27 = vsyncadd [#allocation8], 0
      %s28 = sshll.u32 %s1, 4
      %s29 = int_to_ptr.hbm [resolvable:$true] %s28
      %s30 = sshll.u32 [#allocation7], 4
      %s31 = int_to_ptr.vmem [resolvable:$true] %s30
      %36 = dma.hbm_to_vmem [thread:$0]  %s29, 384, %s31, [#allocation8], 128, 128, 8
    $region9: #{tpu_custom_call.1} parent=1 // pred_fallthru
      _
    // Predicated region
    $region10: #{tpu_custom_call.1} parent=1 // pred_check
      _
    $region11: #{tpu_custom_call.1} parent=1 // pred_check_branch
      %38 = sbr.rel (0) target = $region13
    $region12: #{tpu_custom_call.1} parent=1 // pred_region
      %40 = vsyncadd [#allocation8], 0
      %s41 = sshll.u32 %s2, 4
      %s42 = int_to_ptr.hbm [resolvable:$true] %s41
      %s43 = sshll.u32 [#allocation9], 4
      %s44 = int_to_ptr.vmem [resolvable:$true] %s43
      %49 = dma.hbm_to_vmem [thread:$0]  %s42, 55296, %s44, [#allocation8], 384, 384, 24
    $region13: #{tpu_custom_call.1} parent=1 // pred_fallthru
      _
    // Predicated region
    $region14: #{tpu_custom_call.1} parent=1 // pred_check
      _
    $region15: #{tpu_custom_call.1} parent=1 // pred_check_branch
      %51 = sbr.rel (0) target = $region17
    $region16: #{tpu_custom_call.1} parent=1 // pred_region
      %53 = dma.done [#allocation5], 3200
    $region17: #{tpu_custom_call.1} parent=1 // pred_fallthru
      _
    // Predicated region
    $region18: #{tpu_custom_call.1} parent=1 // pred_check
      _
    $region19: #{tpu_custom_call.1} parent=1 // pred_check_branch
      %55 = sbr.rel (0) target = $region21
    $region20: #{tpu_custom_call.1} parent=1 // pred_region
      %57 = dma.done [#allocation8], 384
    $region21: #{tpu_custom_call.1} parent=1 // pred_fallthru
      _
    // Predicated region
    $region22: #{tpu_custom_call.1} parent=1 // pred_check
      _
    $region23: #{tpu_custom_call.1} parent=1 // pred_check_branch
      %59 = sbr.rel (0) target = $region25
    $region24: #{tpu_custom_call.1} parent=1 // pred_region
      %61 = dma.done [#allocation8], 55296
    $region25: #{tpu_custom_call.1} parent=1 // pred_fallthru
      _
    %v62 = vld [vmem:[#allocation4] sm:$0xff]
    %v63 = vld [vmem:[#allocation4 + $0x8] sm:$0xff]
    %v64 = vld [vmem:[#allocation4 + $0x10] sm:$0xff]
    %v65 = vld [vmem:[#allocation4 + $0x18] sm:$0xff]
    %v66 = vld [vmem:[#allocation4 + $0x20] sm:$0xff]
    %v67 = vld [vmem:[#allocation4 + $0x28] sm:$0xff]
    %v68 = vld [vmem:[#allocation4 + $0x30] sm:$0xff]
    %v69 = vld [vmem:[#allocation4 + $0x38] sm:$0xff]
    %v70 = vld [vmem:[#allocation4 + $0x40] sm:$0xff]
    %v71 = vld [vmem:[#allocation4 + $0x48] sm:$0xff]
    %v72 = vld [vmem:[#allocation4 + $0x50] sm:$0xff]
    %v73 = vld [vmem:[#allocation4 + $0x58] sm:$0xff]
    %v74 = vld [vmem:[#allocation4 + $0x60] sm:$0xff]
    %v75 = vld [vmem:[#allocation4 + $0x68] sm:$0xff]
    %v76 = vld [vmem:[#allocation4 + $0x70] sm:$0xff]
    %v77 = vld [vmem:[#allocation4 + $0x78] sm:$0xff]
    %v78 = vld [vmem:[#allocation4 + $0x80] sm:$0xff]
    %v79 = vld [vmem:[#allocation4 + $0x88] sm:$0xff]
    %v80 = vld [vmem:[#allocation4 + $0x90] sm:$0xff]
    %v81 = vld [vmem:[#allocation4 + $0x98] sm:$0xff]
    %v82 = vld [vmem:[#allocation4 + $0xa0] sm:$0xff]
    %v83 = vld [vmem:[#allocation4 + $0xa8] sm:$0xff]
    %v84 = vld [vmem:[#allocation4 + $0xb0] sm:$0xff]
    %v85 = vld [vmem:[#allocation4 + $0xb8] sm:$0xff]
    %v86 = vld [vmem:[#allocation4 + $0xc0] sm:$0xff]
    %87 = vst [vmem:[#allocation2] sm:$0xff] %v62
    %88 = vst [vmem:[#allocation2 + $0x8] sm:$0xff] %v63
    %89 = vst [vmem:[#allocation2 + $0x10] sm:$0xff] %v64
    %90 = vst [vmem:[#allocation2 + $0x18] sm:$0xff] %v65
    %91 = vst [vmem:[#allocation2 + $0x20] sm:$0xff] %v66
    %92 = vst [vmem:[#allocation2 + $0x28] sm:$0xff] %v67
    %93 = vst [vmem:[#allocation2 + $0x30] sm:$0xff] %v68
    %94 = vst [vmem:[#allocation2 + $0x38] sm:$0xff] %v69
    %95 = vst [vmem:[#allocation2 + $0x40] sm:$0xff] %v70
    %96 = vst [vmem:[#allocation2 + $0x48] sm:$0xff] %v71
    %97 = vst [vmem:[#allocation2 + $0x50] sm:$0xff] %v72
    %98 = vst [vmem:[#allocation2 + $0x58] sm:$0xff] %v73
    %99 = vst [vmem:[#allocation2 + $0x60] sm:$0xff] %v74
    %100 = vst [vmem:[#allocation2 + $0x68] sm:$0xff] %v75
    %101 = vst [vmem:[#allocation2 + $0x70] sm:$0xff] %v76
    %102 = vst [vmem:[#allocation2 + $0x78] sm:$0xff] %v77
    %103 = vst [vmem:[#allocation2 + $0x80] sm:$0xff] %v78
    %104 = vst [vmem:[#allocation2 + $0x88] sm:$0xff] %v79
    %105 = vst [vmem:[#allocation2 + $0x90] sm:$0xff] %v80
    %106 = vst [vmem:[#allocation2 + $0x98] sm:$0xff] %v81
    %107 = vst [vmem:[#allocation2 + $0xa0] sm:$0xff] %v82
    %108 = vst [vmem:[#allocation2 + $0xa8] sm:$0xff] %v83
    %109 = vst [vmem:[#allocation2 + $0xb0] sm:$0xff] %v84
    %110 = vst [vmem:[#allocation2 + $0xb8] sm:$0xff] %v85
    %111 = vst [vmem:[#allocation2 + $0xc0] sm:$0xff] %v86
    %v112 = vld [vmem:[#allocation7] sm:$0xff]
    %v113 = vld [vmem:[#allocation7 + $0x8] sm:$0xff]
    %v114 = vld [vmem:[#allocation7 + $0x10] sm:$0xff]
    %115 = vst [vmem:[#allocation2 + $0xc8] sm:$0xff] %v112
    %116 = vst [vmem:[#allocation2 + $0xd0] sm:$0xff] %v113
    %117 = vst [vmem:[#allocation2 + $0xd8] sm:$0xff] %v114
    %v118 = vld [vmem:[#allocation2] sm:$0xff]
    %v119 = vld [vmem:[#allocation2 + $0x8] sm:$0xff]
    %v120 = vld [vmem:[#allocation2 + $0x10] sm:$0xff]
    %v121 = vld [vmem:[#allocation2 + $0x18] sm:$0xff]
    %v122 = vld [vmem:[#allocation2 + $0x20] sm:$0xff]
    %v123 = vld [vmem:[#allocation2 + $0x28] sm:$0xff]
    %v124 = vld [vmem:[#allocation2 + $0x30] sm:$0xff]
    %v125 = vld [vmem:[#allocation2 + $0x38] sm:$0xff]
    %v126 = vld [vmem:[#allocation2 + $0x40] sm:$0xff]
    %v127 = vld [vmem:[#allocation2 + $0x48] sm:$0xff]
    %v128 = vld [vmem:[#allocation2 + $0x50] sm:$0xff]
    %v129 = vld [vmem:[#allocation2 + $0x58] sm:$0xff]
    %v130 = vld [vmem:[#allocation2 + $0x60] sm:$0xff]
    %v131 = vld [vmem:[#allocation2 + $0x68] sm:$0xff]
    %v132 = vld [vmem:[#allocation2 + $0x70] sm:$0xff]
    %v133 = vld [vmem:[#allocation2 + $0x78] sm:$0xff]
    %v134 = vld [vmem:[#allocation2 + $0x80] sm:$0xff]
    %v135 = vld [vmem:[#allocation2 + $0x88] sm:$0xff]
    %v136 = vld [vmem:[#allocation2 + $0x90] sm:$0xff]
    %v137 = vld [vmem:[#allocation2 + $0x98] sm:$0xff]
    %v138 = vld [vmem:[#allocation2 + $0xa0] sm:$0xff]
    %v139 = vld [vmem:[#allocation2 + $0xa8] sm:$0xff]
    %v140 = vld [vmem:[#allocation2 + $0xb0] sm:$0xff]
    %v141 = vld [vmem:[#allocation2 + $0xb8] sm:$0xff]
    %v142 = vld [vmem:[#allocation2 + $0xc0] sm:$0xff]
    %143 = vst [vmem:[#allocation3] sm:$0xff] %v118
    %144 = vst [vmem:[#allocation3 + $0x48] sm:$0xff] %v119
    %145 = vst [vmem:[#allocation3 + $0x90] sm:$0xff] %v120
    %146 = vst [vmem:[#allocation3 + $0xd8] sm:$0xff] %v121
    %147 = vst [vmem:[#allocation3 + $0x120] sm:$0xff] %v122
    %148 = vst [vmem:[#allocation3 + $0x168] sm:$0xff] %v123
    %149 = vst [vmem:[#allocation3 + $0x1b0] sm:$0xff] %v124
    %150 = vst [vmem:[#allocation3 + $0x1f8] sm:$0xff] %v125
    %151 = vst [vmem:[#allocation3 + $0x240] sm:$0xff] %v126
    %152 = vst [vmem:[#allocation3 + $0x288] sm:$0xff] %v127
    %153 = vst [vmem:[#allocation3 + $0x2d0] sm:$0xff] %v128
    %154 = vst [vmem:[#allocation3 + $0x318] sm:$0xff] %v129
    %155 = vst [vmem:[#allocation3 + $0x360] sm:$0xff] %v130
    %156 = vst [vmem:[#allocation3 + $0x3a8] sm:$0xff] %v131
    %157 = vst [vmem:[#allocation3 + $0x3f0] sm:$0xff] %v132
    %158 = vst [vmem:[#allocation3 + $0x438] sm:$0xff] %v133
    %159 = vst [vmem:[#allocation3 + $0x480] sm:$0xff] %v134
    %160 = vst [vmem:[#allocation3 + $0x4c8] sm:$0xff] %v135
    %161 = vst [vmem:[#allocation3 + $0x510] sm:$0xff] %v136
    %162 = vst [vmem:[#allocation3 + $0x558] sm:$0xff] %v137
    %163 = vst [vmem:[#allocation3 + $0x5a0] sm:$0xff] %v138
    %164 = vst [vmem:[#allocation3 + $0x5e8] sm:$0xff] %v139
    %165 = vst [vmem:[#allocation3 + $0x630] sm:$0xff] %v140
    %166 = vst [vmem:[#allocation3 + $0x678] sm:$0xff] %v141
    %167 = vst [vmem:[#allocation3 + $0x6c0] sm:$0xff] %v142
    %v168 = vld [vmem:[#allocation2 + $0x1] sm:$0xff]
    %v169 = vld [vmem:[#allocation2 + $0x9] sm:$0xff]
    %v170 = vld [vmem:[#allocation2 + $0x11] sm:$0xff]
    %v171 = vld [vmem:[#allocation2 + $0x19] sm:$0xff]
    %v172 = vld [vmem:[#allocation2 + $0x21] sm:$0xff]
    %v173 = vld [vmem:[#allocation2 + $0x29] sm:$0xff]
    %v174 = vld [vmem:[#allocation2 + $0x31] sm:$0xff]
    %v175 = vld [vmem:[#allocation2 + $0x39] sm:$0xff]
    %v176 = vld [vmem:[#allocation2 + $0x41] sm:$0xff]
    %v177 = vld [vmem:[#allocation2 + $0x49] sm:$0xff]
    %v178 = vld [vmem:[#allocation2 + $0x51] sm:$0xff]
    %v179 = vld [vmem:[#allocation2 + $0x59] sm:$0xff]
    %v180 = vld [vmem:[#allocation2 + $0x61] sm:$0xff]
    %v181 = vld [vmem:[#allocation2 + $0x69] sm:$0xff]
    %v182 = vld [vmem:[#allocation2 + $0x71] sm:$0xff]
    %v183 = vld [vmem:[#allocation2 + $0x79] sm:$0xff]
    %v184 = vld [vmem:[#allocation2 + $0x81] sm:$0xff]
    %v185 = vld [vmem:[#allocation2 + $0x89] sm:$0xff]
    %v186 = vld [vmem:[#allocation2 + $0x91] sm:$0xff]
    %v187 = vld [vmem:[#allocation2 + $0x99] sm:$0xff]
    %v188 = vld [vmem:[#allocation2 + $0xa1] sm:$0xff]
    %v189 = vld [vmem:[#allocation2 + $0xa9] sm:$0xff]
    %v190 = vld [vmem:[#allocation2 + $0xb1] sm:$0xff]
    %v191 = vld [vmem:[#allocation2 + $0xb9] sm:$0xff]
    %v192 = vld [vmem:[#allocation2 + $0xc1] sm:$0xff]
    %193 = vst [vmem:[#allocation3 + $0x8] sm:$0xff] %v168
    %194 = vst [vmem:[#allocation3 + $0x50] sm:$0xff] %v169
    %195 = vst [vmem:[#allocation3 + $0x98] sm:$0xff] %v170
    %196 = vst [vmem:[#allocation3 + $0xe0] sm:$0xff] %v171
    %197 = vst [vmem:[#allocation3 + $0x128] sm:$0xff] %v172
    %198 = vst [vmem:[#allocation3 + $0x170] sm:$0xff] %v173
    %199 = vst [vmem:[#allocation3 + $0x1b8] sm:$0xff] %v174
    %200 = vst [vmem:[#allocation3 + $0x200] sm:$0xff] %v175
    %201 = vst [vmem:[#allocation3 + $0x248] sm:$0xff] %v176
    %202 = vst [vmem:[#allocation3 + $0x290] sm:$0xff] %v177
    %203 = vst [vmem:[#allocation3 + $0x2d8] sm:$0xff] %v178
    %204 = vst [vmem:[#allocation3 + $0x320] sm:$0xff] %v179
    %205 = vst [vmem:[#allocation3 + $0x368] sm:$0xff] %v180
    %206 = vst [vmem:[#allocation3 + $0x3b0] sm:$0xff] %v181
    %207 = vst [vmem:[#allocation3 + $0x3f8] sm:$0xff] %v182
    %208 = vst [vmem:[#allocation3 + $0x440] sm:$0xff] %v183
    %209 = vst [vmem:[#allocation3 + $0x488] sm:$0xff] %v184
    %210 = vst [vmem:[#allocation3 + $0x4d0] sm:$0xff] %v185
    %211 = vst [vmem:[#allocation3 + $0x518] sm:$0xff] %v186
    %212 = vst [vmem:[#allocation3 + $0x560] sm:$0xff] %v187
    %213 = vst [vmem:[#allocation3 + $0x5a8] sm:$0xff] %v188
    %214 = vst [vmem:[#allocation3 + $0x5f0] sm:$0xff] %v189
    %215 = vst [vmem:[#allocation3 + $0x638] sm:$0xff] %v190
    %216 = vst [vmem:[#allocation3 + $0x680] sm:$0xff] %v191
    %217 = vst [vmem:[#allocation3 + $0x6c8] sm:$0xff] %v192
    %v218 = vld [vmem:[#allocation2 + $0x2] sm:$0xff]
    %v219 = vld [vmem:[#allocation2 + $0xa] sm:$0xff]
    %v220 = vld [vmem:[#allocation2 + $0x12] sm:$0xff]
    %v221 = vld [vmem:[#allocation2 + $0x1a] sm:$0xff]
    %v222 = vld [vmem:[#allocation2 + $0x22] sm:$0xff]
    %v223 = vld [vmem:[#allocation2 + $0x2a] sm:$0xff]
    %v224 = vld [vmem:[#allocation2 + $0x32] sm:$0xff]
    %v225 = vld [vmem:[#allocation2 + $0x3a] sm:$0xff]
    %v226 = vld [vmem:[#allocation2 + $0x42] sm:$0xff]
    %v227 = vld [vmem:[#allocation2 + $0x4a] sm:$0xff]
    %v228 = vld [vmem:[#allocation2 + $0x52] sm:$0xff]
    %v229 = vld [vmem:[#allocation2 + $0x5a] sm:$0xff]
    %v230 = vld [vmem:[#allocation2 + $0x62] sm:$0xff]
    %v231 = vld [vmem:[#allocation2 + $0x6a] sm:$0xff]
    %v232 = vld [vmem:[#allocation2 + $0x72] sm:$0xff]
    %v233 = vld [vmem:[#allocation2 + $0x7a] sm:$0xff]
    %v234 = vld [vmem:[#allocation2 + $0x82] sm:$0xff]
    %v235 = vld [vmem:[#allocation2 + $0x8a] sm:$0xff]
    %v236 = vld [vmem:[#allocation2 + $0x92] sm:$0xff]
    %v237 = vld [vmem:[#allocation2 + $0x9a] sm:$0xff]
    %v238 = vld [vmem:[#allocation2 + $0xa2] sm:$0xff]
    %v239 = vld [vmem:[#allocation2 + $0xaa] sm:$0xff]
    %v240 = vld [vmem:[#allocation2 + $0xb2] sm:$0xff]
    %v241 = vld [vmem:[#allocation2 + $0xba] sm:$0xff]
    %v242 = vld [vmem:[#allocation2 + $0xc2] sm:$0xff]
    %243 = vst [vmem:[#allocation3 + $0x10] sm:$0xff] %v218
    %244 = vst [vmem:[#allocation3 + $0x58] sm:$0xff] %v219
    %245 = vst [vmem:[#allocation3 + $0xa0] sm:$0xff] %v220
    %246 = vst [vmem:[#allocation3 + $0xe8] sm:$0xff] %v221
    %247 = vst [vmem:[#allocation3 + $0x130] sm:$0xff] %v222
    %248 = vst [vmem:[#allocation3 + $0x178] sm:$0xff] %v223
    %249 = vst [vmem:[#allocation3 + $0x1c0] sm:$0xff] %v224
    %250 = vst [vmem:[#allocation3 + $0x208] sm:$0xff] %v225
    %251 = vst [vmem:[#allocation3 + $0x250] sm:$0xff] %v226
    %252 = vst [vmem:[#allocation3 + $0x298] sm:$0xff] %v227
    %253 = vst [vmem:[#allocation3 + $0x2e0] sm:$0xff] %v228
    %254 = vst [vmem:[#allocation3 + $0x328] sm:$0xff] %v229
    %255 = vst [vmem:[#allocation3 + $0x370] sm:$0xff] %v230
    %256 = vst [vmem:[#allocation3 + $0x3b8] sm:$0xff] %v231
    %257 = vst [vmem:[#allocation3 + $0x400] sm:$0xff] %v232
    %258 = vst [vmem:[#allocation3 + $0x448] sm:$0xff] %v233
    %259 = vst [vmem:[#allocation3 + $0x490] sm:$0xff] %v234
    %260 = vst [vmem:[#allocation3 + $0x4d8] sm:$0xff] %v235
    %261 = vst [vmem:[#allocation3 + $0x520] sm:$0xff] %v236
    %262 = vst [vmem:[#allocation3 + $0x568] sm:$0xff] %v237
    %263 = vst [vmem:[#allocation3 + $0x5b0] sm:$0xff] %v238
    %264 = vst [vmem:[#allocation3 + $0x5f8] sm:$0xff] %v239
    %265 = vst [vmem:[#allocation3 + $0x640] sm:$0xff] %v240
    %266 = vst [vmem:[#allocation3 + $0x688] sm:$0xff] %v241
    %267 = vst [vmem:[#allocation3 + $0x6d0] sm:$0xff] %v242
    %v268 = vld [vmem:[#allocation2 + $0xa] sm:$0xff]
    %v269 = vld [vmem:[#allocation2 + $0x12] sm:$0xff]
    %v270 = vld [vmem:[#allocation2 + $0x1a] sm:$0xff]
    %v271 = vld [vmem:[#allocation2 + $0x22] sm:$0xff]
    %v272 = vld [vmem:[#allocation2 + $0x2a] sm:$0xff]
    %v273 = vld [vmem:[#allocation2 + $0x32] sm:$0xff]
    %v274 = vld [vmem:[#allocation2 + $0x3a] sm:$0xff]
    %v275 = vld [vmem:[#allocation2 + $0x42] sm:$0xff]
    %v276 = vld [vmem:[#allocation2 + $0x4a] sm:$0xff]
    %v277 = vld [vmem:[#allocation2 + $0x52] sm:$0xff]
    %v278 = vld [vmem:[#allocation2 + $0x5a] sm:$0xff]
    %v279 = vld [vmem:[#allocation2 + $0x62] sm:$0xff]
    %v280 = vld [vmem:[#allocation2 + $0x6a] sm:$0xff]
    %v281 = vld [vmem:[#allocation2 + $0x72] sm:$0xff]
    %v282 = vld [vmem:[#allocation2 + $0x7a] sm:$0xff]
    %v283 = vld [vmem:[#allocation2 + $0x82] sm:$0xff]
    %v284 = vld [vmem:[#allocation2 + $0x8a] sm:$0xff]
    %v285 = vld [vmem:[#allocation2 + $0x92] sm:$0xff]
    %v286 = vld [vmem:[#allocation2 + $0x9a] sm:$0xff]
    %v287 = vld [vmem:[#allocation2 + $0xa2] sm:$0xff]
    %v288 = vld [vmem:[#allocation2 + $0xaa] sm:$0xff]
    %v289 = vld [vmem:[#allocation2 + $0xb2] sm:$0xff]
    %v290 = vld [vmem:[#allocation2 + $0xba] sm:$0xff]
    %v291 = vld [vmem:[#allocation2 + $0xc2] sm:$0xff]
    %v292 = vld [vmem:[#allocation2 + $0xca] sm:$0xff]
    %293 = vst [vmem:[#allocation3 + $0x18] sm:$0xff] %v268
    %294 = vst [vmem:[#allocation3 + $0x60] sm:$0xff] %v269
    %295 = vst [vmem:[#allocation3 + $0xa8] sm:$0xff] %v270
    %296 = vst [vmem:[#allocation3 + $0xf0] sm:$0xff] %v271
    %297 = vst [vmem:[#allocation3 + $0x138] sm:$0xff] %v272
    %298 = vst [vmem:[#allocation3 + $0x180] sm:$0xff] %v273
    %299 = vst [vmem:[#allocation3 + $0x1c8] sm:$0xff] %v274
    %300 = vst [vmem:[#allocation3 + $0x210] sm:$0xff] %v275
    %301 = vst [vmem:[#allocation3 + $0x258] sm:$0xff] %v276
    %302 = vst [vmem:[#allocation3 + $0x2a0] sm:$0xff] %v277
    %303 = vst [vmem:[#allocation3 + $0x2e8] sm:$0xff] %v278
    %304 = vst [vmem:[#allocation3 + $0x330] sm:$0xff] %v279
    %305 = vst [vmem:[#allocation3 + $0x378] sm:$0xff] %v280
    %306 = vst [vmem:[#allocation3 + $0x3c0] sm:$0xff] %v281
    %307 = vst [vmem:[#allocation3 + $0x408] sm:$0xff] %v282
    %308 = vst [vmem:[#allocation3 + $0x450] sm:$0xff] %v283
    %309 = vst [vmem:[#allocation3 + $0x498] sm:$0xff] %v284
    %310 = vst [vmem:[#allocation3 + $0x4e0] sm:$0xff] %v285
    %311 = vst [vmem:[#allocation3 + $0x528] sm:$0xff] %v286
    %312 = vst [vmem:[#allocation3 + $0x570] sm:$0xff] %v287
    %313 = vst [vmem:[#allocation3 + $0x5b8] sm:$0xff] %v288
    %314 = vst [vmem:[#allocation3 + $0x600] sm:$0xff] %v289
    %315 = vst [vmem:[#allocation3 + $0x648] sm:$0xff] %v290
    %316 = vst [vmem:[#allocation3 + $0x690] sm:$0xff] %v291
    %317 = vst [vmem:[#allocation3 + $0x6d8] sm:$0xff] %v292
    %v318 = vld [vmem:[#allocation2 + $0xb] sm:$0xff]
    %v319 = vld [vmem:[#allocation2 + $0x13] sm:$0xff]
    %v320 = vld [vmem:[#allocation2 + $0x1b] sm:$0xff]
    %v321 = vld [vmem:[#allocation2 + $0x23] sm:$0xff]
    %v322 = vld [vmem:[#allocation2 + $0x2b] sm:$0xff]
    %v323 = vld [vmem:[#allocation2 + $0x33] sm:$0xff]
    %v324 = vld [vmem:[#allocation2 + $0x3b] sm:$0xff]
    %v325 = vld [vmem:[#allocation2 + $0x43] sm:$0xff]
    %v326 = vld [vmem:[#allocation2 + $0x4b] sm:$0xff]
    %v327 = vld [vmem:[#allocation2 + $0x53] sm:$0xff]
    %v328 = vld [vmem:[#allocation2 + $0x5b] sm:$0xff]
    %v329 = vld [vmem:[#allocation2 + $0x63] sm:$0xff]
    %v330 = vld [vmem:[#allocation2 + $0x6b] sm:$0xff]
    %v331 = vld [vmem:[#allocation2 + $0x73] sm:$0xff]
    %v332 = vld [vmem:[#allocation2 + $0x7b] sm:$0xff]
    %v333 = vld [vmem:[#allocation2 + $0x83] sm:$0xff]
    %v334 = vld [vmem:[#allocation2 + $0x8b] sm:$0xff]
    %v335 = vld [vmem:[#allocation2 + $0x93] sm:$0xff]
    %v336 = vld [vmem:[#allocation2 + $0x9b] sm:$0xff]
    %v337 = vld [vmem:[#allocation2 + $0xa3] sm:$0xff]
    %v338 = vld [vmem:[#allocation2 + $0xab] sm:$0xff]
    %v339 = vld [vmem:[#allocation2 + $0xb3] sm:$0xff]
    %v340 = vld [vmem:[#allocation2 + $0xbb] sm:$0xff]
    %v341 = vld [vmem:[#allocation2 + $0xc3] sm:$0xff]
    %v342 = vld [vmem:[#allocation2 + $0xcb] sm:$0xff]
    %343 = vst [vmem:[#allocation3 + $0x20] sm:$0xff] %v318
    %344 = vst [vmem:[#allocation3 + $0x68] sm:$0xff] %v319
    %345 = vst [vmem:[#allocation3 + $0xb0] sm:$0xff] %v320
    %346 = vst [vmem:[#allocation3 + $0xf8] sm:$0xff] %v321
    %347 = vst [vmem:[#allocation3 + $0x140] sm:$0xff] %v322
    %348 = vst [vmem:[#allocation3 + $0x188] sm:$0xff] %v323
    %349 = vst [vmem:[#allocation3 + $0x1d0] sm:$0xff] %v324
    %350 = vst [vmem:[#allocation3 + $0x218] sm:$0xff] %v325
    %351 = vst [vmem:[#allocation3 + $0x260] sm:$0xff] %v326
    %352 = vst [vmem:[#allocation3 + $0x2a8] sm:$0xff] %v327
    %353 = vst [vmem:[#allocation3 + $0x2f0] sm:$0xff] %v328
    %354 = vst [vmem:[#allocation3 + $0x338] sm:$0xff] %v329
    %355 = vst [vmem:[#allocation3 + $0x380] sm:$0xff] %v330
    %356 = vst [vmem:[#allocation3 + $0x3c8] sm:$0xff] %v331
    %357 = vst [vmem:[#allocation3 + $0x410] sm:$0xff] %v332
    %358 = vst [vmem:[#allocation3 + $0x458] sm:$0xff] %v333
    %359 = vst [vmem:[#allocation3 + $0x4a0] sm:$0xff] %v334
    %360 = vst [vmem:[#allocation3 + $0x4e8] sm:$0xff] %v335
    %361 = vst [vmem:[#allocation3 + $0x530] sm:$0xff] %v336
    %362 = vst [vmem:[#allocation3 + $0x578] sm:$0xff] %v337
    %363 = vst [vmem:[#allocation3 + $0x5c0] sm:$0xff] %v338
    %364 = vst [vmem:[#allocation3 + $0x608] sm:$0xff] %v339
    %365 = vst [vmem:[#allocation3 + $0x650] sm:$0xff] %v340
    %366 = vst [vmem:[#allocation3 + $0x698] sm:$0xff] %v341
    %367 = vst [vmem:[#allocation3 + $0x6e0] sm:$0xff] %v342
    %v368 = vld [vmem:[#allocation2 + $0xc] sm:$0xff]
    %v369 = vld [vmem:[#allocation2 + $0x14] sm:$0xff]
    %v370 = vld [vmem:[#allocation2 + $0x1c] sm:$0xff]
    %v371 = vld [vmem:[#allocation2 + $0x24] sm:$0xff]
    %v372 = vld [vmem:[#allocation2 + $0x2c] sm:$0xff]
    %v373 = vld [vmem:[#allocation2 + $0x34] sm:$0xff]
    %v374 = vld [vmem:[#allocation2 + $0x3c] sm:$0xff]
    %v375 = vld [vmem:[#allocation2 + $0x44] sm:$0xff]
    %v376 = vld [vmem:[#allocation2 + $0x4c] sm:$0xff]
    %v377 = vld [vmem:[#allocation2 + $0x54] sm:$0xff]
    %v378 = vld [vmem:[#allocation2 + $0x5c] sm:$0xff]
    %v379 = vld [vmem:[#allocation2 + $0x64] sm:$0xff]
    %v380 = vld [vmem:[#allocation2 + $0x6c] sm:$0xff]
    %v381 = vld [vmem:[#allocation2 + $0x74] sm:$0xff]
    %v382 = vld [vmem:[#allocation2 + $0x7c] sm:$0xff]
    %v383 = vld [vmem:[#allocation2 + $0x84] sm:$0xff]
    %v384 = vld [vmem:[#allocation2 + $0x8c] sm:$0xff]
    %v385 = vld [vmem:[#allocation2 + $0x94] sm:$0xff]
    %v386 = vld [vmem:[#allocation2 + $0x9c] sm:$0xff]
    %v387 = vld [vmem:[#allocation2 + $0xa4] sm:$0xff]
    %v388 = vld [vmem:[#allocation2 + $0xac] sm:$0xff]
    %v389 = vld [vmem:[#allocation2 + $0xb4] sm:$0xff]
    %v390 = vld [vmem:[#allocation2 + $0xbc] sm:$0xff]
    %v391 = vld [vmem:[#allocation2 + $0xc4] sm:$0xff]
    %v392 = vld [vmem:[#allocation2 + $0xcc] sm:$0xff]
    %393 = vst [vmem:[#allocation3 + $0x28] sm:$0xff] %v368
    %394 = vst [vmem:[#allocation3 + $0x70] sm:$0xff] %v369
    %395 = vst [vmem:[#allocation3 + $0xb8] sm:$0xff] %v370
    %396 = vst [vmem:[#allocation3 + $0x100] sm:$0xff] %v371
    %397 = vst [vmem:[#allocation3 + $0x148] sm:$0xff] %v372
    %398 = vst [vmem:[#allocation3 + $0x190] sm:$0xff] %v373
    %399 = vst [vmem:[#allocation3 + $0x1d8] sm:$0xff] %v374
    %400 = vst [vmem:[#allocation3 + $0x220] sm:$0xff] %v375
    %401 = vst [vmem:[#allocation3 + $0x268] sm:$0xff] %v376
    %402 = vst [vmem:[#allocation3 + $0x2b0] sm:$0xff] %v377
    %403 = vst [vmem:[#allocation3 + $0x2f8] sm:$0xff] %v378
    %404 = vst [vmem:[#allocation3 + $0x340] sm:$0xff] %v379
    %405 = vst [vmem:[#allocation3 + $0x388] sm:$0xff] %v380
    %406 = vst [vmem:[#allocation3 + $0x3d0] sm:$0xff] %v381
    %407 = vst [vmem:[#allocation3 + $0x418] sm:$0xff] %v382
    %408 = vst [vmem:[#allocation3 + $0x460] sm:$0xff] %v383
    %409 = vst [vmem:[#allocation3 + $0x4a8] sm:$0xff] %v384
    %410 = vst [vmem:[#allocation3 + $0x4f0] sm:$0xff] %v385
    %411 = vst [vmem:[#allocation3 + $0x538] sm:$0xff] %v386
    %412 = vst [vmem:[#allocation3 + $0x580] sm:$0xff] %v387
    %413 = vst [vmem:[#allocation3 + $0x5c8] sm:$0xff] %v388
    %414 = vst [vmem:[#allocation3 + $0x610] sm:$0xff] %v389
    %415 = vst [vmem:[#allocation3 + $0x658] sm:$0xff] %v390
    %416 = vst [vmem:[#allocation3 + $0x6a0] sm:$0xff] %v391
    %417 = vst [vmem:[#allocation3 + $0x6e8] sm:$0xff] %v392
    %v418 = vld [vmem:[#allocation2 + $0x14] sm:$0xff]
    %v419 = vld [vmem:[#allocation2 + $0x1c] sm:$0xff]
    %v420 = vld [vmem:[#allocation2 + $0x24] sm:$0xff]
    %v421 = vld [vmem:[#allocation2 + $0x2c] sm:$0xff]
    %v422 = vld [vmem:[#allocation2 + $0x34] sm:$0xff]
    %v423 = vld [vmem:[#allocation2 + $0x3c] sm:$0xff]
    %v424 = vld [vmem:[#allocation2 + $0x44] sm:$0xff]
    %v425 = vld [vmem:[#allocation2 + $0x4c] sm:$0xff]
    %v426 = vld [vmem:[#allocation2 + $0x54] sm:$0xff]
    %v427 = vld [vmem:[#allocation2 + $0x5c] sm:$0xff]
    %v428 = vld [vmem:[#allocation2 + $0x64] sm:$0xff]
    %v429 = vld [vmem:[#allocation2 + $0x6c] sm:$0xff]
    %v430 = vld [vmem:[#allocation2 + $0x74] sm:$0xff]
    %v431 = vld [vmem:[#allocation2 + $0x7c] sm:$0xff]
    %v432 = vld [vmem:[#allocation2 + $0x84] sm:$0xff]
    %v433 = vld [vmem:[#allocation2 + $0x8c] sm:$0xff]
    %v434 = vld [vmem:[#allocation2 + $0x94] sm:$0xff]
    %v435 = vld [vmem:[#allocation2 + $0x9c] sm:$0xff]
    %v436 = vld [vmem:[#allocation2 + $0xa4] sm:$0xff]
    %v437 = vld [vmem:[#allocation2 + $0xac] sm:$0xff]
    %v438 = vld [vmem:[#allocation2 + $0xb4] sm:$0xff]
    %v439 = vld [vmem:[#allocation2 + $0xbc] sm:$0xff]
    %v440 = vld [vmem:[#allocation2 + $0xc4] sm:$0xff]
    %v441 = vld [vmem:[#allocation2 + $0xcc] sm:$0xff]
    %v442 = vld [vmem:[#allocation2 + $0xd4] sm:$0xff]
    %443 = vst [vmem:[#allocation3 + $0x30] sm:$0xff] %v418
    %444 = vst [vmem:[#allocation3 + $0x78] sm:$0xff] %v419
    %445 = vst [vmem:[#allocation3 + $0xc0] sm:$0xff] %v420
    %446 = vst [vmem:[#allocation3 + $0x108] sm:$0xff] %v421
    %447 = vst [vmem:[#allocation3 + $0x150] sm:$0xff] %v422
    %448 = vst [vmem:[#allocation3 + $0x198] sm:$0xff] %v423
    %449 = vst [vmem:[#allocation3 + $0x1e0] sm:$0xff] %v424
    %450 = vst [vmem:[#allocation3 + $0x228] sm:$0xff] %v425
    %451 = vst [vmem:[#allocation3 + $0x270] sm:$0xff] %v426
    %452 = vst [vmem:[#allocation3 + $0x2b8] sm:$0xff] %v427
    %453 = vst [vmem:[#allocation3 + $0x300] sm:$0xff] %v428
    %454 = vst [vmem:[#allocation3 + $0x348] sm:$0xff] %v429
    %455 = vst [vmem:[#allocation3 + $0x390] sm:$0xff] %v430
    %456 = vst [vmem:[#allocation3 + $0x3d8] sm:$0xff] %v431
    %457 = vst [vmem:[#allocation3 + $0x420] sm:$0xff] %v432
    %458 = vst [vmem:[#allocation3 + $0x468] sm:$0xff] %v433
    %459 = vst [vmem:[#allocation3 + $0x4b0] sm:$0xff] %v434
    %460 = vst [vmem:[#allocation3 + $0x4f8] sm:$0xff] %v435
    %461 = vst [vmem:[#allocation3 + $0x540] sm:$0xff] %v436
    %462 = vst [vmem:[#allocation3 + $0x588] sm:$0xff] %v437
    %463 = vst [vmem:[#allocation3 + $0x5d0] sm:$0xff] %v438
    %464 = vst [vmem:[#allocation3 + $0x618] sm:$0xff] %v439
    %465 = vst [vmem:[#allocation3 + $0x660] sm:$0xff] %v440
    %466 = vst [vmem:[#allocation3 + $0x6a8] sm:$0xff] %v441
    %467 = vst [vmem:[#allocation3 + $0x6f0] sm:$0xff] %v442
    %v468 = vld [vmem:[#allocation2 + $0x15] sm:$0xff]
    %v469 = vld [vmem:[#allocation2 + $0x1d] sm:$0xff]
    %v470 = vld [vmem:[#allocation2 + $0x25] sm:$0xff]
    %v471 = vld [vmem:[#allocation2 + $0x2d] sm:$0xff]
    %v472 = vld [vmem:[#allocation2 + $0x35] sm:$0xff]
    %v473 = vld [vmem:[#allocation2 + $0x3d] sm:$0xff]
    %v474 = vld [vmem:[#allocation2 + $0x45] sm:$0xff]
    %v475 = vld [vmem:[#allocation2 + $0x4d] sm:$0xff]
    %v476 = vld [vmem:[#allocation2 + $0x55] sm:$0xff]
    %v477 = vld [vmem:[#allocation2 + $0x5d] sm:$0xff]
    %v478 = vld [vmem:[#allocation2 + $0x65] sm:$0xff]
    %v479 = vld [vmem:[#allocation2 + $0x6d] sm:$0xff]
    %v480 = vld [vmem:[#allocation2 + $0x75] sm:$0xff]
    %v481 = vld [vmem:[#allocation2 + $0x7d] sm:$0xff]
    %v482 = vld [vmem:[#allocation2 + $0x85] sm:$0xff]
    %v483 = vld [vmem:[#allocation2 + $0x8d] sm:$0xff]
    %v484 = vld [vmem:[#allocation2 + $0x95] sm:$0xff]
    %v485 = vld [vmem:[#allocation2 + $0x9d] sm:$0xff]
    %v486 = vld [vmem:[#allocation2 + $0xa5] sm:$0xff]
    %v487 = vld [vmem:[#allocation2 + $0xad] sm:$0xff]
    %v488 = vld [vmem:[#allocation2 + $0xb5] sm:$0xff]
    %v489 = vld [vmem:[#allocation2 + $0xbd] sm:$0xff]
    %v490 = vld [vmem:[#allocation2 + $0xc5] sm:$0xff]
    %v491 = vld [vmem:[#allocation2 + $0xcd] sm:$0xff]
    %v492 = vld [vmem:[#allocation2 + $0xd5] sm:$0xff]
    %493 = vst [vmem:[#allocation3 + $0x38] sm:$0xff] %v468
    %494 = vst [vmem:[#allocation3 + $0x80] sm:$0xff] %v469
    %495 = vst [vmem:[#allocation3 + $0xc8] sm:$0xff] %v470
    %496 = vst [vmem:[#allocation3 + $0x110] sm:$0xff] %v471
    %497 = vst [vmem:[#allocation3 + $0x158] sm:$0xff] %v472
    %498 = vst [vmem:[#allocation3 + $0x1a0] sm:$0xff] %v473
    %499 = vst [vmem:[#allocation3 + $0x1e8] sm:$0xff] %v474
    %500 = vst [vmem:[#allocation3 + $0x230] sm:$0xff] %v475
    %501 = vst [vmem:[#allocation3 + $0x278] sm:$0xff] %v476
    %502 = vst [vmem:[#allocation3 + $0x2c0] sm:$0xff] %v477
    %503 = vst [vmem:[#allocation3 + $0x308] sm:$0xff] %v478
    %504 = vst [vmem:[#allocation3 + $0x350] sm:$0xff] %v479
    %505 = vst [vmem:[#allocation3 + $0x398] sm:$0xff] %v480
    %506 = vst [vmem:[#allocation3 + $0x3e0] sm:$0xff] %v481
    %507 = vst [vmem:[#allocation3 + $0x428] sm:$0xff] %v482
    %508 = vst [vmem:[#allocation3 + $0x470] sm:$0xff] %v483
    %509 = vst [vmem:[#allocation3 + $0x4b8] sm:$0xff] %v484
    %510 = vst [vmem:[#allocation3 + $0x500] sm:$0xff] %v485
    %511 = vst [vmem:[#allocation3 + $0x548] sm:$0xff] %v486
    %512 = vst [vmem:[#allocation3 + $0x590] sm:$0xff] %v487
    %513 = vst [vmem:[#allocation3 + $0x5d8] sm:$0xff] %v488
    %514 = vst [vmem:[#allocation3 + $0x620] sm:$0xff] %v489
    %515 = vst [vmem:[#allocation3 + $0x668] sm:$0xff] %v490
    %516 = vst [vmem:[#allocation3 + $0x6b0] sm:$0xff] %v491
    %517 = vst [vmem:[#allocation3 + $0x6f8] sm:$0xff] %v492
    %v518 = vld [vmem:[#allocation2 + $0x16] sm:$0xff]
    %v519 = vld [vmem:[#allocation2 + $0x1e] sm:$0xff]
    %v520 = vld [vmem:[#allocation2 + $0x26] sm:$0xff]
    %v521 = vld [vmem:[#allocation2 + $0x2e] sm:$0xff]
    %v522 = vld [vmem:[#allocation2 + $0x36] sm:$0xff]
    %v523 = vld [vmem:[#allocation2 + $0x3e] sm:$0xff]
    %v524 = vld [vmem:[#allocation2 + $0x46] sm:$0xff]
    %v525 = vld [vmem:[#allocation2 + $0x4e] sm:$0xff]
    %v526 = vld [vmem:[#allocation2 + $0x56] sm:$0xff]
    %v527 = vld [vmem:[#allocation2 + $0x5e] sm:$0xff]
    %v528 = vld [vmem:[#allocation2 + $0x66] sm:$0xff]
    %v529 = vld [vmem:[#allocation2 + $0x6e] sm:$0xff]
    %v530 = vld [vmem:[#allocation2 + $0x76] sm:$0xff]
    %v531 = vld [vmem:[#allocation2 + $0x7e] sm:$0xff]
    %v532 = vld [vmem:[#allocation2 + $0x86] sm:$0xff]
    %v533 = vld [vmem:[#allocation2 + $0x8e] sm:$0xff]
    %v534 = vld [vmem:[#allocation2 + $0x96] sm:$0xff]
    %v535 = vld [vmem:[#allocation2 + $0x9e] sm:$0xff]
    %v536 = vld [vmem:[#allocation2 + $0xa6] sm:$0xff]
    %v537 = vld [vmem:[#allocation2 + $0xae] sm:$0xff]
    %v538 = vld [vmem:[#allocation2 + $0xb6] sm:$0xff]
    %v539 = vld [vmem:[#allocation2 + $0xbe] sm:$0xff]
    %v540 = vld [vmem:[#allocation2 + $0xc6] sm:$0xff]
    %v541 = vld [vmem:[#allocation2 + $0xce] sm:$0xff]
    %v542 = vld [vmem:[#allocation2 + $0xd6] sm:$0xff]
    %543 = vst [vmem:[#allocation3 + $0x40] sm:$0xff] %v518
    %544 = vst [vmem:[#allocation3 + $0x88] sm:$0xff] %v519
    %545 = vst [vmem:[#allocation3 + $0xd0] sm:$0xff] %v520
    %546 = vst [vmem:[#allocation3 + $0x118] sm:$0xff] %v521
    %547 = vst [vmem:[#allocation3 + $0x160] sm:$0xff] %v522
    %548 = vst [vmem:[#allocation3 + $0x1a8] sm:$0xff] %v523
    %549 = vst [vmem:[#allocation3 + $0x1f0] sm:$0xff] %v524
    %550 = vst [vmem:[#allocation3 + $0x238] sm:$0xff] %v525
    %551 = vst [vmem:[#allocation3 + $0x280] sm:$0xff] %v526
    %552 = vst [vmem:[#allocation3 + $0x2c8] sm:$0xff] %v527
    %553 = vst [vmem:[#allocation3 + $0x310] sm:$0xff] %v528
    %554 = vst [vmem:[#allocation3 + $0x358] sm:$0xff] %v529
    %555 = vst [vmem:[#allocation3 + $0x3a0] sm:$0xff] %v530
    %556 = vst [vmem:[#allocation3 + $0x3e8] sm:$0xff] %v531
    %557 = vst [vmem:[#allocation3 + $0x430] sm:$0xff] %v532
    %558 = vst [vmem:[#allocation3 + $0x478] sm:$0xff] %v533
    %559 = vst [vmem:[#allocation3 + $0x4c0] sm:$0xff] %v534
    %560 = vst [vmem:[#allocation3 + $0x508] sm:$0xff] %v535
    %561 = vst [vmem:[#allocation3 + $0x550] sm:$0xff] %v536
    %562 = vst [vmem:[#allocation3 + $0x598] sm:$0xff] %v537
    %563 = vst [vmem:[#allocation3 + $0x5e0] sm:$0xff] %v538
    %564 = vst [vmem:[#allocation3 + $0x628] sm:$0xff] %v539
    %565 = vst [vmem:[#allocation3 + $0x670] sm:$0xff] %v540
    %566 = vst [vmem:[#allocation3 + $0x6b8] sm:$0xff] %v541
    %567 = vst [vmem:[#allocation3 + $0x700] sm:$0xff] %v542
    %v568 = vld [vmem:[#allocation3] sm:$0xff]
    %v569 = vld [vmem:[#allocation3 + $0x8] sm:$0xff]
    %v570 = vld [vmem:[#allocation3 + $0x10] sm:$0xff]
    %v571 = vld [vmem:[#allocation3 + $0x18] sm:$0xff]
    %v572 = vld [vmem:[#allocation3 + $0x20] sm:$0xff]
    %v573 = vld [vmem:[#allocation3 + $0x28] sm:$0xff]
    %v574 = vld [vmem:[#allocation3 + $0x30] sm:$0xff]
    %v575 = vld [vmem:[#allocation3 + $0x38] sm:$0xff]
    %v576 = vld [vmem:[#allocation3 + $0x40] sm:$0xff]
    %v577 = vld [vmem:[#allocation3 + $0x48] sm:$0xff]
    %v578 = vld [vmem:[#allocation3 + $0x50] sm:$0xff]
    %v579 = vld [vmem:[#allocation3 + $0x58] sm:$0xff]
    %v580 = vld [vmem:[#allocation3 + $0x60] sm:$0xff]
    %v581 = vld [vmem:[#allocation3 + $0x68] sm:$0xff]
    %v582 = vld [vmem:[#allocation3 + $0x70] sm:$0xff]
    %v583 = vld [vmem:[#allocation3 + $0x78] sm:$0xff]
    %v584 = vld [vmem:[#allocation3 + $0x80] sm:$0xff]
    %v585 = vld [vmem:[#allocation3 + $0x88] sm:$0xff]
    %v586 = vld [vmem:[#allocation3 + $0x90] sm:$0xff]
    %v587 = vld [vmem:[#allocation3 + $0x98] sm:$0xff]
    %v588 = vld [vmem:[#allocation3 + $0xa0] sm:$0xff]
    %v589 = vld [vmem:[#allocation3 + $0xa8] sm:$0xff]
    %v590 = vld [vmem:[#allocation3 + $0xb0] sm:$0xff]
    %v591 = vld [vmem:[#allocation3 + $0xb8] sm:$0xff]
    %v592 = vld [vmem:[#allocation3 + $0xc0] sm:$0xff]
    %v593 = vld [vmem:[#allocation3 + $0xc8] sm:$0xff]
    %v594 = vld [vmem:[#allocation3 + $0xd0] sm:$0xff]
    %v595 = vld [vmem:[#allocation3 + $0xd8] sm:$0xff]
    %v596 = vld [vmem:[#allocation3 + $0xe0] sm:$0xff]
    %v597 = vld [vmem:[#allocation3 + $0xe8] sm:$0xff]
    %v598 = vld [vmem:[#allocation3 + $0xf0] sm:$0xff]
    %v599 = vld [vmem:[#allocation3 + $0xf8] sm:$0xff]
    %v600 = vld [vmem:[#allocation3 + $0x100] sm:$0xff]
    %v601 = vld [vmem:[#allocation3 + $0x108] sm:$0xff]
    %v602 = vld [vmem:[#allocation3 + $0x110] sm:$0xff]
    %v603 = vld [vmem:[#allocation3 + $0x118] sm:$0xff]
    %v604 = vld [vmem:[#allocation3 + $0x120] sm:$0xff]
    %v605 = vld [vmem:[#allocation3 + $0x128] sm:$0xff]
    %v606 = vld [vmem:[#allocation3 + $0x130] sm:$0xff]
    %v607 = vld [vmem:[#allocation3 + $0x138] sm:$0xff]
    %v608 = vld [vmem:[#allocation3 + $0x140] sm:$0xff]
    %v609 = vld [vmem:[#allocation3 + $0x148] sm:$0xff]
    %v610 = vld [vmem:[#allocation3 + $0x150] sm:$0xff]
    %v611 = vld [vmem:[#allocation3 + $0x158] sm:$0xff]
    %v612 = vld [vmem:[#allocation3 + $0x160] sm:$0xff]
    %v613 = vld [vmem:[#allocation3 + $0x168] sm:$0xff]
    %v614 = vld [vmem:[#allocation3 + $0x170] sm:$0xff]
    %v615 = vld [vmem:[#allocation3 + $0x178] sm:$0xff]
    %v616 = vld [vmem:[#allocation3 + $0x180] sm:$0xff]
    %v617 = vld [vmem:[#allocation3 + $0x188] sm:$0xff]
    %v618 = vld [vmem:[#allocation3 + $0x190] sm:$0xff]
    %v619 = vld [vmem:[#allocation3 + $0x198] sm:$0xff]
    %v620 = vld [vmem:[#allocation3 + $0x1a0] sm:$0xff]
    %v621 = vld [vmem:[#allocation3 + $0x1a8] sm:$0xff]
    %v622 = vld [vmem:[#allocation3 + $0x1b0] sm:$0xff]
    %v623 = vld [vmem:[#allocation3 + $0x1b8] sm:$0xff]
    %v624 = vld [vmem:[#allocation3 + $0x1c0] sm:$0xff]
    %v625 = vld [vmem:[#allocation3 + $0x1c8] sm:$0xff]
    %v626 = vld [vmem:[#allocation3 + $0x1d0] sm:$0xff]
    %v627 = vld [vmem:[#allocation3 + $0x1d8] sm:$0xff]
    %v628 = vld [vmem:[#allocation3 + $0x1e0] sm:$0xff]
    %v629 = vld [vmem:[#allocation3 + $0x1e8] sm:$0xff]
    %v630 = vld [vmem:[#allocation3 + $0x1f0] sm:$0xff]
    %v631 = vld [vmem:[#allocation3 + $0x1f8] sm:$0xff]
    %v632 = vld [vmem:[#allocation3 + $0x200] sm:$0xff]
    %v633 = vld [vmem:[#allocation3 + $0x208] sm:$0xff]
    %v634 = vld [vmem:[#allocation3 + $0x210] sm:$0xff]
    %v635 = vld [vmem:[#allocation3 + $0x218] sm:$0xff]
    %v636 = vld [vmem:[#allocation3 + $0x220] sm:$0xff]
    %v637 = vld [vmem:[#allocation3 + $0x228] sm:$0xff]
    %v638 = vld [vmem:[#allocation3 + $0x230] sm:$0xff]
    %v639 = vld [vmem:[#allocation3 + $0x238] sm:$0xff]
    %v640 = vld [vmem:[#allocation3 + $0x240] sm:$0xff]
    %v641 = vld [vmem:[#allocation3 + $0x248] sm:$0xff]
    %v642 = vld [vmem:[#allocation3 + $0x250] sm:$0xff]
    %v643 = vld [vmem:[#allocation3 + $0x258] sm:$0xff]
    %v644 = vld [vmem:[#allocation3 + $0x260] sm:$0xff]
    %v645 = vld [vmem:[#allocation3 + $0x268] sm:$0xff]
    %v646 = vld [vmem:[#allocation3 + $0x270] sm:$0xff]
    %v647 = vld [vmem:[#allocation3 + $0x278] sm:$0xff]
    %v648 = vld [vmem:[#allocation3 + $0x280] sm:$0xff]
    %v649 = vld [vmem:[#allocation3 + $0x288] sm:$0xff]
    %v650 = vld [vmem:[#allocation3 + $0x290] sm:$0xff]
    %v651 = vld [vmem:[#allocation3 + $0x298] sm:$0xff]
    %v652 = vld [vmem:[#allocation3 + $0x2a0] sm:$0xff]
    %v653 = vld [vmem:[#allocation3 + $0x2a8] sm:$0xff]
    %v654 = vld [vmem:[#allocation3 + $0x2b0] sm:$0xff]
    %v655 = vld [vmem:[#allocation3 + $0x2b8] sm:$0xff]
    %v656 = vld [vmem:[#allocation3 + $0x2c0] sm:$0xff]
    %v657 = vld [vmem:[#allocation3 + $0x2c8] sm:$0xff]
    %v658 = vld [vmem:[#allocation3 + $0x2d0] sm:$0xff]
    %v659 = vld [vmem:[#allocation3 + $0x2d8] sm:$0xff]
    %v660 = vld [vmem:[#allocation3 + $0x2e0] sm:$0xff]
    %v661 = vld [vmem:[#allocation3 + $0x2e8] sm:$0xff]
    %v662 = vld [vmem:[#allocation3 + $0x2f0] sm:$0xff]
    %v663 = vld [vmem:[#allocation3 + $0x2f8] sm:$0xff]
    %v664 = vld [vmem:[#allocation3 + $0x300] sm:$0xff]
    %v665 = vld [vmem:[#allocation3 + $0x308] sm:$0xff]
    %v666 = vld [vmem:[#allocation3 + $0x310] sm:$0xff]
    %v667 = vld [vmem:[#allocation3 + $0x318] sm:$0xff]
    %v668 = vld [vmem:[#allocation3 + $0x320] sm:$0xff]
    %v669 = vld [vmem:[#allocation3 + $0x328] sm:$0xff]
    %v670 = vld [vmem:[#allocation3 + $0x330] sm:$0xff]
    %v671 = vld [vmem:[#allocation3 + $0x338] sm:$0xff]
    %v672 = vld [vmem:[#allocation3 + $0x340] sm:$0xff]
    %v673 = vld [vmem:[#allocation3 + $0x348] sm:$0xff]
    %v674 = vld [vmem:[#allocation3 + $0x350] sm:$0xff]
    %v675 = vld [vmem:[#allocation3 + $0x358] sm:$0xff]
    %v676 = vld [vmem:[#allocation3 + $0x360] sm:$0xff]
    %v677 = vld [vmem:[#allocation3 + $0x368] sm:$0xff]
    %v678 = vld [vmem:[#allocation3 + $0x370] sm:$0xff]
    %v679 = vld [vmem:[#allocation3 + $0x378] sm:$0xff]
    %v680 = vld [vmem:[#allocation3 + $0x380] sm:$0xff]
    %v681 = vld [vmem:[#allocation3 + $0x388] sm:$0xff]
    %v682 = vld [vmem:[#allocation3 + $0x390] sm:$0xff]
    %v683 = vld [vmem:[#allocation3 + $0x398] sm:$0xff]
    %v684 = vld [vmem:[#allocation3 + $0x3a0] sm:$0xff]
    %v685 = vld [vmem:[#allocation3 + $0x3a8] sm:$0xff]
    %v686 = vld [vmem:[#allocation3 + $0x3b0] sm:$0xff]
    %v687 = vld [vmem:[#allocation3 + $0x3b8] sm:$0xff]
    %v688 = vld [vmem:[#allocation3 + $0x3c0] sm:$0xff]
    %v689 = vld [vmem:[#allocation3 + $0x3c8] sm:$0xff]
    %v690 = vld [vmem:[#allocation3 + $0x3d0] sm:$0xff]
    %v691 = vld [vmem:[#allocation3 + $0x3d8] sm:$0xff]
    %v692 = vld [vmem:[#allocation3 + $0x3e0] sm:$0xff]
    %v693 = vld [vmem:[#allocation3 + $0x3e8] sm:$0xff]
    %v694 = vld [vmem:[#allocation3 + $0x3f0] sm:$0xff]
    %v695 = vld [vmem:[#allocation3 + $0x3f8] sm:$0xff]
    %v696 = vld [vmem:[#allocation3 + $0x400] sm:$0xff]
    %v697 = vld [vmem:[#allocation3 + $0x408] sm:$0xff]
    %v698 = vld [vmem:[#allocation3 + $0x410] sm:$0xff]
    %v699 = vld [vmem:[#allocation3 + $0x418] sm:$0xff]
    %v700 = vld [vmem:[#allocation3 + $0x420] sm:$0xff]
    %v701 = vld [vmem:[#allocation3 + $0x428] sm:$0xff]
    %v702 = vld [vmem:[#allocation3 + $0x430] sm:$0xff]
    %v703 = vld [vmem:[#allocation3 + $0x438] sm:$0xff]
    %v704 = vld [vmem:[#allocation3 + $0x440] sm:$0xff]
    %v705 = vld [vmem:[#allocation3 + $0x448] sm:$0xff]
    %v706 = vld [vmem:[#allocation3 + $0x450] sm:$0xff]
    %v707 = vld [vmem:[#allocation3 + $0x458] sm:$0xff]
    %v708 = vld [vmem:[#allocation3 + $0x460] sm:$0xff]
    %v709 = vld [vmem:[#allocation3 + $0x468] sm:$0xff]
    %v710 = vld [vmem:[#allocation3 + $0x470] sm:$0xff]
    %v711 = vld [vmem:[#allocation3 + $0x478] sm:$0xff]
    %v712 = vld [vmem:[#allocation3 + $0x480] sm:$0xff]
    %v713 = vld [vmem:[#allocation3 + $0x488] sm:$0xff]
    %v714 = vld [vmem:[#allocation3 + $0x490] sm:$0xff]
    %v715 = vld [vmem:[#allocation3 + $0x498] sm:$0xff]
    %v716 = vld [vmem:[#allocation3 + $0x4a0] sm:$0xff]
    %v717 = vld [vmem:[#allocation3 + $0x4a8] sm:$0xff]
    %v718 = vld [vmem:[#allocation3 + $0x4b0] sm:$0xff]
    %v719 = vld [vmem:[#allocation3 + $0x4b8] sm:$0xff]
    %v720 = vld [vmem:[#allocation3 + $0x4c0] sm:$0xff]
    %v721 = vld [vmem:[#allocation3 + $0x4c8] sm:$0xff]
    %v722 = vld [vmem:[#allocation3 + $0x4d0] sm:$0xff]
    %v723 = vld [vmem:[#allocation3 + $0x4d8] sm:$0xff]
    %v724 = vld [vmem:[#allocation3 + $0x4e0] sm:$0xff]
    %v725 = vld [vmem:[#allocation3 + $0x4e8] sm:$0xff]
    %v726 = vld [vmem:[#allocation3 + $0x4f0] sm:$0xff]
    %v727 = vld [vmem:[#allocation3 + $0x4f8] sm:$0xff]
    %v728 = vld [vmem:[#allocation3 + $0x500] sm:$0xff]
    %v729 = vld [vmem:[#allocation3 + $0x508] sm:$0xff]
    %v730 = vld [vmem:[#allocation3 + $0x510] sm:$0xff]
    %v731 = vld [vmem:[#allocation3 + $0x518] sm:$0xff]
    %v732 = vld [vmem:[#allocation3 + $0x520] sm:$0xff]
    %v733 = vld [vmem:[#allocation3 + $0x528] sm:$0xff]
    %v734 = vld [vmem:[#allocation3 + $0x530] sm:$0xff]
    %v735 = vld [vmem:[#allocation3 + $0x538] sm:$0xff]
    %v736 = vld [vmem:[#allocation3 + $0x540] sm:$0xff]
    %v737 = vld [vmem:[#allocation3 + $0x548] sm:$0xff]
    %v738 = vld [vmem:[#allocation3 + $0x550] sm:$0xff]
    %v739 = vld [vmem:[#allocation3 + $0x558] sm:$0xff]
    %v740 = vld [vmem:[#allocation3 + $0x560] sm:$0xff]
    %v741 = vld [vmem:[#allocation3 + $0x568] sm:$0xff]
    %v742 = vld [vmem:[#allocation3 + $0x570] sm:$0xff]
    %v743 = vld [vmem:[#allocation3 + $0x578] sm:$0xff]
    %v744 = vld [vmem:[#allocation3 + $0x580] sm:$0xff]
    %v745 = vld [vmem:[#allocation3 + $0x588] sm:$0xff]
    %v746 = vld [vmem:[#allocation3 + $0x590] sm:$0xff]
    %v747 = vld [vmem:[#allocation3 + $0x598] sm:$0xff]
    %v748 = vld [vmem:[#allocation3 + $0x5a0] sm:$0xff]
    %v749 = vld [vmem:[#allocation3 + $0x5a8] sm:$0xff]
    %v750 = vld [vmem:[#allocation3 + $0x5b0] sm:$0xff]
    %v751 = vld [vmem:[#allocation3 + $0x5b8] sm:$0xff]
    %v752 = vld [vmem:[#allocation3 + $0x5c0] sm:$0xff]
    %v753 = vld [vmem:[#allocation3 + $0x5c8] sm:$0xff]
    %v754 = vld [vmem:[#allocation3 + $0x5d0] sm:$0xff]
    %v755 = vld [vmem:[#allocation3 + $0x5d8] sm:$0xff]
    %v756 = vld [vmem:[#allocation3 + $0x5e0] sm:$0xff]
    %v757 = vld [vmem:[#allocation3 + $0x5e8] sm:$0xff]
    %v758 = vld [vmem:[#allocation3 + $0x5f0] sm:$0xff]
    %v759 = vld [vmem:[#allocation3 + $0x5f8] sm:$0xff]
    %v760 = vld [vmem:[#allocation3 + $0x600] sm:$0xff]
    %v761 = vld [vmem:[#allocation3 + $0x608] sm:$0xff]
    %v762 = vld [vmem:[#allocation3 + $0x610] sm:$0xff]
    %v763 = vld [vmem:[#allocation3 + $0x618] sm:$0xff]
    %v764 = vld [vmem:[#allocation3 + $0x620] sm:$0xff]
    %v765 = vld [vmem:[#allocation3 + $0x628] sm:$0xff]
    %v766 = vld [vmem:[#allocation3 + $0x630] sm:$0xff]
    %v767 = vld [vmem:[#allocation3 + $0x638] sm:$0xff]
    %v768 = vld [vmem:[#allocation3 + $0x640] sm:$0xff]
    %v769 = vld [vmem:[#allocation3 + $0x648] sm:$0xff]
    %v770 = vld [vmem:[#allocation3 + $0x650] sm:$0xff]
    %v771 = vld [vmem:[#allocation3 + $0x658] sm:$0xff]
    %v772 = vld [vmem:[#allocation3 + $0x660] sm:$0xff]
    %v773 = vld [vmem:[#allocation3 + $0x668] sm:$0xff]
    %v774 = vld [vmem:[#allocation3 + $0x670] sm:$0xff]
    %v775 = vld [vmem:[#allocation3 + $0x678] sm:$0xff]
    %v776 = vld [vmem:[#allocation3 + $0x680] sm:$0xff]
    %v777 = vld [vmem:[#allocation3 + $0x688] sm:$0xff]
    %v778 = vld [vmem:[#allocation3 + $0x690] sm:$0xff]
    %v779 = vld [vmem:[#allocation3 + $0x698] sm:$0xff]
    %v780 = vld [vmem:[#allocation3 + $0x6a0] sm:$0xff]
    %v781 = vld [vmem:[#allocation3 + $0x6a8] sm:$0xff]
    %v782 = vld [vmem:[#allocation3 + $0x6b0] sm:$0xff]
    %v783 = vld [vmem:[#allocation3 + $0x6b8] sm:$0xff]
    %v784 = vld [vmem:[#allocation3 + $0x6c0] sm:$0xff]
    %v785 = vld [vmem:[#allocation3 + $0x6c8] sm:$0xff]
    %v786 = vld [vmem:[#allocation3 + $0x6d0] sm:$0xff]
    %v787 = vld [vmem:[#allocation3 + $0x6d8] sm:$0xff]
    %v788 = vld [vmem:[#allocation3 + $0x6e0] sm:$0xff]
    %v789 = vld [vmem:[#allocation3 + $0x6e8] sm:$0xff]
    %v790 = vld [vmem:[#allocation3 + $0x6f0] sm:$0xff]
    %v791 = vld [vmem:[#allocation3 + $0x6f8] sm:$0xff]
    %v792 = vld [vmem:[#allocation3 + $0x700] sm:$0xff]
    %v793 = vld [vmem:[#allocation9] sm:$0xff]
    %v794 = vld [vmem:[#allocation9 + $0x8] sm:$0xff]
    %v795 = vld [vmem:[#allocation9 + $0x10] sm:$0xff]
    %v796 = vld [vmem:[#allocation9 + $0x18] sm:$0xff]
    %v797 = vld [vmem:[#allocation9 + $0x20] sm:$0xff]
    %v798 = vld [vmem:[#allocation9 + $0x28] sm:$0xff]
    %v799 = vld [vmem:[#allocation9 + $0x30] sm:$0xff]
    %v800 = vld [vmem:[#allocation9 + $0x38] sm:$0xff]
    %v801 = vld [vmem:[#allocation9 + $0x40] sm:$0xff]
    %v802 = vld [vmem:[#allocation9 + $0x48] sm:$0xff]
    %v803 = vld [vmem:[#allocation9 + $0x50] sm:$0xff]
    %v804 = vld [vmem:[#allocation9 + $0x58] sm:$0xff]
    %v805 = vld [vmem:[#allocation9 + $0x60] sm:$0xff]
    %v806 = vld [vmem:[#allocation9 + $0x68] sm:$0xff]
    %v807 = vld [vmem:[#allocation9 + $0x70] sm:$0xff]
    %v808 = vld [vmem:[#allocation9 + $0x78] sm:$0xff]
    %v809 = vld [vmem:[#allocation9 + $0x80] sm:$0xff]
    %v810 = vld [vmem:[#allocation9 + $0x88] sm:$0xff]
    %v811 = vld [vmem:[#allocation9 + $0x90] sm:$0xff]
    %v812 = vld [vmem:[#allocation9 + $0x98] sm:$0xff]
    %v813 = vld [vmem:[#allocation9 + $0xa0] sm:$0xff]
    %v814 = vld [vmem:[#allocation9 + $0xa8] sm:$0xff]
    %v815 = vld [vmem:[#allocation9 + $0xb0] sm:$0xff]
    %v816 = vld [vmem:[#allocation9 + $0xb8] sm:$0xff]
    %v817 = vld [vmem:[#allocation9 + $0xc0] sm:$0xff]
    %v818 = vld [vmem:[#allocation9 + $0xc8] sm:$0xff]
    %v819 = vld [vmem:[#allocation9 + $0xd0] sm:$0xff]
    %v820 = vld [vmem:[#allocation9 + $0xd8] sm:$0xff]
    %v821 = vld [vmem:[#allocation9 + $0xe0] sm:$0xff]
    %v822 = vld [vmem:[#allocation9 + $0xe8] sm:$0xff]
    %v823 = vld [vmem:[#allocation9 + $0xf0] sm:$0xff]
    %v824 = vld [vmem:[#allocation9 + $0xf8] sm:$0xff]
    %v825 = vld [vmem:[#allocation9 + $0x100] sm:$0xff]
    %v826 = vld [vmem:[#allocation9 + $0x108] sm:$0xff]
    %v827 = vld [vmem:[#allocation9 + $0x110] sm:$0xff]
    %v828 = vld [vmem:[#allocation9 + $0x118] sm:$0xff]
    %v829 = vld [vmem:[#allocation9 + $0x120] sm:$0xff]
    %v830 = vld [vmem:[#allocation9 + $0x128] sm:$0xff]
    %v831 = vld [vmem:[#allocation9 + $0x130] sm:$0xff]
    %v832 = vld [vmem:[#allocation9 + $0x138] sm:$0xff]
    %v833 = vld [vmem:[#allocation9 + $0x140] sm:$0xff]
    %v834 = vld [vmem:[#allocation9 + $0x148] sm:$0xff]
    %v835 = vld [vmem:[#allocation9 + $0x150] sm:$0xff]
    %v836 = vld [vmem:[#allocation9 + $0x158] sm:$0xff]
    %v837 = vld [vmem:[#allocation9 + $0x160] sm:$0xff]
    %v838 = vld [vmem:[#allocation9 + $0x168] sm:$0xff]
    %v839 = vld [vmem:[#allocation9 + $0x170] sm:$0xff]
    %v840 = vld [vmem:[#allocation9 + $0x178] sm:$0xff]
    %v841 = vld [vmem:[#allocation9 + $0x180] sm:$0xff]
    %v842 = vld [vmem:[#allocation9 + $0x188] sm:$0xff]
    %v843 = vld [vmem:[#allocation9 + $0x190] sm:$0xff]
    %v844 = vld [vmem:[#allocation9 + $0x198] sm:$0xff]
    %v845 = vld [vmem:[#allocation9 + $0x1a0] sm:$0xff]
    %v846 = vld [vmem:[#allocation9 + $0x1a8] sm:$0xff]
    %v847 = vld [vmem:[#allocation9 + $0x1b0] sm:$0xff]
    %v848 = vld [vmem:[#allocation9 + $0x1b8] sm:$0xff]
    %v849 = vld [vmem:[#allocation9 + $0x1c0] sm:$0xff]
    %v850 = vld [vmem:[#allocation9 + $0x1c8] sm:$0xff]
    %v851 = vld [vmem:[#allocation9 + $0x1d0] sm:$0xff]
    %v852 = vld [vmem:[#allocation9 + $0x1d8] sm:$0xff]
    %v853 = vld [vmem:[#allocation9 + $0x1e0] sm:$0xff]
    %v854 = vld [vmem:[#allocation9 + $0x1e8] sm:$0xff]
    %v855 = vld [vmem:[#allocation9 + $0x1f0] sm:$0xff]
    %v856 = vld [vmem:[#allocation9 + $0x1f8] sm:$0xff]
    %v857 = vld [vmem:[#allocation9 + $0x200] sm:$0xff]
    %v858 = vld [vmem:[#allocation9 + $0x208] sm:$0xff]
    %v859 = vld [vmem:[#allocation9 + $0x210] sm:$0xff]
    %v860 = vld [vmem:[#allocation9 + $0x218] sm:$0xff]
    %v861 = vld [vmem:[#allocation9 + $0x220] sm:$0xff]
    %v862 = vld [vmem:[#allocation9 + $0x228] sm:$0xff]
    %v863 = vld [vmem:[#allocation9 + $0x230] sm:$0xff]
    %v864 = vld [vmem:[#allocation9 + $0x238] sm:$0xff]
    %v865 = vld [vmem:[#allocation9 + $0x240] sm:$0xff]
    %v866 = vld [vmem:[#allocation9 + $0x248] sm:$0xff]
    %v867 = vld [vmem:[#allocation9 + $0x250] sm:$0xff]
    %v868 = vld [vmem:[#allocation9 + $0x258] sm:$0xff]
    %v869 = vld [vmem:[#allocation9 + $0x260] sm:$0xff]
    %v870 = vld [vmem:[#allocation9 + $0x268] sm:$0xff]
    %v871 = vld [vmem:[#allocation9 + $0x270] sm:$0xff]
    %v872 = vld [vmem:[#allocation9 + $0x278] sm:$0xff]
    %v873 = vld [vmem:[#allocation9 + $0x280] sm:$0xff]
    %v874 = vld [vmem:[#allocation9 + $0x288] sm:$0xff]
    %v875 = vld [vmem:[#allocation9 + $0x290] sm:$0xff]
    %v876 = vld [vmem:[#allocation9 + $0x298] sm:$0xff]
    %v877 = vld [vmem:[#allocation9 + $0x2a0] sm:$0xff]
    %v878 = vld [vmem:[#allocation9 + $0x2a8] sm:$0xff]
    %v879 = vld [vmem:[#allocation9 + $0x2b0] sm:$0xff]
    %v880 = vld [vmem:[#allocation9 + $0x2b8] sm:$0xff]
    %v881 = vld [vmem:[#allocation9 + $0x2c0] sm:$0xff]
    %v882 = vld [vmem:[#allocation9 + $0x2c8] sm:$0xff]
    %v883 = vld [vmem:[#allocation9 + $0x2d0] sm:$0xff]
    %v884 = vld [vmem:[#allocation9 + $0x2d8] sm:$0xff]
    %v885 = vld [vmem:[#allocation9 + $0x2e0] sm:$0xff]
    %v886 = vld [vmem:[#allocation9 + $0x2e8] sm:$0xff]
    %v887 = vld [vmem:[#allocation9 + $0x2f0] sm:$0xff]
    %v888 = vld [vmem:[#allocation9 + $0x2f8] sm:$0xff]
    %v889 = vld [vmem:[#allocation9 + $0x300] sm:$0xff]
    %v890 = vld [vmem:[#allocation9 + $0x308] sm:$0xff]
    %v891 = vld [vmem:[#allocation9 + $0x310] sm:$0xff]
    %v892 = vld [vmem:[#allocation9 + $0x318] sm:$0xff]
    %v893 = vld [vmem:[#allocation9 + $0x320] sm:$0xff]
    %v894 = vld [vmem:[#allocation9 + $0x328] sm:$0xff]
    %v895 = vld [vmem:[#allocation9 + $0x330] sm:$0xff]
    %v896 = vld [vmem:[#allocation9 + $0x338] sm:$0xff]
    %v897 = vld [vmem:[#allocation9 + $0x340] sm:$0xff]
    %v898 = vld [vmem:[#allocation9 + $0x348] sm:$0xff]
    %v899 = vld [vmem:[#allocation9 + $0x350] sm:$0xff]
    %v900 = vld [vmem:[#allocation9 + $0x358] sm:$0xff]
    %v901 = vld [vmem:[#allocation9 + $0x360] sm:$0xff]
    %v902 = vld [vmem:[#allocation9 + $0x368] sm:$0xff]
    %v903 = vld [vmem:[#allocation9 + $0x370] sm:$0xff]
    %v904 = vld [vmem:[#allocation9 + $0x378] sm:$0xff]
    %v905 = vld [vmem:[#allocation9 + $0x380] sm:$0xff]
    %v906 = vld [vmem:[#allocation9 + $0x388] sm:$0xff]
    %v907 = vld [vmem:[#allocation9 + $0x390] sm:$0xff]
    %v908 = vld [vmem:[#allocation9 + $0x398] sm:$0xff]
    %v909 = vld [vmem:[#allocation9 + $0x3a0] sm:$0xff]
    %v910 = vld [vmem:[#allocation9 + $0x3a8] sm:$0xff]
    %v911 = vld [vmem:[#allocation9 + $0x3b0] sm:$0xff]
    %v912 = vld [vmem:[#allocation9 + $0x3b8] sm:$0xff]
    %v913 = vld [vmem:[#allocation9 + $0x3c0] sm:$0xff]
    %v914 = vld [vmem:[#allocation9 + $0x3c8] sm:$0xff]
    %v915 = vld [vmem:[#allocation9 + $0x3d0] sm:$0xff]
    %v916 = vld [vmem:[#allocation9 + $0x3d8] sm:$0xff]
    %v917 = vld [vmem:[#allocation9 + $0x3e0] sm:$0xff]
    %v918 = vld [vmem:[#allocation9 + $0x3e8] sm:$0xff]
    %v919 = vld [vmem:[#allocation9 + $0x3f0] sm:$0xff]
    %v920 = vld [vmem:[#allocation9 + $0x3f8] sm:$0xff]
    %v921 = vld [vmem:[#allocation9 + $0x400] sm:$0xff]
    %v922 = vld [vmem:[#allocation9 + $0x408] sm:$0xff]
    %v923 = vld [vmem:[#allocation9 + $0x410] sm:$0xff]
    %v924 = vld [vmem:[#allocation9 + $0x418] sm:$0xff]
    %v925 = vld [vmem:[#allocation9 + $0x420] sm:$0xff]
    %v926 = vld [vmem:[#allocation9 + $0x428] sm:$0xff]
    %v927 = vld [vmem:[#allocation9 + $0x430] sm:$0xff]
    %v928 = vld [vmem:[#allocation9 + $0x438] sm:$0xff]
    %v929 = vld [vmem:[#allocation9 + $0x440] sm:$0xff]
    %v930 = vld [vmem:[#allocation9 + $0x448] sm:$0xff]
    %v931 = vld [vmem:[#allocation9 + $0x450] sm:$0xff]
    %v932 = vld [vmem:[#allocation9 + $0x458] sm:$0xff]
    %v933 = vld [vmem:[#allocation9 + $0x460] sm:$0xff]
    %v934 = vld [vmem:[#allocation9 + $0x468] sm:$0xff]
    %v935 = vld [vmem:[#allocation9 + $0x470] sm:$0xff]
    %v936 = vld [vmem:[#allocation9 + $0x478] sm:$0xff]
    %v937 = vld [vmem:[#allocation9 + $0x480] sm:$0xff]
    %v938 = vld [vmem:[#allocation9 + $0x488] sm:$0xff]
    %v939 = vld [vmem:[#allocation9 + $0x490] sm:$0xff]
    %v940 = vld [vmem:[#allocation9 + $0x498] sm:$0xff]
    %v941 = vld [vmem:[#allocation9 + $0x4a0] sm:$0xff]
    %v942 = vld [vmem:[#allocation9 + $0x4a8] sm:$0xff]
    %v943 = vld [vmem:[#allocation9 + $0x4b0] sm:$0xff]
    %v944 = vld [vmem:[#allocation9 + $0x4b8] sm:$0xff]
    %v945 = vld [vmem:[#allocation9 + $0x4c0] sm:$0xff]
    %v946 = vld [vmem:[#allocation9 + $0x4c8] sm:$0xff]
    %v947 = vld [vmem:[#allocation9 + $0x4d0] sm:$0xff]
    %v948 = vld [vmem:[#allocation9 + $0x4d8] sm:$0xff]
    %v949 = vld [vmem:[#allocation9 + $0x4e0] sm:$0xff]
    %v950 = vld [vmem:[#allocation9 + $0x4e8] sm:$0xff]
    %v951 = vld [vmem:[#allocation9 + $0x4f0] sm:$0xff]
    %v952 = vld [vmem:[#allocation9 + $0x4f8] sm:$0xff]
    %v953 = vld [vmem:[#allocation9 + $0x500] sm:$0xff]
    %v954 = vld [vmem:[#allocation9 + $0x508] sm:$0xff]
    %v955 = vld [vmem:[#allocation9 + $0x510] sm:$0xff]
    %v956 = vld [vmem:[#allocation9 + $0x518] sm:$0xff]
    %v957 = vld [vmem:[#allocation9 + $0x520] sm:$0xff]
    %v958 = vld [vmem:[#allocation9 + $0x528] sm:$0xff]
    %v959 = vld [vmem:[#allocation9 + $0x530] sm:$0xff]
    %v960 = vld [vmem:[#allocation9 + $0x538] sm:$0xff]
    %v961 = vld [vmem:[#allocation9 + $0x540] sm:$0xff]
    %v962 = vld [vmem:[#allocation9 + $0x548] sm:$0xff]
    %v963 = vld [vmem:[#allocation9 + $0x550] sm:$0xff]
    %v964 = vld [vmem:[#allocation9 + $0x558] sm:$0xff]
    %v965 = vld [vmem:[#allocation9 + $0x560] sm:$0xff]
    %v966 = vld [vmem:[#allocation9 + $0x568] sm:$0xff]
    %v967 = vld [vmem:[#allocation9 + $0x570] sm:$0xff]
    %v968 = vld [vmem:[#allocation9 + $0x578] sm:$0xff]
    %v969 = vld [vmem:[#allocation9 + $0x580] sm:$0xff]
    %v970 = vld [vmem:[#allocation9 + $0x588] sm:$0xff]
    %v971 = vld [vmem:[#allocation9 + $0x590] sm:$0xff]
    %v972 = vld [vmem:[#allocation9 + $0x598] sm:$0xff]
    %v973 = vld [vmem:[#allocation9 + $0x5a0] sm:$0xff]
    %v974 = vld [vmem:[#allocation9 + $0x5a8] sm:$0xff]
    %v975 = vld [vmem:[#allocation9 + $0x5b0] sm:$0xff]
    %v976 = vld [vmem:[#allocation9 + $0x5b8] sm:$0xff]
    %v977 = vld [vmem:[#allocation9 + $0x5c0] sm:$0xff]
    %v978 = vld [vmem:[#allocation9 + $0x5c8] sm:$0xff]
    %v979 = vld [vmem:[#allocation9 + $0x5d0] sm:$0xff]
    %v980 = vld [vmem:[#allocation9 + $0x5d8] sm:$0xff]
    %v981 = vld [vmem:[#allocation9 + $0x5e0] sm:$0xff]
    %v982 = vld [vmem:[#allocation9 + $0x5e8] sm:$0xff]
    %v983 = vld [vmem:[#allocation9 + $0x5f0] sm:$0xff]
    %v984 = vld [vmem:[#allocation9 + $0x5f8] sm:$0xff]
    %v985 = vld [vmem:[#allocation9 + $0x600] sm:$0xff]
    %v986 = vld [vmem:[#allocation9 + $0x608] sm:$0xff]
    %v987 = vld [vmem:[#allocation9 + $0x610] sm:$0xff]
    %v988 = vld [vmem:[#allocation9 + $0x618] sm:$0xff]
    %v989 = vld [vmem:[#allocation9 + $0x620] sm:$0xff]
    %v990 = vld [vmem:[#allocation9 + $0x628] sm:$0xff]
    %v991 = vld [vmem:[#allocation9 + $0x630] sm:$0xff]
    %v992 = vld [vmem:[#allocation9 + $0x638] sm:$0xff]
    %v993 = vld [vmem:[#allocation9 + $0x640] sm:$0xff]
    %v994 = vld [vmem:[#allocation9 + $0x648] sm:$0xff]
    %v995 = vld [vmem:[#allocation9 + $0x650] sm:$0xff]
    %v996 = vld [vmem:[#allocation9 + $0x658] sm:$0xff]
    %v997 = vld [vmem:[#allocation9 + $0x660] sm:$0xff]
    %v998 = vld [vmem:[#allocation9 + $0x668] sm:$0xff]
    %v999 = vld [vmem:[#allocation9 + $0x670] sm:$0xff]
    %v1000 = vld [vmem:[#allocation9 + $0x678] sm:$0xff]
    %v1001 = vld [vmem:[#allocation9 + $0x680] sm:$0xff]
    %v1002 = vld [vmem:[#allocation9 + $0x688] sm:$0xff]
    %v1003 = vld [vmem:[#allocation9 + $0x690] sm:$0xff]
    %v1004 = vld [vmem:[#allocation9 + $0x698] sm:$0xff]
    %v1005 = vld [vmem:[#allocation9 + $0x6a0] sm:$0xff]
    %v1006 = vld [vmem:[#allocation9 + $0x6a8] sm:$0xff]
    %v1007 = vld [vmem:[#allocation9 + $0x6b0] sm:$0xff]
    %v1008 = vld [vmem:[#allocation9 + $0x6b8] sm:$0xff]
    %v1009 = vld [vmem:[#allocation9 + $0x6c0] sm:$0xff]
    %v1010 = vld [vmem:[#allocation9 + $0x6c8] sm:$0xff]
    %v1011 = vld [vmem:[#allocation9 + $0x6d0] sm:$0xff]
    %v1012 = vld [vmem:[#allocation9 + $0x6d8] sm:$0xff]
    %v1013 = vld [vmem:[#allocation9 + $0x6e0] sm:$0xff]
    %v1014 = vld [vmem:[#allocation9 + $0x6e8] sm:$0xff]
    %v1015 = vld [vmem:[#allocation9 + $0x6f0] sm:$0xff]
    %v1016 = vld [vmem:[#allocation9 + $0x6f8] sm:$0xff]
    %v1017 = vld [vmem:[#allocation9 + $0x700] sm:$0xff]
    %v1018 = vld [vmem:[#allocation9 + $0x708] sm:$0xff]
    %v1019 = vld [vmem:[#allocation9 + $0x710] sm:$0xff]
    %v1020 = vld [vmem:[#allocation9 + $0x718] sm:$0xff]
    %v1021 = vld [vmem:[#allocation9 + $0x720] sm:$0xff]
    %v1022 = vld [vmem:[#allocation9 + $0x728] sm:$0xff]
    %v1023 = vld [vmem:[#allocation9 + $0x730] sm:$0xff]
    %v1024 = vld [vmem:[#allocation9 + $0x738] sm:$0xff]
    %v1025 = vld [vmem:[#allocation9 + $0x740] sm:$0xff]
    %v1026 = vld [vmem:[#allocation9 + $0x748] sm:$0xff]
    %v1027 = vld [vmem:[#allocation9 + $0x750] sm:$0xff]
    %v1028 = vld [vmem:[#allocation9 + $0x758] sm:$0xff]
    %v1029 = vld [vmem:[#allocation9 + $0x760] sm:$0xff]
    %v1030 = vld [vmem:[#allocation9 + $0x768] sm:$0xff]
    %v1031 = vld [vmem:[#allocation9 + $0x770] sm:$0xff]
    %v1032 = vld [vmem:[#allocation9 + $0x778] sm:$0xff]
    %v1033 = vld [vmem:[#allocation9 + $0x780] sm:$0xff]
    %v1034 = vld [vmem:[#allocation9 + $0x788] sm:$0xff]
    %v1035 = vld [vmem:[#allocation9 + $0x790] sm:$0xff]
    %v1036 = vld [vmem:[#allocation9 + $0x798] sm:$0xff]
    %v1037 = vld [vmem:[#allocation9 + $0x7a0] sm:$0xff]
    %v1038 = vld [vmem:[#allocation9 + $0x7a8] sm:$0xff]
    %v1039 = vld [vmem:[#allocation9 + $0x7b0] sm:$0xff]
    %v1040 = vld [vmem:[#allocation9 + $0x7b8] sm:$0xff]
    %v1041 = vld [vmem:[#allocation9 + $0x7c0] sm:$0xff]
    %v1042 = vld [vmem:[#allocation9 + $0x7c8] sm:$0xff]
    %v1043 = vld [vmem:[#allocation9 + $0x7d0] sm:$0xff]
    %v1044 = vld [vmem:[#allocation9 + $0x7d8] sm:$0xff]
    %v1045 = vld [vmem:[#allocation9 + $0x7e0] sm:$0xff]
    %v1046 = vld [vmem:[#allocation9 + $0x7e8] sm:$0xff]
    %v1047 = vld [vmem:[#allocation9 + $0x7f0] sm:$0xff]
    %v1048 = vld [vmem:[#allocation9 + $0x7f8] sm:$0xff]
    %v1049 = vld [vmem:[#allocation9 + $0x800] sm:$0xff]
    %v1050 = vld [vmem:[#allocation9 + $0x808] sm:$0xff]
    %v1051 = vld [vmem:[#allocation9 + $0x810] sm:$0xff]
    %v1052 = vld [vmem:[#allocation9 + $0x818] sm:$0xff]
    %v1053 = vld [vmem:[#allocation9 + $0x820] sm:$0xff]
    %v1054 = vld [vmem:[#allocation9 + $0x828] sm:$0xff]
    %v1055 = vld [vmem:[#allocation9 + $0x830] sm:$0xff]
    %v1056 = vld [vmem:[#allocation9 + $0x838] sm:$0xff]
    %v1057 = vld [vmem:[#allocation9 + $0x840] sm:$0xff]
    %v1058 = vld [vmem:[#allocation9 + $0x848] sm:$0xff]
    %v1059 = vld [vmem:[#allocation9 + $0x850] sm:$0xff]
    %v1060 = vld [vmem:[#allocation9 + $0x858] sm:$0xff]
    %v1061 = vld [vmem:[#allocation9 + $0x860] sm:$0xff]
    %v1062 = vld [vmem:[#allocation9 + $0x868] sm:$0xff]
    %v1063 = vld [vmem:[#allocation9 + $0x870] sm:$0xff]
    %v1064 = vld [vmem:[#allocation9 + $0x878] sm:$0xff]
    %v1065 = vld [vmem:[#allocation9 + $0x880] sm:$0xff]
    %v1066 = vld [vmem:[#allocation9 + $0x888] sm:$0xff]
    %v1067 = vld [vmem:[#allocation9 + $0x890] sm:$0xff]
    %v1068 = vld [vmem:[#allocation9 + $0x898] sm:$0xff]
    %v1069 = vld [vmem:[#allocation9 + $0x8a0] sm:$0xff]
    %v1070 = vld [vmem:[#allocation9 + $0x8a8] sm:$0xff]
    %v1071 = vld [vmem:[#allocation9 + $0x8b0] sm:$0xff]
    %v1072 = vld [vmem:[#allocation9 + $0x8b8] sm:$0xff]
    %v1073 = vld [vmem:[#allocation9 + $0x8c0] sm:$0xff]
    %v1074 = vld [vmem:[#allocation9 + $0x8c8] sm:$0xff]
    %v1075 = vld [vmem:[#allocation9 + $0x8d0] sm:$0xff]
    %v1076 = vld [vmem:[#allocation9 + $0x8d8] sm:$0xff]
    %v1077 = vld [vmem:[#allocation9 + $0x8e0] sm:$0xff]
    %v1078 = vld [vmem:[#allocation9 + $0x8e8] sm:$0xff]
    %v1079 = vld [vmem:[#allocation9 + $0x8f0] sm:$0xff]
    %v1080 = vld [vmem:[#allocation9 + $0x8f8] sm:$0xff]
    %v1081 = vld [vmem:[#allocation9 + $0x900] sm:$0xff]
    %v1082 = vld [vmem:[#allocation9 + $0x908] sm:$0xff]
    %v1083 = vld [vmem:[#allocation9 + $0x910] sm:$0xff]
    %v1084 = vld [vmem:[#allocation9 + $0x918] sm:$0xff]
    %v1085 = vld [vmem:[#allocation9 + $0x920] sm:$0xff]
    %v1086 = vld [vmem:[#allocation9 + $0x928] sm:$0xff]
    %v1087 = vld [vmem:[#allocation9 + $0x930] sm:$0xff]
    %v1088 = vld [vmem:[#allocation9 + $0x938] sm:$0xff]
    %v1089 = vld [vmem:[#allocation9 + $0x940] sm:$0xff]
    %v1090 = vld [vmem:[#allocation9 + $0x948] sm:$0xff]
    %v1091 = vld [vmem:[#allocation9 + $0x950] sm:$0xff]
    %v1092 = vld [vmem:[#allocation9 + $0x958] sm:$0xff]
    %v1093 = vld [vmem:[#allocation9 + $0x960] sm:$0xff]
    %v1094 = vld [vmem:[#allocation9 + $0x968] sm:$0xff]
    %v1095 = vld [vmem:[#allocation9 + $0x970] sm:$0xff]
    %v1096 = vld [vmem:[#allocation9 + $0x978] sm:$0xff]
    %v1097 = vld [vmem:[#allocation9 + $0x980] sm:$0xff]
    %v1098 = vld [vmem:[#allocation9 + $0x988] sm:$0xff]
    %v1099 = vld [vmem:[#allocation9 + $0x990] sm:$0xff]
    %v1100 = vld [vmem:[#allocation9 + $0x998] sm:$0xff]
    %v1101 = vld [vmem:[#allocation9 + $0x9a0] sm:$0xff]
    %v1102 = vld [vmem:[#allocation9 + $0x9a8] sm:$0xff]
    %v1103 = vld [vmem:[#allocation9 + $0x9b0] sm:$0xff]
    %v1104 = vld [vmem:[#allocation9 + $0x9b8] sm:$0xff]
    %v1105 = vld [vmem:[#allocation9 + $0x9c0] sm:$0xff]
    %v1106 = vld [vmem:[#allocation9 + $0x9c8] sm:$0xff]
    %v1107 = vld [vmem:[#allocation9 + $0x9d0] sm:$0xff]
    %v1108 = vld [vmem:[#allocation9 + $0x9d8] sm:$0xff]
    %v1109 = vld [vmem:[#allocation9 + $0x9e0] sm:$0xff]
    %v1110 = vld [vmem:[#allocation9 + $0x9e8] sm:$0xff]
    %v1111 = vld [vmem:[#allocation9 + $0x9f0] sm:$0xff]
    %v1112 = vld [vmem:[#allocation9 + $0x9f8] sm:$0xff]
    %v1113 = vld [vmem:[#allocation9 + $0xa00] sm:$0xff]
    %v1114 = vld [vmem:[#allocation9 + $0xa08] sm:$0xff]
    %v1115 = vld [vmem:[#allocation9 + $0xa10] sm:$0xff]
    %v1116 = vld [vmem:[#allocation9 + $0xa18] sm:$0xff]
    %v1117 = vld [vmem:[#allocation9 + $0xa20] sm:$0xff]
    %v1118 = vld [vmem:[#allocation9 + $0xa28] sm:$0xff]
    %v1119 = vld [vmem:[#allocation9 + $0xa30] sm:$0xff]
    %v1120 = vld [vmem:[#allocation9 + $0xa38] sm:$0xff]
    %v1121 = vld [vmem:[#allocation9 + $0xa40] sm:$0xff]
    %v1122 = vld [vmem:[#allocation9 + $0xa48] sm:$0xff]
    %v1123 = vld [vmem:[#allocation9 + $0xa50] sm:$0xff]
    %v1124 = vld [vmem:[#allocation9 + $0xa58] sm:$0xff]
    %v1125 = vld [vmem:[#allocation9 + $0xa60] sm:$0xff]
    %v1126 = vld [vmem:[#allocation9 + $0xa68] sm:$0xff]
    %v1127 = vld [vmem:[#allocation9 + $0xa70] sm:$0xff]
    %v1128 = vld [vmem:[#allocation9 + $0xa78] sm:$0xff]
    %v1129 = vld [vmem:[#allocation9 + $0xa80] sm:$0xff]
    %v1130 = vld [vmem:[#allocation9 + $0xa88] sm:$0xff]
    %v1131 = vld [vmem:[#allocation9 + $0xa90] sm:$0xff]
    %v1132 = vld [vmem:[#allocation9 + $0xa98] sm:$0xff]
    %v1133 = vld [vmem:[#allocation9 + $0xaa0] sm:$0xff]
    %v1134 = vld [vmem:[#allocation9 + $0xaa8] sm:$0xff]
    %v1135 = vld [vmem:[#allocation9 + $0xab0] sm:$0xff]
    %v1136 = vld [vmem:[#allocation9 + $0xab8] sm:$0xff]
    %v1137 = vld [vmem:[#allocation9 + $0xac0] sm:$0xff]
    %v1138 = vld [vmem:[#allocation9 + $0xac8] sm:$0xff]
    %v1139 = vld [vmem:[#allocation9 + $0xad0] sm:$0xff]
    %v1140 = vld [vmem:[#allocation9 + $0xad8] sm:$0xff]
    %v1141 = vld [vmem:[#allocation9 + $0xae0] sm:$0xff]
    %v1142 = vld [vmem:[#allocation9 + $0xae8] sm:$0xff]
    %v1143 = vld [vmem:[#allocation9 + $0xaf0] sm:$0xff]
    %v1144 = vld [vmem:[#allocation9 + $0xaf8] sm:$0xff]
    %v1145 = vld [vmem:[#allocation9 + $0xb00] sm:$0xff]
    %v1146 = vld [vmem:[#allocation9 + $0xb08] sm:$0xff]
    %v1147 = vld [vmem:[#allocation9 + $0xb10] sm:$0xff]
    %v1148 = vld [vmem:[#allocation9 + $0xb18] sm:$0xff]
    %v1149 = vld [vmem:[#allocation9 + $0xb20] sm:$0xff]
    %v1150 = vld [vmem:[#allocation9 + $0xb28] sm:$0xff]
    %v1151 = vld [vmem:[#allocation9 + $0xb30] sm:$0xff]
    %v1152 = vld [vmem:[#allocation9 + $0xb38] sm:$0xff]
    %v1153 = vld [vmem:[#allocation9 + $0xb40] sm:$0xff]
    %v1154 = vld [vmem:[#allocation9 + $0xb48] sm:$0xff]
    %v1155 = vld [vmem:[#allocation9 + $0xb50] sm:$0xff]
    %v1156 = vld [vmem:[#allocation9 + $0xb58] sm:$0xff]
    %v1157 = vld [vmem:[#allocation9 + $0xb60] sm:$0xff]
    %v1158 = vld [vmem:[#allocation9 + $0xb68] sm:$0xff]
    %v1159 = vld [vmem:[#allocation9 + $0xb70] sm:$0xff]
    %v1160 = vld [vmem:[#allocation9 + $0xb78] sm:$0xff]
    %v1161 = vld [vmem:[#allocation9 + $0xb80] sm:$0xff]
    %v1162 = vld [vmem:[#allocation9 + $0xb88] sm:$0xff]
    %v1163 = vld [vmem:[#allocation9 + $0xb90] sm:$0xff]
    %v1164 = vld [vmem:[#allocation9 + $0xb98] sm:$0xff]
    %v1165 = vld [vmem:[#allocation9 + $0xba0] sm:$0xff]
    %v1166 = vld [vmem:[#allocation9 + $0xba8] sm:$0xff]
    %v1167 = vld [vmem:[#allocation9 + $0xbb0] sm:$0xff]
    %v1168 = vld [vmem:[#allocation9 + $0xbb8] sm:$0xff]
    %v1169 = vld [vmem:[#allocation9 + $0xbc0] sm:$0xff]
    %v1170 = vld [vmem:[#allocation9 + $0xbc8] sm:$0xff]
    %v1171 = vld [vmem:[#allocation9 + $0xbd0] sm:$0xff]
    %v1172 = vld [vmem:[#allocation9 + $0xbd8] sm:$0xff]
    %v1173 = vld [vmem:[#allocation9 + $0xbe0] sm:$0xff]
    %v1174 = vld [vmem:[#allocation9 + $0xbe8] sm:$0xff]
    %v1175 = vld [vmem:[#allocation9 + $0xbf0] sm:$0xff]
    %v1176 = vld [vmem:[#allocation9 + $0xbf8] sm:$0xff]
    %v1177 = vld [vmem:[#allocation9 + $0xc00] sm:$0xff]
    %v1178 = vld [vmem:[#allocation9 + $0xc08] sm:$0xff]
    %v1179 = vld [vmem:[#allocation9 + $0xc10] sm:$0xff]
    %v1180 = vld [vmem:[#allocation9 + $0xc18] sm:$0xff]
    %v1181 = vld [vmem:[#allocation9 + $0xc20] sm:$0xff]
    %v1182 = vld [vmem:[#allocation9 + $0xc28] sm:$0xff]
    %v1183 = vld [vmem:[#allocation9 + $0xc30] sm:$0xff]
    %v1184 = vld [vmem:[#allocation9 + $0xc38] sm:$0xff]
    %v1185 = vld [vmem:[#allocation9 + $0xc40] sm:$0xff]
    %v1186 = vld [vmem:[#allocation9 + $0xc48] sm:$0xff]
    %v1187 = vld [vmem:[#allocation9 + $0xc50] sm:$0xff]
    %v1188 = vld [vmem:[#allocation9 + $0xc58] sm:$0xff]
    %v1189 = vld [vmem:[#allocation9 + $0xc60] sm:$0xff]
    %v1190 = vld [vmem:[#allocation9 + $0xc68] sm:$0xff]
    %v1191 = vld [vmem:[#allocation9 + $0xc70] sm:$0xff]
    %v1192 = vld [vmem:[#allocation9 + $0xc78] sm:$0xff]
    %v1193 = vld [vmem:[#allocation9 + $0xc80] sm:$0xff]
    %v1194 = vld [vmem:[#allocation9 + $0xc88] sm:$0xff]
    %v1195 = vld [vmem:[#allocation9 + $0xc90] sm:$0xff]
    %v1196 = vld [vmem:[#allocation9 + $0xc98] sm:$0xff]
    %v1197 = vld [vmem:[#allocation9 + $0xca0] sm:$0xff]
    %v1198 = vld [vmem:[#allocation9 + $0xca8] sm:$0xff]
    %v1199 = vld [vmem:[#allocation9 + $0xcb0] sm:$0xff]
    %v1200 = vld [vmem:[#allocation9 + $0xcb8] sm:$0xff]
    %v1201 = vld [vmem:[#allocation9 + $0xcc0] sm:$0xff]
    %v1202 = vld [vmem:[#allocation9 + $0xcc8] sm:$0xff]
    %v1203 = vld [vmem:[#allocation9 + $0xcd0] sm:$0xff]
    %v1204 = vld [vmem:[#allocation9 + $0xcd8] sm:$0xff]
    %v1205 = vld [vmem:[#allocation9 + $0xce0] sm:$0xff]
    %v1206 = vld [vmem:[#allocation9 + $0xce8] sm:$0xff]
    %v1207 = vld [vmem:[#allocation9 + $0xcf0] sm:$0xff]
    %v1208 = vld [vmem:[#allocation9 + $0xcf8] sm:$0xff]
    %v1209 = vld [vmem:[#allocation9 + $0xd00] sm:$0xff]
    %v1210 = vld [vmem:[#allocation9 + $0xd08] sm:$0xff]
    %v1211 = vld [vmem:[#allocation9 + $0xd10] sm:$0xff]
    %v1212 = vld [vmem:[#allocation9 + $0xd18] sm:$0xff]
    %v1213 = vld [vmem:[#allocation9 + $0xd20] sm:$0xff]
    %v1214 = vld [vmem:[#allocation9 + $0xd28] sm:$0xff]
    %v1215 = vld [vmem:[#allocation9 + $0xd30] sm:$0xff]
    %v1216 = vld [vmem:[#allocation9 + $0xd38] sm:$0xff]
    %v1217 = vld [vmem:[#allocation9 + $0xd40] sm:$0xff]
    %v1218 = vld [vmem:[#allocation9 + $0xd48] sm:$0xff]
    %v1219 = vld [vmem:[#allocation9 + $0xd50] sm:$0xff]
    %v1220 = vld [vmem:[#allocation9 + $0xd58] sm:$0xff]
    %v1221 = vld [vmem:[#allocation9 + $0xd60] sm:$0xff]
    %v1222 = vld [vmem:[#allocation9 + $0xd68] sm:$0xff]
    %v1223 = vld [vmem:[#allocation9 + $0xd70] sm:$0xff]
    %v1224 = vld [vmem:[#allocation9 + $0xd78] sm:$0xff]
    %1225 = vmatpush.msra.mxu0 %v838
    %1226 = vmatpush.msra.mxu0 %v835
    %1227 = vmatpush.msra.mxu0 %v832
    %1228 = vmatpush.msra.mxu0 %v829
    %1229 = vmatpush.msra.mxu0 %v826
    %1230 = vmatpush.msra.mxu0 %v823
    %1231 = vmatpush.msra.mxu0 %v820
    %1232 = vmatpush.msra.mxu0 %v817
    %1233 = vmatpush.msra.mxu0 %v814
    %1234 = vmatpush.msra.mxu0 %v811
    %1235 = vmatpush.msra.mxu0 %v808
    %1236 = vmatpush.msra.mxu0 %v805
    %1237 = vmatpush.msra.mxu0 %v802
    %1238 = vmatpush.msra.mxu0 %v799
    %1239 = vmatpush.msra.mxu0 %v796
    %1240 = vmatpush.msra.mxu0 %v793
    %1241 = vmatmul.f32.gmra.mxu0 %v568
    %v1242 = vpop.f32.mrf.mxu0
    %v1243 = vadd.f32 0.0, %v1242
    %1244 = vmatmul.f32.gmra.mxu0 %v577
    %v1245 = vpop.f32.mrf.mxu0
    %v1246 = vadd.f32 0.0, %v1245
    %1247 = vmatmul.f32.gmra.mxu0 %v586
    %v1248 = vpop.f32.mrf.mxu0
    %v1249 = vadd.f32 0.0, %v1248
    %1250 = vmatmul.f32.gmra.mxu0 %v595
    %v1251 = vpop.f32.mrf.mxu0
    %v1252 = vadd.f32 0.0, %v1251
    %1253 = vmatmul.f32.gmra.mxu0 %v604
    %v1254 = vpop.f32.mrf.mxu0
    %v1255 = vadd.f32 0.0, %v1254
    %1256 = vmatmul.f32.gmra.mxu0 %v613
    %v1257 = vpop.f32.mrf.mxu0
    %v1258 = vadd.f32 0.0, %v1257
    %1259 = vmatmul.f32.gmra.mxu0 %v622
    %v1260 = vpop.f32.mrf.mxu0
    %v1261 = vadd.f32 0.0, %v1260
    %1262 = vmatmul.f32.gmra.mxu0 %v631
    %v1263 = vpop.f32.mrf.mxu0
    %v1264 = vadd.f32 0.0, %v1263
    %1265 = vmatmul.f32.gmra.mxu0 %v640
    %v1266 = vpop.f32.mrf.mxu0
    %v1267 = vadd.f32 0.0, %v1266
    %1268 = vmatmul.f32.gmra.mxu0 %v649
    %v1269 = vpop.f32.mrf.mxu0
    %v1270 = vadd.f32 0.0, %v1269
    %1271 = vmatmul.f32.gmra.mxu0 %v658
    %v1272 = vpop.f32.mrf.mxu0
    %v1273 = vadd.f32 0.0, %v1272
    %1274 = vmatmul.f32.gmra.mxu0 %v667
    %v1275 = vpop.f32.mrf.mxu0
    %v1276 = vadd.f32 0.0, %v1275
    %1277 = vmatmul.f32.gmra.mxu0 %v676
    %v1278 = vpop.f32.mrf.mxu0
    %v1279 = vadd.f32 0.0, %v1278
    %1280 = vmatmul.f32.gmra.mxu0 %v685
    %v1281 = vpop.f32.mrf.mxu0
    %v1282 = vadd.f32 0.0, %v1281
    %1283 = vmatmul.f32.gmra.mxu0 %v694
    %v1284 = vpop.f32.mrf.mxu0
    %v1285 = vadd.f32 0.0, %v1284
    %1286 = vmatmul.f32.gmra.mxu0 %v703
    %v1287 = vpop.f32.mrf.mxu0
    %v1288 = vadd.f32 0.0, %v1287
    %1289 = vmatmul.f32.gmra.mxu0 %v712
    %v1290 = vpop.f32.mrf.mxu0
    %v1291 = vadd.f32 0.0, %v1290
    %1292 = vmatmul.f32.gmra.mxu0 %v721
    %v1293 = vpop.f32.mrf.mxu0
    %v1294 = vadd.f32 0.0, %v1293
    %1295 = vmatmul.f32.gmra.mxu0 %v730
    %v1296 = vpop.f32.mrf.mxu0
    %v1297 = vadd.f32 0.0, %v1296
    %1298 = vmatmul.f32.gmra.mxu0 %v739
    %v1299 = vpop.f32.mrf.mxu0
    %v1300 = vadd.f32 0.0, %v1299
    %1301 = vmatmul.f32.gmra.mxu0 %v748
    %v1302 = vpop.f32.mrf.mxu0
    %v1303 = vadd.f32 0.0, %v1302
    %1304 = vmatmul.f32.gmra.mxu0 %v757
    %v1305 = vpop.f32.mrf.mxu0
    %v1306 = vadd.f32 0.0, %v1305
    %1307 = vmatmul.f32.gmra.mxu0 %v766
    %v1308 = vpop.f32.mrf.mxu0
    %v1309 = vadd.f32 0.0, %v1308
    %1310 = vmatmul.f32.gmra.mxu0 %v775
    %v1311 = vpop.f32.mrf.mxu0
    %v1312 = vadd.f32 0.0, %v1311
    %1313 = vmatmul.f32.gmra.mxu0 %v784
    %v1314 = vpop.f32.mrf.mxu0
    %v1315 = vadd.f32 0.0, %v1314
    %1316 = vdwg.mxu0
    %1317 = vmatpush.msra.mxu0 %v886
    %1318 = vmatpush.msra.mxu0 %v883
    %1319 = vmatpush.msra.mxu0 %v880
    %1320 = vmatpush.msra.mxu0 %v877
    %1321 = vmatpush.msra.mxu0 %v874
    %1322 = vmatpush.msra.mxu0 %v871
    %1323 = vmatpush.msra.mxu0 %v868
    %1324 = vmatpush.msra.mxu0 %v865
    %1325 = vmatpush.msra.mxu0 %v862
    %1326 = vmatpush.msra.mxu0 %v859
    %1327 = vmatpush.msra.mxu0 %v856
    %1328 = vmatpush.msra.mxu0 %v853
    %1329 = vmatpush.msra.mxu0 %v850
    %1330 = vmatpush.msra.mxu0 %v847
    %1331 = vmatpush.msra.mxu0 %v844
    %1332 = vmatpush.msra.mxu0 %v841
    %1333 = vmatmul.f32.gmra.mxu0 %v569
    %v1334 = vpop.f32.mrf.mxu0
    %v1335 = vadd.f32 %v1243, %v1334
    %1336 = vmatmul.f32.gmra.mxu0 %v578
    %v1337 = vpop.f32.mrf.mxu0
    %v1338 = vadd.f32 %v1246, %v1337
    %1339 = vmatmul.f32.gmra.mxu0 %v587
    %v1340 = vpop.f32.mrf.mxu0
    %v1341 = vadd.f32 %v1249, %v1340
    %1342 = vmatmul.f32.gmra.mxu0 %v596
    %v1343 = vpop.f32.mrf.mxu0
    %v1344 = vadd.f32 %v1252, %v1343
    %1345 = vmatmul.f32.gmra.mxu0 %v605
    %v1346 = vpop.f32.mrf.mxu0
    %v1347 = vadd.f32 %v1255, %v1346
    %1348 = vmatmul.f32.gmra.mxu0 %v614
    %v1349 = vpop.f32.mrf.mxu0
    %v1350 = vadd.f32 %v1258, %v1349
    %1351 = vmatmul.f32.gmra.mxu0 %v623
    %v1352 = vpop.f32.mrf.mxu0
    %v1353 = vadd.f32 %v1261, %v1352
    %1354 = vmatmul.f32.gmra.mxu0 %v632
    %v1355 = vpop.f32.mrf.mxu0
    %v1356 = vadd.f32 %v1264, %v1355
    %1357 = vmatmul.f32.gmra.mxu0 %v641
    %v1358 = vpop.f32.mrf.mxu0
    %v1359 = vadd.f32 %v1267, %v1358
    %1360 = vmatmul.f32.gmra.mxu0 %v650
    %v1361 = vpop.f32.mrf.mxu0
    %v1362 = vadd.f32 %v1270, %v1361
    %1363 = vmatmul.f32.gmra.mxu0 %v659
    %v1364 = vpop.f32.mrf.mxu0
    %v1365 = vadd.f32 %v1273, %v1364
    %1366 = vmatmul.f32.gmra.mxu0 %v668
    %v1367 = vpop.f32.mrf.mxu0
    %v1368 = vadd.f32 %v1276, %v1367
    %1369 = vmatmul.f32.gmra.mxu0 %v677
    %v1370 = vpop.f32.mrf.mxu0
    %v1371 = vadd.f32 %v1279, %v1370
    %1372 = vmatmul.f32.gmra.mxu0 %v686
    %v1373 = vpop.f32.mrf.mxu0
    %v1374 = vadd.f32 %v1282, %v1373
    %1375 = vmatmul.f32.gmra.mxu0 %v695
    %v1376 = vpop.f32.mrf.mxu0
    %v1377 = vadd.f32 %v1285, %v1376
    %1378 = vmatmul.f32.gmra.mxu0 %v704
    %v1379 = vpop.f32.mrf.mxu0
    %v1380 = vadd.f32 %v1288, %v1379
    %1381 = vmatmul.f32.gmra.mxu0 %v713
    %v1382 = vpop.f32.mrf.mxu0
    %v1383 = vadd.f32 %v1291, %v1382
    %1384 = vmatmul.f32.gmra.mxu0 %v722
    %v1385 = vpop.f32.mrf.mxu0
    %v1386 = vadd.f32 %v1294, %v1385
    %1387 = vmatmul.f32.gmra.mxu0 %v731
    %v1388 = vpop.f32.mrf.mxu0
    %v1389 = vadd.f32 %v1297, %v1388
    %1390 = vmatmul.f32.gmra.mxu0 %v740
    %v1391 = vpop.f32.mrf.mxu0
    %v1392 = vadd.f32 %v1300, %v1391
    %1393 = vmatmul.f32.gmra.mxu0 %v749
    %v1394 = vpop.f32.mrf.mxu0
    %v1395 = vadd.f32 %v1303, %v1394
    %1396 = vmatmul.f32.gmra.mxu0 %v758
    %v1397 = vpop.f32.mrf.mxu0
    %v1398 = vadd.f32 %v1306, %v1397
    %1399 = vmatmul.f32.gmra.mxu0 %v767
    %v1400 = vpop.f32.mrf.mxu0
    %v1401 = vadd.f32 %v1309, %v1400
    %1402 = vmatmul.f32.gmra.mxu0 %v776
    %v1403 = vpop.f32.mrf.mxu0
    %v1404 = vadd.f32 %v1312, %v1403
    %1405 = vmatmul.f32.gmra.mxu0 %v785
    %v1406 = vpop.f32.mrf.mxu0
    %v1407 = vadd.f32 %v1315, %v1406
    %1408 = vdwg.mxu0
    %1409 = vmatpush.msra.mxu0 %v934
    %1410 = vmatpush.msra.mxu0 %v931
    %1411 = vmatpush.msra.mxu0 %v928
    %1412 = vmatpush.msra.mxu0 %v925
    %1413 = vmatpush.msra.mxu0 %v922
    %1414 = vmatpush.msra.mxu0 %v919
    %1415 = vmatpush.msra.mxu0 %v916
    %1416 = vmatpush.msra.mxu0 %v913
    %1417 = vmatpush.msra.mxu0 %v910
    %1418 = vmatpush.msra.mxu0 %v907
    %1419 = vmatpush.msra.mxu0 %v904
    %1420 = vmatpush.msra.mxu0 %v901
    %1421 = vmatpush.msra.mxu0 %v898
    %1422 = vmatpush.msra.mxu0 %v895
    %1423 = vmatpush.msra.mxu0 %v892
    %1424 = vmatpush.msra.mxu0 %v889
    %1425 = vmatmul.f32.gmra.mxu0 %v570
    %v1426 = vpop.f32.mrf.mxu0
    %v1427 = vadd.f32 %v1335, %v1426
    %1428 = vmatmul.f32.gmra.mxu0 %v579
    %v1429 = vpop.f32.mrf.mxu0
    %v1430 = vadd.f32 %v1338, %v1429
    %1431 = vmatmul.f32.gmra.mxu0 %v588
    %v1432 = vpop.f32.mrf.mxu0
    %v1433 = vadd.f32 %v1341, %v1432
    %1434 = vmatmul.f32.gmra.mxu0 %v597
    %v1435 = vpop.f32.mrf.mxu0
    %v1436 = vadd.f32 %v1344, %v1435
    %1437 = vmatmul.f32.gmra.mxu0 %v606
    %v1438 = vpop.f32.mrf.mxu0
    %v1439 = vadd.f32 %v1347, %v1438
    %1440 = vmatmul.f32.gmra.mxu0 %v615
    %v1441 = vpop.f32.mrf.mxu0
    %v1442 = vadd.f32 %v1350, %v1441
    %1443 = vmatmul.f32.gmra.mxu0 %v624
    %v1444 = vpop.f32.mrf.mxu0
    %v1445 = vadd.f32 %v1353, %v1444
    %1446 = vmatmul.f32.gmra.mxu0 %v633
    %v1447 = vpop.f32.mrf.mxu0
    %v1448 = vadd.f32 %v1356, %v1447
    %1449 = vmatmul.f32.gmra.mxu0 %v642
    %v1450 = vpop.f32.mrf.mxu0
    %v1451 = vadd.f32 %v1359, %v1450
    %1452 = vmatmul.f32.gmra.mxu0 %v651
    %v1453 = vpop.f32.mrf.mxu0
    %v1454 = vadd.f32 %v1362, %v1453
    %1455 = vmatmul.f32.gmra.mxu0 %v660
    %v1456 = vpop.f32.mrf.mxu0
    %v1457 = vadd.f32 %v1365, %v1456
    %1458 = vmatmul.f32.gmra.mxu0 %v669
    %v1459 = vpop.f32.mrf.mxu0
    %v1460 = vadd.f32 %v1368, %v1459
    %1461 = vmatmul.f32.gmra.mxu0 %v678
    %v1462 = vpop.f32.mrf.mxu0
    %v1463 = vadd.f32 %v1371, %v1462
    %1464 = vmatmul.f32.gmra.mxu0 %v687
    %v1465 = vpop.f32.mrf.mxu0
    %v1466 = vadd.f32 %v1374, %v1465
    %1467 = vmatmul.f32.gmra.mxu0 %v696
    %v1468 = vpop.f32.mrf.mxu0
    %v1469 = vadd.f32 %v1377, %v1468
    %1470 = vmatmul.f32.gmra.mxu0 %v705
    %v1471 = vpop.f32.mrf.mxu0
    %v1472 = vadd.f32 %v1380, %v1471
    %1473 = vmatmul.f32.gmra.mxu0 %v714
    %v1474 = vpop.f32.mrf.mxu0
    %v1475 = vadd.f32 %v1383, %v1474
    %1476 = vmatmul.f32.gmra.mxu0 %v723
    %v1477 = vpop.f32.mrf.mxu0
    %v1478 = vadd.f32 %v1386, %v1477
    %1479 = vmatmul.f32.gmra.mxu0 %v732
    %v1480 = vpop.f32.mrf.mxu0
    %v1481 = vadd.f32 %v1389, %v1480
    %1482 = vmatmul.f32.gmra.mxu0 %v741
    %v1483 = vpop.f32.mrf.mxu0
    %v1484 = vadd.f32 %v1392, %v1483
    %1485 = vmatmul.f32.gmra.mxu0 %v750
    %v1486 = vpop.f32.mrf.mxu0
    %v1487 = vadd.f32 %v1395, %v1486
    %1488 = vmatmul.f32.gmra.mxu0 %v759
    %v1489 = vpop.f32.mrf.mxu0
    %v1490 = vadd.f32 %v1398, %v1489
    %1491 = vmatmul.f32.gmra.mxu0 %v768
    %v1492 = vpop.f32.mrf.mxu0
    %v1493 = vadd.f32 %v1401, %v1492
    %1494 = vmatmul.f32.gmra.mxu0 %v777
    %v1495 = vpop.f32.mrf.mxu0
    %v1496 = vadd.f32 %v1404, %v1495
    %1497 = vmatmul.f32.gmra.mxu0 %v786
    %v1498 = vpop.f32.mrf.mxu0
    %v1499 = vadd.f32 %v1407, %v1498
    %1500 = vdwg.mxu0
    %1501 = vmatpush.msra.mxu0 %v982
    %1502 = vmatpush.msra.mxu0 %v979
    %1503 = vmatpush.msra.mxu0 %v976
    %1504 = vmatpush.msra.mxu0 %v973
    %1505 = vmatpush.msra.mxu0 %v970
    %1506 = vmatpush.msra.mxu0 %v967
    %1507 = vmatpush.msra.mxu0 %v964
    %1508 = vmatpush.msra.mxu0 %v961
    %1509 = vmatpush.msra.mxu0 %v958
    %1510 = vmatpush.msra.mxu0 %v955
    %1511 = vmatpush.msra.mxu0 %v952
    %1512 = vmatpush.msra.mxu0 %v949
    %1513 = vmatpush.msra.mxu0 %v946
    %1514 = vmatpush.msra.mxu0 %v943
    %1515 = vmatpush.msra.mxu0 %v940
    %1516 = vmatpush.msra.mxu0 %v937
    %1517 = vmatmul.f32.gmra.mxu0 %v571
    %v1518 = vpop.f32.mrf.mxu0
    %v1519 = vadd.f32 %v1427, %v1518
    %1520 = vmatmul.f32.gmra.mxu0 %v580
    %v1521 = vpop.f32.mrf.mxu0
    %v1522 = vadd.f32 %v1430, %v1521
    %1523 = vmatmul.f32.gmra.mxu0 %v589
    %v1524 = vpop.f32.mrf.mxu0
    %v1525 = vadd.f32 %v1433, %v1524
    %1526 = vmatmul.f32.gmra.mxu0 %v598
    %v1527 = vpop.f32.mrf.mxu0
    %v1528 = vadd.f32 %v1436, %v1527
    %1529 = vmatmul.f32.gmra.mxu0 %v607
    %v1530 = vpop.f32.mrf.mxu0
    %v1531 = vadd.f32 %v1439, %v1530
    %1532 = vmatmul.f32.gmra.mxu0 %v616
    %v1533 = vpop.f32.mrf.mxu0
    %v1534 = vadd.f32 %v1442, %v1533
    %1535 = vmatmul.f32.gmra.mxu0 %v625
    %v1536 = vpop.f32.mrf.mxu0
    %v1537 = vadd.f32 %v1445, %v1536
    %1538 = vmatmul.f32.gmra.mxu0 %v634
    %v1539 = vpop.f32.mrf.mxu0
    %v1540 = vadd.f32 %v1448, %v1539
    %1541 = vmatmul.f32.gmra.mxu0 %v643
    %v1542 = vpop.f32.mrf.mxu0
    %v1543 = vadd.f32 %v1451, %v1542
    %1544 = vmatmul.f32.gmra.mxu0 %v652
    %v1545 = vpop.f32.mrf.mxu0
    %v1546 = vadd.f32 %v1454, %v1545
    %1547 = vmatmul.f32.gmra.mxu0 %v661
    %v1548 = vpop.f32.mrf.mxu0
    %v1549 = vadd.f32 %v1457, %v1548
    %1550 = vmatmul.f32.gmra.mxu0 %v670
    %v1551 = vpop.f32.mrf.mxu0
    %v1552 = vadd.f32 %v1460, %v1551
    %1553 = vmatmul.f32.gmra.mxu0 %v679
    %v1554 = vpop.f32.mrf.mxu0
    %v1555 = vadd.f32 %v1463, %v1554
    %1556 = vmatmul.f32.gmra.mxu0 %v688
    %v1557 = vpop.f32.mrf.mxu0
    %v1558 = vadd.f32 %v1466, %v1557
    %1559 = vmatmul.f32.gmra.mxu0 %v697
    %v1560 = vpop.f32.mrf.mxu0
    %v1561 = vadd.f32 %v1469, %v1560
    %1562 = vmatmul.f32.gmra.mxu0 %v706
    %v1563 = vpop.f32.mrf.mxu0
    %v1564 = vadd.f32 %v1472, %v1563
    %1565 = vmatmul.f32.gmra.mxu0 %v715
    %v1566 = vpop.f32.mrf.mxu0
    %v1567 = vadd.f32 %v1475, %v1566
    %1568 = vmatmul.f32.gmra.mxu0 %v724
    %v1569 = vpop.f32.mrf.mxu0
    %v1570 = vadd.f32 %v1478, %v1569
    %1571 = vmatmul.f32.gmra.mxu0 %v733
    %v1572 = vpop.f32.mrf.mxu0
    %v1573 = vadd.f32 %v1481, %v1572
    %1574 = vmatmul.f32.gmra.mxu0 %v742
    %v1575 = vpop.f32.mrf.mxu0
    %v1576 = vadd.f32 %v1484, %v1575
    %1577 = vmatmul.f32.gmra.mxu0 %v751
    %v1578 = vpop.f32.mrf.mxu0
    %v1579 = vadd.f32 %v1487, %v1578
    %1580 = vmatmul.f32.gmra.mxu0 %v760
    %v1581 = vpop.f32.mrf.mxu0
    %v1582 = vadd.f32 %v1490, %v1581
    %1583 = vmatmul.f32.gmra.mxu0 %v769
    %v1584 = vpop.f32.mrf.mxu0
    %v1585 = vadd.f32 %v1493, %v1584
    %1586 = vmatmul.f32.gmra.mxu0 %v778
    %v1587 = vpop.f32.mrf.mxu0
    %v1588 = vadd.f32 %v1496, %v1587
    %1589 = vmatmul.f32.gmra.mxu0 %v787
    %v1590 = vpop.f32.mrf.mxu0
    %v1591 = vadd.f32 %v1499, %v1590
    %1592 = vdwg.mxu0
    %1593 = vmatpush.msra.mxu0 %v1030
    %1594 = vmatpush.msra.mxu0 %v1027
    %1595 = vmatpush.msra.mxu0 %v1024
    %1596 = vmatpush.msra.mxu0 %v1021
    %1597 = vmatpush.msra.mxu0 %v1018
    %1598 = vmatpush.msra.mxu0 %v1015
    %1599 = vmatpush.msra.mxu0 %v1012
    %1600 = vmatpush.msra.mxu0 %v1009
    %1601 = vmatpush.msra.mxu0 %v1006
    %1602 = vmatpush.msra.mxu0 %v1003
    %1603 = vmatpush.msra.mxu0 %v1000
    %1604 = vmatpush.msra.mxu0 %v997
    %1605 = vmatpush.msra.mxu0 %v994
    %1606 = vmatpush.msra.mxu0 %v991
    %1607 = vmatpush.msra.mxu0 %v988
    %1608 = vmatpush.msra.mxu0 %v985
    %1609 = vmatmul.f32.gmra.mxu0 %v572
    %v1610 = vpop.f32.mrf.mxu0
    %v1611 = vadd.f32 %v1519, %v1610
    %1612 = vmatmul.f32.gmra.mxu0 %v581
    %v1613 = vpop.f32.mrf.mxu0
    %v1614 = vadd.f32 %v1522, %v1613
    %1615 = vmatmul.f32.gmra.mxu0 %v590
    %v1616 = vpop.f32.mrf.mxu0
    %v1617 = vadd.f32 %v1525, %v1616
    %1618 = vmatmul.f32.gmra.mxu0 %v599
    %v1619 = vpop.f32.mrf.mxu0
    %v1620 = vadd.f32 %v1528, %v1619
    %1621 = vmatmul.f32.gmra.mxu0 %v608
    %v1622 = vpop.f32.mrf.mxu0
    %v1623 = vadd.f32 %v1531, %v1622
    %1624 = vmatmul.f32.gmra.mxu0 %v617
    %v1625 = vpop.f32.mrf.mxu0
    %v1626 = vadd.f32 %v1534, %v1625
    %1627 = vmatmul.f32.gmra.mxu0 %v626
    %v1628 = vpop.f32.mrf.mxu0
    %v1629 = vadd.f32 %v1537, %v1628
    %1630 = vmatmul.f32.gmra.mxu0 %v635
    %v1631 = vpop.f32.mrf.mxu0
    %v1632 = vadd.f32 %v1540, %v1631
    %1633 = vmatmul.f32.gmra.mxu0 %v644
    %v1634 = vpop.f32.mrf.mxu0
    %v1635 = vadd.f32 %v1543, %v1634
    %1636 = vmatmul.f32.gmra.mxu0 %v653
    %v1637 = vpop.f32.mrf.mxu0
    %v1638 = vadd.f32 %v1546, %v1637
    %1639 = vmatmul.f32.gmra.mxu0 %v662
    %v1640 = vpop.f32.mrf.mxu0
    %v1641 = vadd.f32 %v1549, %v1640
    %1642 = vmatmul.f32.gmra.mxu0 %v671
    %v1643 = vpop.f32.mrf.mxu0
    %v1644 = vadd.f32 %v1552, %v1643
    %1645 = vmatmul.f32.gmra.mxu0 %v680
    %v1646 = vpop.f32.mrf.mxu0
    %v1647 = vadd.f32 %v1555, %v1646
    %1648 = vmatmul.f32.gmra.mxu0 %v689
    %v1649 = vpop.f32.mrf.mxu0
    %v1650 = vadd.f32 %v1558, %v1649
    %1651 = vmatmul.f32.gmra.mxu0 %v698
    %v1652 = vpop.f32.mrf.mxu0
    %v1653 = vadd.f32 %v1561, %v1652
    %1654 = vmatmul.f32.gmra.mxu0 %v707
    %v1655 = vpop.f32.mrf.mxu0
    %v1656 = vadd.f32 %v1564, %v1655
    %1657 = vmatmul.f32.gmra.mxu0 %v716
    %v1658 = vpop.f32.mrf.mxu0
    %v1659 = vadd.f32 %v1567, %v1658
    %1660 = vmatmul.f32.gmra.mxu0 %v725
    %v1661 = vpop.f32.mrf.mxu0
    %v1662 = vadd.f32 %v1570, %v1661
    %1663 = vmatmul.f32.gmra.mxu0 %v734
    %v1664 = vpop.f32.mrf.mxu0
    %v1665 = vadd.f32 %v1573, %v1664
    %1666 = vmatmul.f32.gmra.mxu0 %v743
    %v1667 = vpop.f32.mrf.mxu0
    %v1668 = vadd.f32 %v1576, %v1667
    %1669 = vmatmul.f32.gmra.mxu0 %v752
    %v1670 = vpop.f32.mrf.mxu0
    %v1671 = vadd.f32 %v1579, %v1670
    %1672 = vmatmul.f32.gmra.mxu0 %v761
    %v1673 = vpop.f32.mrf.mxu0
    %v1674 = vadd.f32 %v1582, %v1673
    %1675 = vmatmul.f32.gmra.mxu0 %v770
    %v1676 = vpop.f32.mrf.mxu0
    %v1677 = vadd.f32 %v1585, %v1676
    %1678 = vmatmul.f32.gmra.mxu0 %v779
    %v1679 = vpop.f32.mrf.mxu0
    %v1680 = vadd.f32 %v1588, %v1679
    %1681 = vmatmul.f32.gmra.mxu0 %v788
    %v1682 = vpop.f32.mrf.mxu0
    %v1683 = vadd.f32 %v1591, %v1682
    %1684 = vdwg.mxu0
    %1685 = vmatpush.msra.mxu0 %v1078
    %1686 = vmatpush.msra.mxu0 %v1075
    %1687 = vmatpush.msra.mxu0 %v1072
    %1688 = vmatpush.msra.mxu0 %v1069
    %1689 = vmatpush.msra.mxu0 %v1066
    %1690 = vmatpush.msra.mxu0 %v1063
    %1691 = vmatpush.msra.mxu0 %v1060
    %1692 = vmatpush.msra.mxu0 %v1057
    %1693 = vmatpush.msra.mxu0 %v1054
    %1694 = vmatpush.msra.mxu0 %v1051
    %1695 = vmatpush.msra.mxu0 %v1048
    %1696 = vmatpush.msra.mxu0 %v1045
    %1697 = vmatpush.msra.mxu0 %v1042
    %1698 = vmatpush.msra.mxu0 %v1039
    %1699 = vmatpush.msra.mxu0 %v1036
    %1700 = vmatpush.msra.mxu0 %v1033
    %1701 = vmatmul.f32.gmra.mxu0 %v573
    %v1702 = vpop.f32.mrf.mxu0
    %v1703 = vadd.f32 %v1611, %v1702
    %1704 = vmatmul.f32.gmra.mxu0 %v582
    %v1705 = vpop.f32.mrf.mxu0
    %v1706 = vadd.f32 %v1614, %v1705
    %1707 = vmatmul.f32.gmra.mxu0 %v591
    %v1708 = vpop.f32.mrf.mxu0
    %v1709 = vadd.f32 %v1617, %v1708
    %1710 = vmatmul.f32.gmra.mxu0 %v600
    %v1711 = vpop.f32.mrf.mxu0
    %v1712 = vadd.f32 %v1620, %v1711
    %1713 = vmatmul.f32.gmra.mxu0 %v609
    %v1714 = vpop.f32.mrf.mxu0
    %v1715 = vadd.f32 %v1623, %v1714
    %1716 = vmatmul.f32.gmra.mxu0 %v618
    %v1717 = vpop.f32.mrf.mxu0
    %v1718 = vadd.f32 %v1626, %v1717
    %1719 = vmatmul.f32.gmra.mxu0 %v627
    %v1720 = vpop.f32.mrf.mxu0
    %v1721 = vadd.f32 %v1629, %v1720
    %1722 = vmatmul.f32.gmra.mxu0 %v636
    %v1723 = vpop.f32.mrf.mxu0
    %v1724 = vadd.f32 %v1632, %v1723
    %1725 = vmatmul.f32.gmra.mxu0 %v645
    %v1726 = vpop.f32.mrf.mxu0
    %v1727 = vadd.f32 %v1635, %v1726
    %1728 = vmatmul.f32.gmra.mxu0 %v654
    %v1729 = vpop.f32.mrf.mxu0
    %v1730 = vadd.f32 %v1638, %v1729
    %1731 = vmatmul.f32.gmra.mxu0 %v663
    %v1732 = vpop.f32.mrf.mxu0
    %v1733 = vadd.f32 %v1641, %v1732
    %1734 = vmatmul.f32.gmra.mxu0 %v672
    %v1735 = vpop.f32.mrf.mxu0
    %v1736 = vadd.f32 %v1644, %v1735
    %1737 = vmatmul.f32.gmra.mxu0 %v681
    %v1738 = vpop.f32.mrf.mxu0
    %v1739 = vadd.f32 %v1647, %v1738
    %1740 = vmatmul.f32.gmra.mxu0 %v690
    %v1741 = vpop.f32.mrf.mxu0
    %v1742 = vadd.f32 %v1650, %v1741
    %1743 = vmatmul.f32.gmra.mxu0 %v699
    %v1744 = vpop.f32.mrf.mxu0
    %v1745 = vadd.f32 %v1653, %v1744
    %1746 = vmatmul.f32.gmra.mxu0 %v708
    %v1747 = vpop.f32.mrf.mxu0
    %v1748 = vadd.f32 %v1656, %v1747
    %1749 = vmatmul.f32.gmra.mxu0 %v717
    %v1750 = vpop.f32.mrf.mxu0
    %v1751 = vadd.f32 %v1659, %v1750
    %1752 = vmatmul.f32.gmra.mxu0 %v726
    %v1753 = vpop.f32.mrf.mxu0
    %v1754 = vadd.f32 %v1662, %v1753
    %1755 = vmatmul.f32.gmra.mxu0 %v735
    %v1756 = vpop.f32.mrf.mxu0
    %v1757 = vadd.f32 %v1665, %v1756
    %1758 = vmatmul.f32.gmra.mxu0 %v744
    %v1759 = vpop.f32.mrf.mxu0
    %v1760 = vadd.f32 %v1668, %v1759
    %1761 = vmatmul.f32.gmra.mxu0 %v753
    %v1762 = vpop.f32.mrf.mxu0
    %v1763 = vadd.f32 %v1671, %v1762
    %1764 = vmatmul.f32.gmra.mxu0 %v762
    %v1765 = vpop.f32.mrf.mxu0
    %v1766 = vadd.f32 %v1674, %v1765
    %1767 = vmatmul.f32.gmra.mxu0 %v771
    %v1768 = vpop.f32.mrf.mxu0
    %v1769 = vadd.f32 %v1677, %v1768
    %1770 = vmatmul.f32.gmra.mxu0 %v780
    %v1771 = vpop.f32.mrf.mxu0
    %v1772 = vadd.f32 %v1680, %v1771
    %1773 = vmatmul.f32.gmra.mxu0 %v789
    %v1774 = vpop.f32.mrf.mxu0
    %v1775 = vadd.f32 %v1683, %v1774
    %1776 = vdwg.mxu0
    %1777 = vmatpush.msra.mxu0 %v1126
    %1778 = vmatpush.msra.mxu0 %v1123
    %1779 = vmatpush.msra.mxu0 %v1120
    %1780 = vmatpush.msra.mxu0 %v1117
    %1781 = vmatpush.msra.mxu0 %v1114
    %1782 = vmatpush.msra.mxu0 %v1111
    %1783 = vmatpush.msra.mxu0 %v1108
    %1784 = vmatpush.msra.mxu0 %v1105
    %1785 = vmatpush.msra.mxu0 %v1102
    %1786 = vmatpush.msra.mxu0 %v1099
    %1787 = vmatpush.msra.mxu0 %v1096
    %1788 = vmatpush.msra.mxu0 %v1093
    %1789 = vmatpush.msra.mxu0 %v1090
    %1790 = vmatpush.msra.mxu0 %v1087
    %1791 = vmatpush.msra.mxu0 %v1084
    %1792 = vmatpush.msra.mxu0 %v1081
    %1793 = vmatmul.f32.gmra.mxu0 %v574
    %v1794 = vpop.f32.mrf.mxu0
    %v1795 = vadd.f32 %v1703, %v1794
    %1796 = vmatmul.f32.gmra.mxu0 %v583
    %v1797 = vpop.f32.mrf.mxu0
    %v1798 = vadd.f32 %v1706, %v1797
    %1799 = vmatmul.f32.gmra.mxu0 %v592
    %v1800 = vpop.f32.mrf.mxu0
    %v1801 = vadd.f32 %v1709, %v1800
    %1802 = vmatmul.f32.gmra.mxu0 %v601
    %v1803 = vpop.f32.mrf.mxu0
    %v1804 = vadd.f32 %v1712, %v1803
    %1805 = vmatmul.f32.gmra.mxu0 %v610
    %v1806 = vpop.f32.mrf.mxu0
    %v1807 = vadd.f32 %v1715, %v1806
    %1808 = vmatmul.f32.gmra.mxu0 %v619
    %v1809 = vpop.f32.mrf.mxu0
    %v1810 = vadd.f32 %v1718, %v1809
    %1811 = vmatmul.f32.gmra.mxu0 %v628
    %v1812 = vpop.f32.mrf.mxu0
    %v1813 = vadd.f32 %v1721, %v1812
    %1814 = vmatmul.f32.gmra.mxu0 %v637
    %v1815 = vpop.f32.mrf.mxu0
    %v1816 = vadd.f32 %v1724, %v1815
    %1817 = vmatmul.f32.gmra.mxu0 %v646
    %v1818 = vpop.f32.mrf.mxu0
    %v1819 = vadd.f32 %v1727, %v1818
    %1820 = vmatmul.f32.gmra.mxu0 %v655
    %v1821 = vpop.f32.mrf.mxu0
    %v1822 = vadd.f32 %v1730, %v1821
    %1823 = vmatmul.f32.gmra.mxu0 %v664
    %v1824 = vpop.f32.mrf.mxu0
    %v1825 = vadd.f32 %v1733, %v1824
    %1826 = vmatmul.f32.gmra.mxu0 %v673
    %v1827 = vpop.f32.mrf.mxu0
    %v1828 = vadd.f32 %v1736, %v1827
    %1829 = vmatmul.f32.gmra.mxu0 %v682
    %v1830 = vpop.f32.mrf.mxu0
    %v1831 = vadd.f32 %v1739, %v1830
    %1832 = vmatmul.f32.gmra.mxu0 %v691
    %v1833 = vpop.f32.mrf.mxu0
    %v1834 = vadd.f32 %v1742, %v1833
    %1835 = vmatmul.f32.gmra.mxu0 %v700
    %v1836 = vpop.f32.mrf.mxu0
    %v1837 = vadd.f32 %v1745, %v1836
    %1838 = vmatmul.f32.gmra.mxu0 %v709
    %v1839 = vpop.f32.mrf.mxu0
    %v1840 = vadd.f32 %v1748, %v1839
    %1841 = vmatmul.f32.gmra.mxu0 %v718
    %v1842 = vpop.f32.mrf.mxu0
    %v1843 = vadd.f32 %v1751, %v1842
    %1844 = vmatmul.f32.gmra.mxu0 %v727
    %v1845 = vpop.f32.mrf.mxu0
    %v1846 = vadd.f32 %v1754, %v1845
    %1847 = vmatmul.f32.gmra.mxu0 %v736
    %v1848 = vpop.f32.mrf.mxu0
    %v1849 = vadd.f32 %v1757, %v1848
    %1850 = vmatmul.f32.gmra.mxu0 %v745
    %v1851 = vpop.f32.mrf.mxu0
    %v1852 = vadd.f32 %v1760, %v1851
    %1853 = vmatmul.f32.gmra.mxu0 %v754
    %v1854 = vpop.f32.mrf.mxu0
    %v1855 = vadd.f32 %v1763, %v1854
    %1856 = vmatmul.f32.gmra.mxu0 %v763
    %v1857 = vpop.f32.mrf.mxu0
    %v1858 = vadd.f32 %v1766, %v1857
    %1859 = vmatmul.f32.gmra.mxu0 %v772
    %v1860 = vpop.f32.mrf.mxu0
    %v1861 = vadd.f32 %v1769, %v1860
    %1862 = vmatmul.f32.gmra.mxu0 %v781
    %v1863 = vpop.f32.mrf.mxu0
    %v1864 = vadd.f32 %v1772, %v1863
    %1865 = vmatmul.f32.gmra.mxu0 %v790
    %v1866 = vpop.f32.mrf.mxu0
    %v1867 = vadd.f32 %v1775, %v1866
    %1868 = vdwg.mxu0
    %1869 = vmatpush.msra.mxu0 %v1174
    %1870 = vmatpush.msra.mxu0 %v1171
    %1871 = vmatpush.msra.mxu0 %v1168
    %1872 = vmatpush.msra.mxu0 %v1165
    %1873 = vmatpush.msra.mxu0 %v1162
    %1874 = vmatpush.msra.mxu0 %v1159
    %1875 = vmatpush.msra.mxu0 %v1156
    %1876 = vmatpush.msra.mxu0 %v1153
    %1877 = vmatpush.msra.mxu0 %v1150
    %1878 = vmatpush.msra.mxu0 %v1147
    %1879 = vmatpush.msra.mxu0 %v1144
    %1880 = vmatpush.msra.mxu0 %v1141
    %1881 = vmatpush.msra.mxu0 %v1138
    %1882 = vmatpush.msra.mxu0 %v1135
    %1883 = vmatpush.msra.mxu0 %v1132
    %1884 = vmatpush.msra.mxu0 %v1129
    %1885 = vmatmul.f32.gmra.mxu0 %v575
    %v1886 = vpop.f32.mrf.mxu0
    %v1887 = vadd.f32 %v1795, %v1886
    %1888 = vmatmul.f32.gmra.mxu0 %v584
    %v1889 = vpop.f32.mrf.mxu0
    %v1890 = vadd.f32 %v1798, %v1889
    %1891 = vmatmul.f32.gmra.mxu0 %v593
    %v1892 = vpop.f32.mrf.mxu0
    %v1893 = vadd.f32 %v1801, %v1892
    %1894 = vmatmul.f32.gmra.mxu0 %v602
    %v1895 = vpop.f32.mrf.mxu0
    %v1896 = vadd.f32 %v1804, %v1895
    %1897 = vmatmul.f32.gmra.mxu0 %v611
    %v1898 = vpop.f32.mrf.mxu0
    %v1899 = vadd.f32 %v1807, %v1898
    %1900 = vmatmul.f32.gmra.mxu0 %v620
    %v1901 = vpop.f32.mrf.mxu0
    %v1902 = vadd.f32 %v1810, %v1901
    %1903 = vmatmul.f32.gmra.mxu0 %v629
    %v1904 = vpop.f32.mrf.mxu0
    %v1905 = vadd.f32 %v1813, %v1904
    %1906 = vmatmul.f32.gmra.mxu0 %v638
    %v1907 = vpop.f32.mrf.mxu0
    %v1908 = vadd.f32 %v1816, %v1907
    %1909 = vmatmul.f32.gmra.mxu0 %v647
    %v1910 = vpop.f32.mrf.mxu0
    %v1911 = vadd.f32 %v1819, %v1910
    %1912 = vmatmul.f32.gmra.mxu0 %v656
    %v1913 = vpop.f32.mrf.mxu0
    %v1914 = vadd.f32 %v1822, %v1913
    %1915 = vmatmul.f32.gmra.mxu0 %v665
    %v1916 = vpop.f32.mrf.mxu0
    %v1917 = vadd.f32 %v1825, %v1916
    %1918 = vmatmul.f32.gmra.mxu0 %v674
    %v1919 = vpop.f32.mrf.mxu0
    %v1920 = vadd.f32 %v1828, %v1919
    %1921 = vmatmul.f32.gmra.mxu0 %v683
    %v1922 = vpop.f32.mrf.mxu0
    %v1923 = vadd.f32 %v1831, %v1922
    %1924 = vmatmul.f32.gmra.mxu0 %v692
    %v1925 = vpop.f32.mrf.mxu0
    %v1926 = vadd.f32 %v1834, %v1925
    %1927 = vmatmul.f32.gmra.mxu0 %v701
    %v1928 = vpop.f32.mrf.mxu0
    %v1929 = vadd.f32 %v1837, %v1928
    %1930 = vmatmul.f32.gmra.mxu0 %v710
    %v1931 = vpop.f32.mrf.mxu0
    %v1932 = vadd.f32 %v1840, %v1931
    %1933 = vmatmul.f32.gmra.mxu0 %v719
    %v1934 = vpop.f32.mrf.mxu0
    %v1935 = vadd.f32 %v1843, %v1934
    %1936 = vmatmul.f32.gmra.mxu0 %v728
    %v1937 = vpop.f32.mrf.mxu0
    %v1938 = vadd.f32 %v1846, %v1937
    %1939 = vmatmul.f32.gmra.mxu0 %v737
    %v1940 = vpop.f32.mrf.mxu0
    %v1941 = vadd.f32 %v1849, %v1940
    %1942 = vmatmul.f32.gmra.mxu0 %v746
    %v1943 = vpop.f32.mrf.mxu0
    %v1944 = vadd.f32 %v1852, %v1943
    %1945 = vmatmul.f32.gmra.mxu0 %v755
    %v1946 = vpop.f32.mrf.mxu0
    %v1947 = vadd.f32 %v1855, %v1946
    %1948 = vmatmul.f32.gmra.mxu0 %v764
    %v1949 = vpop.f32.mrf.mxu0
    %v1950 = vadd.f32 %v1858, %v1949
    %1951 = vmatmul.f32.gmra.mxu0 %v773
    %v1952 = vpop.f32.mrf.mxu0
    %v1953 = vadd.f32 %v1861, %v1952
    %1954 = vmatmul.f32.gmra.mxu0 %v782
    %v1955 = vpop.f32.mrf.mxu0
    %v1956 = vadd.f32 %v1864, %v1955
    %1957 = vmatmul.f32.gmra.mxu0 %v791
    %v1958 = vpop.f32.mrf.mxu0
    %v1959 = vadd.f32 %v1867, %v1958
    %1960 = vdwg.mxu0
    %1961 = vmatpush.msra.mxu0 %v1222
    %1962 = vmatpush.msra.mxu0 %v1219
    %1963 = vmatpush.msra.mxu0 %v1216
    %1964 = vmatpush.msra.mxu0 %v1213
    %1965 = vmatpush.msra.mxu0 %v1210
    %1966 = vmatpush.msra.mxu0 %v1207
    %1967 = vmatpush.msra.mxu0 %v1204
    %1968 = vmatpush.msra.mxu0 %v1201
    %1969 = vmatpush.msra.mxu0 %v1198
    %1970 = vmatpush.msra.mxu0 %v1195
    %1971 = vmatpush.msra.mxu0 %v1192
    %1972 = vmatpush.msra.mxu0 %v1189
    %1973 = vmatpush.msra.mxu0 %v1186
    %1974 = vmatpush.msra.mxu0 %v1183
    %1975 = vmatpush.msra.mxu0 %v1180
    %1976 = vmatpush.msra.mxu0 %v1177
    %1977 = vmatmul.f32.gmra.mxu0 %v576
    %v1978 = vpop.f32.mrf.mxu0
    %v1979 = vadd.f32 %v1887, %v1978
    %1980 = vmatmul.f32.gmra.mxu0 %v585
    %v1981 = vpop.f32.mrf.mxu0
    %v1982 = vadd.f32 %v1890, %v1981
    %1983 = vmatmul.f32.gmra.mxu0 %v594
    %v1984 = vpop.f32.mrf.mxu0
    %v1985 = vadd.f32 %v1893, %v1984
    %1986 = vmatmul.f32.gmra.mxu0 %v603
    %v1987 = vpop.f32.mrf.mxu0
    %v1988 = vadd.f32 %v1896, %v1987
    %1989 = vmatmul.f32.gmra.mxu0 %v612
    %v1990 = vpop.f32.mrf.mxu0
    %v1991 = vadd.f32 %v1899, %v1990
    %1992 = vmatmul.f32.gmra.mxu0 %v621
    %v1993 = vpop.f32.mrf.mxu0
    %v1994 = vadd.f32 %v1902, %v1993
    %1995 = vmatmul.f32.gmra.mxu0 %v630
    %v1996 = vpop.f32.mrf.mxu0
    %v1997 = vadd.f32 %v1905, %v1996
    %1998 = vmatmul.f32.gmra.mxu0 %v639
    %v1999 = vpop.f32.mrf.mxu0
    %v2000 = vadd.f32 %v1908, %v1999
    %2001 = vmatmul.f32.gmra.mxu0 %v648
    %v2002 = vpop.f32.mrf.mxu0
    %v2003 = vadd.f32 %v1911, %v2002
    %2004 = vmatmul.f32.gmra.mxu0 %v657
    %v2005 = vpop.f32.mrf.mxu0
    %v2006 = vadd.f32 %v1914, %v2005
    %2007 = vmatmul.f32.gmra.mxu0 %v666
    %v2008 = vpop.f32.mrf.mxu0
    %v2009 = vadd.f32 %v1917, %v2008
    %2010 = vmatmul.f32.gmra.mxu0 %v675
    %v2011 = vpop.f32.mrf.mxu0
    %v2012 = vadd.f32 %v1920, %v2011
    %2013 = vmatmul.f32.gmra.mxu0 %v684
    %v2014 = vpop.f32.mrf.mxu0
    %v2015 = vadd.f32 %v1923, %v2014
    %2016 = vmatmul.f32.gmra.mxu0 %v693
    %v2017 = vpop.f32.mrf.mxu0
    %v2018 = vadd.f32 %v1926, %v2017
    %2019 = vmatmul.f32.gmra.mxu0 %v702
    %v2020 = vpop.f32.mrf.mxu0
    %v2021 = vadd.f32 %v1929, %v2020
    %2022 = vmatmul.f32.gmra.mxu0 %v711
    %v2023 = vpop.f32.mrf.mxu0
    %v2024 = vadd.f32 %v1932, %v2023
    %2025 = vmatmul.f32.gmra.mxu0 %v720
    %v2026 = vpop.f32.mrf.mxu0
    %v2027 = vadd.f32 %v1935, %v2026
    %2028 = vmatmul.f32.gmra.mxu0 %v729
    %v2029 = vpop.f32.mrf.mxu0
    %v2030 = vadd.f32 %v1938, %v2029
    %2031 = vmatmul.f32.gmra.mxu0 %v738
    %v2032 = vpop.f32.mrf.mxu0
    %v2033 = vadd.f32 %v1941, %v2032
    %2034 = vmatmul.f32.gmra.mxu0 %v747
    %v2035 = vpop.f32.mrf.mxu0
    %v2036 = vadd.f32 %v1944, %v2035
    %2037 = vmatmul.f32.gmra.mxu0 %v756
    %v2038 = vpop.f32.mrf.mxu0
    %v2039 = vadd.f32 %v1947, %v2038
    %2040 = vmatmul.f32.gmra.mxu0 %v765
    %v2041 = vpop.f32.mrf.mxu0
    %v2042 = vadd.f32 %v1950, %v2041
    %2043 = vmatmul.f32.gmra.mxu0 %v774
    %v2044 = vpop.f32.mrf.mxu0
    %v2045 = vadd.f32 %v1953, %v2044
    %2046 = vmatmul.f32.gmra.mxu0 %v783
    %v2047 = vpop.f32.mrf.mxu0
    %v2048 = vadd.f32 %v1956, %v2047
    %2049 = vmatmul.f32.gmra.mxu0 %v792
    %v2050 = vpop.f32.mrf.mxu0
    %v2051 = vadd.f32 %v1959, %v2050
    %2052 = vdwg.mxu0
    %2053 = vmatpush.msra.mxu0 %v839
    %2054 = vmatpush.msra.mxu0 %v836
    %2055 = vmatpush.msra.mxu0 %v833
    %2056 = vmatpush.msra.mxu0 %v830
    %2057 = vmatpush.msra.mxu0 %v827
    %2058 = vmatpush.msra.mxu0 %v824
    %2059 = vmatpush.msra.mxu0 %v821
    %2060 = vmatpush.msra.mxu0 %v818
    %2061 = vmatpush.msra.mxu0 %v815
    %2062 = vmatpush.msra.mxu0 %v812
    %2063 = vmatpush.msra.mxu0 %v809
    %2064 = vmatpush.msra.mxu0 %v806
    %2065 = vmatpush.msra.mxu0 %v803
    %2066 = vmatpush.msra.mxu0 %v800
    %2067 = vmatpush.msra.mxu0 %v797
    %2068 = vmatpush.msra.mxu0 %v794
    %2069 = vmatmul.f32.gmra.mxu0 %v568
    %v2070 = vpop.f32.mrf.mxu0
    %v2071 = vadd.f32 0.0, %v2070
    %2072 = vmatmul.f32.gmra.mxu0 %v577
    %v2073 = vpop.f32.mrf.mxu0
    %v2074 = vadd.f32 0.0, %v2073
    %2075 = vmatmul.f32.gmra.mxu0 %v586
    %v2076 = vpop.f32.mrf.mxu0
    %v2077 = vadd.f32 0.0, %v2076
    %2078 = vmatmul.f32.gmra.mxu0 %v595
    %v2079 = vpop.f32.mrf.mxu0
    %v2080 = vadd.f32 0.0, %v2079
    %2081 = vmatmul.f32.gmra.mxu0 %v604
    %v2082 = vpop.f32.mrf.mxu0
    %v2083 = vadd.f32 0.0, %v2082
    %2084 = vmatmul.f32.gmra.mxu0 %v613
    %v2085 = vpop.f32.mrf.mxu0
    %v2086 = vadd.f32 0.0, %v2085
    %2087 = vmatmul.f32.gmra.mxu0 %v622
    %v2088 = vpop.f32.mrf.mxu0
    %v2089 = vadd.f32 0.0, %v2088
    %2090 = vmatmul.f32.gmra.mxu0 %v631
    %v2091 = vpop.f32.mrf.mxu0
    %v2092 = vadd.f32 0.0, %v2091
    %2093 = vmatmul.f32.gmra.mxu0 %v640
    %v2094 = vpop.f32.mrf.mxu0
    %v2095 = vadd.f32 0.0, %v2094
    %2096 = vmatmul.f32.gmra.mxu0 %v649
    %v2097 = vpop.f32.mrf.mxu0
    %v2098 = vadd.f32 0.0, %v2097
    %2099 = vmatmul.f32.gmra.mxu0 %v658
    %v2100 = vpop.f32.mrf.mxu0
    %v2101 = vadd.f32 0.0, %v2100
    %2102 = vmatmul.f32.gmra.mxu0 %v667
    %v2103 = vpop.f32.mrf.mxu0
    %v2104 = vadd.f32 0.0, %v2103
    %2105 = vmatmul.f32.gmra.mxu0 %v676
    %v2106 = vpop.f32.mrf.mxu0
    %v2107 = vadd.f32 0.0, %v2106
    %2108 = vmatmul.f32.gmra.mxu0 %v685
    %v2109 = vpop.f32.mrf.mxu0
    %v2110 = vadd.f32 0.0, %v2109
    %2111 = vmatmul.f32.gmra.mxu0 %v694
    %v2112 = vpop.f32.mrf.mxu0
    %v2113 = vadd.f32 0.0, %v2112
    %2114 = vmatmul.f32.gmra.mxu0 %v703
    %v2115 = vpop.f32.mrf.mxu0
    %v2116 = vadd.f32 0.0, %v2115
    %2117 = vmatmul.f32.gmra.mxu0 %v712
    %v2118 = vpop.f32.mrf.mxu0
    %v2119 = vadd.f32 0.0, %v2118
    %2120 = vmatmul.f32.gmra.mxu0 %v721
    %v2121 = vpop.f32.mrf.mxu0
    %v2122 = vadd.f32 0.0, %v2121
    %2123 = vmatmul.f32.gmra.mxu0 %v730
    %v2124 = vpop.f32.mrf.mxu0
    %v2125 = vadd.f32 0.0, %v2124
    %2126 = vmatmul.f32.gmra.mxu0 %v739
    %v2127 = vpop.f32.mrf.mxu0
    %v2128 = vadd.f32 0.0, %v2127
    %2129 = vmatmul.f32.gmra.mxu0 %v748
    %v2130 = vpop.f32.mrf.mxu0
    %v2131 = vadd.f32 0.0, %v2130
    %2132 = vmatmul.f32.gmra.mxu0 %v757
    %v2133 = vpop.f32.mrf.mxu0
    %v2134 = vadd.f32 0.0, %v2133
    %2135 = vmatmul.f32.gmra.mxu0 %v766
    %v2136 = vpop.f32.mrf.mxu0
    %v2137 = vadd.f32 0.0, %v2136
    %2138 = vmatmul.f32.gmra.mxu0 %v775
    %v2139 = vpop.f32.mrf.mxu0
    %v2140 = vadd.f32 0.0, %v2139
    %2141 = vmatmul.f32.gmra.mxu0 %v784
    %v2142 = vpop.f32.mrf.mxu0
    %v2143 = vadd.f32 0.0, %v2142
    %2144 = vdwg.mxu0
    %2145 = vmatpush.msra.mxu0 %v887
    %2146 = vmatpush.msra.mxu0 %v884
    %2147 = vmatpush.msra.mxu0 %v881
    %2148 = vmatpush.msra.mxu0 %v878
    %2149 = vmatpush.msra.mxu0 %v875
    %2150 = vmatpush.msra.mxu0 %v872
    %2151 = vmatpush.msra.mxu0 %v869
    %2152 = vmatpush.msra.mxu0 %v866
    %2153 = vmatpush.msra.mxu0 %v863
    %2154 = vmatpush.msra.mxu0 %v860
    %2155 = vmatpush.msra.mxu0 %v857
    %2156 = vmatpush.msra.mxu0 %v854
    %2157 = vmatpush.msra.mxu0 %v851
    %2158 = vmatpush.msra.mxu0 %v848
    %2159 = vmatpush.msra.mxu0 %v845
    %2160 = vmatpush.msra.mxu0 %v842
    %2161 = vmatmul.f32.gmra.mxu0 %v569
    %v2162 = vpop.f32.mrf.mxu0
    %v2163 = vadd.f32 %v2071, %v2162
    %2164 = vmatmul.f32.gmra.mxu0 %v578
    %v2165 = vpop.f32.mrf.mxu0
    %v2166 = vadd.f32 %v2074, %v2165
    %2167 = vmatmul.f32.gmra.mxu0 %v587
    %v2168 = vpop.f32.mrf.mxu0
    %v2169 = vadd.f32 %v2077, %v2168
    %2170 = vmatmul.f32.gmra.mxu0 %v596
    %v2171 = vpop.f32.mrf.mxu0
    %v2172 = vadd.f32 %v2080, %v2171
    %2173 = vmatmul.f32.gmra.mxu0 %v605
    %v2174 = vpop.f32.mrf.mxu0
    %v2175 = vadd.f32 %v2083, %v2174
    %2176 = vmatmul.f32.gmra.mxu0 %v614
    %v2177 = vpop.f32.mrf.mxu0
    %v2178 = vadd.f32 %v2086, %v2177
    %2179 = vmatmul.f32.gmra.mxu0 %v623
    %v2180 = vpop.f32.mrf.mxu0
    %v2181 = vadd.f32 %v2089, %v2180
    %2182 = vmatmul.f32.gmra.mxu0 %v632
    %v2183 = vpop.f32.mrf.mxu0
    %v2184 = vadd.f32 %v2092, %v2183
    %2185 = vmatmul.f32.gmra.mxu0 %v641
    %v2186 = vpop.f32.mrf.mxu0
    %v2187 = vadd.f32 %v2095, %v2186
    %2188 = vmatmul.f32.gmra.mxu0 %v650
    %v2189 = vpop.f32.mrf.mxu0
    %v2190 = vadd.f32 %v2098, %v2189
    %2191 = vmatmul.f32.gmra.mxu0 %v659
    %v2192 = vpop.f32.mrf.mxu0
    %v2193 = vadd.f32 %v2101, %v2192
    %2194 = vmatmul.f32.gmra.mxu0 %v668
    %v2195 = vpop.f32.mrf.mxu0
    %v2196 = vadd.f32 %v2104, %v2195
    %2197 = vmatmul.f32.gmra.mxu0 %v677
    %v2198 = vpop.f32.mrf.mxu0
    %v2199 = vadd.f32 %v2107, %v2198
    %2200 = vmatmul.f32.gmra.mxu0 %v686
    %v2201 = vpop.f32.mrf.mxu0
    %v2202 = vadd.f32 %v2110, %v2201
    %2203 = vmatmul.f32.gmra.mxu0 %v695
    %v2204 = vpop.f32.mrf.mxu0
    %v2205 = vadd.f32 %v2113, %v2204
    %2206 = vmatmul.f32.gmra.mxu0 %v704
    %v2207 = vpop.f32.mrf.mxu0
    %v2208 = vadd.f32 %v2116, %v2207
    %2209 = vmatmul.f32.gmra.mxu0 %v713
    %v2210 = vpop.f32.mrf.mxu0
    %v2211 = vadd.f32 %v2119, %v2210
    %2212 = vmatmul.f32.gmra.mxu0 %v722
    %v2213 = vpop.f32.mrf.mxu0
    %v2214 = vadd.f32 %v2122, %v2213
    %2215 = vmatmul.f32.gmra.mxu0 %v731
    %v2216 = vpop.f32.mrf.mxu0
    %v2217 = vadd.f32 %v2125, %v2216
    %2218 = vmatmul.f32.gmra.mxu0 %v740
    %v2219 = vpop.f32.mrf.mxu0
    %v2220 = vadd.f32 %v2128, %v2219
    %2221 = vmatmul.f32.gmra.mxu0 %v749
    %v2222 = vpop.f32.mrf.mxu0
    %v2223 = vadd.f32 %v2131, %v2222
    %2224 = vmatmul.f32.gmra.mxu0 %v758
    %v2225 = vpop.f32.mrf.mxu0
    %v2226 = vadd.f32 %v2134, %v2225
    %2227 = vmatmul.f32.gmra.mxu0 %v767
    %v2228 = vpop.f32.mrf.mxu0
    %v2229 = vadd.f32 %v2137, %v2228
    %2230 = vmatmul.f32.gmra.mxu0 %v776
    %v2231 = vpop.f32.mrf.mxu0
    %v2232 = vadd.f32 %v2140, %v2231
    %2233 = vmatmul.f32.gmra.mxu0 %v785
    %v2234 = vpop.f32.mrf.mxu0
    %v2235 = vadd.f32 %v2143, %v2234
    %2236 = vdwg.mxu0
    %2237 = vmatpush.msra.mxu0 %v935
    %2238 = vmatpush.msra.mxu0 %v932
    %2239 = vmatpush.msra.mxu0 %v929
    %2240 = vmatpush.msra.mxu0 %v926
    %2241 = vmatpush.msra.mxu0 %v923
    %2242 = vmatpush.msra.mxu0 %v920
    %2243 = vmatpush.msra.mxu0 %v917
    %2244 = vmatpush.msra.mxu0 %v914
    %2245 = vmatpush.msra.mxu0 %v911
    %2246 = vmatpush.msra.mxu0 %v908
    %2247 = vmatpush.msra.mxu0 %v905
    %2248 = vmatpush.msra.mxu0 %v902
    %2249 = vmatpush.msra.mxu0 %v899
    %2250 = vmatpush.msra.mxu0 %v896
    %2251 = vmatpush.msra.mxu0 %v893
    %2252 = vmatpush.msra.mxu0 %v890
    %2253 = vmatmul.f32.gmra.mxu0 %v570
    %v2254 = vpop.f32.mrf.mxu0
    %v2255 = vadd.f32 %v2163, %v2254
    %2256 = vmatmul.f32.gmra.mxu0 %v579
    %v2257 = vpop.f32.mrf.mxu0
    %v2258 = vadd.f32 %v2166, %v2257
    %2259 = vmatmul.f32.gmra.mxu0 %v588
    %v2260 = vpop.f32.mrf.mxu0
    %v2261 = vadd.f32 %v2169, %v2260
    %2262 = vmatmul.f32.gmra.mxu0 %v597
    %v2263 = vpop.f32.mrf.mxu0
    %v2264 = vadd.f32 %v2172, %v2263
    %2265 = vmatmul.f32.gmra.mxu0 %v606
    %v2266 = vpop.f32.mrf.mxu0
    %v2267 = vadd.f32 %v2175, %v2266
    %2268 = vmatmul.f32.gmra.mxu0 %v615
    %v2269 = vpop.f32.mrf.mxu0
    %v2270 = vadd.f32 %v2178, %v2269
    %2271 = vmatmul.f32.gmra.mxu0 %v624
    %v2272 = vpop.f32.mrf.mxu0
    %v2273 = vadd.f32 %v2181, %v2272
    %2274 = vmatmul.f32.gmra.mxu0 %v633
    %v2275 = vpop.f32.mrf.mxu0
    %v2276 = vadd.f32 %v2184, %v2275
    %2277 = vmatmul.f32.gmra.mxu0 %v642
    %v2278 = vpop.f32.mrf.mxu0
    %v2279 = vadd.f32 %v2187, %v2278
    %2280 = vmatmul.f32.gmra.mxu0 %v651
    %v2281 = vpop.f32.mrf.mxu0
    %v2282 = vadd.f32 %v2190, %v2281
    %2283 = vmatmul.f32.gmra.mxu0 %v660
    %v2284 = vpop.f32.mrf.mxu0
    %v2285 = vadd.f32 %v2193, %v2284
    %2286 = vmatmul.f32.gmra.mxu0 %v669
    %v2287 = vpop.f32.mrf.mxu0
    %v2288 = vadd.f32 %v2196, %v2287
    %2289 = vmatmul.f32.gmra.mxu0 %v678
    %v2290 = vpop.f32.mrf.mxu0
    %v2291 = vadd.f32 %v2199, %v2290
    %2292 = vmatmul.f32.gmra.mxu0 %v687
    %v2293 = vpop.f32.mrf.mxu0
    %v2294 = vadd.f32 %v2202, %v2293
    %2295 = vmatmul.f32.gmra.mxu0 %v696
    %v2296 = vpop.f32.mrf.mxu0
    %v2297 = vadd.f32 %v2205, %v2296
    %2298 = vmatmul.f32.gmra.mxu0 %v705
    %v2299 = vpop.f32.mrf.mxu0
    %v2300 = vadd.f32 %v2208, %v2299
    %2301 = vmatmul.f32.gmra.mxu0 %v714
    %v2302 = vpop.f32.mrf.mxu0
    %v2303 = vadd.f32 %v2211, %v2302
    %2304 = vmatmul.f32.gmra.mxu0 %v723
    %v2305 = vpop.f32.mrf.mxu0
    %v2306 = vadd.f32 %v2214, %v2305
    %2307 = vmatmul.f32.gmra.mxu0 %v732
    %v2308 = vpop.f32.mrf.mxu0
    %v2309 = vadd.f32 %v2217, %v2308
    %2310 = vmatmul.f32.gmra.mxu0 %v741
    %v2311 = vpop.f32.mrf.mxu0
    %v2312 = vadd.f32 %v2220, %v2311
    %2313 = vmatmul.f32.gmra.mxu0 %v750
    %v2314 = vpop.f32.mrf.mxu0
    %v2315 = vadd.f32 %v2223, %v2314
    %2316 = vmatmul.f32.gmra.mxu0 %v759
    %v2317 = vpop.f32.mrf.mxu0
    %v2318 = vadd.f32 %v2226, %v2317
    %2319 = vmatmul.f32.gmra.mxu0 %v768
    %v2320 = vpop.f32.mrf.mxu0
    %v2321 = vadd.f32 %v2229, %v2320
    %2322 = vmatmul.f32.gmra.mxu0 %v777
    %v2323 = vpop.f32.mrf.mxu0
    %v2324 = vadd.f32 %v2232, %v2323
    %2325 = vmatmul.f32.gmra.mxu0 %v786
    %v2326 = vpop.f32.mrf.mxu0
    %v2327 = vadd.f32 %v2235, %v2326
    %2328 = vdwg.mxu0
    %2329 = vmatpush.msra.mxu0 %v983
    %2330 = vmatpush.msra.mxu0 %v980
    %2331 = vmatpush.msra.mxu0 %v977
    %2332 = vmatpush.msra.mxu0 %v974
    %2333 = vmatpush.msra.mxu0 %v971
    %2334 = vmatpush.msra.mxu0 %v968
    %2335 = vmatpush.msra.mxu0 %v965
    %2336 = vmatpush.msra.mxu0 %v962
    %2337 = vmatpush.msra.mxu0 %v959
    %2338 = vmatpush.msra.mxu0 %v956
    %2339 = vmatpush.msra.mxu0 %v953
    %2340 = vmatpush.msra.mxu0 %v950
    %2341 = vmatpush.msra.mxu0 %v947
    %2342 = vmatpush.msra.mxu0 %v944
    %2343 = vmatpush.msra.mxu0 %v941
    %2344 = vmatpush.msra.mxu0 %v938
    %2345 = vmatmul.f32.gmra.mxu0 %v571
    %v2346 = vpop.f32.mrf.mxu0
    %v2347 = vadd.f32 %v2255, %v2346
    %2348 = vmatmul.f32.gmra.mxu0 %v580
    %v2349 = vpop.f32.mrf.mxu0
    %v2350 = vadd.f32 %v2258, %v2349
    %2351 = vmatmul.f32.gmra.mxu0 %v589
    %v2352 = vpop.f32.mrf.mxu0
    %v2353 = vadd.f32 %v2261, %v2352
    %2354 = vmatmul.f32.gmra.mxu0 %v598
    %v2355 = vpop.f32.mrf.mxu0
    %v2356 = vadd.f32 %v2264, %v2355
    %2357 = vmatmul.f32.gmra.mxu0 %v607
    %v2358 = vpop.f32.mrf.mxu0
    %v2359 = vadd.f32 %v2267, %v2358
    %2360 = vmatmul.f32.gmra.mxu0 %v616
    %v2361 = vpop.f32.mrf.mxu0
    %v2362 = vadd.f32 %v2270, %v2361
    %2363 = vmatmul.f32.gmra.mxu0 %v625
    %v2364 = vpop.f32.mrf.mxu0
    %v2365 = vadd.f32 %v2273, %v2364
    %2366 = vmatmul.f32.gmra.mxu0 %v634
    %v2367 = vpop.f32.mrf.mxu0
    %v2368 = vadd.f32 %v2276, %v2367
    %2369 = vmatmul.f32.gmra.mxu0 %v643
    %v2370 = vpop.f32.mrf.mxu0
    %v2371 = vadd.f32 %v2279, %v2370
    %2372 = vmatmul.f32.gmra.mxu0 %v652
    %v2373 = vpop.f32.mrf.mxu0
    %v2374 = vadd.f32 %v2282, %v2373
    %2375 = vmatmul.f32.gmra.mxu0 %v661
    %v2376 = vpop.f32.mrf.mxu0
    %v2377 = vadd.f32 %v2285, %v2376
    %2378 = vmatmul.f32.gmra.mxu0 %v670
    %v2379 = vpop.f32.mrf.mxu0
    %v2380 = vadd.f32 %v2288, %v2379
    %2381 = vmatmul.f32.gmra.mxu0 %v679
    %v2382 = vpop.f32.mrf.mxu0
    %v2383 = vadd.f32 %v2291, %v2382
    %2384 = vmatmul.f32.gmra.mxu0 %v688
    %v2385 = vpop.f32.mrf.mxu0
    %v2386 = vadd.f32 %v2294, %v2385
    %2387 = vmatmul.f32.gmra.mxu0 %v697
    %v2388 = vpop.f32.mrf.mxu0
    %v2389 = vadd.f32 %v2297, %v2388
    %2390 = vmatmul.f32.gmra.mxu0 %v706
    %v2391 = vpop.f32.mrf.mxu0
    %v2392 = vadd.f32 %v2300, %v2391
    %2393 = vmatmul.f32.gmra.mxu0 %v715
    %v2394 = vpop.f32.mrf.mxu0
    %v2395 = vadd.f32 %v2303, %v2394
    %2396 = vmatmul.f32.gmra.mxu0 %v724
    %v2397 = vpop.f32.mrf.mxu0
    %v2398 = vadd.f32 %v2306, %v2397
    %2399 = vmatmul.f32.gmra.mxu0 %v733
    %v2400 = vpop.f32.mrf.mxu0
    %v2401 = vadd.f32 %v2309, %v2400
    %2402 = vmatmul.f32.gmra.mxu0 %v742
    %v2403 = vpop.f32.mrf.mxu0
    %v2404 = vadd.f32 %v2312, %v2403
    %2405 = vmatmul.f32.gmra.mxu0 %v751
    %v2406 = vpop.f32.mrf.mxu0
    %v2407 = vadd.f32 %v2315, %v2406
    %2408 = vmatmul.f32.gmra.mxu0 %v760
    %v2409 = vpop.f32.mrf.mxu0
    %v2410 = vadd.f32 %v2318, %v2409
    %2411 = vmatmul.f32.gmra.mxu0 %v769
    %v2412 = vpop.f32.mrf.mxu0
    %v2413 = vadd.f32 %v2321, %v2412
    %2414 = vmatmul.f32.gmra.mxu0 %v778
    %v2415 = vpop.f32.mrf.mxu0
    %v2416 = vadd.f32 %v2324, %v2415
    %2417 = vmatmul.f32.gmra.mxu0 %v787
    %v2418 = vpop.f32.mrf.mxu0
    %v2419 = vadd.f32 %v2327, %v2418
    %2420 = vdwg.mxu0
    %2421 = vmatpush.msra.mxu0 %v1031
    %2422 = vmatpush.msra.mxu0 %v1028
    %2423 = vmatpush.msra.mxu0 %v1025
    %2424 = vmatpush.msra.mxu0 %v1022
    %2425 = vmatpush.msra.mxu0 %v1019
    %2426 = vmatpush.msra.mxu0 %v1016
    %2427 = vmatpush.msra.mxu0 %v1013
    %2428 = vmatpush.msra.mxu0 %v1010
    %2429 = vmatpush.msra.mxu0 %v1007
    %2430 = vmatpush.msra.mxu0 %v1004
    %2431 = vmatpush.msra.mxu0 %v1001
    %2432 = vmatpush.msra.mxu0 %v998
    %2433 = vmatpush.msra.mxu0 %v995
    %2434 = vmatpush.msra.mxu0 %v992
    %2435 = vmatpush.msra.mxu0 %v989
    %2436 = vmatpush.msra.mxu0 %v986
    %2437 = vmatmul.f32.gmra.mxu0 %v572
    %v2438 = vpop.f32.mrf.mxu0
    %v2439 = vadd.f32 %v2347, %v2438
    %2440 = vmatmul.f32.gmra.mxu0 %v581
    %v2441 = vpop.f32.mrf.mxu0
    %v2442 = vadd.f32 %v2350, %v2441
    %2443 = vmatmul.f32.gmra.mxu0 %v590
    %v2444 = vpop.f32.mrf.mxu0
    %v2445 = vadd.f32 %v2353, %v2444
    %2446 = vmatmul.f32.gmra.mxu0 %v599
    %v2447 = vpop.f32.mrf.mxu0
    %v2448 = vadd.f32 %v2356, %v2447
    %2449 = vmatmul.f32.gmra.mxu0 %v608
    %v2450 = vpop.f32.mrf.mxu0
    %v2451 = vadd.f32 %v2359, %v2450
    %2452 = vmatmul.f32.gmra.mxu0 %v617
    %v2453 = vpop.f32.mrf.mxu0
    %v2454 = vadd.f32 %v2362, %v2453
    %2455 = vmatmul.f32.gmra.mxu0 %v626
    %v2456 = vpop.f32.mrf.mxu0
    %v2457 = vadd.f32 %v2365, %v2456
    %2458 = vmatmul.f32.gmra.mxu0 %v635
    %v2459 = vpop.f32.mrf.mxu0
    %v2460 = vadd.f32 %v2368, %v2459
    %2461 = vmatmul.f32.gmra.mxu0 %v644
    %v2462 = vpop.f32.mrf.mxu0
    %v2463 = vadd.f32 %v2371, %v2462
    %2464 = vmatmul.f32.gmra.mxu0 %v653
    %v2465 = vpop.f32.mrf.mxu0
    %v2466 = vadd.f32 %v2374, %v2465
    %2467 = vmatmul.f32.gmra.mxu0 %v662
    %v2468 = vpop.f32.mrf.mxu0
    %v2469 = vadd.f32 %v2377, %v2468
    %2470 = vmatmul.f32.gmra.mxu0 %v671
    %v2471 = vpop.f32.mrf.mxu0
    %v2472 = vadd.f32 %v2380, %v2471
    %2473 = vmatmul.f32.gmra.mxu0 %v680
    %v2474 = vpop.f32.mrf.mxu0
    %v2475 = vadd.f32 %v2383, %v2474
    %2476 = vmatmul.f32.gmra.mxu0 %v689
    %v2477 = vpop.f32.mrf.mxu0
    %v2478 = vadd.f32 %v2386, %v2477
    %2479 = vmatmul.f32.gmra.mxu0 %v698
    %v2480 = vpop.f32.mrf.mxu0
    %v2481 = vadd.f32 %v2389, %v2480
    %2482 = vmatmul.f32.gmra.mxu0 %v707
    %v2483 = vpop.f32.mrf.mxu0
    %v2484 = vadd.f32 %v2392, %v2483
    %2485 = vmatmul.f32.gmra.mxu0 %v716
    %v2486 = vpop.f32.mrf.mxu0
    %v2487 = vadd.f32 %v2395, %v2486
    %2488 = vmatmul.f32.gmra.mxu0 %v725
    %v2489 = vpop.f32.mrf.mxu0
    %v2490 = vadd.f32 %v2398, %v2489
    %2491 = vmatmul.f32.gmra.mxu0 %v734
    %v2492 = vpop.f32.mrf.mxu0
    %v2493 = vadd.f32 %v2401, %v2492
    %2494 = vmatmul.f32.gmra.mxu0 %v743
    %v2495 = vpop.f32.mrf.mxu0
    %v2496 = vadd.f32 %v2404, %v2495
    %2497 = vmatmul.f32.gmra.mxu0 %v752
    %v2498 = vpop.f32.mrf.mxu0
    %v2499 = vadd.f32 %v2407, %v2498
    %2500 = vmatmul.f32.gmra.mxu0 %v761
    %v2501 = vpop.f32.mrf.mxu0
    %v2502 = vadd.f32 %v2410, %v2501
    %2503 = vmatmul.f32.gmra.mxu0 %v770
    %v2504 = vpop.f32.mrf.mxu0
    %v2505 = vadd.f32 %v2413, %v2504
    %2506 = vmatmul.f32.gmra.mxu0 %v779
    %v2507 = vpop.f32.mrf.mxu0
    %v2508 = vadd.f32 %v2416, %v2507
    %2509 = vmatmul.f32.gmra.mxu0 %v788
    %v2510 = vpop.f32.mrf.mxu0
    %v2511 = vadd.f32 %v2419, %v2510
    %2512 = vdwg.mxu0
    %2513 = vmatpush.msra.mxu0 %v1079
    %2514 = vmatpush.msra.mxu0 %v1076
    %2515 = vmatpush.msra.mxu0 %v1073
    %2516 = vmatpush.msra.mxu0 %v1070
    %2517 = vmatpush.msra.mxu0 %v1067
    %2518 = vmatpush.msra.mxu0 %v1064
    %2519 = vmatpush.msra.mxu0 %v1061
    %2520 = vmatpush.msra.mxu0 %v1058
    %2521 = vmatpush.msra.mxu0 %v1055
    %2522 = vmatpush.msra.mxu0 %v1052
    %2523 = vmatpush.msra.mxu0 %v1049
    %2524 = vmatpush.msra.mxu0 %v1046
    %2525 = vmatpush.msra.mxu0 %v1043
    %2526 = vmatpush.msra.mxu0 %v1040
    %2527 = vmatpush.msra.mxu0 %v1037
    %2528 = vmatpush.msra.mxu0 %v1034
    %2529 = vmatmul.f32.gmra.mxu0 %v573
    %v2530 = vpop.f32.mrf.mxu0
    %v2531 = vadd.f32 %v2439, %v2530
    %2532 = vmatmul.f32.gmra.mxu0 %v582
    %v2533 = vpop.f32.mrf.mxu0
    %v2534 = vadd.f32 %v2442, %v2533
    %2535 = vmatmul.f32.gmra.mxu0 %v591
    %v2536 = vpop.f32.mrf.mxu0
    %v2537 = vadd.f32 %v2445, %v2536
    %2538 = vmatmul.f32.gmra.mxu0 %v600
    %v2539 = vpop.f32.mrf.mxu0
    %v2540 = vadd.f32 %v2448, %v2539
    %2541 = vmatmul.f32.gmra.mxu0 %v609
    %v2542 = vpop.f32.mrf.mxu0
    %v2543 = vadd.f32 %v2451, %v2542
    %2544 = vmatmul.f32.gmra.mxu0 %v618
    %v2545 = vpop.f32.mrf.mxu0
    %v2546 = vadd.f32 %v2454, %v2545
    %2547 = vmatmul.f32.gmra.mxu0 %v627
    %v2548 = vpop.f32.mrf.mxu0
    %v2549 = vadd.f32 %v2457, %v2548
    %2550 = vmatmul.f32.gmra.mxu0 %v636
    %v2551 = vpop.f32.mrf.mxu0
    %v2552 = vadd.f32 %v2460, %v2551
    %2553 = vmatmul.f32.gmra.mxu0 %v645
    %v2554 = vpop.f32.mrf.mxu0
    %v2555 = vadd.f32 %v2463, %v2554
    %2556 = vmatmul.f32.gmra.mxu0 %v654
    %v2557 = vpop.f32.mrf.mxu0
    %v2558 = vadd.f32 %v2466, %v2557
    %2559 = vmatmul.f32.gmra.mxu0 %v663
    %v2560 = vpop.f32.mrf.mxu0
    %v2561 = vadd.f32 %v2469, %v2560
    %2562 = vmatmul.f32.gmra.mxu0 %v672
    %v2563 = vpop.f32.mrf.mxu0
    %v2564 = vadd.f32 %v2472, %v2563
    %2565 = vmatmul.f32.gmra.mxu0 %v681
    %v2566 = vpop.f32.mrf.mxu0
    %v2567 = vadd.f32 %v2475, %v2566
    %2568 = vmatmul.f32.gmra.mxu0 %v690
    %v2569 = vpop.f32.mrf.mxu0
    %v2570 = vadd.f32 %v2478, %v2569
    %2571 = vmatmul.f32.gmra.mxu0 %v699
    %v2572 = vpop.f32.mrf.mxu0
    %v2573 = vadd.f32 %v2481, %v2572
    %2574 = vmatmul.f32.gmra.mxu0 %v708
    %v2575 = vpop.f32.mrf.mxu0
    %v2576 = vadd.f32 %v2484, %v2575
    %2577 = vmatmul.f32.gmra.mxu0 %v717
    %v2578 = vpop.f32.mrf.mxu0
    %v2579 = vadd.f32 %v2487, %v2578
    %2580 = vmatmul.f32.gmra.mxu0 %v726
    %v2581 = vpop.f32.mrf.mxu0
    %v2582 = vadd.f32 %v2490, %v2581
    %2583 = vmatmul.f32.gmra.mxu0 %v735
    %v2584 = vpop.f32.mrf.mxu0
    %v2585 = vadd.f32 %v2493, %v2584
    %2586 = vmatmul.f32.gmra.mxu0 %v744
    %v2587 = vpop.f32.mrf.mxu0
    %v2588 = vadd.f32 %v2496, %v2587
    %2589 = vmatmul.f32.gmra.mxu0 %v753
    %v2590 = vpop.f32.mrf.mxu0
    %v2591 = vadd.f32 %v2499, %v2590
    %2592 = vmatmul.f32.gmra.mxu0 %v762
    %v2593 = vpop.f32.mrf.mxu0
    %v2594 = vadd.f32 %v2502, %v2593
    %2595 = vmatmul.f32.gmra.mxu0 %v771
    %v2596 = vpop.f32.mrf.mxu0
    %v2597 = vadd.f32 %v2505, %v2596
    %2598 = vmatmul.f32.gmra.mxu0 %v780
    %v2599 = vpop.f32.mrf.mxu0
    %v2600 = vadd.f32 %v2508, %v2599
    %2601 = vmatmul.f32.gmra.mxu0 %v789
    %v2602 = vpop.f32.mrf.mxu0
    %v2603 = vadd.f32 %v2511, %v2602
    %2604 = vdwg.mxu0
    %2605 = vmatpush.msra.mxu0 %v1127
    %2606 = vmatpush.msra.mxu0 %v1124
    %2607 = vmatpush.msra.mxu0 %v1121
    %2608 = vmatpush.msra.mxu0 %v1118
    %2609 = vmatpush.msra.mxu0 %v1115
    %2610 = vmatpush.msra.mxu0 %v1112
    %2611 = vmatpush.msra.mxu0 %v1109
    %2612 = vmatpush.msra.mxu0 %v1106
    %2613 = vmatpush.msra.mxu0 %v1103
    %2614 = vmatpush.msra.mxu0 %v1100
    %2615 = vmatpush.msra.mxu0 %v1097
    %2616 = vmatpush.msra.mxu0 %v1094
    %2617 = vmatpush.msra.mxu0 %v1091
    %2618 = vmatpush.msra.mxu0 %v1088
    %2619 = vmatpush.msra.mxu0 %v1085
    %2620 = vmatpush.msra.mxu0 %v1082
    %2621 = vmatmul.f32.gmra.mxu0 %v574
    %v2622 = vpop.f32.mrf.mxu0
    %v2623 = vadd.f32 %v2531, %v2622
    %2624 = vmatmul.f32.gmra.mxu0 %v583
    %v2625 = vpop.f32.mrf.mxu0
    %v2626 = vadd.f32 %v2534, %v2625
    %2627 = vmatmul.f32.gmra.mxu0 %v592
    %v2628 = vpop.f32.mrf.mxu0
    %v2629 = vadd.f32 %v2537, %v2628
    %2630 = vmatmul.f32.gmra.mxu0 %v601
    %v2631 = vpop.f32.mrf.mxu0
    %v2632 = vadd.f32 %v2540, %v2631
    %2633 = vmatmul.f32.gmra.mxu0 %v610
    %v2634 = vpop.f32.mrf.mxu0
    %v2635 = vadd.f32 %v2543, %v2634
    %2636 = vmatmul.f32.gmra.mxu0 %v619
    %v2637 = vpop.f32.mrf.mxu0
    %v2638 = vadd.f32 %v2546, %v2637
    %2639 = vmatmul.f32.gmra.mxu0 %v628
    %v2640 = vpop.f32.mrf.mxu0
    %v2641 = vadd.f32 %v2549, %v2640
    %2642 = vmatmul.f32.gmra.mxu0 %v637
    %v2643 = vpop.f32.mrf.mxu0
    %v2644 = vadd.f32 %v2552, %v2643
    %2645 = vmatmul.f32.gmra.mxu0 %v646
    %v2646 = vpop.f32.mrf.mxu0
    %v2647 = vadd.f32 %v2555, %v2646
    %2648 = vmatmul.f32.gmra.mxu0 %v655
    %v2649 = vpop.f32.mrf.mxu0
    %v2650 = vadd.f32 %v2558, %v2649
    %2651 = vmatmul.f32.gmra.mxu0 %v664
    %v2652 = vpop.f32.mrf.mxu0
    %v2653 = vadd.f32 %v2561, %v2652
    %2654 = vmatmul.f32.gmra.mxu0 %v673
    %v2655 = vpop.f32.mrf.mxu0
    %v2656 = vadd.f32 %v2564, %v2655
    %2657 = vmatmul.f32.gmra.mxu0 %v682
    %v2658 = vpop.f32.mrf.mxu0
    %v2659 = vadd.f32 %v2567, %v2658
    %2660 = vmatmul.f32.gmra.mxu0 %v691
    %v2661 = vpop.f32.mrf.mxu0
    %v2662 = vadd.f32 %v2570, %v2661
    %2663 = vmatmul.f32.gmra.mxu0 %v700
    %v2664 = vpop.f32.mrf.mxu0
    %v2665 = vadd.f32 %v2573, %v2664
    %2666 = vmatmul.f32.gmra.mxu0 %v709
    %v2667 = vpop.f32.mrf.mxu0
    %v2668 = vadd.f32 %v2576, %v2667
    %2669 = vmatmul.f32.gmra.mxu0 %v718
    %v2670 = vpop.f32.mrf.mxu0
    %v2671 = vadd.f32 %v2579, %v2670
    %2672 = vmatmul.f32.gmra.mxu0 %v727
    %v2673 = vpop.f32.mrf.mxu0
    %v2674 = vadd.f32 %v2582, %v2673
    %2675 = vmatmul.f32.gmra.mxu0 %v736
    %v2676 = vpop.f32.mrf.mxu0
    %v2677 = vadd.f32 %v2585, %v2676
    %2678 = vmatmul.f32.gmra.mxu0 %v745
    %v2679 = vpop.f32.mrf.mxu0
    %v2680 = vadd.f32 %v2588, %v2679
    %2681 = vmatmul.f32.gmra.mxu0 %v754
    %v2682 = vpop.f32.mrf.mxu0
    %v2683 = vadd.f32 %v2591, %v2682
    %2684 = vmatmul.f32.gmra.mxu0 %v763
    %v2685 = vpop.f32.mrf.mxu0
    %v2686 = vadd.f32 %v2594, %v2685
    %2687 = vmatmul.f32.gmra.mxu0 %v772
    %v2688 = vpop.f32.mrf.mxu0
    %v2689 = vadd.f32 %v2597, %v2688
    %2690 = vmatmul.f32.gmra.mxu0 %v781
    %v2691 = vpop.f32.mrf.mxu0
    %v2692 = vadd.f32 %v2600, %v2691
    %2693 = vmatmul.f32.gmra.mxu0 %v790
    %v2694 = vpop.f32.mrf.mxu0
    %v2695 = vadd.f32 %v2603, %v2694
    %2696 = vdwg.mxu0
    %2697 = vmatpush.msra.mxu0 %v1175
    %2698 = vmatpush.msra.mxu0 %v1172
    %2699 = vmatpush.msra.mxu0 %v1169
    %2700 = vmatpush.msra.mxu0 %v1166
    %2701 = vmatpush.msra.mxu0 %v1163
    %2702 = vmatpush.msra.mxu0 %v1160
    %2703 = vmatpush.msra.mxu0 %v1157
    %2704 = vmatpush.msra.mxu0 %v1154
    %2705 = vmatpush.msra.mxu0 %v1151
    %2706 = vmatpush.msra.mxu0 %v1148
    %2707 = vmatpush.msra.mxu0 %v1145
    %2708 = vmatpush.msra.mxu0 %v1142
    %2709 = vmatpush.msra.mxu0 %v1139
    %2710 = vmatpush.msra.mxu0 %v1136
    %2711 = vmatpush.msra.mxu0 %v1133
    %2712 = vmatpush.msra.mxu0 %v1130
    %2713 = vmatmul.f32.gmra.mxu0 %v575
    %v2714 = vpop.f32.mrf.mxu0
    %v2715 = vadd.f32 %v2623, %v2714
    %2716 = vmatmul.f32.gmra.mxu0 %v584
    %v2717 = vpop.f32.mrf.mxu0
    %v2718 = vadd.f32 %v2626, %v2717
    %2719 = vmatmul.f32.gmra.mxu0 %v593
    %v2720 = vpop.f32.mrf.mxu0
    %v2721 = vadd.f32 %v2629, %v2720
    %2722 = vmatmul.f32.gmra.mxu0 %v602
    %v2723 = vpop.f32.mrf.mxu0
    %v2724 = vadd.f32 %v2632, %v2723
    %2725 = vmatmul.f32.gmra.mxu0 %v611
    %v2726 = vpop.f32.mrf.mxu0
    %v2727 = vadd.f32 %v2635, %v2726
    %2728 = vmatmul.f32.gmra.mxu0 %v620
    %v2729 = vpop.f32.mrf.mxu0
    %v2730 = vadd.f32 %v2638, %v2729
    %2731 = vmatmul.f32.gmra.mxu0 %v629
    %v2732 = vpop.f32.mrf.mxu0
    %v2733 = vadd.f32 %v2641, %v2732
    %2734 = vmatmul.f32.gmra.mxu0 %v638
    %v2735 = vpop.f32.mrf.mxu0
    %v2736 = vadd.f32 %v2644, %v2735
    %2737 = vmatmul.f32.gmra.mxu0 %v647
    %v2738 = vpop.f32.mrf.mxu0
    %v2739 = vadd.f32 %v2647, %v2738
    %2740 = vmatmul.f32.gmra.mxu0 %v656
    %v2741 = vpop.f32.mrf.mxu0
    %v2742 = vadd.f32 %v2650, %v2741
    %2743 = vmatmul.f32.gmra.mxu0 %v665
    %v2744 = vpop.f32.mrf.mxu0
    %v2745 = vadd.f32 %v2653, %v2744
    %2746 = vmatmul.f32.gmra.mxu0 %v674
    %v2747 = vpop.f32.mrf.mxu0
    %v2748 = vadd.f32 %v2656, %v2747
    %2749 = vmatmul.f32.gmra.mxu0 %v683
    %v2750 = vpop.f32.mrf.mxu0
    %v2751 = vadd.f32 %v2659, %v2750
    %2752 = vmatmul.f32.gmra.mxu0 %v692
    %v2753 = vpop.f32.mrf.mxu0
    %v2754 = vadd.f32 %v2662, %v2753
    %2755 = vmatmul.f32.gmra.mxu0 %v701
    %v2756 = vpop.f32.mrf.mxu0
    %v2757 = vadd.f32 %v2665, %v2756
    %2758 = vmatmul.f32.gmra.mxu0 %v710
    %v2759 = vpop.f32.mrf.mxu0
    %v2760 = vadd.f32 %v2668, %v2759
    %2761 = vmatmul.f32.gmra.mxu0 %v719
    %v2762 = vpop.f32.mrf.mxu0
    %v2763 = vadd.f32 %v2671, %v2762
    %2764 = vmatmul.f32.gmra.mxu0 %v728
    %v2765 = vpop.f32.mrf.mxu0
    %v2766 = vadd.f32 %v2674, %v2765
    %2767 = vmatmul.f32.gmra.mxu0 %v737
    %v2768 = vpop.f32.mrf.mxu0
    %v2769 = vadd.f32 %v2677, %v2768
    %2770 = vmatmul.f32.gmra.mxu0 %v746
    %v2771 = vpop.f32.mrf.mxu0
    %v2772 = vadd.f32 %v2680, %v2771
    %2773 = vmatmul.f32.gmra.mxu0 %v755
    %v2774 = vpop.f32.mrf.mxu0
    %v2775 = vadd.f32 %v2683, %v2774
    %2776 = vmatmul.f32.gmra.mxu0 %v764
    %v2777 = vpop.f32.mrf.mxu0
    %v2778 = vadd.f32 %v2686, %v2777
    %2779 = vmatmul.f32.gmra.mxu0 %v773
    %v2780 = vpop.f32.mrf.mxu0
    %v2781 = vadd.f32 %v2689, %v2780
    %2782 = vmatmul.f32.gmra.mxu0 %v782
    %v2783 = vpop.f32.mrf.mxu0
    %v2784 = vadd.f32 %v2692, %v2783
    %2785 = vmatmul.f32.gmra.mxu0 %v791
    %v2786 = vpop.f32.mrf.mxu0
    %v2787 = vadd.f32 %v2695, %v2786
    %2788 = vdwg.mxu0
    %2789 = vmatpush.msra.mxu0 %v1223
    %2790 = vmatpush.msra.mxu0 %v1220
    %2791 = vmatpush.msra.mxu0 %v1217
    %2792 = vmatpush.msra.mxu0 %v1214
    %2793 = vmatpush.msra.mxu0 %v1211
    %2794 = vmatpush.msra.mxu0 %v1208
    %2795 = vmatpush.msra.mxu0 %v1205
    %2796 = vmatpush.msra.mxu0 %v1202
    %2797 = vmatpush.msra.mxu0 %v1199
    %2798 = vmatpush.msra.mxu0 %v1196
    %2799 = vmatpush.msra.mxu0 %v1193
    %2800 = vmatpush.msra.mxu0 %v1190
    %2801 = vmatpush.msra.mxu0 %v1187
    %2802 = vmatpush.msra.mxu0 %v1184
    %2803 = vmatpush.msra.mxu0 %v1181
    %2804 = vmatpush.msra.mxu0 %v1178
    %2805 = vmatmul.f32.gmra.mxu0 %v576
    %v2806 = vpop.f32.mrf.mxu0
    %v2807 = vadd.f32 %v2715, %v2806
    %2808 = vmatmul.f32.gmra.mxu0 %v585
    %v2809 = vpop.f32.mrf.mxu0
    %v2810 = vadd.f32 %v2718, %v2809
    %2811 = vmatmul.f32.gmra.mxu0 %v594
    %v2812 = vpop.f32.mrf.mxu0
    %v2813 = vadd.f32 %v2721, %v2812
    %2814 = vmatmul.f32.gmra.mxu0 %v603
    %v2815 = vpop.f32.mrf.mxu0
    %v2816 = vadd.f32 %v2724, %v2815
    %2817 = vmatmul.f32.gmra.mxu0 %v612
    %v2818 = vpop.f32.mrf.mxu0
    %v2819 = vadd.f32 %v2727, %v2818
    %2820 = vmatmul.f32.gmra.mxu0 %v621
    %v2821 = vpop.f32.mrf.mxu0
    %v2822 = vadd.f32 %v2730, %v2821
    %2823 = vmatmul.f32.gmra.mxu0 %v630
    %v2824 = vpop.f32.mrf.mxu0
    %v2825 = vadd.f32 %v2733, %v2824
    %2826 = vmatmul.f32.gmra.mxu0 %v639
    %v2827 = vpop.f32.mrf.mxu0
    %v2828 = vadd.f32 %v2736, %v2827
    %2829 = vmatmul.f32.gmra.mxu0 %v648
    %v2830 = vpop.f32.mrf.mxu0
    %v2831 = vadd.f32 %v2739, %v2830
    %2832 = vmatmul.f32.gmra.mxu0 %v657
    %v2833 = vpop.f32.mrf.mxu0
    %v2834 = vadd.f32 %v2742, %v2833
    %2835 = vmatmul.f32.gmra.mxu0 %v666
    %v2836 = vpop.f32.mrf.mxu0
    %v2837 = vadd.f32 %v2745, %v2836
    %2838 = vmatmul.f32.gmra.mxu0 %v675
    %v2839 = vpop.f32.mrf.mxu0
    %v2840 = vadd.f32 %v2748, %v2839
    %2841 = vmatmul.f32.gmra.mxu0 %v684
    %v2842 = vpop.f32.mrf.mxu0
    %v2843 = vadd.f32 %v2751, %v2842
    %2844 = vmatmul.f32.gmra.mxu0 %v693
    %v2845 = vpop.f32.mrf.mxu0
    %v2846 = vadd.f32 %v2754, %v2845
    %2847 = vmatmul.f32.gmra.mxu0 %v702
    %v2848 = vpop.f32.mrf.mxu0
    %v2849 = vadd.f32 %v2757, %v2848
    %2850 = vmatmul.f32.gmra.mxu0 %v711
    %v2851 = vpop.f32.mrf.mxu0
    %v2852 = vadd.f32 %v2760, %v2851
    %2853 = vmatmul.f32.gmra.mxu0 %v720
    %v2854 = vpop.f32.mrf.mxu0
    %v2855 = vadd.f32 %v2763, %v2854
    %2856 = vmatmul.f32.gmra.mxu0 %v729
    %v2857 = vpop.f32.mrf.mxu0
    %v2858 = vadd.f32 %v2766, %v2857
    %2859 = vmatmul.f32.gmra.mxu0 %v738
    %v2860 = vpop.f32.mrf.mxu0
    %v2861 = vadd.f32 %v2769, %v2860
    %2862 = vmatmul.f32.gmra.mxu0 %v747
    %v2863 = vpop.f32.mrf.mxu0
    %v2864 = vadd.f32 %v2772, %v2863
    %2865 = vmatmul.f32.gmra.mxu0 %v756
    %v2866 = vpop.f32.mrf.mxu0
    %v2867 = vadd.f32 %v2775, %v2866
    %2868 = vmatmul.f32.gmra.mxu0 %v765
    %v2869 = vpop.f32.mrf.mxu0
    %v2870 = vadd.f32 %v2778, %v2869
    %2871 = vmatmul.f32.gmra.mxu0 %v774
    %v2872 = vpop.f32.mrf.mxu0
    %v2873 = vadd.f32 %v2781, %v2872
    %2874 = vmatmul.f32.gmra.mxu0 %v783
    %v2875 = vpop.f32.mrf.mxu0
    %v2876 = vadd.f32 %v2784, %v2875
    %2877 = vmatmul.f32.gmra.mxu0 %v792
    %v2878 = vpop.f32.mrf.mxu0
    %v2879 = vadd.f32 %v2787, %v2878
    %2880 = vdwg.mxu0
    %2881 = vmatpush.msra.mxu0 %v840
    %2882 = vmatpush.msra.mxu0 %v837
    %2883 = vmatpush.msra.mxu0 %v834
    %2884 = vmatpush.msra.mxu0 %v831
    %2885 = vmatpush.msra.mxu0 %v828
    %2886 = vmatpush.msra.mxu0 %v825
    %2887 = vmatpush.msra.mxu0 %v822
    %2888 = vmatpush.msra.mxu0 %v819
    %2889 = vmatpush.msra.mxu0 %v816
    %2890 = vmatpush.msra.mxu0 %v813
    %2891 = vmatpush.msra.mxu0 %v810
    %2892 = vmatpush.msra.mxu0 %v807
    %2893 = vmatpush.msra.mxu0 %v804
    %2894 = vmatpush.msra.mxu0 %v801
    %2895 = vmatpush.msra.mxu0 %v798
    %2896 = vmatpush.msra.mxu0 %v795
    %2897 = vmatmul.f32.gmra.mxu0 %v568
    %v2898 = vpop.f32.mrf.mxu0
    %v2899 = vadd.f32 0.0, %v2898
    %2900 = vmatmul.f32.gmra.mxu0 %v577
    %v2901 = vpop.f32.mrf.mxu0
    %v2902 = vadd.f32 0.0, %v2901
    %2903 = vmatmul.f32.gmra.mxu0 %v586
    %v2904 = vpop.f32.mrf.mxu0
    %v2905 = vadd.f32 0.0, %v2904
    %2906 = vmatmul.f32.gmra.mxu0 %v595
    %v2907 = vpop.f32.mrf.mxu0
    %v2908 = vadd.f32 0.0, %v2907
    %2909 = vmatmul.f32.gmra.mxu0 %v604
    %v2910 = vpop.f32.mrf.mxu0
    %v2911 = vadd.f32 0.0, %v2910
    %2912 = vmatmul.f32.gmra.mxu0 %v613
    %v2913 = vpop.f32.mrf.mxu0
    %v2914 = vadd.f32 0.0, %v2913
    %2915 = vmatmul.f32.gmra.mxu0 %v622
    %v2916 = vpop.f32.mrf.mxu0
    %v2917 = vadd.f32 0.0, %v2916
    %2918 = vmatmul.f32.gmra.mxu0 %v631
    %v2919 = vpop.f32.mrf.mxu0
    %v2920 = vadd.f32 0.0, %v2919
    %2921 = vmatmul.f32.gmra.mxu0 %v640
    %v2922 = vpop.f32.mrf.mxu0
    %v2923 = vadd.f32 0.0, %v2922
    %2924 = vmatmul.f32.gmra.mxu0 %v649
    %v2925 = vpop.f32.mrf.mxu0
    %v2926 = vadd.f32 0.0, %v2925
    %2927 = vmatmul.f32.gmra.mxu0 %v658
    %v2928 = vpop.f32.mrf.mxu0
    %v2929 = vadd.f32 0.0, %v2928
    %2930 = vmatmul.f32.gmra.mxu0 %v667
    %v2931 = vpop.f32.mrf.mxu0
    %v2932 = vadd.f32 0.0, %v2931
    %2933 = vmatmul.f32.gmra.mxu0 %v676
    %v2934 = vpop.f32.mrf.mxu0
    %v2935 = vadd.f32 0.0, %v2934
    %2936 = vmatmul.f32.gmra.mxu0 %v685
    %v2937 = vpop.f32.mrf.mxu0
    %v2938 = vadd.f32 0.0, %v2937
    %2939 = vmatmul.f32.gmra.mxu0 %v694
    %v2940 = vpop.f32.mrf.mxu0
    %v2941 = vadd.f32 0.0, %v2940
    %2942 = vmatmul.f32.gmra.mxu0 %v703
    %v2943 = vpop.f32.mrf.mxu0
    %v2944 = vadd.f32 0.0, %v2943
    %2945 = vmatmul.f32.gmra.mxu0 %v712
    %v2946 = vpop.f32.mrf.mxu0
    %v2947 = vadd.f32 0.0, %v2946
    %2948 = vmatmul.f32.gmra.mxu0 %v721
    %v2949 = vpop.f32.mrf.mxu0
    %v2950 = vadd.f32 0.0, %v2949
    %2951 = vmatmul.f32.gmra.mxu0 %v730
    %v2952 = vpop.f32.mrf.mxu0
    %v2953 = vadd.f32 0.0, %v2952
    %2954 = vmatmul.f32.gmra.mxu0 %v739
    %v2955 = vpop.f32.mrf.mxu0
    %v2956 = vadd.f32 0.0, %v2955
    %2957 = vmatmul.f32.gmra.mxu0 %v748
    %v2958 = vpop.f32.mrf.mxu0
    %v2959 = vadd.f32 0.0, %v2958
    %2960 = vmatmul.f32.gmra.mxu0 %v757
    %v2961 = vpop.f32.mrf.mxu0
    %v2962 = vadd.f32 0.0, %v2961
    %2963 = vmatmul.f32.gmra.mxu0 %v766
    %v2964 = vpop.f32.mrf.mxu0
    %v2965 = vadd.f32 0.0, %v2964
    %2966 = vmatmul.f32.gmra.mxu0 %v775
    %v2967 = vpop.f32.mrf.mxu0
    %v2968 = vadd.f32 0.0, %v2967
    %2969 = vmatmul.f32.gmra.mxu0 %v784
    %v2970 = vpop.f32.mrf.mxu0
    %v2971 = vadd.f32 0.0, %v2970
    %2972 = vdwg.mxu0
    %2973 = vmatpush.msra.mxu0 %v888
    %2974 = vmatpush.msra.mxu0 %v885
    %2975 = vmatpush.msra.mxu0 %v882
    %2976 = vmatpush.msra.mxu0 %v879
    %2977 = vmatpush.msra.mxu0 %v876
    %2978 = vmatpush.msra.mxu0 %v873
    %2979 = vmatpush.msra.mxu0 %v870
    %2980 = vmatpush.msra.mxu0 %v867
    %2981 = vmatpush.msra.mxu0 %v864
    %2982 = vmatpush.msra.mxu0 %v861
    %2983 = vmatpush.msra.mxu0 %v858
    %2984 = vmatpush.msra.mxu0 %v855
    %2985 = vmatpush.msra.mxu0 %v852
    %2986 = vmatpush.msra.mxu0 %v849
    %2987 = vmatpush.msra.mxu0 %v846
    %2988 = vmatpush.msra.mxu0 %v843
    %2989 = vmatmul.f32.gmra.mxu0 %v569
    %v2990 = vpop.f32.mrf.mxu0
    %v2991 = vadd.f32 %v2899, %v2990
    %2992 = vmatmul.f32.gmra.mxu0 %v578
    %v2993 = vpop.f32.mrf.mxu0
    %v2994 = vadd.f32 %v2902, %v2993
    %2995 = vmatmul.f32.gmra.mxu0 %v587
    %v2996 = vpop.f32.mrf.mxu0
    %v2997 = vadd.f32 %v2905, %v2996
    %2998 = vmatmul.f32.gmra.mxu0 %v596
    %v2999 = vpop.f32.mrf.mxu0
    %v3000 = vadd.f32 %v2908, %v2999
    %3001 = vmatmul.f32.gmra.mxu0 %v605
    %v3002 = vpop.f32.mrf.mxu0
    %v3003 = vadd.f32 %v2911, %v3002
    %3004 = vmatmul.f32.gmra.mxu0 %v614
    %v3005 = vpop.f32.mrf.mxu0
    %v3006 = vadd.f32 %v2914, %v3005
    %3007 = vmatmul.f32.gmra.mxu0 %v623
    %v3008 = vpop.f32.mrf.mxu0
    %v3009 = vadd.f32 %v2917, %v3008
    %3010 = vmatmul.f32.gmra.mxu0 %v632
    %v3011 = vpop.f32.mrf.mxu0
    %v3012 = vadd.f32 %v2920, %v3011
    %3013 = vmatmul.f32.gmra.mxu0 %v641
    %v3014 = vpop.f32.mrf.mxu0
    %v3015 = vadd.f32 %v2923, %v3014
    %3016 = vmatmul.f32.gmra.mxu0 %v650
    %v3017 = vpop.f32.mrf.mxu0
    %v3018 = vadd.f32 %v2926, %v3017
    %3019 = vmatmul.f32.gmra.mxu0 %v659
    %v3020 = vpop.f32.mrf.mxu0
    %v3021 = vadd.f32 %v2929, %v3020
    %3022 = vmatmul.f32.gmra.mxu0 %v668
    %v3023 = vpop.f32.mrf.mxu0
    %v3024 = vadd.f32 %v2932, %v3023
    %3025 = vmatmul.f32.gmra.mxu0 %v677
    %v3026 = vpop.f32.mrf.mxu0
    %v3027 = vadd.f32 %v2935, %v3026
    %3028 = vmatmul.f32.gmra.mxu0 %v686
    %v3029 = vpop.f32.mrf.mxu0
    %v3030 = vadd.f32 %v2938, %v3029
    %3031 = vmatmul.f32.gmra.mxu0 %v695
    %v3032 = vpop.f32.mrf.mxu0
    %v3033 = vadd.f32 %v2941, %v3032
    %3034 = vmatmul.f32.gmra.mxu0 %v704
    %v3035 = vpop.f32.mrf.mxu0
    %v3036 = vadd.f32 %v2944, %v3035
    %3037 = vmatmul.f32.gmra.mxu0 %v713
    %v3038 = vpop.f32.mrf.mxu0
    %v3039 = vadd.f32 %v2947, %v3038
    %3040 = vmatmul.f32.gmra.mxu0 %v722
    %v3041 = vpop.f32.mrf.mxu0
    %v3042 = vadd.f32 %v2950, %v3041
    %3043 = vmatmul.f32.gmra.mxu0 %v731
    %v3044 = vpop.f32.mrf.mxu0
    %v3045 = vadd.f32 %v2953, %v3044
    %3046 = vmatmul.f32.gmra.mxu0 %v740
    %v3047 = vpop.f32.mrf.mxu0
    %v3048 = vadd.f32 %v2956, %v3047
    %3049 = vmatmul.f32.gmra.mxu0 %v749
    %v3050 = vpop.f32.mrf.mxu0
    %v3051 = vadd.f32 %v2959, %v3050
    %3052 = vmatmul.f32.gmra.mxu0 %v758
    %v3053 = vpop.f32.mrf.mxu0
    %v3054 = vadd.f32 %v2962, %v3053
    %3055 = vmatmul.f32.gmra.mxu0 %v767
    %v3056 = vpop.f32.mrf.mxu0
    %v3057 = vadd.f32 %v2965, %v3056
    %3058 = vmatmul.f32.gmra.mxu0 %v776
    %v3059 = vpop.f32.mrf.mxu0
    %v3060 = vadd.f32 %v2968, %v3059
    %3061 = vmatmul.f32.gmra.mxu0 %v785
    %v3062 = vpop.f32.mrf.mxu0
    %v3063 = vadd.f32 %v2971, %v3062
    %3064 = vdwg.mxu0
    %3065 = vmatpush.msra.mxu0 %v936
    %3066 = vmatpush.msra.mxu0 %v933
    %3067 = vmatpush.msra.mxu0 %v930
    %3068 = vmatpush.msra.mxu0 %v927
    %3069 = vmatpush.msra.mxu0 %v924
    %3070 = vmatpush.msra.mxu0 %v921
    %3071 = vmatpush.msra.mxu0 %v918
    %3072 = vmatpush.msra.mxu0 %v915
    %3073 = vmatpush.msra.mxu0 %v912
    %3074 = vmatpush.msra.mxu0 %v909
    %3075 = vmatpush.msra.mxu0 %v906
    %3076 = vmatpush.msra.mxu0 %v903
    %3077 = vmatpush.msra.mxu0 %v900
    %3078 = vmatpush.msra.mxu0 %v897
    %3079 = vmatpush.msra.mxu0 %v894
    %3080 = vmatpush.msra.mxu0 %v891
    %3081 = vmatmul.f32.gmra.mxu0 %v570
    %v3082 = vpop.f32.mrf.mxu0
    %v3083 = vadd.f32 %v2991, %v3082
    %3084 = vmatmul.f32.gmra.mxu0 %v579
    %v3085 = vpop.f32.mrf.mxu0
    %v3086 = vadd.f32 %v2994, %v3085
    %3087 = vmatmul.f32.gmra.mxu0 %v588
    %v3088 = vpop.f32.mrf.mxu0
    %v3089 = vadd.f32 %v2997, %v3088
    %3090 = vmatmul.f32.gmra.mxu0 %v597
    %v3091 = vpop.f32.mrf.mxu0
    %v3092 = vadd.f32 %v3000, %v3091
    %3093 = vmatmul.f32.gmra.mxu0 %v606
    %v3094 = vpop.f32.mrf.mxu0
    %v3095 = vadd.f32 %v3003, %v3094
    %3096 = vmatmul.f32.gmra.mxu0 %v615
    %v3097 = vpop.f32.mrf.mxu0
    %v3098 = vadd.f32 %v3006, %v3097
    %3099 = vmatmul.f32.gmra.mxu0 %v624
    %v3100 = vpop.f32.mrf.mxu0
    %v3101 = vadd.f32 %v3009, %v3100
    %3102 = vmatmul.f32.gmra.mxu0 %v633
    %v3103 = vpop.f32.mrf.mxu0
    %v3104 = vadd.f32 %v3012, %v3103
    %3105 = vmatmul.f32.gmra.mxu0 %v642
    %v3106 = vpop.f32.mrf.mxu0
    %v3107 = vadd.f32 %v3015, %v3106
    %3108 = vmatmul.f32.gmra.mxu0 %v651
    %v3109 = vpop.f32.mrf.mxu0
    %v3110 = vadd.f32 %v3018, %v3109
    %3111 = vmatmul.f32.gmra.mxu0 %v660
    %v3112 = vpop.f32.mrf.mxu0
    %v3113 = vadd.f32 %v3021, %v3112
    %3114 = vmatmul.f32.gmra.mxu0 %v669
    %v3115 = vpop.f32.mrf.mxu0
    %v3116 = vadd.f32 %v3024, %v3115
    %3117 = vmatmul.f32.gmra.mxu0 %v678
    %v3118 = vpop.f32.mrf.mxu0
    %v3119 = vadd.f32 %v3027, %v3118
    %3120 = vmatmul.f32.gmra.mxu0 %v687
    %v3121 = vpop.f32.mrf.mxu0
    %v3122 = vadd.f32 %v3030, %v3121
    %3123 = vmatmul.f32.gmra.mxu0 %v696
    %v3124 = vpop.f32.mrf.mxu0
    %v3125 = vadd.f32 %v3033, %v3124
    %3126 = vmatmul.f32.gmra.mxu0 %v705
    %v3127 = vpop.f32.mrf.mxu0
    %v3128 = vadd.f32 %v3036, %v3127
    %3129 = vmatmul.f32.gmra.mxu0 %v714
    %v3130 = vpop.f32.mrf.mxu0
    %v3131 = vadd.f32 %v3039, %v3130
    %3132 = vmatmul.f32.gmra.mxu0 %v723
    %v3133 = vpop.f32.mrf.mxu0
    %v3134 = vadd.f32 %v3042, %v3133
    %3135 = vmatmul.f32.gmra.mxu0 %v732
    %v3136 = vpop.f32.mrf.mxu0
    %v3137 = vadd.f32 %v3045, %v3136
    %3138 = vmatmul.f32.gmra.mxu0 %v741
    %v3139 = vpop.f32.mrf.mxu0
    %v3140 = vadd.f32 %v3048, %v3139
    %3141 = vmatmul.f32.gmra.mxu0 %v750
    %v3142 = vpop.f32.mrf.mxu0
    %v3143 = vadd.f32 %v3051, %v3142
    %3144 = vmatmul.f32.gmra.mxu0 %v759
    %v3145 = vpop.f32.mrf.mxu0
    %v3146 = vadd.f32 %v3054, %v3145
    %3147 = vmatmul.f32.gmra.mxu0 %v768
    %v3148 = vpop.f32.mrf.mxu0
    %v3149 = vadd.f32 %v3057, %v3148
    %3150 = vmatmul.f32.gmra.mxu0 %v777
    %v3151 = vpop.f32.mrf.mxu0
    %v3152 = vadd.f32 %v3060, %v3151
    %3153 = vmatmul.f32.gmra.mxu0 %v786
    %v3154 = vpop.f32.mrf.mxu0
    %v3155 = vadd.f32 %v3063, %v3154
    %3156 = vdwg.mxu0
    %3157 = vmatpush.msra.mxu0 %v984
    %3158 = vmatpush.msra.mxu0 %v981
    %3159 = vmatpush.msra.mxu0 %v978
    %3160 = vmatpush.msra.mxu0 %v975
    %3161 = vmatpush.msra.mxu0 %v972
    %3162 = vmatpush.msra.mxu0 %v969
    %3163 = vmatpush.msra.mxu0 %v966
    %3164 = vmatpush.msra.mxu0 %v963
    %3165 = vmatpush.msra.mxu0 %v960
    %3166 = vmatpush.msra.mxu0 %v957
    %3167 = vmatpush.msra.mxu0 %v954
    %3168 = vmatpush.msra.mxu0 %v951
    %3169 = vmatpush.msra.mxu0 %v948
    %3170 = vmatpush.msra.mxu0 %v945
    %3171 = vmatpush.msra.mxu0 %v942
    %3172 = vmatpush.msra.mxu0 %v939
    %3173 = vmatmul.f32.gmra.mxu0 %v571
    %v3174 = vpop.f32.mrf.mxu0
    %v3175 = vadd.f32 %v3083, %v3174
    %3176 = vmatmul.f32.gmra.mxu0 %v580
    %v3177 = vpop.f32.mrf.mxu0
    %v3178 = vadd.f32 %v3086, %v3177
    %3179 = vmatmul.f32.gmra.mxu0 %v589
    %v3180 = vpop.f32.mrf.mxu0
    %v3181 = vadd.f32 %v3089, %v3180
    %3182 = vmatmul.f32.gmra.mxu0 %v598
    %v3183 = vpop.f32.mrf.mxu0
    %v3184 = vadd.f32 %v3092, %v3183
    %3185 = vmatmul.f32.gmra.mxu0 %v607
    %v3186 = vpop.f32.mrf.mxu0
    %v3187 = vadd.f32 %v3095, %v3186
    %3188 = vmatmul.f32.gmra.mxu0 %v616
    %v3189 = vpop.f32.mrf.mxu0
    %v3190 = vadd.f32 %v3098, %v3189
    %3191 = vmatmul.f32.gmra.mxu0 %v625
    %v3192 = vpop.f32.mrf.mxu0
    %v3193 = vadd.f32 %v3101, %v3192
    %3194 = vmatmul.f32.gmra.mxu0 %v634
    %v3195 = vpop.f32.mrf.mxu0
    %v3196 = vadd.f32 %v3104, %v3195
    %3197 = vmatmul.f32.gmra.mxu0 %v643
    %v3198 = vpop.f32.mrf.mxu0
    %v3199 = vadd.f32 %v3107, %v3198
    %3200 = vmatmul.f32.gmra.mxu0 %v652
    %v3201 = vpop.f32.mrf.mxu0
    %v3202 = vadd.f32 %v3110, %v3201
    %3203 = vmatmul.f32.gmra.mxu0 %v661
    %v3204 = vpop.f32.mrf.mxu0
    %v3205 = vadd.f32 %v3113, %v3204
    %3206 = vmatmul.f32.gmra.mxu0 %v670
    %v3207 = vpop.f32.mrf.mxu0
    %v3208 = vadd.f32 %v3116, %v3207
    %3209 = vmatmul.f32.gmra.mxu0 %v679
    %v3210 = vpop.f32.mrf.mxu0
    %v3211 = vadd.f32 %v3119, %v3210
    %3212 = vmatmul.f32.gmra.mxu0 %v688
    %v3213 = vpop.f32.mrf.mxu0
    %v3214 = vadd.f32 %v3122, %v3213
    %3215 = vmatmul.f32.gmra.mxu0 %v697
    %v3216 = vpop.f32.mrf.mxu0
    %v3217 = vadd.f32 %v3125, %v3216
    %3218 = vmatmul.f32.gmra.mxu0 %v706
    %v3219 = vpop.f32.mrf.mxu0
    %v3220 = vadd.f32 %v3128, %v3219
    %3221 = vmatmul.f32.gmra.mxu0 %v715
    %v3222 = vpop.f32.mrf.mxu0
    %v3223 = vadd.f32 %v3131, %v3222
    %3224 = vmatmul.f32.gmra.mxu0 %v724
    %v3225 = vpop.f32.mrf.mxu0
    %v3226 = vadd.f32 %v3134, %v3225
    %3227 = vmatmul.f32.gmra.mxu0 %v733
    %v3228 = vpop.f32.mrf.mxu0
    %v3229 = vadd.f32 %v3137, %v3228
    %3230 = vmatmul.f32.gmra.mxu0 %v742
    %v3231 = vpop.f32.mrf.mxu0
    %v3232 = vadd.f32 %v3140, %v3231
    %3233 = vmatmul.f32.gmra.mxu0 %v751
    %v3234 = vpop.f32.mrf.mxu0
    %v3235 = vadd.f32 %v3143, %v3234
    %3236 = vmatmul.f32.gmra.mxu0 %v760
    %v3237 = vpop.f32.mrf.mxu0
    %v3238 = vadd.f32 %v3146, %v3237
    %3239 = vmatmul.f32.gmra.mxu0 %v769
    %v3240 = vpop.f32.mrf.mxu0
    %v3241 = vadd.f32 %v3149, %v3240
    %3242 = vmatmul.f32.gmra.mxu0 %v778
    %v3243 = vpop.f32.mrf.mxu0
    %v3244 = vadd.f32 %v3152, %v3243
    %3245 = vmatmul.f32.gmra.mxu0 %v787
    %v3246 = vpop.f32.mrf.mxu0
    %v3247 = vadd.f32 %v3155, %v3246
    %3248 = vdwg.mxu0
    %3249 = vmatpush.msra.mxu0 %v1032
    %3250 = vmatpush.msra.mxu0 %v1029
    %3251 = vmatpush.msra.mxu0 %v1026
    %3252 = vmatpush.msra.mxu0 %v1023
    %3253 = vmatpush.msra.mxu0 %v1020
    %3254 = vmatpush.msra.mxu0 %v1017
    %3255 = vmatpush.msra.mxu0 %v1014
    %3256 = vmatpush.msra.mxu0 %v1011
    %3257 = vmatpush.msra.mxu0 %v1008
    %3258 = vmatpush.msra.mxu0 %v1005
    %3259 = vmatpush.msra.mxu0 %v1002
    %3260 = vmatpush.msra.mxu0 %v999
    %3261 = vmatpush.msra.mxu0 %v996
    %3262 = vmatpush.msra.mxu0 %v993
    %3263 = vmatpush.msra.mxu0 %v990
    %3264 = vmatpush.msra.mxu0 %v987
    %3265 = vmatmul.f32.gmra.mxu0 %v572
    %v3266 = vpop.f32.mrf.mxu0
    %v3267 = vadd.f32 %v3175, %v3266
    %3268 = vmatmul.f32.gmra.mxu0 %v581
    %v3269 = vpop.f32.mrf.mxu0
    %v3270 = vadd.f32 %v3178, %v3269
    %3271 = vmatmul.f32.gmra.mxu0 %v590
    %v3272 = vpop.f32.mrf.mxu0
    %v3273 = vadd.f32 %v3181, %v3272
    %3274 = vmatmul.f32.gmra.mxu0 %v599
    %v3275 = vpop.f32.mrf.mxu0
    %v3276 = vadd.f32 %v3184, %v3275
    %3277 = vmatmul.f32.gmra.mxu0 %v608
    %v3278 = vpop.f32.mrf.mxu0
    %v3279 = vadd.f32 %v3187, %v3278
    %3280 = vmatmul.f32.gmra.mxu0 %v617
    %v3281 = vpop.f32.mrf.mxu0
    %v3282 = vadd.f32 %v3190, %v3281
    %3283 = vmatmul.f32.gmra.mxu0 %v626
    %v3284 = vpop.f32.mrf.mxu0
    %v3285 = vadd.f32 %v3193, %v3284
    %3286 = vmatmul.f32.gmra.mxu0 %v635
    %v3287 = vpop.f32.mrf.mxu0
    %v3288 = vadd.f32 %v3196, %v3287
    %3289 = vmatmul.f32.gmra.mxu0 %v644
    %v3290 = vpop.f32.mrf.mxu0
    %v3291 = vadd.f32 %v3199, %v3290
    %3292 = vmatmul.f32.gmra.mxu0 %v653
    %v3293 = vpop.f32.mrf.mxu0
    %v3294 = vadd.f32 %v3202, %v3293
    %3295 = vmatmul.f32.gmra.mxu0 %v662
    %v3296 = vpop.f32.mrf.mxu0
    %v3297 = vadd.f32 %v3205, %v3296
    %3298 = vmatmul.f32.gmra.mxu0 %v671
    %v3299 = vpop.f32.mrf.mxu0
    %v3300 = vadd.f32 %v3208, %v3299
    %3301 = vmatmul.f32.gmra.mxu0 %v680
    %v3302 = vpop.f32.mrf.mxu0
    %v3303 = vadd.f32 %v3211, %v3302
    %3304 = vmatmul.f32.gmra.mxu0 %v689
    %v3305 = vpop.f32.mrf.mxu0
    %v3306 = vadd.f32 %v3214, %v3305
    %3307 = vmatmul.f32.gmra.mxu0 %v698
    %v3308 = vpop.f32.mrf.mxu0
    %v3309 = vadd.f32 %v3217, %v3308
    %3310 = vmatmul.f32.gmra.mxu0 %v707
    %v3311 = vpop.f32.mrf.mxu0
    %v3312 = vadd.f32 %v3220, %v3311
    %3313 = vmatmul.f32.gmra.mxu0 %v716
    %v3314 = vpop.f32.mrf.mxu0
    %v3315 = vadd.f32 %v3223, %v3314
    %3316 = vmatmul.f32.gmra.mxu0 %v725
    %v3317 = vpop.f32.mrf.mxu0
    %v3318 = vadd.f32 %v3226, %v3317
    %3319 = vmatmul.f32.gmra.mxu0 %v734
    %v3320 = vpop.f32.mrf.mxu0
    %v3321 = vadd.f32 %v3229, %v3320
    %3322 = vmatmul.f32.gmra.mxu0 %v743
    %v3323 = vpop.f32.mrf.mxu0
    %v3324 = vadd.f32 %v3232, %v3323
    %3325 = vmatmul.f32.gmra.mxu0 %v752
    %v3326 = vpop.f32.mrf.mxu0
    %v3327 = vadd.f32 %v3235, %v3326
    %3328 = vmatmul.f32.gmra.mxu0 %v761
    %v3329 = vpop.f32.mrf.mxu0
    %v3330 = vadd.f32 %v3238, %v3329
    %3331 = vmatmul.f32.gmra.mxu0 %v770
    %v3332 = vpop.f32.mrf.mxu0
    %v3333 = vadd.f32 %v3241, %v3332
    %3334 = vmatmul.f32.gmra.mxu0 %v779
    %v3335 = vpop.f32.mrf.mxu0
    %v3336 = vadd.f32 %v3244, %v3335
    %3337 = vmatmul.f32.gmra.mxu0 %v788
    %v3338 = vpop.f32.mrf.mxu0
    %v3339 = vadd.f32 %v3247, %v3338
    %3340 = vdwg.mxu0
    %3341 = vmatpush.msra.mxu0 %v1080
    %3342 = vmatpush.msra.mxu0 %v1077
    %3343 = vmatpush.msra.mxu0 %v1074
    %3344 = vmatpush.msra.mxu0 %v1071
    %3345 = vmatpush.msra.mxu0 %v1068
    %3346 = vmatpush.msra.mxu0 %v1065
    %3347 = vmatpush.msra.mxu0 %v1062
    %3348 = vmatpush.msra.mxu0 %v1059
    %3349 = vmatpush.msra.mxu0 %v1056
    %3350 = vmatpush.msra.mxu0 %v1053
    %3351 = vmatpush.msra.mxu0 %v1050
    %3352 = vmatpush.msra.mxu0 %v1047
    %3353 = vmatpush.msra.mxu0 %v1044
    %3354 = vmatpush.msra.mxu0 %v1041
    %3355 = vmatpush.msra.mxu0 %v1038
    %3356 = vmatpush.msra.mxu0 %v1035
    %3357 = vmatmul.f32.gmra.mxu0 %v573
    %v3358 = vpop.f32.mrf.mxu0
    %v3359 = vadd.f32 %v3267, %v3358
    %3360 = vmatmul.f32.gmra.mxu0 %v582
    %v3361 = vpop.f32.mrf.mxu0
    %v3362 = vadd.f32 %v3270, %v3361
    %3363 = vmatmul.f32.gmra.mxu0 %v591
    %v3364 = vpop.f32.mrf.mxu0
    %v3365 = vadd.f32 %v3273, %v3364
    %3366 = vmatmul.f32.gmra.mxu0 %v600
    %v3367 = vpop.f32.mrf.mxu0
    %v3368 = vadd.f32 %v3276, %v3367
    %3369 = vmatmul.f32.gmra.mxu0 %v609
    %v3370 = vpop.f32.mrf.mxu0
    %v3371 = vadd.f32 %v3279, %v3370
    %3372 = vmatmul.f32.gmra.mxu0 %v618
    %v3373 = vpop.f32.mrf.mxu0
    %v3374 = vadd.f32 %v3282, %v3373
    %3375 = vmatmul.f32.gmra.mxu0 %v627
    %v3376 = vpop.f32.mrf.mxu0
    %v3377 = vadd.f32 %v3285, %v3376
    %3378 = vmatmul.f32.gmra.mxu0 %v636
    %v3379 = vpop.f32.mrf.mxu0
    %v3380 = vadd.f32 %v3288, %v3379
    %3381 = vmatmul.f32.gmra.mxu0 %v645
    %v3382 = vpop.f32.mrf.mxu0
    %v3383 = vadd.f32 %v3291, %v3382
    %3384 = vmatmul.f32.gmra.mxu0 %v654
    %v3385 = vpop.f32.mrf.mxu0
    %v3386 = vadd.f32 %v3294, %v3385
    %3387 = vmatmul.f32.gmra.mxu0 %v663
    %v3388 = vpop.f32.mrf.mxu0
    %v3389 = vadd.f32 %v3297, %v3388
    %3390 = vmatmul.f32.gmra.mxu0 %v672
    %v3391 = vpop.f32.mrf.mxu0
    %v3392 = vadd.f32 %v3300, %v3391
    %3393 = vmatmul.f32.gmra.mxu0 %v681
    %v3394 = vpop.f32.mrf.mxu0
    %v3395 = vadd.f32 %v3303, %v3394
    %3396 = vmatmul.f32.gmra.mxu0 %v690
    %v3397 = vpop.f32.mrf.mxu0
    %v3398 = vadd.f32 %v3306, %v3397
    %3399 = vmatmul.f32.gmra.mxu0 %v699
    %v3400 = vpop.f32.mrf.mxu0
    %v3401 = vadd.f32 %v3309, %v3400
    %3402 = vmatmul.f32.gmra.mxu0 %v708
    %v3403 = vpop.f32.mrf.mxu0
    %v3404 = vadd.f32 %v3312, %v3403
    %3405 = vmatmul.f32.gmra.mxu0 %v717
    %v3406 = vpop.f32.mrf.mxu0
    %v3407 = vadd.f32 %v3315, %v3406
    %3408 = vmatmul.f32.gmra.mxu0 %v726
    %v3409 = vpop.f32.mrf.mxu0
    %v3410 = vadd.f32 %v3318, %v3409
    %3411 = vmatmul.f32.gmra.mxu0 %v735
    %v3412 = vpop.f32.mrf.mxu0
    %v3413 = vadd.f32 %v3321, %v3412
    %3414 = vmatmul.f32.gmra.mxu0 %v744
    %v3415 = vpop.f32.mrf.mxu0
    %v3416 = vadd.f32 %v3324, %v3415
    %3417 = vmatmul.f32.gmra.mxu0 %v753
    %v3418 = vpop.f32.mrf.mxu0
    %v3419 = vadd.f32 %v3327, %v3418
    %3420 = vmatmul.f32.gmra.mxu0 %v762
    %v3421 = vpop.f32.mrf.mxu0
    %v3422 = vadd.f32 %v3330, %v3421
    %3423 = vmatmul.f32.gmra.mxu0 %v771
    %v3424 = vpop.f32.mrf.mxu0
    %v3425 = vadd.f32 %v3333, %v3424
    %3426 = vmatmul.f32.gmra.mxu0 %v780
    %v3427 = vpop.f32.mrf.mxu0
    %v3428 = vadd.f32 %v3336, %v3427
    %3429 = vmatmul.f32.gmra.mxu0 %v789
    %v3430 = vpop.f32.mrf.mxu0
    %v3431 = vadd.f32 %v3339, %v3430
    %3432 = vdwg.mxu0
    %3433 = vmatpush.msra.mxu0 %v1128
    %3434 = vmatpush.msra.mxu0 %v1125
    %3435 = vmatpush.msra.mxu0 %v1122
    %3436 = vmatpush.msra.mxu0 %v1119
    %3437 = vmatpush.msra.mxu0 %v1116
    %3438 = vmatpush.msra.mxu0 %v1113
    %3439 = vmatpush.msra.mxu0 %v1110
    %3440 = vmatpush.msra.mxu0 %v1107
    %3441 = vmatpush.msra.mxu0 %v1104
    %3442 = vmatpush.msra.mxu0 %v1101
    %3443 = vmatpush.msra.mxu0 %v1098
    %3444 = vmatpush.msra.mxu0 %v1095
    %3445 = vmatpush.msra.mxu0 %v1092
    %3446 = vmatpush.msra.mxu0 %v1089
    %3447 = vmatpush.msra.mxu0 %v1086
    %3448 = vmatpush.msra.mxu0 %v1083
    %3449 = vmatmul.f32.gmra.mxu0 %v574
    %v3450 = vpop.f32.mrf.mxu0
    %v3451 = vadd.f32 %v3359, %v3450
    %3452 = vmatmul.f32.gmra.mxu0 %v583
    %v3453 = vpop.f32.mrf.mxu0
    %v3454 = vadd.f32 %v3362, %v3453
    %3455 = vmatmul.f32.gmra.mxu0 %v592
    %v3456 = vpop.f32.mrf.mxu0
    %v3457 = vadd.f32 %v3365, %v3456
    %3458 = vmatmul.f32.gmra.mxu0 %v601
    %v3459 = vpop.f32.mrf.mxu0
    %v3460 = vadd.f32 %v3368, %v3459
    %3461 = vmatmul.f32.gmra.mxu0 %v610
    %v3462 = vpop.f32.mrf.mxu0
    %v3463 = vadd.f32 %v3371, %v3462
    %3464 = vmatmul.f32.gmra.mxu0 %v619
    %v3465 = vpop.f32.mrf.mxu0
    %v3466 = vadd.f32 %v3374, %v3465
    %3467 = vmatmul.f32.gmra.mxu0 %v628
    %v3468 = vpop.f32.mrf.mxu0
    %v3469 = vadd.f32 %v3377, %v3468
    %3470 = vmatmul.f32.gmra.mxu0 %v637
    %v3471 = vpop.f32.mrf.mxu0
    %v3472 = vadd.f32 %v3380, %v3471
    %3473 = vmatmul.f32.gmra.mxu0 %v646
    %v3474 = vpop.f32.mrf.mxu0
    %v3475 = vadd.f32 %v3383, %v3474
    %3476 = vmatmul.f32.gmra.mxu0 %v655
    %v3477 = vpop.f32.mrf.mxu0
    %v3478 = vadd.f32 %v3386, %v3477
    %3479 = vmatmul.f32.gmra.mxu0 %v664
    %v3480 = vpop.f32.mrf.mxu0
    %v3481 = vadd.f32 %v3389, %v3480
    %3482 = vmatmul.f32.gmra.mxu0 %v673
    %v3483 = vpop.f32.mrf.mxu0
    %v3484 = vadd.f32 %v3392, %v3483
    %3485 = vmatmul.f32.gmra.mxu0 %v682
    %v3486 = vpop.f32.mrf.mxu0
    %v3487 = vadd.f32 %v3395, %v3486
    %3488 = vmatmul.f32.gmra.mxu0 %v691
    %v3489 = vpop.f32.mrf.mxu0
    %v3490 = vadd.f32 %v3398, %v3489
    %3491 = vmatmul.f32.gmra.mxu0 %v700
    %v3492 = vpop.f32.mrf.mxu0
    %v3493 = vadd.f32 %v3401, %v3492
    %3494 = vmatmul.f32.gmra.mxu0 %v709
    %v3495 = vpop.f32.mrf.mxu0
    %v3496 = vadd.f32 %v3404, %v3495
    %3497 = vmatmul.f32.gmra.mxu0 %v718
    %v3498 = vpop.f32.mrf.mxu0
    %v3499 = vadd.f32 %v3407, %v3498
    %3500 = vmatmul.f32.gmra.mxu0 %v727
    %v3501 = vpop.f32.mrf.mxu0
    %v3502 = vadd.f32 %v3410, %v3501
    %3503 = vmatmul.f32.gmra.mxu0 %v736
    %v3504 = vpop.f32.mrf.mxu0
    %v3505 = vadd.f32 %v3413, %v3504
    %3506 = vmatmul.f32.gmra.mxu0 %v745
    %v3507 = vpop.f32.mrf.mxu0
    %v3508 = vadd.f32 %v3416, %v3507
    %3509 = vmatmul.f32.gmra.mxu0 %v754
    %v3510 = vpop.f32.mrf.mxu0
    %v3511 = vadd.f32 %v3419, %v3510
    %3512 = vmatmul.f32.gmra.mxu0 %v763
    %v3513 = vpop.f32.mrf.mxu0
    %v3514 = vadd.f32 %v3422, %v3513
    %3515 = vmatmul.f32.gmra.mxu0 %v772
    %v3516 = vpop.f32.mrf.mxu0
    %v3517 = vadd.f32 %v3425, %v3516
    %3518 = vmatmul.f32.gmra.mxu0 %v781
    %v3519 = vpop.f32.mrf.mxu0
    %v3520 = vadd.f32 %v3428, %v3519
    %3521 = vmatmul.f32.gmra.mxu0 %v790
    %v3522 = vpop.f32.mrf.mxu0
    %v3523 = vadd.f32 %v3431, %v3522
    %3524 = vdwg.mxu0
    %3525 = vmatpush.msra.mxu0 %v1176
    %3526 = vmatpush.msra.mxu0 %v1173
    %3527 = vmatpush.msra.mxu0 %v1170
    %3528 = vmatpush.msra.mxu0 %v1167
    %3529 = vmatpush.msra.mxu0 %v1164
    %3530 = vmatpush.msra.mxu0 %v1161
    %3531 = vmatpush.msra.mxu0 %v1158
    %3532 = vmatpush.msra.mxu0 %v1155
    %3533 = vmatpush.msra.mxu0 %v1152
    %3534 = vmatpush.msra.mxu0 %v1149
    %3535 = vmatpush.msra.mxu0 %v1146
    %3536 = vmatpush.msra.mxu0 %v1143
    %3537 = vmatpush.msra.mxu0 %v1140
    %3538 = vmatpush.msra.mxu0 %v1137
    %3539 = vmatpush.msra.mxu0 %v1134
    %3540 = vmatpush.msra.mxu0 %v1131
    %3541 = vmatmul.f32.gmra.mxu0 %v575
    %v3542 = vpop.f32.mrf.mxu0
    %v3543 = vadd.f32 %v3451, %v3542
    %3544 = vmatmul.f32.gmra.mxu0 %v584
    %v3545 = vpop.f32.mrf.mxu0
    %v3546 = vadd.f32 %v3454, %v3545
    %3547 = vmatmul.f32.gmra.mxu0 %v593
    %v3548 = vpop.f32.mrf.mxu0
    %v3549 = vadd.f32 %v3457, %v3548
    %3550 = vmatmul.f32.gmra.mxu0 %v602
    %v3551 = vpop.f32.mrf.mxu0
    %v3552 = vadd.f32 %v3460, %v3551
    %3553 = vmatmul.f32.gmra.mxu0 %v611
    %v3554 = vpop.f32.mrf.mxu0
    %v3555 = vadd.f32 %v3463, %v3554
    %3556 = vmatmul.f32.gmra.mxu0 %v620
    %v3557 = vpop.f32.mrf.mxu0
    %v3558 = vadd.f32 %v3466, %v3557
    %3559 = vmatmul.f32.gmra.mxu0 %v629
    %v3560 = vpop.f32.mrf.mxu0
    %v3561 = vadd.f32 %v3469, %v3560
    %3562 = vmatmul.f32.gmra.mxu0 %v638
    %v3563 = vpop.f32.mrf.mxu0
    %v3564 = vadd.f32 %v3472, %v3563
    %3565 = vmatmul.f32.gmra.mxu0 %v647
    %v3566 = vpop.f32.mrf.mxu0
    %v3567 = vadd.f32 %v3475, %v3566
    %3568 = vmatmul.f32.gmra.mxu0 %v656
    %v3569 = vpop.f32.mrf.mxu0
    %v3570 = vadd.f32 %v3478, %v3569
    %3571 = vmatmul.f32.gmra.mxu0 %v665
    %v3572 = vpop.f32.mrf.mxu0
    %v3573 = vadd.f32 %v3481, %v3572
    %3574 = vmatmul.f32.gmra.mxu0 %v674
    %v3575 = vpop.f32.mrf.mxu0
    %v3576 = vadd.f32 %v3484, %v3575
    %3577 = vmatmul.f32.gmra.mxu0 %v683
    %v3578 = vpop.f32.mrf.mxu0
    %v3579 = vadd.f32 %v3487, %v3578
    %3580 = vmatmul.f32.gmra.mxu0 %v692
    %v3581 = vpop.f32.mrf.mxu0
    %v3582 = vadd.f32 %v3490, %v3581
    %3583 = vmatmul.f32.gmra.mxu0 %v701
    %v3584 = vpop.f32.mrf.mxu0
    %v3585 = vadd.f32 %v3493, %v3584
    %3586 = vmatmul.f32.gmra.mxu0 %v710
    %v3587 = vpop.f32.mrf.mxu0
    %v3588 = vadd.f32 %v3496, %v3587
    %3589 = vmatmul.f32.gmra.mxu0 %v719
    %v3590 = vpop.f32.mrf.mxu0
    %v3591 = vadd.f32 %v3499, %v3590
    %3592 = vmatmul.f32.gmra.mxu0 %v728
    %v3593 = vpop.f32.mrf.mxu0
    %v3594 = vadd.f32 %v3502, %v3593
    %3595 = vmatmul.f32.gmra.mxu0 %v737
    %v3596 = vpop.f32.mrf.mxu0
    %v3597 = vadd.f32 %v3505, %v3596
    %3598 = vmatmul.f32.gmra.mxu0 %v746
    %v3599 = vpop.f32.mrf.mxu0
    %v3600 = vadd.f32 %v3508, %v3599
    %3601 = vmatmul.f32.gmra.mxu0 %v755
    %v3602 = vpop.f32.mrf.mxu0
    %v3603 = vadd.f32 %v3511, %v3602
    %3604 = vmatmul.f32.gmra.mxu0 %v764
    %v3605 = vpop.f32.mrf.mxu0
    %v3606 = vadd.f32 %v3514, %v3605
    %3607 = vmatmul.f32.gmra.mxu0 %v773
    %v3608 = vpop.f32.mrf.mxu0
    %v3609 = vadd.f32 %v3517, %v3608
    %3610 = vmatmul.f32.gmra.mxu0 %v782
    %v3611 = vpop.f32.mrf.mxu0
    %v3612 = vadd.f32 %v3520, %v3611
    %3613 = vmatmul.f32.gmra.mxu0 %v791
    %v3614 = vpop.f32.mrf.mxu0
    %v3615 = vadd.f32 %v3523, %v3614
    %3616 = vdwg.mxu0
    %3617 = vmatpush.msra.mxu0 %v1224
    %3618 = vmatpush.msra.mxu0 %v1221
    %3619 = vmatpush.msra.mxu0 %v1218
    %3620 = vmatpush.msra.mxu0 %v1215
    %3621 = vmatpush.msra.mxu0 %v1212
    %3622 = vmatpush.msra.mxu0 %v1209
    %3623 = vmatpush.msra.mxu0 %v1206
    %3624 = vmatpush.msra.mxu0 %v1203
    %3625 = vmatpush.msra.mxu0 %v1200
    %3626 = vmatpush.msra.mxu0 %v1197
    %3627 = vmatpush.msra.mxu0 %v1194
    %3628 = vmatpush.msra.mxu0 %v1191
    %3629 = vmatpush.msra.mxu0 %v1188
    %3630 = vmatpush.msra.mxu0 %v1185
    %3631 = vmatpush.msra.mxu0 %v1182
    %3632 = vmatpush.msra.mxu0 %v1179
    %3633 = vmatmul.f32.gmra.mxu0 %v576
    %v3634 = vpop.f32.mrf.mxu0
    %v3635 = vadd.f32 %v3543, %v3634
    %3636 = vmatmul.f32.gmra.mxu0 %v585
    %v3637 = vpop.f32.mrf.mxu0
    %v3638 = vadd.f32 %v3546, %v3637
    %3639 = vmatmul.f32.gmra.mxu0 %v594
    %v3640 = vpop.f32.mrf.mxu0
    %v3641 = vadd.f32 %v3549, %v3640
    %3642 = vmatmul.f32.gmra.mxu0 %v603
    %v3643 = vpop.f32.mrf.mxu0
    %v3644 = vadd.f32 %v3552, %v3643
    %3645 = vmatmul.f32.gmra.mxu0 %v612
    %v3646 = vpop.f32.mrf.mxu0
    %v3647 = vadd.f32 %v3555, %v3646
    %3648 = vmatmul.f32.gmra.mxu0 %v621
    %v3649 = vpop.f32.mrf.mxu0
    %v3650 = vadd.f32 %v3558, %v3649
    %3651 = vmatmul.f32.gmra.mxu0 %v630
    %v3652 = vpop.f32.mrf.mxu0
    %v3653 = vadd.f32 %v3561, %v3652
    %3654 = vmatmul.f32.gmra.mxu0 %v639
    %v3655 = vpop.f32.mrf.mxu0
    %v3656 = vadd.f32 %v3564, %v3655
    %3657 = vmatmul.f32.gmra.mxu0 %v648
    %v3658 = vpop.f32.mrf.mxu0
    %v3659 = vadd.f32 %v3567, %v3658
    %3660 = vmatmul.f32.gmra.mxu0 %v657
    %v3661 = vpop.f32.mrf.mxu0
    %v3662 = vadd.f32 %v3570, %v3661
    %3663 = vmatmul.f32.gmra.mxu0 %v666
    %v3664 = vpop.f32.mrf.mxu0
    %v3665 = vadd.f32 %v3573, %v3664
    %3666 = vmatmul.f32.gmra.mxu0 %v675
    %v3667 = vpop.f32.mrf.mxu0
    %v3668 = vadd.f32 %v3576, %v3667
    %3669 = vmatmul.f32.gmra.mxu0 %v684
    %v3670 = vpop.f32.mrf.mxu0
    %v3671 = vadd.f32 %v3579, %v3670
    %3672 = vmatmul.f32.gmra.mxu0 %v693
    %v3673 = vpop.f32.mrf.mxu0
    %v3674 = vadd.f32 %v3582, %v3673
    %3675 = vmatmul.f32.gmra.mxu0 %v702
    %v3676 = vpop.f32.mrf.mxu0
    %v3677 = vadd.f32 %v3585, %v3676
    %3678 = vmatmul.f32.gmra.mxu0 %v711
    %v3679 = vpop.f32.mrf.mxu0
    %v3680 = vadd.f32 %v3588, %v3679
    %3681 = vmatmul.f32.gmra.mxu0 %v720
    %v3682 = vpop.f32.mrf.mxu0
    %v3683 = vadd.f32 %v3591, %v3682
    %3684 = vmatmul.f32.gmra.mxu0 %v729
    %v3685 = vpop.f32.mrf.mxu0
    %v3686 = vadd.f32 %v3594, %v3685
    %3687 = vmatmul.f32.gmra.mxu0 %v738
    %v3688 = vpop.f32.mrf.mxu0
    %v3689 = vadd.f32 %v3597, %v3688
    %3690 = vmatmul.f32.gmra.mxu0 %v747
    %v3691 = vpop.f32.mrf.mxu0
    %v3692 = vadd.f32 %v3600, %v3691
    %3693 = vmatmul.f32.gmra.mxu0 %v756
    %v3694 = vpop.f32.mrf.mxu0
    %v3695 = vadd.f32 %v3603, %v3694
    %3696 = vmatmul.f32.gmra.mxu0 %v765
    %v3697 = vpop.f32.mrf.mxu0
    %v3698 = vadd.f32 %v3606, %v3697
    %3699 = vmatmul.f32.gmra.mxu0 %v774
    %v3700 = vpop.f32.mrf.mxu0
    %v3701 = vadd.f32 %v3609, %v3700
    %3702 = vmatmul.f32.gmra.mxu0 %v783
    %v3703 = vpop.f32.mrf.mxu0
    %v3704 = vadd.f32 %v3612, %v3703
    %3705 = vmatmul.f32.gmra.mxu0 %v792
    %v3706 = vpop.f32.mrf.mxu0
    %v3707 = vadd.f32 %v3615, %v3706
    %3708 = vdwg.mxu0
    %v3709 = vmul.f32 %v2807, %v3635
    %v3710 = vmul.f32 %v2810, %v3638
    %v3711 = vmul.f32 %v2813, %v3641
    %v3712 = vmul.f32 %v2816, %v3644
    %v3713 = vmul.f32 %v2819, %v3647
    %v3714 = vmul.f32 %v2822, %v3650
    %v3715 = vmul.f32 %v2825, %v3653
    %v3716 = vmul.f32 %v2828, %v3656
    %v3717 = vmul.f32 %v2831, %v3659
    %v3718 = vmul.f32 %v2834, %v3662
    %v3719 = vmul.f32 %v2837, %v3665
    %v3720 = vmul.f32 %v2840, %v3668
    %v3721 = vmul.f32 %v2843, %v3671
    %v3722 = vmul.f32 %v2846, %v3674
    %v3723 = vmul.f32 %v2849, %v3677
    %v3724 = vmul.f32 %v2852, %v3680
    %v3725 = vmul.f32 %v2855, %v3683
    %v3726 = vmul.f32 %v2858, %v3686
    %v3727 = vmul.f32 %v2861, %v3689
    %v3728 = vmul.f32 %v2864, %v3692
    %v3729 = vmul.f32 %v2867, %v3695
    %v3730 = vmul.f32 %v2870, %v3698
    %v3731 = vmul.f32 %v2873, %v3701
    %v3732 = vmul.f32 %v2876, %v3704
    %v3733 = vmul.f32 %v2879, %v3707
    %v3734 = vadd.f32 %v1979, %v3709
    %v3735 = vadd.f32 %v1982, %v3710
    %v3736 = vadd.f32 %v1985, %v3711
    %v3737 = vadd.f32 %v1988, %v3712
    %v3738 = vadd.f32 %v1991, %v3713
    %v3739 = vadd.f32 %v1994, %v3714
    %v3740 = vadd.f32 %v1997, %v3715
    %v3741 = vadd.f32 %v2000, %v3716
    %v3742 = vadd.f32 %v2003, %v3717
    %v3743 = vadd.f32 %v2006, %v3718
    %v3744 = vadd.f32 %v2009, %v3719
    %v3745 = vadd.f32 %v2012, %v3720
    %v3746 = vadd.f32 %v2015, %v3721
    %v3747 = vadd.f32 %v2018, %v3722
    %v3748 = vadd.f32 %v2021, %v3723
    %v3749 = vadd.f32 %v2024, %v3724
    %v3750 = vadd.f32 %v2027, %v3725
    %v3751 = vadd.f32 %v2030, %v3726
    %v3752 = vadd.f32 %v2033, %v3727
    %v3753 = vadd.f32 %v2036, %v3728
    %v3754 = vadd.f32 %v2039, %v3729
    %v3755 = vadd.f32 %v2042, %v3730
    %v3756 = vadd.f32 %v2045, %v3731
    %v3757 = vadd.f32 %v2048, %v3732
    %v3758 = vadd.f32 %v2051, %v3733
    %v3759 = vmul.f32 %v3734, 1.442695
    %v3760 = vpow.pop %v3759
    %v3761 = vmul.f32 %v3735, 1.442695
    %v3762 = vpow.pop %v3761
    %v3763 = vmul.f32 %v3736, 1.442695
    %v3764 = vpow.pop %v3763
    %v3765 = vmul.f32 %v3737, 1.442695
    %v3766 = vpow.pop %v3765
    %v3767 = vmul.f32 %v3738, 1.442695
    %v3768 = vpow.pop %v3767
    %v3769 = vmul.f32 %v3739, 1.442695
    %v3770 = vpow.pop %v3769
    %v3771 = vmul.f32 %v3740, 1.442695
    %v3772 = vpow.pop %v3771
    %v3773 = vmul.f32 %v3741, 1.442695
    %v3774 = vpow.pop %v3773
    %v3775 = vmul.f32 %v3742, 1.442695
    %v3776 = vpow.pop %v3775
    %v3777 = vmul.f32 %v3743, 1.442695
    %v3778 = vpow.pop %v3777
    %v3779 = vmul.f32 %v3744, 1.442695
    %v3780 = vpow.pop %v3779
    %v3781 = vmul.f32 %v3745, 1.442695
    %v3782 = vpow.pop %v3781
    %v3783 = vmul.f32 %v3746, 1.442695
    %v3784 = vpow.pop %v3783
    %v3785 = vmul.f32 %v3747, 1.442695
    %v3786 = vpow.pop %v3785
    %v3787 = vmul.f32 %v3748, 1.442695
    %v3788 = vpow.pop %v3787
    %v3789 = vmul.f32 %v3749, 1.442695
    %v3790 = vpow.pop %v3789
    %v3791 = vmul.f32 %v3750, 1.442695
    %v3792 = vpow.pop %v3791
    %v3793 = vmul.f32 %v3751, 1.442695
    %v3794 = vpow.pop %v3793
    %v3795 = vmul.f32 %v3752, 1.442695
    %v3796 = vpow.pop %v3795
    %v3797 = vmul.f32 %v3753, 1.442695
    %v3798 = vpow.pop %v3797
    %v3799 = vmul.f32 %v3754, 1.442695
    %v3800 = vpow.pop %v3799
    %v3801 = vmul.f32 %v3755, 1.442695
    %v3802 = vpow.pop %v3801
    %v3803 = vmul.f32 %v3756, 1.442695
    %v3804 = vpow.pop %v3803
    %v3805 = vmul.f32 %v3757, 1.442695
    %v3806 = vpow.pop %v3805
    %v3807 = vmul.f32 %v3758, 1.442695
    %v3808 = vpow.pop %v3807
    %3809 = vst [vmem:[#allocation10] sm:$0xff] %v3760
    %3810 = vst [vmem:[#allocation10 + $0x8] sm:$0xff] %v3762
    %3811 = vst [vmem:[#allocation10 + $0x10] sm:$0xff] %v3764
    %3812 = vst [vmem:[#allocation10 + $0x18] sm:$0xff] %v3766
    %3813 = vst [vmem:[#allocation10 + $0x20] sm:$0xff] %v3768
    %3814 = vst [vmem:[#allocation10 + $0x28] sm:$0xff] %v3770
    %3815 = vst [vmem:[#allocation10 + $0x30] sm:$0xff] %v3772
    %3816 = vst [vmem:[#allocation10 + $0x38] sm:$0xff] %v3774
    %3817 = vst [vmem:[#allocation10 + $0x40] sm:$0xff] %v3776
    %3818 = vst [vmem:[#allocation10 + $0x48] sm:$0xff] %v3778
    %3819 = vst [vmem:[#allocation10 + $0x50] sm:$0xff] %v3780
    %3820 = vst [vmem:[#allocation10 + $0x58] sm:$0xff] %v3782
    %3821 = vst [vmem:[#allocation10 + $0x60] sm:$0xff] %v3784
    %3822 = vst [vmem:[#allocation10 + $0x68] sm:$0xff] %v3786
    %3823 = vst [vmem:[#allocation10 + $0x70] sm:$0xff] %v3788
    %3824 = vst [vmem:[#allocation10 + $0x78] sm:$0xff] %v3790
    %3825 = vst [vmem:[#allocation10 + $0x80] sm:$0xff] %v3792
    %3826 = vst [vmem:[#allocation10 + $0x88] sm:$0xff] %v3794
    %3827 = vst [vmem:[#allocation10 + $0x90] sm:$0xff] %v3796
    %3828 = vst [vmem:[#allocation10 + $0x98] sm:$0xff] %v3798
    %3829 = vst [vmem:[#allocation10 + $0xa0] sm:$0xff] %v3800
    %3830 = vst [vmem:[#allocation10 + $0xa8] sm:$0xff] %v3802
    %3831 = vst [vmem:[#allocation10 + $0xb0] sm:$0xff] %v3804
    %3832 = vst [vmem:[#allocation10 + $0xb8] sm:$0xff] %v3806
    %3833 = vst [vmem:[#allocation10 + $0xc0] sm:$0xff] %v3808
    // Predicated region
    $region26: #{tpu_custom_call.1} parent=1 // pred_check
      _
    $region27: #{tpu_custom_call.1} parent=1 // pred_check_branch
      %3835 = sbr.rel (0) target = $region29
    $region28: #{tpu_custom_call.1} parent=1 // pred_region
      %3837 = vsyncadd [#allocation6], 0
      %s3838 = sshll.u32 [#allocation10], 4
      %s3839 = int_to_ptr.vmem [resolvable:$true] %s3838
      %s3840 = sshll.u32 %s3, 4
      %s3841 = int_to_ptr.hbm [resolvable:$true] %s3840
      %3846 = dma.vmem_to_hbm [thread:$0]  %s3839, 3200, %s3841, [#allocation6], 128, 128, 8
    $region29: #{tpu_custom_call.1} parent=1 // pred_fallthru
      _
    // Predicated region
    $region30: #{tpu_custom_call.1} parent=1 // pred_check
      _
    $region31: #{tpu_custom_call.1} parent=1 // pred_check_branch
      %3848 = sbr.rel (0) target = $region33
    $region32: #{tpu_custom_call.1} parent=1 // pred_region
      %3850 = dma.done [#allocation6], 3200
    $region33: #{tpu_custom_call.1} parent=1 // pred_fallthru
      _
    %3851 = vsyncpa [#allocation5], 1
    %3852 = vsyncpa [#allocation8], 1
    %3853 = vsyncpa [#allocation6], 1

</llo_original>
